<compile_context>
chip_gen: v7x
topology: tpu7x:2x2x1
jax: 0.10.0
libtpu: 0.0.40
codegen_flags: <defaults>
</compile_context>

<pallas_src>
import functools

import numpy as np
import jax
import jax.numpy as jnp
from jax import lax
from jax.experimental import pallas as pl
from jax.experimental.pallas import tpu as pltpu

EMBED = 8
HEADS = 8
SEQ = 200
LN_EPS = 1e-5


def att_kernel(cq_ref, bq_ref, ck_ref, bk_ref, cv_ref, bv_ref, wom_ref, bom_ref,
               x_ref, lnw_ref, lnb_ref,
               we1_ref, be1_ref, we2_ref, be2_ref,
               wd1_ref, bd1_ref, wd2_ref, bd2_ref,
               out_ref, sim_ref,
               *, total_b, block_b, nb_inner, needs_mask, score_dtype):
    c = pl.program_id(0)          # "parallel" core axis
    i = pl.program_id(1)          # "arbitrary" batch-block axis (sim block is resident)

    x = x_ref[...]                # (Bb, L) f32, lane-dense
    Bb, L = x.shape

    # Zero the per-core similarity accumulator on the first visit of its block.
    @pl.when(i == 0)
    def _():
        sim_ref[...] = jnp.zeros_like(sim_ref)

    if needs_mask:
        row0 = (c * nb_inner + i) * block_b
        rows = row0 + lax.broadcasted_iota(jnp.int32, (Bb, 1), 0)
        validf = (rows < total_b).astype(jnp.float32)            # (Bb, 1)
    else:
        validf = None

    def one_head(h, y):
        # Scalar-affine q/k/v: every embedding channel of the repeated input is x.
        qh = x * cq_ref[h] + bq_ref[h]                            # (Bb, L)
        kh = x * ck_ref[h] + bk_ref[h]
        vh = x * cv_ref[h] + bv_ref[h]

        # Exact row-max of the rank-1 score matrix without an (Bb,L,L) reduction.
        kmax = jnp.max(kh, axis=-1, keepdims=True)
        kmin = jnp.min(kh, axis=-1, keepdims=True)
        m = jnp.where(qh >= 0.0, qh * kmax, qh * kmin)            # (Bb, L)

        qs = qh.astype(score_dtype)
        ks = kh.astype(score_dtype)
        vs = vh.astype(score_dtype)

        # Un-normalised softmax weights; never materialise the raw scores separately.
        e = jnp.exp(qs[:, :, None] * ks[:, None, :]
                    - m.astype(score_dtype)[:, :, None])          # (Bb, L, L)

        # One batched MXU contraction gives both the softmax denominator (ones column)
        # and the un-normalised context (v_h column); accumulation in f32.
        rhs = jnp.stack([jnp.ones_like(vs), vs], axis=-1)         # (Bb, L, 2)
        red = jnp.einsum('bqk,bkn->bqn', e, rhs,
                         preferred_element_type=jnp.float32)      # (Bb, L, 2)
        denom = red[..., 0]
        inv = pl.reciprocal(denom, approx=True)                   # EUP slot
        inv = inv * (2.0 - denom * inv)                           # one Newton step -> ~exact
        ctx = red[..., 1] * inv                                   # (Bb, L)

        y = y + ctx * wom_ref[h]                                  # folded out_proj row-mean

        # Similarity: softmax rows summed over the batch rows of this block.
        # Padded rows are masked by folding validity into the per-row reciprocal.
        inv_sim = inv * validf if needs_mask else inv
        sim_ref[...] += jnp.sum(e * inv_sim[:, :, None], axis=0)  # f32 (L, L)
        return y

    # fori_loop bounds the per-head live set; body manually unrolled by 2 heads.
    def head_pair(j, y):
        y = one_head(2 * j, y)
        y = one_head(2 * j + 1, y)
        return y

    y = lax.fori_loop(0, HEADS // 2, head_pair, jnp.zeros((Bb, L), jnp.float32))
    y = y + bom_ref[0]                                            # folded mean of out_proj bias

    # LayerNorm(200)
    mu = jnp.mean(y, axis=-1, keepdims=True)
    var = jnp.mean(jnp.square(y - mu), axis=-1, keepdims=True)
    yn = (y - mu) * lax.rsqrt(var + LN_EPS)
    yn = yn * lnw_ref[...] + lnb_ref[...]

    # encoder 200 -> 128 -> 64 ; decoder 64 -> 128 -> 200
    h1 = jnp.maximum(jnp.dot(yn, we1_ref[...],
                             preferred_element_type=jnp.float32) + be1_ref[...], 0.0)
    h2 = jnp.dot(h1, we2_ref[...], preferred_element_type=jnp.float32) + be2_ref[...]
    h3 = jnp.maximum(jnp.dot(h2, wd1_ref[...],
                             preferred_element_type=jnp.float32) + bd1_ref[...], 0.0)
    out_ref[...] = jnp.dot(h3, wd2_ref[...],
                           preferred_element_type=jnp.float32) + bd2_ref[...]


def _plan_batch_blocks(B, cap=16):
    """Return (block_b, n_cores, nb_inner, padded_B).

    Batch blocks are either equal to the full (unpadded) batch dim or a multiple
    of 8, so the BlockSpec stays (8,128)-friendly.
    """
    cap = max(8, (cap // 8) * 8)
    if B <= cap:
        if B >= 16 and B % 16 == 0:          # e.g. B == 16: two aligned blocks -> both v7x cores
            return B // 2, 2, 1, B
        return B, 1, 1, B                    # single block == full array dim
    block_b = cap
    nb = -(-B // block_b)
    n_cores = 2
    nb = n_cores * (-(-nb // n_cores))       # blocks per core balanced
    return block_b, n_cores, nb // n_cores, nb * block_b


def _score_dtype(force_f32):
    if force_f32:
        return jnp.float32
    try:
        kind = jax.devices()[0].device_kind.lower()
    except Exception:
        return jnp.float32
    # bf16 VALU/EUP exist on v6e/v7x; v5e and older have none -> keep f32 there.
    return jnp.bfloat16 if ("v6" in kind or "v7" in kind) else jnp.float32


def att_forward(x, params, *, force_f32_scores=False, block_cap=16):
    (wq, bq, wk, bk, wv, bv, wo, bo, lnw, lnb,
     we1, be1, we2, be2, wd1, bd1, wd2, bd2) = params
    B, L = x.shape
    assert L == SEQ

    # Tiny algebraic folds, computed once outside the kernel (live in SMEM).
    cq = jnp.sum(wq, axis=0)                 # (8,) column sums of Wq
    ck = jnp.sum(wk, axis=0)
    cv = jnp.sum(wv, axis=0)
    bqv = bq.reshape(-1)                     # (8,)
    bkv = bk.reshape(-1)
    bvv = bv.reshape(-1)
    wom = jnp.mean(wo, axis=1)               # (8,)  out_proj rows averaged over out channels
    bom = jnp.mean(bo).reshape(1)            # (1,)

    score_dtype = _score_dtype(force_f32_scores)
    block_b, n_cores, nb_inner, padded_B = _plan_batch_blocks(B, block_cap)
    if padded_B != B:
        x = jnp.pad(x, ((0, padded_B - B), (0, 0)))

    kernel = functools.partial(
        att_kernel, total_b=B, block_b=block_b, nb_inner=nb_inner,
        needs_mask=(padded_B != B), score_dtype=score_dtype)

    smem = pl.BlockSpec(memory_space=pltpu.MemorySpace.SMEM)

    def resident(arr):
        zeros = (0,) * arr.ndim
        return pl.BlockSpec(arr.shape, lambda c, i: zeros)   # DMA'd once, stays in VMEM

    weights = (lnw, lnb, we1, be1, we2, be2, wd1, bd1, wd2, bd2)

    score_bytes = 2 if score_dtype == jnp.bfloat16 else 4
    vmem_limit = int(min(48 << 20,
                         max(24 << 20, (8 << 20) + 6 * block_b * SEQ * SEQ * score_bytes)))

    mlp_flops = 2 * (SEQ * 128 + 128 * 64 + 64 * 128 + 128 * SEQ)
    attn_flops = HEADS * 6 * SEQ * SEQ
    weight_bytes = 4 * sum(int(np.prod(w.shape)) for w in weights)
    cost = pl.CostEstimate(
        flops=int(padded_B * (attn_flops + mlp_flops)),
        transcendentals=int(padded_B * HEADS * SEQ * SEQ),
        bytes_accessed=int(4 * padded_B * SEQ * 2 + 4 * n_cores * SEQ * SEQ + weight_bytes))

    out, sim_partial = pl.pallas_call(
        kernel,
        grid=(n_cores, nb_inner),
        out_shape=(jax.ShapeDtypeStruct((padded_B, SEQ), jnp.float32),
                   jax.ShapeDtypeStruct((n_cores, SEQ, SEQ), jnp.float32)),
        in_specs=(
            [smem] * 8                                                   # folded per-head scalars
            + [pl.BlockSpec((block_b, SEQ), lambda c, i: (c * nb_inner + i, 0))]  # x
            + [resident(w) for w in weights]),                           # LN + MLP weights
        out_specs=(
            pl.BlockSpec((block_b, SEQ), lambda c, i: (c * nb_inner + i, 0)),
            pl.BlockSpec((None, SEQ, SEQ), lambda c, i: (c, 0, 0))),     # per-core sim accumulator
        compiler_params=pltpu.CompilerParams(
            dimension_semantics=("parallel", "arbitrary"),
            vmem_limit_bytes=vmem_limit),
        cost_estimate=cost,
    )(cq, bqv, ck, bkv, cv, bvv, wom, bom, x, *weights)

    # attentions.mean(heads).mean(batch) == sum over (head, batch) / (HEADS * B)
    sim = jnp.sum(sim_partial, axis=0) * (1.0 / (HEADS * B))
    if padded_B != B:
        out = out[:B]
    return out, sim


def att_reference(x, params):
    """Pure-JAX reference with identical parameterisation (weights stored as (in, out))."""
    (wq, bq, wk, bk, wv, bv, wo, bo, lnw, lnb,
     we1, be1, we2, be2, wd1, bd1, wd2, bd2) = params
    X = jnp.repeat(x[:, :, None], EMBED, axis=2)                  # (B, L, 8)
    q = X @ wq + bq
    k = X @ wk + bk
    v = X @ wv + bv
    s = jnp.einsum('bqh,bkh->bhqk', q, k)                         # head_dim=1 -> scale 1
    a = jax.nn.softmax(s, axis=-1)                                # (B, H, L, L)
    ctx = jnp.einsum('bhqk,bkh->bqh', a, v)                       # (B, L, 8)
    y = (ctx @ wo + bo).mean(axis=2)                              # (B, L)
    mu = y.mean(-1, keepdims=True)
    var = ((y - mu) ** 2).mean(-1, keepdims=True)
    yn = (y - mu) / jnp.sqrt(var + LN_EPS) * lnw + lnb
    h1 = jax.nn.relu(yn @ we1 + be1)
    h2 = h1 @ we2 + be2
    h3 = jax.nn.relu(h2 @ wd1 + bd1)
    out = h3 @ wd2 + bd2
    sim = a.mean(axis=1).mean(axis=0)
    return out, sim


def init_params(key):
    E = EMBED
    ks = list(jax.random.split(key, 16))

    def lin(kw, kb, fan_in, fan_out):
        bound = 1.0 / np.sqrt(fan_in)
        w = jax.random.uniform(kw, (fan_in, fan_out), jnp.float32, -bound, bound)
        b = jax.random.uniform(kb, (1, fan_out), jnp.float32, -bound, bound)
        return w, b

    # MHA in/out projections, stored transposed as (in, out)
    wq, bq = lin(ks[0], ks[1], E, E)
    wk, bk = lin(ks[2], ks[3], E, E)
    wv, bv = lin(ks[4], ks[5], E, E)
    wo, bo = lin(ks[6], ks[7], E, E)
    # LayerNorm(200): default gamma=1, beta=0
    lnw = jnp.ones((1, SEQ), jnp.float32)
    lnb = jnp.zeros((1, SEQ), jnp.float32)
    # encoder / decoder
    we1, be1 = lin(ks[8], ks[9], SEQ, 128)
    we2, be2 = lin(ks[10], ks[11], 128, 64)
    wd1, bd1 = lin(ks[12], ks[13], 64, 128)
    wd2, bd2 = lin(ks[14], ks[15], 128, SEQ)
    return (wq, bq, wk, bk, wv, bv, wo, bo, lnw, lnb,
            we1, be1, we2, be2, wd1, bd1, wd2, bd2)


if __name__ == "__main__":
    key = jax.random.PRNGKey(0)
    kx, kp = jax.random.split(key)
    B = 2
    x = jax.random.normal(kx, (B, SEQ), jnp.float32)
    params = init_params(kp)

    def run(force_f32):
        fn = jax.jit(functools.partial(att_forward, force_f32_scores=force_f32))
        res = fn(x, params)
        jax.block_until_ready(res)
        return res

    # f32-score path (near-exact) checked against the pure-JAX reference.
    out, sim = run(True)
    ref_out, ref_sim = jax.jit(att_reference)(x, params)
    jax.block_until_ready((ref_out, ref_sim))
    np.testing.assert_allclose(np.asarray(out), np.asarray(ref_out), rtol=5e-3, atol=1e-4)
    np.testing.assert_allclose(np.asarray(sim), np.asarray(ref_sim), rtol=5e-3, atol=1e-4)

    # Chip-default path (bf16 score/exp math on v6e/v7x); fall back to f32 result if it
    # cannot lower on this chip/toolchain.
    if _score_dtype(False) == jnp.bfloat16:
        try:
            out, sim = run(False)
        except Exception:
            pass

    assert out.shape == (B, SEQ) and out.dtype == jnp.float32
    assert sim.shape == (SEQ, SEQ) and sim.dtype == jnp.float32
    assert bool(jnp.all(jnp.isfinite(out))) and bool(jnp.all(jnp.isfinite(sim)))
    print("KERNEL_OK")
</pallas_src>

<mosaic_0001>
module attributes {stable_mosaic.version = 11 : i64} {
  func.func @att_kernel(%arg0: i32, %arg1: i32, %arg2: memref<8xf32, #tpu.memory_space<smem>>, %arg3: memref<8xf32, #tpu.memory_space<smem>>, %arg4: memref<8xf32, #tpu.memory_space<smem>>, %arg5: memref<8xf32, #tpu.memory_space<smem>>, %arg6: memref<8xf32, #tpu.memory_space<smem>>, %arg7: memref<8xf32, #tpu.memory_space<smem>>, %arg8: memref<8xf32, #tpu.memory_space<smem>>, %arg9: memref<1xf32, #tpu.memory_space<smem>>, %arg10: memref<2x200xf32, #tpu.memory_space<vmem>>, %arg11: memref<1x200xf32, #tpu.memory_space<vmem>>, %arg12: memref<1x200xf32, #tpu.memory_space<vmem>>, %arg13: memref<200x128xf32, #tpu.memory_space<vmem>>, %arg14: memref<1x128xf32, #tpu.memory_space<vmem>>, %arg15: memref<128x64xf32, #tpu.memory_space<vmem>>, %arg16: memref<1x64xf32, #tpu.memory_space<vmem>>, %arg17: memref<64x128xf32, #tpu.memory_space<vmem>>, %arg18: memref<1x128xf32, #tpu.memory_space<vmem>>, %arg19: memref<128x200xf32, #tpu.memory_space<vmem>>, %arg20: memref<1x200xf32, #tpu.memory_space<vmem>>, %arg21: memref<2x200xf32, #tpu.memory_space<vmem>>, %arg22: memref<1x200x200xf32, #tpu.memory_space<vmem>>) attributes {dimension_semantics = [#tpu.dimension_semantics<parallel>, #tpu.dimension_semantics<arbitrary>], iteration_bounds = array<i64: 1, 1>, scalar_prefetch = 0 : i64, scratch_operands = 0 : i64, tpu.core_type = #tpu.core_type<tc>, window_params = [{transform_indices = @transform_0, window_bounds = array<i64: 8>}, {transform_indices = @transform_1, window_bounds = array<i64: 8>}, {transform_indices = @transform_2, window_bounds = array<i64: 8>}, {transform_indices = @transform_3, window_bounds = array<i64: 8>}, {transform_indices = @transform_4, window_bounds = array<i64: 8>}, {transform_indices = @transform_5, window_bounds = array<i64: 8>}, {transform_indices = @transform_6, window_bounds = array<i64: 8>}, {transform_indices = @transform_7, window_bounds = array<i64: 1>}, {transform_indices = @transform_8, window_bounds = array<i64: 2, 200>}, {pipeline_mode = #tpu.pipeline_mode<synchronous>, transform_indices = @transform_9, window_bounds = array<i64: 1, 200>}, {pipeline_mode = #tpu.pipeline_mode<synchronous>, transform_indices = @transform_10, window_bounds = array<i64: 1, 200>}, {pipeline_mode = #tpu.pipeline_mode<synchronous>, transform_indices = @transform_11, window_bounds = array<i64: 200, 128>}, {pipeline_mode = #tpu.pipeline_mode<synchronous>, transform_indices = @transform_12, window_bounds = array<i64: 1, 128>}, {pipeline_mode = #tpu.pipeline_mode<synchronous>, transform_indices = @transform_13, window_bounds = array<i64: 128, 64>}, {pipeline_mode = #tpu.pipeline_mode<synchronous>, transform_indices = @transform_14, window_bounds = array<i64: 1, 64>}, {pipeline_mode = #tpu.pipeline_mode<synchronous>, transform_indices = @transform_15, window_bounds = array<i64: 64, 128>}, {pipeline_mode = #tpu.pipeline_mode<synchronous>, transform_indices = @transform_16, window_bounds = array<i64: 1, 128>}, {pipeline_mode = #tpu.pipeline_mode<synchronous>, transform_indices = @transform_17, window_bounds = array<i64: 128, 200>}, {pipeline_mode = #tpu.pipeline_mode<synchronous>, transform_indices = @transform_18, window_bounds = array<i64: 1, 200>}, {transform_indices = @transform_19, window_bounds = array<i64: 2, 200>}, {transform_indices = @transform_20, window_bounds = array<i64: 1, 200, 200>}]} {
    %c0 = arith.constant 0 : index
    %c0_0 = arith.constant 0 : index
    %0 = vector.load %arg10[%c0, %c0_0] : memref<2x200xf32, #tpu.memory_space<vmem>>, vector<2x200xf32>
    %c0_i32 = arith.constant 0 : i32
    %1 = arith.cmpi eq, %arg1, %c0_i32 : i32
    %2 = arith.extui %1 : i1 to i32
    %c0_i32_1 = arith.constant 0 : i32
    %3 = arith.cmpi ne, %2, %c0_i32_1 : i32
    scf.if %3 {
      %cst_38 = arith.constant 0.000000e+00 : f32
      %59 = vector.broadcast %cst_38 : f32 to vector<200x200xf32>
      %c0_39 = arith.constant 0 : index
      %c0_40 = arith.constant 0 : index
      %c0_41 = arith.constant 0 : index
      %60 = vector.load %arg22[%c0_39, %c0_40, %c0_41] : memref<1x200x200xf32, #tpu.memory_space<vmem>>, vector<1x200x200xf32>
      %61 = vector.shape_cast %60 : vector<1x200x200xf32> to vector<200x200xf32>
      %62 = vector.shape_cast %59 : vector<200x200xf32> to vector<1x200x200xf32>
      tpu.vector_store %arg22[%c0_39, %c0_40, %c0_41], %62 {strides = array<i32>} : memref<1x200x200xf32, #tpu.memory_space<vmem>>, vector<1x200x200xf32>,
    } else {
    }
    %cst = arith.constant 0.000000e+00 : f32
    %4 = vector.broadcast %cst : f32 to vector<2x200xf32>
    %c0_i32_2 = arith.constant 0 : i32
    %c4_i32 = arith.constant 4 : i32
    %5 = arith.addi %c0_i32_2, %c4_i32 : i32
    %c1_i32 = arith.constant 1 : i32
    %6 = scf.for %arg23 = %c0_i32_2 to %5 step %c1_i32 iter_args(%arg24 = %4) -> (vector<2x200xf32>)  : i32 {
      %c2_i32 = arith.constant 2 : i32
      %59 = arith.muli %c2_i32, %arg23 : i32
      %60 = arith.index_cast %59 : i32 to index
      %61 = memref.load %arg2[%60] : memref<8xf32, #tpu.memory_space<smem>>
      %62 = vector.broadcast %61 : f32 to vector<2x200xf32>
      %63 = arith.mulf %0, %62 : vector<2x200xf32>
      %64 = arith.index_cast %59 : i32 to index
      %65 = memref.load %arg3[%64] : memref<8xf32, #tpu.memory_space<smem>>
      %66 = vector.broadcast %65 : f32 to vector<2x200xf32>
      %67 = arith.addf %63, %66 : vector<2x200xf32>
      %68 = arith.index_cast %59 : i32 to index
      %69 = memref.load %arg4[%68] : memref<8xf32, #tpu.memory_space<smem>>
      %70 = vector.broadcast %69 : f32 to vector<2x200xf32>
      %71 = arith.mulf %0, %70 : vector<2x200xf32>
      %72 = arith.index_cast %59 : i32 to index
      %73 = memref.load %arg5[%72] : memref<8xf32, #tpu.memory_space<smem>>
      %74 = vector.broadcast %73 : f32 to vector<2x200xf32>
      %75 = arith.addf %71, %74 : vector<2x200xf32>
      %76 = arith.index_cast %59 : i32 to index
      %77 = memref.load %arg6[%76] : memref<8xf32, #tpu.memory_space<smem>>
      %78 = vector.broadcast %77 : f32 to vector<2x200xf32>
      %79 = arith.mulf %0, %78 : vector<2x200xf32>
      %80 = arith.index_cast %59 : i32 to index
      %81 = memref.load %arg7[%80] : memref<8xf32, #tpu.memory_space<smem>>
      %82 = vector.broadcast %81 : f32 to vector<2x200xf32>
      %83 = arith.addf %79, %82 : vector<2x200xf32>
      %cst_38 = arith.constant dense<0xFF800000> : vector<2xf32>
      %84 = vector.multi_reduction <maximumf>, %75, %cst_38 [1] : vector<2x200xf32> to vector<2xf32>
      %85 = vector.shape_cast %84 : vector<2xf32> to vector<2x1xf32>
      %cst_39 = arith.constant dense<0x7F800000> : vector<2xf32>
      %86 = vector.multi_reduction <minimumf>, %75, %cst_39 [1] : vector<2x200xf32> to vector<2xf32>
      %87 = vector.shape_cast %86 : vector<2xf32> to vector<2x1xf32>
      %cst_40 = arith.constant 0.000000e+00 : f32
      %88 = vector.broadcast %cst_40 : f32 to vector<2x200xf32>
      %89 = arith.cmpf oge, %67, %88 : vector<2x200xf32>
      %90 = vector.broadcast %85 : vector<2x1xf32> to vector<2x200xf32>
      %91 = arith.mulf %67, %90 : vector<2x200xf32>
      %92 = vector.broadcast %87 : vector<2x1xf32> to vector<2x200xf32>
      %93 = arith.mulf %67, %92 : vector<2x200xf32>
      %94 = arith.select %89, %91, %93 : vector<2x200xi1>, vector<2x200xf32>
      %95 = vector.shape_cast %67 : vector<2x200xf32> to vector<2x200x1xf32>
      %96 = vector.shape_cast %75 : vector<2x200xf32> to vector<2x1x200xf32>
      %97 = vector.broadcast %95 : vector<2x200x1xf32> to vector<2x200x200xf32>
      %98 = vector.broadcast %96 : vector<2x1x200xf32> to vector<2x200x200xf32>
      %99 = arith.mulf %97, %98 : vector<2x200x200xf32>
      %100 = vector.shape_cast %94 : vector<2x200xf32> to vector<2x200x1xf32>
      %101 = vector.broadcast %100 : vector<2x200x1xf32> to vector<2x200x200xf32>
      %102 = arith.subf %99, %101 : vector<2x200x200xf32>
      %103 = math.exp %102 : vector<2x200x200xf32>
      %cst_41 = arith.constant 1.000000e+00 : f32
      %104 = vector.broadcast %cst_41 : f32 to vector<2x200xf32>
      %105 = vector.shape_cast %104 : vector<2x200xf32> to vector<2x200x1xf32>
      %106 = vector.shape_cast %83 : vector<2x200xf32> to vector<2x200x1xf32>
      %107 = tpu.concatenate %105, %106 in 2 : vector<2x200x1xf32>, vector<2x200x1xf32> -> vector<2x200x2xf32>
      "tpu.trace_start"() <{level = 10 : i32, message = "bqk,bkn->bqn"}> : () -> ()
      %cst_42 = arith.constant dense<0.000000e+00> : vector<2x200x2xf32>
      %108 = tpu.matmul %103, %107, %cst_42 {dimension_numbers = #tpu.dot_dimension_numbers<[2], [1], [1], [2], [0, 0, 0, 1, 1, 2], [0], [0]>} : vector<2x200x200xf32>, vector<2x200x2xf32>, vector<2x200x2xf32> -> vector<2x200x2xf32>
      "tpu.trace_stop"() : () -> ()
      %109 = vector.extract_strided_slice %108 {offsets = [0, 0, 0], sizes = [2, 200, 1], strides = [1, 1, 1]} : vector<2x200x2xf32> to vector<2x200x1xf32>
      %110 = vector.shape_cast %109 : vector<2x200x1xf32> to vector<2x200xf32>
      %111 = tpu.reciprocal %110 {approx = true} : vector<2x200xf32> -> vector<2x200xf32>
      %112 = arith.mulf %110, %111 : vector<2x200xf32>
      %cst_43 = arith.constant 2.000000e+00 : f32
      %113 = vector.broadcast %cst_43 : f32 to vector<2x200xf32>
      %114 = arith.subf %113, %112 : vector<2x200xf32>
      %115 = arith.mulf %111, %114 : vector<2x200xf32>
      %116 = vector.extract_strided_slice %108 {offsets = [0, 0, 1], sizes = [2, 200, 1], strides = [1, 1, 1]} : vector<2x200x2xf32> to vector<2x200x1xf32>
      %117 = vector.shape_cast %116 : vector<2x200x1xf32> to vector<2x200xf32>
      %118 = arith.mulf %117, %115 : vector<2x200xf32>
      %119 = arith.index_cast %59 : i32 to index
      %120 = memref.load %arg8[%119] : memref<8xf32, #tpu.memory_space<smem>>
      %121 = vector.broadcast %120 : f32 to vector<2x200xf32>
      %122 = arith.mulf %118, %121 : vector<2x200xf32>
      %123 = arith.addf %arg24, %122 : vector<2x200xf32>
      %c0_44 = arith.constant 0 : index
      %c0_45 = arith.constant 0 : index
      %c0_46 = arith.constant 0 : index
      %124 = vector.load %arg22[%c0_44, %c0_45, %c0_46] : memref<1x200x200xf32, #tpu.memory_space<vmem>>, vector<1x200x200xf32>
      %125 = vector.shape_cast %124 : vector<1x200x200xf32> to vector<200x200xf32>
      %126 = vector.shape_cast %115 : vector<2x200xf32> to vector<2x200x1xf32>
      %127 = vector.broadcast %126 : vector<2x200x1xf32> to vector<2x200x200xf32>
      %128 = arith.mulf %103, %127 : vector<2x200x200xf32>
      %cst_47 = arith.constant dense<0.000000e+00> : vector<200x200xf32>
      %129 = vector.multi_reduction <add>, %128, %cst_47 [0] : vector<2x200x200xf32> to vector<200x200xf32>
      %130 = arith.addf %125, %129 : vector<200x200xf32>
      %c0_48 = arith.constant 0 : index
      %c0_49 = arith.constant 0 : index
      %c0_50 = arith.constant 0 : index
      %131 = vector.load %arg22[%c0_48, %c0_49, %c0_50] : memref<1x200x200xf32, #tpu.memory_space<vmem>>, vector<1x200x200xf32>
      %132 = vector.shape_cast %131 : vector<1x200x200xf32> to vector<200x200xf32>
      %133 = vector.shape_cast %130 : vector<200x200xf32> to vector<1x200x200xf32>
      tpu.vector_store %arg22[%c0_48, %c0_49, %c0_50], %133 {strides = array<i32>} : memref<1x200x200xf32, #tpu.memory_space<vmem>>, vector<1x200x200xf32>,
      %c2_i32_51 = arith.constant 2 : i32
      %134 = arith.muli %c2_i32_51, %arg23 : i32
      %c1_i32_52 = arith.constant 1 : i32
      %135 = arith.addi %134, %c1_i32_52 : i32
      %136 = arith.index_cast %135 : i32 to index
      %137 = memref.load %arg2[%136] : memref<8xf32, #tpu.memory_space<smem>>
      %138 = vector.broadcast %137 : f32 to vector<2x200xf32>
      %139 = arith.mulf %0, %138 : vector<2x200xf32>
      %140 = arith.index_cast %135 : i32 to index
      %141 = memref.load %arg3[%140] : memref<8xf32, #tpu.memory_space<smem>>
      %142 = vector.broadcast %141 : f32 to vector<2x200xf32>
      %143 = arith.addf %139, %142 : vector<2x200xf32>
      %144 = arith.index_cast %135 : i32 to index
      %145 = memref.load %arg4[%144] : memref<8xf32, #tpu.memory_space<smem>>
      %146 = vector.broadcast %145 : f32 to vector<2x200xf32>
      %147 = arith.mulf %0, %146 : vector<2x200xf32>
      %148 = arith.index_cast %135 : i32 to index
      %149 = memref.load %arg5[%148] : memref<8xf32, #tpu.memory_space<smem>>
      %150 = vector.broadcast %149 : f32 to vector<2x200xf32>
      %151 = arith.addf %147, %150 : vector<2x200xf32>
      %152 = arith.index_cast %135 : i32 to index
      %153 = memref.load %arg6[%152] : memref<8xf32, #tpu.memory_space<smem>>
      %154 = vector.broadcast %153 : f32 to vector<2x200xf32>
      %155 = arith.mulf %0, %154 : vector<2x200xf32>
      %156 = arith.index_cast %135 : i32 to index
      %157 = memref.load %arg7[%156] : memref<8xf32, #tpu.memory_space<smem>>
      %158 = vector.broadcast %157 : f32 to vector<2x200xf32>
      %159 = arith.addf %155, %158 : vector<2x200xf32>
      %cst_53 = arith.constant dense<0xFF800000> : vector<2xf32>
      %160 = vector.multi_reduction <maximumf>, %151, %cst_53 [1] : vector<2x200xf32> to vector<2xf32>
      %161 = vector.shape_cast %160 : vector<2xf32> to vector<2x1xf32>
      %cst_54 = arith.constant dense<0x7F800000> : vector<2xf32>
      %162 = vector.multi_reduction <minimumf>, %151, %cst_54 [1] : vector<2x200xf32> to vector<2xf32>
      %163 = vector.shape_cast %162 : vector<2xf32> to vector<2x1xf32>
      %cst_55 = arith.constant 0.000000e+00 : f32
      %164 = vector.broadcast %cst_55 : f32 to vector<2x200xf32>
      %165 = arith.cmpf oge, %143, %164 : vector<2x200xf32>
      %166 = vector.broadcast %161 : vector<2x1xf32> to vector<2x200xf32>
      %167 = arith.mulf %143, %166 : vector<2x200xf32>
      %168 = vector.broadcast %163 : vector<2x1xf32> to vector<2x200xf32>
      %169 = arith.mulf %143, %168 : vector<2x200xf32>
      %170 = arith.select %165, %167, %169 : vector<2x200xi1>, vector<2x200xf32>
      %171 = vector.shape_cast %143 : vector<2x200xf32> to vector<2x200x1xf32>
      %172 = vector.shape_cast %151 : vector<2x200xf32> to vector<2x1x200xf32>
      %173 = vector.broadcast %171 : vector<2x200x1xf32> to vector<2x200x200xf32>
      %174 = vector.broadcast %172 : vector<2x1x200xf32> to vector<2x200x200xf32>
      %175 = arith.mulf %173, %174 : vector<2x200x200xf32>
      %176 = vector.shape_cast %170 : vector<2x200xf32> to vector<2x200x1xf32>
      %177 = vector.broadcast %176 : vector<2x200x1xf32> to vector<2x200x200xf32>
      %178 = arith.subf %175, %177 : vector<2x200x200xf32>
      %179 = math.exp %178 : vector<2x200x200xf32>
      %cst_56 = arith.constant 1.000000e+00 : f32
      %180 = vector.broadcast %cst_56 : f32 to vector<2x200xf32>
      %181 = vector.shape_cast %180 : vector<2x200xf32> to vector<2x200x1xf32>
      %182 = vector.shape_cast %159 : vector<2x200xf32> to vector<2x200x1xf32>
      %183 = tpu.concatenate %181, %182 in 2 : vector<2x200x1xf32>, vector<2x200x1xf32> -> vector<2x200x2xf32>
      "tpu.trace_start"() <{level = 10 : i32, message = "bqk,bkn->bqn"}> : () -> ()
      %cst_57 = arith.constant dense<0.000000e+00> : vector<2x200x2xf32>
      %184 = tpu.matmul %179, %183, %cst_57 {dimension_numbers = #tpu.dot_dimension_numbers<[2], [1], [1], [2], [0, 0, 0, 1, 1, 2], [0], [0]>} : vector<2x200x200xf32>, vector<2x200x2xf32>, vector<2x200x2xf32> -> vector<2x200x2xf32>
      "tpu.trace_stop"() : () -> ()
      %185 = vector.extract_strided_slice %184 {offsets = [0, 0, 0], sizes = [2, 200, 1], strides = [1, 1, 1]} : vector<2x200x2xf32> to vector<2x200x1xf32>
      %186 = vector.shape_cast %185 : vector<2x200x1xf32> to vector<2x200xf32>
      %187 = tpu.reciprocal %186 {approx = true} : vector<2x200xf32> -> vector<2x200xf32>
      %188 = arith.mulf %186, %187 : vector<2x200xf32>
      %cst_58 = arith.constant 2.000000e+00 : f32
      %189 = vector.broadcast %cst_58 : f32 to vector<2x200xf32>
      %190 = arith.subf %189, %188 : vector<2x200xf32>
      %191 = arith.mulf %187, %190 : vector<2x200xf32>
      %192 = vector.extract_strided_slice %184 {offsets = [0, 0, 1], sizes = [2, 200, 1], strides = [1, 1, 1]} : vector<2x200x2xf32> to vector<2x200x1xf32>
      %193 = vector.shape_cast %192 : vector<2x200x1xf32> to vector<2x200xf32>
      %194 = arith.mulf %193, %191 : vector<2x200xf32>
      %195 = arith.index_cast %135 : i32 to index
      %196 = memref.load %arg8[%195] : memref<8xf32, #tpu.memory_space<smem>>
      %197 = vector.broadcast %196 : f32 to vector<2x200xf32>
      %198 = arith.mulf %194, %197 : vector<2x200xf32>
      %199 = arith.addf %123, %198 : vector<2x200xf32>
      %c0_59 = arith.constant 0 : index
      %c0_60 = arith.constant 0 : index
      %c0_61 = arith.constant 0 : index
      %200 = vector.load %arg22[%c0_59, %c0_60, %c0_61] : memref<1x200x200xf32, #tpu.memory_space<vmem>>, vector<1x200x200xf32>
      %201 = vector.shape_cast %200 : vector<1x200x200xf32> to vector<200x200xf32>
      %202 = vector.shape_cast %191 : vector<2x200xf32> to vector<2x200x1xf32>
      %203 = vector.broadcast %202 : vector<2x200x1xf32> to vector<2x200x200xf32>
      %204 = arith.mulf %179, %203 : vector<2x200x200xf32>
      %cst_62 = arith.constant dense<0.000000e+00> : vector<200x200xf32>
      %205 = vector.multi_reduction <add>, %204, %cst_62 [0] : vector<2x200x200xf32> to vector<200x200xf32>
      %206 = arith.addf %201, %205 : vector<200x200xf32>
      %c0_63 = arith.constant 0 : index
      %c0_64 = arith.constant 0 : index
      %c0_65 = arith.constant 0 : index
      %207 = vector.load %arg22[%c0_63, %c0_64, %c0_65] : memref<1x200x200xf32, #tpu.memory_space<vmem>>, vector<1x200x200xf32>
      %208 = vector.shape_cast %207 : vector<1x200x200xf32> to vector<200x200xf32>
      %209 = vector.shape_cast %206 : vector<200x200xf32> to vector<1x200x200xf32>
      tpu.vector_store %arg22[%c0_63, %c0_64, %c0_65], %209 {strides = array<i32>} : memref<1x200x200xf32, #tpu.memory_space<vmem>>, vector<1x200x200xf32>,
      scf.yield %199 : vector<2x200xf32>
    }
    %c4_i32_3 = arith.constant 4 : i32
    %c0_4 = arith.constant 0 : index
    %7 = memref.load %arg9[%c0_4] : memref<1xf32, #tpu.memory_space<smem>>
    %8 = vector.broadcast %7 : f32 to vector<2x200xf32>
    %9 = arith.addf %6, %8 : vector<2x200xf32>
    %cst_5 = arith.constant dense<0.000000e+00> : vector<2xf32>
    %10 = vector.multi_reduction <add>, %9, %cst_5 [1] : vector<2x200xf32> to vector<2xf32>
    %11 = vector.shape_cast %10 : vector<2xf32> to vector<2x1xf32>
    %cst_6 = arith.constant 2.000000e+02 : f32
    %12 = vector.broadcast %cst_6 : f32 to vector<2x1xf32>
    %13 = arith.divf %11, %12 : vector<2x1xf32>
    %14 = vector.broadcast %13 : vector<2x1xf32> to vector<2x200xf32>
    %15 = arith.subf %9, %14 : vector<2x200xf32>
    %16 = arith.mulf %15, %15 : vector<2x200xf32>
    %cst_7 = arith.constant dense<0.000000e+00> : vector<2xf32>
    %17 = vector.multi_reduction <add>, %16, %cst_7 [1] : vector<2x200xf32> to vector<2xf32>
    %18 = vector.shape_cast %17 : vector<2xf32> to vector<2x1xf32>
    %cst_8 = arith.constant 2.000000e+02 : f32
    %19 = vector.broadcast %cst_8 : f32 to vector<2x1xf32>
    %20 = arith.divf %18, %19 : vector<2x1xf32>
    %21 = vector.broadcast %13 : vector<2x1xf32> to vector<2x200xf32>
    %22 = arith.subf %9, %21 : vector<2x200xf32>
    %cst_9 = arith.constant 9.99999974E-6 : f32
    %23 = vector.broadcast %cst_9 : f32 to vector<2x1xf32>
    %24 = arith.addf %20, %23 : vector<2x1xf32>
    %25 = math.rsqrt %24 : vector<2x1xf32>
    %26 = vector.broadcast %25 : vector<2x1xf32> to vector<2x200xf32>
    %27 = arith.mulf %22, %26 : vector<2x200xf32>
    %c0_10 = arith.constant 0 : index
    %c0_11 = arith.constant 0 : index
    %28 = vector.load %arg11[%c0_10, %c0_11] : memref<1x200xf32, #tpu.memory_space<vmem>>, vector<1x200xf32>
    %29 = vector.broadcast %28 : vector<1x200xf32> to vector<2x200xf32>
    %30 = arith.mulf %27, %29 : vector<2x200xf32>
    %c0_12 = arith.constant 0 : index
    %c0_13 = arith.constant 0 : index
    %31 = vector.load %arg12[%c0_12, %c0_13] : memref<1x200xf32, #tpu.memory_space<vmem>>, vector<1x200xf32>
    %32 = vector.broadcast %31 : vector<1x200xf32> to vector<2x200xf32>
    %33 = arith.addf %30, %32 : vector<2x200xf32>
    %c0_14 = arith.constant 0 : index
    %c0_15 = arith.constant 0 : index
    %34 = vector.load %arg13[%c0_14, %c0_15] : memref<200x128xf32, #tpu.memory_space<vmem>>, vector<200x128xf32>
    %cst_16 = arith.constant dense<0.000000e+00> : vector<2x128xf32>
    %35 = tpu.matmul %33, %34, %cst_16 {dimension_numbers = #tpu.dot_dimension_numbers<[1], [0], [0], [1], [0, 0, 1, 1], [], []>} : vector<2x200xf32>, vector<200x128xf32>, vector<2x128xf32> -> vector<2x128xf32>
    %c0_17 = arith.constant 0 : index
    %c0_18 = arith.constant 0 : index
    %36 = vector.load %arg14[%c0_17, %c0_18] : memref<1x128xf32, #tpu.memory_space<vmem>>, vector<1x128xf32>
    %37 = vector.broadcast %36 : vector<1x128xf32> to vector<2x128xf32>
    %38 = arith.addf %35, %37 : vector<2x128xf32>
    %cst_19 = arith.constant 0.000000e+00 : f32
    %39 = vector.broadcast %cst_19 : f32 to vector<2x128xf32>
    %40 = arith.maximumf %38, %39 : vector<2x128xf32>
    %c0_20 = arith.constant 0 : index
    %c0_21 = arith.constant 0 : index
    %41 = vector.load %arg15[%c0_20, %c0_21] : memref<128x64xf32, #tpu.memory_space<vmem>>, vector<128x64xf32>
    %cst_22 = arith.constant dense<0.000000e+00> : vector<2x64xf32>
    %42 = tpu.matmul %40, %41, %cst_22 {dimension_numbers = #tpu.dot_dimension_numbers<[1], [0], [0], [1], [0, 0, 1, 1], [], []>} : vector<2x128xf32>, vector<128x64xf32>, vector<2x64xf32> -> vector<2x64xf32>
    %c0_23 = arith.constant 0 : index
    %c0_24 = arith.constant 0 : index
    %43 = vector.load %arg16[%c0_23, %c0_24] : memref<1x64xf32, #tpu.memory_space<vmem>>, vector<1x64xf32>
    %44 = vector.broadcast %43 : vector<1x64xf32> to vector<2x64xf32>
    %45 = arith.addf %42, %44 : vector<2x64xf32>
    %c0_25 = arith.constant 0 : index
    %c0_26 = arith.constant 0 : index
    %46 = vector.load %arg17[%c0_25, %c0_26] : memref<64x128xf32, #tpu.memory_space<vmem>>, vector<64x128xf32>
    %cst_27 = arith.constant dense<0.000000e+00> : vector<2x128xf32>
    %47 = tpu.matmul %45, %46, %cst_27 {dimension_numbers = #tpu.dot_dimension_numbers<[1], [0], [0], [1], [0, 0, 1, 1], [], []>} : vector<2x64xf32>, vector<64x128xf32>, vector<2x128xf32> -> vector<2x128xf32>
    %c0_28 = arith.constant 0 : index
    %c0_29 = arith.constant 0 : index
    %48 = vector.load %arg18[%c0_28, %c0_29] : memref<1x128xf32, #tpu.memory_space<vmem>>, vector<1x128xf32>
    %49 = vector.broadcast %48 : vector<1x128xf32> to vector<2x128xf32>
    %50 = arith.addf %47, %49 : vector<2x128xf32>
    %cst_30 = arith.constant 0.000000e+00 : f32
    %51 = vector.broadcast %cst_30 : f32 to vector<2x128xf32>
    %52 = arith.maximumf %50, %51 : vector<2x128xf32>
    %c0_31 = arith.constant 0 : index
    %c0_32 = arith.constant 0 : index
    %53 = vector.load %arg19[%c0_31, %c0_32] : memref<128x200xf32, #tpu.memory_space<vmem>>, vector<128x200xf32>
    %cst_33 = arith.constant dense<0.000000e+00> : vector<2x200xf32>
    %54 = tpu.matmul %52, %53, %cst_33 {dimension_numbers = #tpu.dot_dimension_numbers<[1], [0], [0], [1], [0, 0, 1, 1], [], []>} : vector<2x128xf32>, vector<128x200xf32>, vector<2x200xf32> -> vector<2x200xf32>
    %c0_34 = arith.constant 0 : index
    %c0_35 = arith.constant 0 : index
    %55 = vector.load %arg20[%c0_34, %c0_35] : memref<1x200xf32, #tpu.memory_space<vmem>>, vector<1x200xf32>
    %56 = vector.broadcast %55 : vector<1x200xf32> to vector<2x200xf32>
    %57 = arith.addf %54, %56 : vector<2x200xf32>
    %c0_36 = arith.constant 0 : index
    %c0_37 = arith.constant 0 : index
    %58 = vector.load %arg21[%c0_36, %c0_37] : memref<2x200xf32, #tpu.memory_space<vmem>>, vector<2x200xf32>
    tpu.vector_store %arg21[%c0_36, %c0_37], %57 {strides = array<i32>} : memref<2x200xf32, #tpu.memory_space<vmem>>, vector<2x200xf32>,
    return
  }
  func.func @transform_0(%arg0: i32, %arg1: i32) -> i32 {
    %c0_i32 = arith.constant 0 : i32
    %c0_i32_0 = arith.constant 0 : i32
    return %c0_i32 : i32
  }
  func.func @transform_1(%arg0: i32, %arg1: i32) -> i32 {
    %c0_i32 = arith.constant 0 : i32
    %c0_i32_0 = arith.constant 0 : i32
    return %c0_i32 : i32
  }
  func.func @transform_2(%arg0: i32, %arg1: i32) -> i32 {
    %c0_i32 = arith.constant 0 : i32
    %c0_i32_0 = arith.constant 0 : i32
    return %c0_i32 : i32
  }
  func.func @transform_3(%arg0: i32, %arg1: i32) -> i32 {
    %c0_i32 = arith.constant 0 : i32
    %c0_i32_0 = arith.constant 0 : i32
    return %c0_i32 : i32
  }
  func.func @transform_4(%arg0: i32, %arg1: i32) -> i32 {
    %c0_i32 = arith.constant 0 : i32
    %c0_i32_0 = arith.constant 0 : i32
    return %c0_i32 : i32
  }
  func.func @transform_5(%arg0: i32, %arg1: i32) -> i32 {
    %c0_i32 = arith.constant 0 : i32
    %c0_i32_0 = arith.constant 0 : i32
    return %c0_i32 : i32
  }
  func.func @transform_6(%arg0: i32, %arg1: i32) -> i32 {
    %c0_i32 = arith.constant 0 : i32
    %c0_i32_0 = arith.constant 0 : i32
    return %c0_i32 : i32
  }
  func.func @transform_7(%arg0: i32, %arg1: i32) -> i32 {
    %c0_i32 = arith.constant 0 : i32
    %c0_i32_0 = arith.constant 0 : i32
    return %c0_i32 : i32
  }
  func.func @transform_8(%arg0: i32, %arg1: i32) -> (i32, i32) {
    %c1_i32 = arith.constant 1 : i32
    %0 = arith.muli %arg0, %c1_i32 : i32
    %1 = arith.addi %0, %arg1 : i32
    %c0_i32 = arith.constant 0 : i32
    %c0_i32_0 = arith.constant 0 : i32
    return %1, %c0_i32 : i32, i32
  }
  func.func @transform_9(%arg0: i32, %arg1: i32) -> (i32, i32) {
    %c0_i32 = arith.constant 0 : i32
    %c0_i32_0 = arith.constant 0 : i32
    %c0_i32_1 = arith.constant 0 : i32
    return %c0_i32, %c0_i32_0 : i32, i32
  }
  func.func @transform_10(%arg0: i32, %arg1: i32) -> (i32, i32) {
    %c0_i32 = arith.constant 0 : i32
    %c0_i32_0 = arith.constant 0 : i32
    %c0_i32_1 = arith.constant 0 : i32
    return %c0_i32, %c0_i32_0 : i32, i32
  }
  func.func @transform_11(%arg0: i32, %arg1: i32) -> (i32, i32) {
    %c0_i32 = arith.constant 0 : i32
    %c0_i32_0 = arith.constant 0 : i32
    %c0_i32_1 = arith.constant 0 : i32
    return %c0_i32, %c0_i32_0 : i32, i32
  }
  func.func @transform_12(%arg0: i32, %arg1: i32) -> (i32, i32) {
    %c0_i32 = arith.constant 0 : i32
    %c0_i32_0 = arith.constant 0 : i32
    %c0_i32_1 = arith.constant 0 : i32
    return %c0_i32, %c0_i32_0 : i32, i32
  }
  func.func @transform_13(%arg0: i32, %arg1: i32) -> (i32, i32) {
    %c0_i32 = arith.constant 0 : i32
    %c0_i32_0 = arith.constant 0 : i32
    %c0_i32_1 = arith.constant 0 : i32
    return %c0_i32, %c0_i32_0 : i32, i32
  }
  func.func @transform_14(%arg0: i32, %arg1: i32) -> (i32, i32) {
    %c0_i32 = arith.constant 0 : i32
    %c0_i32_0 = arith.constant 0 : i32
    %c0_i32_1 = arith.constant 0 : i32
    return %c0_i32, %c0_i32_0 : i32, i32
  }
  func.func @transform_15(%arg0: i32, %arg1: i32) -> (i32, i32) {
    %c0_i32 = arith.constant 0 : i32
    %c0_i32_0 = arith.constant 0 : i32
    %c0_i32_1 = arith.constant 0 : i32
    return %c0_i32, %c0_i32_0 : i32, i32
  }
  func.func @transform_16(%arg0: i32, %arg1: i32) -> (i32, i32) {
    %c0_i32 = arith.constant 0 : i32
    %c0_i32_0 = arith.constant 0 : i32
    %c0_i32_1 = arith.constant 0 : i32
    return %c0_i32, %c0_i32_0 : i32, i32
  }
  func.func @transform_17(%arg0: i32, %arg1: i32) -> (i32, i32) {
    %c0_i32 = arith.constant 0 : i32
    %c0_i32_0 = arith.constant 0 : i32
    %c0_i32_1 = arith.constant 0 : i32
    return %c0_i32, %c0_i32_0 : i32, i32
  }
  func.func @transform_18(%arg0: i32, %arg1: i32) -> (i32, i32) {
    %c0_i32 = arith.constant 0 : i32
    %c0_i32_0 = arith.constant 0 : i32
    %c0_i32_1 = arith.constant 0 : i32
    return %c0_i32, %c0_i32_0 : i32, i32
  }
  func.func @transform_19(%arg0: i32, %arg1: i32) -> (i32, i32) {
    %c1_i32 = arith.constant 1 : i32
    %0 = arith.muli %arg0, %c1_i32 : i32
    %1 = arith.addi %0, %arg1 : i32
    %c0_i32 = arith.constant 0 : i32
    %c0_i32_0 = arith.constant 0 : i32
    return %1, %c0_i32 : i32, i32
  }
  func.func @transform_20(%arg0: i32, %arg1: i32) -> (i32, i32, i32) {
    %c0_i32 = arith.constant 0 : i32
    %c0_i32_0 = arith.constant 0 : i32
    %c0_i32_1 = arith.constant 0 : i32
    return %arg0, %c0_i32, %c0_i32_0 : i32, i32, i32
  }
}

</mosaic_0001>

<llo_original>
// kernel: att_forward.1
$region0: #{att_forward.1}
  #allocation0 [shape = 'u32[]', space=smem, size = 0x4, offset = 0x4, fixed_abs, tag = 'smem constant byte address 0x4 - core index']
  #allocation1 [shape = 'u32[144,128]{1,0:T(1,128)}', space=vmem, size = 0x12000, scoped, tag = 'internal scratch']
  #allocation2 [shape = 'f32[1]{0:T(128)S(6)}', space=smem, size = 0x200, scoped, tag = 'scoped memory for att_forward.1']
  %s0 = inlined_call_operand.vmem [shape: f32[8], index: 0, kind: input, shape index: {}]
  %s1 = inlined_call_operand.vmem [shape: f32[8], index: 1, kind: input, shape index: {}]
  %s2 = inlined_call_operand.vmem [shape: f32[8], index: 2, kind: input, shape index: {}]
  %s3 = inlined_call_operand.vmem [shape: f32[8], index: 3, kind: input, shape index: {}]
  %s4 = inlined_call_operand.vmem [shape: f32[8], index: 4, kind: input, shape index: {}]
  %s5 = inlined_call_operand.vmem [shape: f32[8], index: 5, kind: input, shape index: {}]
  %s6 = inlined_call_operand.vmem [shape: f32[8], index: 6, kind: input, shape index: {}]
  %s7 = inlined_call_operand.<no memory space> [shape: f32[1], index: 7, kind: input, shape index: {}]
  %s8 = inlined_call_operand.vmem [shape: f32[2,200], index: 8, kind: input, shape index: {}]
  %s9 = inlined_call_operand.vmem [shape: f32[1,200], index: 9, kind: input, shape index: {}]
  %s10 = inlined_call_operand.vmem [shape: f32[1,200], index: 10, kind: input, shape index: {}]
  %s11 = inlined_call_operand.vmem [shape: f32[200,128], index: 11, kind: input, shape index: {}]
  %s12 = inlined_call_operand.vmem [shape: f32[1,128], index: 12, kind: input, shape index: {}]
  %s13 = inlined_call_operand.vmem [shape: f32[128,64], index: 13, kind: input, shape index: {}]
  %s14 = inlined_call_operand.vmem [shape: f32[1,64], index: 14, kind: input, shape index: {}]
  %s15 = inlined_call_operand.vmem [shape: f32[64,128], index: 15, kind: input, shape index: {}]
  %s16 = inlined_call_operand.vmem [shape: f32[1,128], index: 16, kind: input, shape index: {}]
  %s17 = inlined_call_operand.vmem [shape: f32[128,200], index: 17, kind: input, shape index: {}]
  %s18 = inlined_call_operand.vmem [shape: f32[1,200], index: 18, kind: input, shape index: {}]
  %s19 = inlined_call_operand.hbm [shape: f32[2,200], index: 19, kind: output, shape index: {0}]
  %s20 = inlined_call_operand.vmem [shape: f32[1,200,200], index: 20, kind: output, shape index: {1}]
  %21 = xla_tuple %s19, %s20
  %s22 = sld [smem:[#allocation0]]
  $region133: #{att_forward.1} parent=0
    _
  %s24 = ssub.s32 1, %s22
  %s25 = scalar_select 0, %s24, %s22
  %26 = sst [smem:[#allocation2]] %s7
  $region1: #{att_forward.1} parent=0
    #allocation3 [shape = 'u8[512]{0}', space=smem, size = 0x200, scoped, tag = 'input window, operand 0, single buffered']
    #allocation4 [shape = 's32[1]{0}', space=sflag, size = 0x4, scoped, tag = 'scoped memory for att_forward.1']
    #allocation5 [shape = 's32[1]{0}', space=sflag, size = 0x4, scoped, tag = 'scoped memory for att_forward.1']
    #allocation6 [shape = 'u8[512]{0}', space=smem, size = 0x200, scoped, tag = 'input window, operand 1, single buffered']
    #allocation7 [shape = 's32[1]{0}', space=sflag, size = 0x4, scoped, tag = 'scoped memory for att_forward.1']
    #allocation8 [shape = 'u8[512]{0}', space=smem, size = 0x200, scoped, tag = 'input window, operand 2, single buffered']
    #allocation9 [shape = 'u8[512]{0}', space=smem, size = 0x200, scoped, tag = 'input window, operand 3, single buffered']
    #allocation10 [shape = 's32[1]{0}', space=sflag, size = 0x4, scoped, tag = 'scoped memory for att_forward.1']
    #allocation11 [shape = 'u8[512]{0}', space=smem, size = 0x200, scoped, tag = 'input window, operand 4, single buffered']
    #allocation12 [shape = 'u8[512]{0}', space=smem, size = 0x200, scoped, tag = 'input window, operand 5, single buffered']
    #allocation13 [shape = 's32[1]{0}', space=sflag, size = 0x4, scoped, tag = 'scoped memory for att_forward.1']
    #allocation14 [shape = 'u8[512]{0}', space=smem, size = 0x200, scoped, tag = 'input window, operand 6, single buffered']
    #allocation15 [shape = 'u8[2048]{0}', space=vmem, size = 0x800, scoped, tag = 'output window, operand 0, single buffered']
    %27 = vsyncpa [#allocation5], 0
    %28 = vsyncpa [#allocation7], 0
    %29 = vsyncpa [#allocation10], 0
    %30 = vsyncpa [#allocation13], 0
    %31 = vsyncpa [#allocation4], 0
    // Predicated region
    $region2: #{att_forward.1} parent=1 // pred_check
      _
    $region3: #{att_forward.1} parent=1 // pred_check_branch
      %33 = sbr.rel (0) target = $region5
    $region4: #{att_forward.1} parent=1 // pred_region
      %s35 = ssub.s32 16, 16
      %36 = vsyncadd [#allocation5], %s35
      %s38 = sshll.u32 %s0, 4
      %s39 = int_to_ptr.vmem [resolvable:$true] %s38
      %41 = dma.vmem_to_smem %s39, 16, [#allocation3], [#allocation5]
    $region5: #{att_forward.1} parent=1 // pred_fallthru
      _
    // Predicated region
    $region6: #{att_forward.1} parent=1 // pred_check
      _
    $region7: #{att_forward.1} parent=1 // pred_check_branch
      %43 = sbr.rel (0) target = $region9
    $region8: #{att_forward.1} parent=1 // pred_region
      %s45 = ssub.s32 16, 16
      %46 = vsyncadd [#allocation7], %s45
      %s48 = sshll.u32 %s1, 4
      %s49 = int_to_ptr.vmem [resolvable:$true] %s48
      %51 = dma.vmem_to_smem %s49, 16, [#allocation6], [#allocation7]
    $region9: #{att_forward.1} parent=1 // pred_fallthru
      _
    // Predicated region
    $region10: #{att_forward.1} parent=1 // pred_check
      _
    $region11: #{att_forward.1} parent=1 // pred_check_branch
      %53 = sbr.rel (0) target = $region13
    $region12: #{att_forward.1} parent=1 // pred_region
      %s55 = ssub.s32 16, 16
      %56 = vsyncadd [#allocation7], %s55
      %s58 = sshll.u32 %s2, 4
      %s59 = int_to_ptr.vmem [resolvable:$true] %s58
      %61 = dma.vmem_to_smem %s59, 16, [#allocation8], [#allocation7]
    $region13: #{att_forward.1} parent=1 // pred_fallthru
      _
    // Predicated region
    $region14: #{att_forward.1} parent=1 // pred_check
      _
    $region15: #{att_forward.1} parent=1 // pred_check_branch
      %63 = sbr.rel (0) target = $region17
    $region16: #{att_forward.1} parent=1 // pred_region
      %s65 = ssub.s32 16, 16
      %66 = vsyncadd [#allocation10], %s65
      %s68 = sshll.u32 %s3, 4
      %s69 = int_to_ptr.vmem [resolvable:$true] %s68
      %71 = dma.vmem_to_smem %s69, 16, [#allocation9], [#allocation10]
    $region17: #{att_forward.1} parent=1 // pred_fallthru
      _
    // Predicated region
    $region18: #{att_forward.1} parent=1 // pred_check
      _
    $region19: #{att_forward.1} parent=1 // pred_check_branch
      %73 = sbr.rel (0) target = $region21
    $region20: #{att_forward.1} parent=1 // pred_region
      %s75 = ssub.s32 16, 16
      %76 = vsyncadd [#allocation10], %s75
      %s78 = sshll.u32 %s4, 4
      %s79 = int_to_ptr.vmem [resolvable:$true] %s78
      %81 = dma.vmem_to_smem %s79, 16, [#allocation11], [#allocation10]
    $region21: #{att_forward.1} parent=1 // pred_fallthru
      _
    // Predicated region
    $region22: #{att_forward.1} parent=1 // pred_check
      _
    $region23: #{att_forward.1} parent=1 // pred_check_branch
      %83 = sbr.rel (0) target = $region25
    $region24: #{att_forward.1} parent=1 // pred_region
      %s85 = ssub.s32 16, 16
      %86 = vsyncadd [#allocation13], %s85
      %s88 = sshll.u32 %s5, 4
      %s89 = int_to_ptr.vmem [resolvable:$true] %s88
      %91 = dma.vmem_to_smem %s89, 16, [#allocation12], [#allocation13]
    $region25: #{att_forward.1} parent=1 // pred_fallthru
      _
    // Predicated region
    $region26: #{att_forward.1} parent=1 // pred_check
      _
    $region27: #{att_forward.1} parent=1 // pred_check_branch
      %93 = sbr.rel (0) target = $region29
    $region28: #{att_forward.1} parent=1 // pred_region
      %s95 = ssub.s32 16, 16
      %96 = vsyncadd [#allocation13], %s95
      %s98 = sshll.u32 %s6, 4
      %s99 = int_to_ptr.vmem [resolvable:$true] %s98
      %101 = dma.vmem_to_smem %s99, 16, [#allocation14], [#allocation13]
    $region29: #{att_forward.1} parent=1 // pred_fallthru
      _
    // Predicated region
    $region30: #{att_forward.1} parent=1 // pred_check
      _
    $region31: #{att_forward.1} parent=1 // pred_check_branch
      %103 = sbr.rel (0) target = $region33
    $region32: #{att_forward.1} parent=1 // pred_region
      _
    $region33: #{att_forward.1} parent=1 // pred_fallthru
      _
    // Predicated region
    $region34: #{att_forward.1} parent=1 // pred_check
      _
    $region35: #{att_forward.1} parent=1 // pred_check_branch
      %105 = sbr.rel (0) target = $region37
    $region36: #{att_forward.1} parent=1 // pred_region
      %s106 = sadd.s32 0, 0
      %p107 = scmp.lt.s32.totalorder %s106, 0
      %s108 = scalar_select %p107, %s106, 0
      %s109 = smul.addr %s108, 2
      %s110 = smul.addr %s109, 2
      %s111 = scalar_lea.vmem %s8, %s110
      %s112 = sadd.s32 0, 0
    $region37: #{att_forward.1} parent=1 // pred_fallthru
      _
    // Predicated region
    $region38: #{att_forward.1} parent=1 // pred_check
      _
    $region39: #{att_forward.1} parent=1 // pred_check_branch
      %114 = sbr.rel (0) target = $region41
    $region40: #{att_forward.1} parent=1 // pred_region
      _
    $region41: #{att_forward.1} parent=1 // pred_fallthru
      _
    // Predicated region
    $region42: #{att_forward.1} parent=1 // pred_check
      _
    $region43: #{att_forward.1} parent=1 // pred_check_branch
      %116 = sbr.rel (0) target = $region45
    $region44: #{att_forward.1} parent=1 // pred_region
      _
    $region45: #{att_forward.1} parent=1 // pred_fallthru
      _
    // Predicated region
    $region46: #{att_forward.1} parent=1 // pred_check
      _
    $region47: #{att_forward.1} parent=1 // pred_check_branch
      %118 = sbr.rel (0) target = $region49
    $region48: #{att_forward.1} parent=1 // pred_region
      _
    $region49: #{att_forward.1} parent=1 // pred_fallthru
      _
    // Predicated region
    $region50: #{att_forward.1} parent=1 // pred_check
      _
    $region51: #{att_forward.1} parent=1 // pred_check_branch
      %120 = sbr.rel (0) target = $region53
    $region52: #{att_forward.1} parent=1 // pred_region
      _
    $region53: #{att_forward.1} parent=1 // pred_fallthru
      _
    // Predicated region
    $region54: #{att_forward.1} parent=1 // pred_check
      _
    $region55: #{att_forward.1} parent=1 // pred_check_branch
      %122 = sbr.rel (0) target = $region57
    $region56: #{att_forward.1} parent=1 // pred_region
      _
    $region57: #{att_forward.1} parent=1 // pred_fallthru
      _
    // Predicated region
    $region58: #{att_forward.1} parent=1 // pred_check
      _
    $region59: #{att_forward.1} parent=1 // pred_check_branch
      %124 = sbr.rel (0) target = $region61
    $region60: #{att_forward.1} parent=1 // pred_region
      _
    $region61: #{att_forward.1} parent=1 // pred_fallthru
      _
    // Predicated region
    $region62: #{att_forward.1} parent=1 // pred_check
      _
    $region63: #{att_forward.1} parent=1 // pred_check_branch
      %126 = sbr.rel (0) target = $region65
    $region64: #{att_forward.1} parent=1 // pred_region
      _
    $region65: #{att_forward.1} parent=1 // pred_fallthru
      _
    // Predicated region
    $region66: #{att_forward.1} parent=1 // pred_check
      _
    $region67: #{att_forward.1} parent=1 // pred_check_branch
      %128 = sbr.rel (0) target = $region69
    $region68: #{att_forward.1} parent=1 // pred_region
      _
    $region69: #{att_forward.1} parent=1 // pred_fallthru
      _
    // Predicated region
    $region70: #{att_forward.1} parent=1 // pred_check
      _
    $region71: #{att_forward.1} parent=1 // pred_check_branch
      %130 = sbr.rel (0) target = $region73
    $region72: #{att_forward.1} parent=1 // pred_region
      _
    $region73: #{att_forward.1} parent=1 // pred_fallthru
      _
    // Predicated region
    $region74: #{att_forward.1} parent=1 // pred_check
      _
    $region75: #{att_forward.1} parent=1 // pred_check_branch
      %132 = sbr.rel (0) target = $region77
    $region76: #{att_forward.1} parent=1 // pred_region
      _
    $region77: #{att_forward.1} parent=1 // pred_fallthru
      _
    // Predicated region
    $region78: #{att_forward.1} parent=1 // pred_check
      _
    $region79: #{att_forward.1} parent=1 // pred_check_branch
      %134 = sbr.rel (0) target = $region81
    $region80: #{att_forward.1} parent=1 // pred_region
      %135 = dma.done [#allocation5], 16
    $region81: #{att_forward.1} parent=1 // pred_fallthru
      _
    // Predicated region
    $region82: #{att_forward.1} parent=1 // pred_check
      _
    $region83: #{att_forward.1} parent=1 // pred_check_branch
      %137 = sbr.rel (0) target = $region85
    $region84: #{att_forward.1} parent=1 // pred_region
      %138 = dma.done [#allocation7], 16
    $region85: #{att_forward.1} parent=1 // pred_fallthru
      _
    // Predicated region
    $region86: #{att_forward.1} parent=1 // pred_check
      _
    $region87: #{att_forward.1} parent=1 // pred_check_branch
      %140 = sbr.rel (0) target = $region89
    $region88: #{att_forward.1} parent=1 // pred_region
      %141 = dma.done [#allocation7], 16
    $region89: #{att_forward.1} parent=1 // pred_fallthru
      _
    // Predicated region
    $region90: #{att_forward.1} parent=1 // pred_check
      _
    $region91: #{att_forward.1} parent=1 // pred_check_branch
      %143 = sbr.rel (0) target = $region93
    $region92: #{att_forward.1} parent=1 // pred_region
      %144 = dma.done [#allocation10], 16
    $region93: #{att_forward.1} parent=1 // pred_fallthru
      _
    // Predicated region
    $region94: #{att_forward.1} parent=1 // pred_check
      _
    $region95: #{att_forward.1} parent=1 // pred_check_branch
      %146 = sbr.rel (0) target = $region97
    $region96: #{att_forward.1} parent=1 // pred_region
      %147 = dma.done [#allocation10], 16
    $region97: #{att_forward.1} parent=1 // pred_fallthru
      _
    // Predicated region
    $region98: #{att_forward.1} parent=1 // pred_check
      _
    $region99: #{att_forward.1} parent=1 // pred_check_branch
      %149 = sbr.rel (0) target = $region101
    $region100: #{att_forward.1} parent=1 // pred_region
      %150 = dma.done [#allocation13], 16
    $region101: #{att_forward.1} parent=1 // pred_fallthru
      _
    // Predicated region
    $region102: #{att_forward.1} parent=1 // pred_check
      _
    $region103: #{att_forward.1} parent=1 // pred_check_branch
      %152 = sbr.rel (0) target = $region105
    $region104: #{att_forward.1} parent=1 // pred_region
      %153 = dma.done [#allocation13], 16
    $region105: #{att_forward.1} parent=1 // pred_fallthru
      _
    %154 = sfence
    %s155 = sadd.s32 0, 0
    %p156 = scmp.lt.s32.totalorder %s155, 0
    %s157 = scalar_select %p156, %s155, 0
    %s158 = smul.addr %s157, 2
    %s159 = smul.addr %s158, 2
    %s160 = scalar_lea.vmem %s8, %s159
    %s161 = sadd.s32 0, 0
    %p162 = scmp.lt.s32.totalorder %s161, 0
    %s163 = scalar_select %p162, %s161, 0
    %s164 = smul.addr %s163, 2
    %s165 = smul.addr %s164, 2
    %s166 = scalar_lea.vmem %s8, %s165
    %s167 = sadd.s32 0, 0
    %s168 = sadd.s32 0, 0
    %v169 = vld [vmem:[%s166] sm:$0xf]
    %p170 = scmp.eq.s32.totalorder 0, 0
    // Predicated region
    $region106: #{att_forward.1} parent=1 // pred_check
      %p171 = pneg %p170
    $region107: #{att_forward.1} parent=1 // pred_check_branch
      %173 = sbr.rel (%p171) target = $region109
    $region108: #{att_forward.1} parent=1 // pred_region
      %174 = vst [vmem:[%s20] sm:$0xff] 0.0
      %vm175 = vcmask 588800
      %176 = vst.msk [vmem:[%s20 + $0x8] sm:$0xff] %vm175, 0.0
      %177 = vst [vmem:[%s20 + $0x10] sm:$0xff] 0.0
      %178 = vst.msk [vmem:[%s20 + $0x18] sm:$0xff] %vm175, 0.0
      %179 = vst [vmem:[%s20 + $0x20] sm:$0xff] 0.0
      %180 = vst.msk [vmem:[%s20 + $0x28] sm:$0xff] %vm175, 0.0
      %181 = vst [vmem:[%s20 + $0x30] sm:$0xff] 0.0
      %182 = vst.msk [vmem:[%s20 + $0x38] sm:$0xff] %vm175, 0.0
      %183 = vst [vmem:[%s20 + $0x40] sm:$0xff] 0.0
      %184 = vst.msk [vmem:[%s20 + $0x48] sm:$0xff] %vm175, 0.0
      %185 = vst [vmem:[%s20 + $0x50] sm:$0xff] 0.0
      %186 = vst.msk [vmem:[%s20 + $0x58] sm:$0xff] %vm175, 0.0
      %187 = vst [vmem:[%s20 + $0x60] sm:$0xff] 0.0
      %188 = vst.msk [vmem:[%s20 + $0x68] sm:$0xff] %vm175, 0.0
      %189 = vst [vmem:[%s20 + $0x70] sm:$0xff] 0.0
      %190 = vst.msk [vmem:[%s20 + $0x78] sm:$0xff] %vm175, 0.0
      %191 = vst [vmem:[%s20 + $0x80] sm:$0xff] 0.0
      %192 = vst.msk [vmem:[%s20 + $0x88] sm:$0xff] %vm175, 0.0
      %193 = vst [vmem:[%s20 + $0x90] sm:$0xff] 0.0
      %194 = vst.msk [vmem:[%s20 + $0x98] sm:$0xff] %vm175, 0.0
      %195 = vst [vmem:[%s20 + $0xa0] sm:$0xff] 0.0
      %196 = vst.msk [vmem:[%s20 + $0xa8] sm:$0xff] %vm175, 0.0
      %197 = vst [vmem:[%s20 + $0xb0] sm:$0xff] 0.0
      %198 = vst.msk [vmem:[%s20 + $0xb8] sm:$0xff] %vm175, 0.0
      %199 = vst [vmem:[%s20 + $0xc0] sm:$0xff] 0.0
      %200 = vst.msk [vmem:[%s20 + $0xc8] sm:$0xff] %vm175, 0.0
      %201 = vst [vmem:[%s20 + $0xd0] sm:$0xff] 0.0
      %202 = vst.msk [vmem:[%s20 + $0xd8] sm:$0xff] %vm175, 0.0
      %203 = vst [vmem:[%s20 + $0xe0] sm:$0xff] 0.0
      %204 = vst.msk [vmem:[%s20 + $0xe8] sm:$0xff] %vm175, 0.0
      %205 = vst [vmem:[%s20 + $0xf0] sm:$0xff] 0.0
      %206 = vst.msk [vmem:[%s20 + $0xf8] sm:$0xff] %vm175, 0.0
      %207 = vst [vmem:[%s20 + $0x100] sm:$0xff] 0.0
      %208 = vst.msk [vmem:[%s20 + $0x108] sm:$0xff] %vm175, 0.0
      %209 = vst [vmem:[%s20 + $0x110] sm:$0xff] 0.0
      %210 = vst.msk [vmem:[%s20 + $0x118] sm:$0xff] %vm175, 0.0
      %211 = vst [vmem:[%s20 + $0x120] sm:$0xff] 0.0
      %212 = vst.msk [vmem:[%s20 + $0x128] sm:$0xff] %vm175, 0.0
      %213 = vst [vmem:[%s20 + $0x130] sm:$0xff] 0.0
      %214 = vst.msk [vmem:[%s20 + $0x138] sm:$0xff] %vm175, 0.0
      %215 = vst [vmem:[%s20 + $0x140] sm:$0xff] 0.0
      %216 = vst.msk [vmem:[%s20 + $0x148] sm:$0xff] %vm175, 0.0
      %217 = vst [vmem:[%s20 + $0x150] sm:$0xff] 0.0
      %218 = vst.msk [vmem:[%s20 + $0x158] sm:$0xff] %vm175, 0.0
      %219 = vst [vmem:[%s20 + $0x160] sm:$0xff] 0.0
      %220 = vst.msk [vmem:[%s20 + $0x168] sm:$0xff] %vm175, 0.0
      %221 = vst [vmem:[%s20 + $0x170] sm:$0xff] 0.0
      %222 = vst.msk [vmem:[%s20 + $0x178] sm:$0xff] %vm175, 0.0
      %223 = vst [vmem:[%s20 + $0x180] sm:$0xff] 0.0
      %224 = vst.msk [vmem:[%s20 + $0x188] sm:$0xff] %vm175, 0.0
    $region109: #{att_forward.1} parent=1 // pred_fallthru
      _
    loop: start=0, step=1, limit=4
    $region110: #{att_forward.1} parent=1 // loop_pre_header
      _
    $region111: #{att_forward.1} parent=1 // loop_header
      %s226 = sphi 0, %s230
      %p227 = scmp.ge.s32.totalorder %s226, 4
      %v231 = vphi 0.0, %v5367
      %v232 = vphi 0.0, %v5368
      %v233 = vphi 0.0, %v5369
      %v234 = vphi 0.0, %v5370
      %v235 = vphi 0.0, %v5371
      %v236 = vphi 0.0, %v5372
      %v237 = vphi 0.0, %v5373
      %v238 = vphi 0.0, %v5374
      %v239 = vphi 0.0, %v5375
      %v240 = vphi 0.0, %v5376
      %v241 = vphi 0.0, %v5377
      %v242 = vphi 0.0, %v5378
      %v243 = vphi 0.0, %v5379
      %v244 = vphi 0.0, %v5380
      %v245 = vphi 0.0, %v5381
      %v246 = vphi 0.0, %v5382
      %v247 = vphi 0.0, %v5383
      %v248 = vphi 0.0, %v5384
      %v249 = vphi 0.0, %v5385
      %v250 = vphi 0.0, %v5386
      %v251 = vphi 0.0, %v5387
      %v252 = vphi 0.0, %v5388
      %v253 = vphi 0.0, %v5389
      %v254 = vphi 0.0, %v5390
      %v255 = vphi 0.0, %v5391
      %v256 = vphi 0.0, %v5392
      %v257 = vphi 0.0, %v5393
      %v258 = vphi 0.0, %v5394
      %v259 = vphi 0.0, %v5395
      %v260 = vphi 0.0, %v5396
      %v261 = vphi 0.0, %v5397
      %v262 = vphi 0.0, %v5398
      %v263 = vphi 0.0, %v5399
      %v264 = vphi 0.0, %v5400
      %v265 = vphi 0.0, %v5401
      %v266 = vphi 0.0, %v5402
      %v267 = vphi 0.0, %v5403
      %v268 = vphi 0.0, %v5404
      %v269 = vphi 0.0, %v5405
      %v270 = vphi 0.0, %v5406
      %v271 = vphi 0.0, %v5407
      %v272 = vphi 0.0, %v5408
      %v273 = vphi 0.0, %v5409
      %v274 = vphi 0.0, %v5410
      %v275 = vphi 0.0, %v5411
      %v276 = vphi 0.0, %v5412
      %v277 = vphi 0.0, %v5413
      %v278 = vphi 0.0, %v5414
      %v279 = vphi 0.0, %v5415
      %v280 = vphi 0.0, %v5416
    $region112: #{att_forward.1} parent=1 // loop_header_branch
      %229 = sbr.rel (%p227) target = $region116
    $region113: #{att_forward.1} parent=1 // loop_body
      %s281 = smul.u32 %s226, 2
      %s282 = sld [smem:[#allocation3 + %s281]]
      %v283 = vstv %s282
      %v284 = vmul.f32 %v169, %v283
      %s285 = sld [smem:[#allocation6 + %s281]]
      %v286 = vstv %s285
      %v287 = vadd.f32 %v284, %v286
      %s288 = sld [smem:[#allocation8 + %s281]]
      %v289 = vstv %s288
      %v290 = vmul.f32 %v169, %v289
      %s291 = sld [smem:[#allocation9 + %s281]]
      %v292 = vstv %s291
      %v293 = vadd.f32 %v290, %v292
      %s294 = sld [smem:[#allocation11 + %s281]]
      %v295 = vstv %s294
      %v296 = vmul.f32 %v169, %v295
      %s297 = sld [smem:[#allocation12 + %s281]]
      %v298 = vstv %s297
      %v299 = vadd.f32 %v296, %v298
      %v302 = vunpack.c.l.s4 1983009808
      %v303 = vunpack.c.0.s8 %v302
      %v304 = vlaneseq
      %v305 = vshrl.u32 %v304, 7
      %v306 = vsub.s32 %v303, %v305
      %v307 = vrot.slane %v293, %v306
      %v308 = vcombine.high %v307, %v307
      %vm311 = vcmask 1041408
      %v312 = vsel %vm311, %v307, -inf
      %vm313 = vcmask 582656
      %v314 = vsel %vm313, %v308, -inf
      %v315 = vmax.f32 %v312, %v314
      %316 = vmax.xlane.f32.xlu0 %v315
      %v317 = vpop.xlane.xlu0 %316
      %v318 = vsel %vm311, %v307, inf
      %v319 = vsel %vm313, %v308, inf
      %v320 = vmin.f32 %v318, %v319
      %321 = vmin.xlane.f32.xlu0 %v320
      %v322 = vpop.xlane.xlu0 %321
      %vm323 = vcmp.ge.f32.partialorder %v287, 0.0
      %v326 = vunpack.c.l.s4 269488144
      %v327 = vunpack.c.0.s8 %v326
      %v328 = vlaneseq
      %v329 = vshrl.u32 %v328, 7
      %v330 = vsub.s32 %v327, %v329
      %v331 = vrot.slane %v317, %v330
      %v333 = vmul.f32 %v287, %v331
      %v336 = vunpack.c.l.s4 269488144
      %v337 = vunpack.c.0.s8 %v336
      %v338 = vlaneseq
      %v339 = vshrl.u32 %v338, 7
      %v340 = vsub.s32 %v337, %v339
      %v341 = vrot.slane %v322, %v340
      %v343 = vmul.f32 %v287, %v341
      %v344 = vsel %vm323, %v333, %v343
      %v347 = vunpack.c.l.s4 1983009808
      %v348 = vunpack.c.0.s8 %v347
      %v349 = vlaneseq
      %v350 = vshrl.u32 %v349, 7
      %v351 = vsub.s32 %v348, %v350
      %v352 = vrot.slane %v287, %v351
      %v353 = vcombine.high %v352, %v352
      %v356 = vlaneseq
      %v357 = vshrl.u32 %v356, 7
      %v358 = vsub.s32 0, %v357
      %v359 = vrot.slane %v352, %v358
      %361 = vbcast.lane.b32.xlu0 %v359, 256
      %v362 = vpop.permute.xlu0 %361
      %s364 = sor.u32 256, 8
      %365 = vbcast.lane.b32.xlu0 %v359, %s364
      %v366 = vpop.permute.xlu0 %365
      %s368 = sor.u32 256, 16
      %369 = vbcast.lane.b32.xlu0 %v359, %s368
      %v370 = vpop.permute.xlu0 %369
      %s372 = sor.u32 256, 24
      %373 = vbcast.lane.b32.xlu0 %v359, %s372
      %v374 = vpop.permute.xlu0 %373
      %s376 = sor.u32 256, 32
      %377 = vbcast.lane.b32.xlu0 %v359, %s376
      %v378 = vpop.permute.xlu0 %377
      %s380 = sor.u32 256, 40
      %381 = vbcast.lane.b32.xlu0 %v359, %s380
      %v382 = vpop.permute.xlu0 %381
      %s384 = sor.u32 256, 48
      %385 = vbcast.lane.b32.xlu0 %v359, %s384
      %v386 = vpop.permute.xlu0 %385
      %s388 = sor.u32 256, 56
      %389 = vbcast.lane.b32.xlu0 %v359, %s388
      %v390 = vpop.permute.xlu0 %389
      %s392 = sor.u32 256, 64
      %393 = vbcast.lane.b32.xlu0 %v359, %s392
      %v394 = vpop.permute.xlu0 %393
      %s396 = sor.u32 256, 72
      %397 = vbcast.lane.b32.xlu0 %v359, %s396
      %v398 = vpop.permute.xlu0 %397
      %s400 = sor.u32 256, 80
      %401 = vbcast.lane.b32.xlu0 %v359, %s400
      %v402 = vpop.permute.xlu0 %401
      %s404 = sor.u32 256, 88
      %405 = vbcast.lane.b32.xlu0 %v359, %s404
      %v406 = vpop.permute.xlu0 %405
      %s408 = sor.u32 256, 96
      %409 = vbcast.lane.b32.xlu0 %v359, %s408
      %v410 = vpop.permute.xlu0 %409
      %s412 = sor.u32 256, 104
      %413 = vbcast.lane.b32.xlu0 %v359, %s412
      %v414 = vpop.permute.xlu0 %413
      %s416 = sor.u32 256, 112
      %417 = vbcast.lane.b32.xlu0 %v359, %s416
      %v418 = vpop.permute.xlu0 %417
      %s420 = sor.u32 256, 120
      %421 = vbcast.lane.b32.xlu0 %v359, %s420
      %v422 = vpop.permute.xlu0 %421
      %v423 = vlaneseq
      %v424 = vshrl.u32 %v423, 7
      %v425 = vsub.s32 0, %v424
      %v426 = vrot.slane %v353, %v425
      %428 = vbcast.lane.b32.xlu0 %v426, 256
      %v429 = vpop.permute.xlu0 %428
      %s431 = sor.u32 256, 8
      %432 = vbcast.lane.b32.xlu0 %v426, %s431
      %v433 = vpop.permute.xlu0 %432
      %s435 = sor.u32 256, 16
      %436 = vbcast.lane.b32.xlu0 %v426, %s435
      %v437 = vpop.permute.xlu0 %436
      %s439 = sor.u32 256, 24
      %440 = vbcast.lane.b32.xlu0 %v426, %s439
      %v441 = vpop.permute.xlu0 %440
      %s443 = sor.u32 256, 32
      %444 = vbcast.lane.b32.xlu0 %v426, %s443
      %v445 = vpop.permute.xlu0 %444
      %s447 = sor.u32 256, 40
      %448 = vbcast.lane.b32.xlu0 %v426, %s447
      %v449 = vpop.permute.xlu0 %448
      %s451 = sor.u32 256, 48
      %452 = vbcast.lane.b32.xlu0 %v426, %s451
      %v453 = vpop.permute.xlu0 %452
      %s455 = sor.u32 256, 56
      %456 = vbcast.lane.b32.xlu0 %v426, %s455
      %v457 = vpop.permute.xlu0 %456
      %s459 = sor.u32 256, 64
      %460 = vbcast.lane.b32.xlu0 %v426, %s459
      %v461 = vpop.permute.xlu0 %460
      %v462 = vlaneseq
      %v463 = vshrl.u32 %v462, 7
      %v464 = vsub.s32 1, %v463
      %v465 = vrot.slane %v352, %v464
      %467 = vbcast.lane.b32.xlu0 %v465, 256
      %v468 = vpop.permute.xlu0 %467
      %s470 = sor.u32 256, 8
      %471 = vbcast.lane.b32.xlu0 %v465, %s470
      %v472 = vpop.permute.xlu0 %471
      %s474 = sor.u32 256, 16
      %475 = vbcast.lane.b32.xlu0 %v465, %s474
      %v476 = vpop.permute.xlu0 %475
      %s478 = sor.u32 256, 24
      %479 = vbcast.lane.b32.xlu0 %v465, %s478
      %v480 = vpop.permute.xlu0 %479
      %s482 = sor.u32 256, 32
      %483 = vbcast.lane.b32.xlu0 %v465, %s482
      %v484 = vpop.permute.xlu0 %483
      %s486 = sor.u32 256, 40
      %487 = vbcast.lane.b32.xlu0 %v465, %s486
      %v488 = vpop.permute.xlu0 %487
      %s490 = sor.u32 256, 48
      %491 = vbcast.lane.b32.xlu0 %v465, %s490
      %v492 = vpop.permute.xlu0 %491
      %s494 = sor.u32 256, 56
      %495 = vbcast.lane.b32.xlu0 %v465, %s494
      %v496 = vpop.permute.xlu0 %495
      %s498 = sor.u32 256, 64
      %499 = vbcast.lane.b32.xlu0 %v465, %s498
      %v500 = vpop.permute.xlu0 %499
      %s502 = sor.u32 256, 72
      %503 = vbcast.lane.b32.xlu0 %v465, %s502
      %v504 = vpop.permute.xlu0 %503
      %s506 = sor.u32 256, 80
      %507 = vbcast.lane.b32.xlu0 %v465, %s506
      %v508 = vpop.permute.xlu0 %507
      %s510 = sor.u32 256, 88
      %511 = vbcast.lane.b32.xlu0 %v465, %s510
      %v512 = vpop.permute.xlu0 %511
      %s514 = sor.u32 256, 96
      %515 = vbcast.lane.b32.xlu0 %v465, %s514
      %v516 = vpop.permute.xlu0 %515
      %s518 = sor.u32 256, 104
      %519 = vbcast.lane.b32.xlu0 %v465, %s518
      %v520 = vpop.permute.xlu0 %519
      %s522 = sor.u32 256, 112
      %523 = vbcast.lane.b32.xlu0 %v465, %s522
      %v524 = vpop.permute.xlu0 %523
      %s526 = sor.u32 256, 120
      %527 = vbcast.lane.b32.xlu0 %v465, %s526
      %v528 = vpop.permute.xlu0 %527
      %v529 = vlaneseq
      %v530 = vshrl.u32 %v529, 7
      %v531 = vsub.s32 1, %v530
      %v532 = vrot.slane %v353, %v531
      %534 = vbcast.lane.b32.xlu0 %v532, 256
      %v535 = vpop.permute.xlu0 %534
      %s537 = sor.u32 256, 8
      %538 = vbcast.lane.b32.xlu0 %v532, %s537
      %v539 = vpop.permute.xlu0 %538
      %s541 = sor.u32 256, 16
      %542 = vbcast.lane.b32.xlu0 %v532, %s541
      %v543 = vpop.permute.xlu0 %542
      %s545 = sor.u32 256, 24
      %546 = vbcast.lane.b32.xlu0 %v532, %s545
      %v547 = vpop.permute.xlu0 %546
      %s549 = sor.u32 256, 32
      %550 = vbcast.lane.b32.xlu0 %v532, %s549
      %v551 = vpop.permute.xlu0 %550
      %s553 = sor.u32 256, 40
      %554 = vbcast.lane.b32.xlu0 %v532, %s553
      %v555 = vpop.permute.xlu0 %554
      %s557 = sor.u32 256, 48
      %558 = vbcast.lane.b32.xlu0 %v532, %s557
      %v559 = vpop.permute.xlu0 %558
      %s561 = sor.u32 256, 56
      %562 = vbcast.lane.b32.xlu0 %v532, %s561
      %v563 = vpop.permute.xlu0 %562
      %s565 = sor.u32 256, 64
      %566 = vbcast.lane.b32.xlu0 %v532, %s565
      %v567 = vpop.permute.xlu0 %566
      %v569 = vunpack.c.l.s4 1966171168
      %v570 = vunpack.c.0.s8 %v569
      %v571 = vlaneseq
      %v572 = vshrl.u32 %v571, 7
      %v573 = vsub.s32 %v570, %v572
      %v574 = vrot.slane %v293, %v573
      %v575 = vcombine.high %v574, %v574
      %v576 = vlaneseq
      %v577 = vshrl.u32 %v576, 7
      %v578 = vsub.s32 0, %v577
      %v579 = vrot.slane %v574, %v578
      %v580 = vlaneseq
      %v581 = vshrl.u32 %v580, 7
      %v582 = vsub.s32 1, %v581
      %v583 = vrot.slane %v574, %v582
      %v584 = vlaneseq
      %v585 = vshrl.u32 %v584, 7
      %v586 = vsub.s32 0, %v585
      %v587 = vrot.slane %v575, %v586
      %v588 = vlaneseq
      %v589 = vshrl.u32 %v588, 7
      %v590 = vsub.s32 1, %v589
      %v591 = vrot.slane %v575, %v590
      %v596 = vmul.f32 %v362, %v579
      %v597 = vmul.f32 %v362, %v583
      %v598 = vmul.f32 %v366, %v579
      %v599 = vmul.f32 %v366, %v583
      %v600 = vmul.f32 %v370, %v579
      %v601 = vmul.f32 %v370, %v583
      %v602 = vmul.f32 %v374, %v579
      %v603 = vmul.f32 %v374, %v583
      %v604 = vmul.f32 %v378, %v579
      %v605 = vmul.f32 %v378, %v583
      %v606 = vmul.f32 %v382, %v579
      %v607 = vmul.f32 %v382, %v583
      %v608 = vmul.f32 %v386, %v579
      %v609 = vmul.f32 %v386, %v583
      %v610 = vmul.f32 %v390, %v579
      %v611 = vmul.f32 %v390, %v583
      %v612 = vmul.f32 %v394, %v579
      %v613 = vmul.f32 %v394, %v583
      %v614 = vmul.f32 %v398, %v579
      %v615 = vmul.f32 %v398, %v583
      %v616 = vmul.f32 %v402, %v579
      %v617 = vmul.f32 %v402, %v583
      %v618 = vmul.f32 %v406, %v579
      %v619 = vmul.f32 %v406, %v583
      %v620 = vmul.f32 %v410, %v579
      %v621 = vmul.f32 %v410, %v583
      %v622 = vmul.f32 %v414, %v579
      %v623 = vmul.f32 %v414, %v583
      %v624 = vmul.f32 %v418, %v579
      %v625 = vmul.f32 %v418, %v583
      %v626 = vmul.f32 %v422, %v579
      %v627 = vmul.f32 %v422, %v583
      %v628 = vmul.f32 %v429, %v579
      %v629 = vmul.f32 %v429, %v583
      %v630 = vmul.f32 %v433, %v579
      %v631 = vmul.f32 %v433, %v583
      %v632 = vmul.f32 %v437, %v579
      %v633 = vmul.f32 %v437, %v583
      %v634 = vmul.f32 %v441, %v579
      %v635 = vmul.f32 %v441, %v583
      %v636 = vmul.f32 %v445, %v579
      %v637 = vmul.f32 %v445, %v583
      %v638 = vmul.f32 %v449, %v579
      %v639 = vmul.f32 %v449, %v583
      %v640 = vmul.f32 %v453, %v579
      %v641 = vmul.f32 %v453, %v583
      %v642 = vmul.f32 %v457, %v579
      %v643 = vmul.f32 %v457, %v583
      %v644 = vmul.f32 %v461, %v579
      %v645 = vmul.f32 %v461, %v583
      %v646 = vmul.f32 %v468, %v587
      %v647 = vmul.f32 %v468, %v591
      %v648 = vmul.f32 %v472, %v587
      %v649 = vmul.f32 %v472, %v591
      %v650 = vmul.f32 %v476, %v587
      %v651 = vmul.f32 %v476, %v591
      %v652 = vmul.f32 %v480, %v587
      %v653 = vmul.f32 %v480, %v591
      %v654 = vmul.f32 %v484, %v587
      %v655 = vmul.f32 %v484, %v591
      %v656 = vmul.f32 %v488, %v587
      %v657 = vmul.f32 %v488, %v591
      %v658 = vmul.f32 %v492, %v587
      %v659 = vmul.f32 %v492, %v591
      %v660 = vmul.f32 %v496, %v587
      %v661 = vmul.f32 %v496, %v591
      %v662 = vmul.f32 %v500, %v587
      %v663 = vmul.f32 %v500, %v591
      %v664 = vmul.f32 %v504, %v587
      %v665 = vmul.f32 %v504, %v591
      %v666 = vmul.f32 %v508, %v587
      %v667 = vmul.f32 %v508, %v591
      %v668 = vmul.f32 %v512, %v587
      %v669 = vmul.f32 %v512, %v591
      %v670 = vmul.f32 %v516, %v587
      %v671 = vmul.f32 %v516, %v591
      %v672 = vmul.f32 %v520, %v587
      %v673 = vmul.f32 %v520, %v591
      %v674 = vmul.f32 %v524, %v587
      %v675 = vmul.f32 %v524, %v591
      %v676 = vmul.f32 %v528, %v587
      %v677 = vmul.f32 %v528, %v591
      %v678 = vmul.f32 %v535, %v587
      %v679 = vmul.f32 %v535, %v591
      %v680 = vmul.f32 %v539, %v587
      %v681 = vmul.f32 %v539, %v591
      %v682 = vmul.f32 %v543, %v587
      %v683 = vmul.f32 %v543, %v591
      %v684 = vmul.f32 %v547, %v587
      %v685 = vmul.f32 %v547, %v591
      %v686 = vmul.f32 %v551, %v587
      %v687 = vmul.f32 %v551, %v591
      %v688 = vmul.f32 %v555, %v587
      %v689 = vmul.f32 %v555, %v591
      %v690 = vmul.f32 %v559, %v587
      %v691 = vmul.f32 %v559, %v591
      %v692 = vmul.f32 %v563, %v587
      %v693 = vmul.f32 %v563, %v591
      %v694 = vmul.f32 %v567, %v587
      %v695 = vmul.f32 %v567, %v591
      %v698 = vunpack.c.l.s4 1983009808
      %v699 = vunpack.c.0.s8 %v698
      %v700 = vlaneseq
      %v701 = vshrl.u32 %v700, 7
      %v702 = vsub.s32 %v699, %v701
      %v703 = vrot.slane %v344, %v702
      %v704 = vcombine.high %v703, %v703
      %v707 = vlaneseq
      %v708 = vshrl.u32 %v707, 7
      %v709 = vsub.s32 0, %v708
      %v710 = vrot.slane %v703, %v709
      %712 = vbcast.lane.b32.xlu0 %v710, 256
      %v713 = vpop.permute.xlu0 %712
      %s715 = sor.u32 256, 8
      %716 = vbcast.lane.b32.xlu0 %v710, %s715
      %v717 = vpop.permute.xlu0 %716
      %s719 = sor.u32 256, 16
      %720 = vbcast.lane.b32.xlu0 %v710, %s719
      %v721 = vpop.permute.xlu0 %720
      %s723 = sor.u32 256, 24
      %724 = vbcast.lane.b32.xlu0 %v710, %s723
      %v725 = vpop.permute.xlu0 %724
      %s727 = sor.u32 256, 32
      %728 = vbcast.lane.b32.xlu0 %v710, %s727
      %v729 = vpop.permute.xlu0 %728
      %s731 = sor.u32 256, 40
      %732 = vbcast.lane.b32.xlu0 %v710, %s731
      %v733 = vpop.permute.xlu0 %732
      %s735 = sor.u32 256, 48
      %736 = vbcast.lane.b32.xlu0 %v710, %s735
      %v737 = vpop.permute.xlu0 %736
      %s739 = sor.u32 256, 56
      %740 = vbcast.lane.b32.xlu0 %v710, %s739
      %v741 = vpop.permute.xlu0 %740
      %s743 = sor.u32 256, 64
      %744 = vbcast.lane.b32.xlu0 %v710, %s743
      %v745 = vpop.permute.xlu0 %744
      %s747 = sor.u32 256, 72
      %748 = vbcast.lane.b32.xlu0 %v710, %s747
      %v749 = vpop.permute.xlu0 %748
      %s751 = sor.u32 256, 80
      %752 = vbcast.lane.b32.xlu0 %v710, %s751
      %v753 = vpop.permute.xlu0 %752
      %s755 = sor.u32 256, 88
      %756 = vbcast.lane.b32.xlu0 %v710, %s755
      %v757 = vpop.permute.xlu0 %756
      %s759 = sor.u32 256, 96
      %760 = vbcast.lane.b32.xlu0 %v710, %s759
      %v761 = vpop.permute.xlu0 %760
      %s763 = sor.u32 256, 104
      %764 = vbcast.lane.b32.xlu0 %v710, %s763
      %v765 = vpop.permute.xlu0 %764
      %s767 = sor.u32 256, 112
      %768 = vbcast.lane.b32.xlu0 %v710, %s767
      %v769 = vpop.permute.xlu0 %768
      %s771 = sor.u32 256, 120
      %772 = vbcast.lane.b32.xlu0 %v710, %s771
      %v773 = vpop.permute.xlu0 %772
      %v774 = vlaneseq
      %v775 = vshrl.u32 %v774, 7
      %v776 = vsub.s32 0, %v775
      %v777 = vrot.slane %v704, %v776
      %779 = vbcast.lane.b32.xlu0 %v777, 256
      %v780 = vpop.permute.xlu0 %779
      %s782 = sor.u32 256, 8
      %783 = vbcast.lane.b32.xlu0 %v777, %s782
      %v784 = vpop.permute.xlu0 %783
      %s786 = sor.u32 256, 16
      %787 = vbcast.lane.b32.xlu0 %v777, %s786
      %v788 = vpop.permute.xlu0 %787
      %s790 = sor.u32 256, 24
      %791 = vbcast.lane.b32.xlu0 %v777, %s790
      %v792 = vpop.permute.xlu0 %791
      %s794 = sor.u32 256, 32
      %795 = vbcast.lane.b32.xlu0 %v777, %s794
      %v796 = vpop.permute.xlu0 %795
      %s798 = sor.u32 256, 40
      %799 = vbcast.lane.b32.xlu0 %v777, %s798
      %v800 = vpop.permute.xlu0 %799
      %s802 = sor.u32 256, 48
      %803 = vbcast.lane.b32.xlu0 %v777, %s802
      %v804 = vpop.permute.xlu0 %803
      %s806 = sor.u32 256, 56
      %807 = vbcast.lane.b32.xlu0 %v777, %s806
      %v808 = vpop.permute.xlu0 %807
      %s810 = sor.u32 256, 64
      %811 = vbcast.lane.b32.xlu0 %v777, %s810
      %v812 = vpop.permute.xlu0 %811
      %v813 = vlaneseq
      %v814 = vshrl.u32 %v813, 7
      %v815 = vsub.s32 1, %v814
      %v816 = vrot.slane %v703, %v815
      %818 = vbcast.lane.b32.xlu0 %v816, 256
      %v819 = vpop.permute.xlu0 %818
      %s821 = sor.u32 256, 8
      %822 = vbcast.lane.b32.xlu0 %v816, %s821
      %v823 = vpop.permute.xlu0 %822
      %s825 = sor.u32 256, 16
      %826 = vbcast.lane.b32.xlu0 %v816, %s825
      %v827 = vpop.permute.xlu0 %826
      %s829 = sor.u32 256, 24
      %830 = vbcast.lane.b32.xlu0 %v816, %s829
      %v831 = vpop.permute.xlu0 %830
      %s833 = sor.u32 256, 32
      %834 = vbcast.lane.b32.xlu0 %v816, %s833
      %v835 = vpop.permute.xlu0 %834
      %s837 = sor.u32 256, 40
      %838 = vbcast.lane.b32.xlu0 %v816, %s837
      %v839 = vpop.permute.xlu0 %838
      %s841 = sor.u32 256, 48
      %842 = vbcast.lane.b32.xlu0 %v816, %s841
      %v843 = vpop.permute.xlu0 %842
      %s845 = sor.u32 256, 56
      %846 = vbcast.lane.b32.xlu0 %v816, %s845
      %v847 = vpop.permute.xlu0 %846
      %s849 = sor.u32 256, 64
      %850 = vbcast.lane.b32.xlu0 %v816, %s849
      %v851 = vpop.permute.xlu0 %850
      %s853 = sor.u32 256, 72
      %854 = vbcast.lane.b32.xlu0 %v816, %s853
      %v855 = vpop.permute.xlu0 %854
      %s857 = sor.u32 256, 80
      %858 = vbcast.lane.b32.xlu0 %v816, %s857
      %v859 = vpop.permute.xlu0 %858
      %s861 = sor.u32 256, 88
      %862 = vbcast.lane.b32.xlu0 %v816, %s861
      %v863 = vpop.permute.xlu0 %862
      %s865 = sor.u32 256, 96
      %866 = vbcast.lane.b32.xlu0 %v816, %s865
      %v867 = vpop.permute.xlu0 %866
      %s869 = sor.u32 256, 104
      %870 = vbcast.lane.b32.xlu0 %v816, %s869
      %v871 = vpop.permute.xlu0 %870
      %s873 = sor.u32 256, 112
      %874 = vbcast.lane.b32.xlu0 %v816, %s873
      %v875 = vpop.permute.xlu0 %874
      %s877 = sor.u32 256, 120
      %878 = vbcast.lane.b32.xlu0 %v816, %s877
      %v879 = vpop.permute.xlu0 %878
      %v880 = vlaneseq
      %v881 = vshrl.u32 %v880, 7
      %v882 = vsub.s32 1, %v881
      %v883 = vrot.slane %v704, %v882
      %885 = vbcast.lane.b32.xlu0 %v883, 256
      %v886 = vpop.permute.xlu0 %885
      %s888 = sor.u32 256, 8
      %889 = vbcast.lane.b32.xlu0 %v883, %s888
      %v890 = vpop.permute.xlu0 %889
      %s892 = sor.u32 256, 16
      %893 = vbcast.lane.b32.xlu0 %v883, %s892
      %v894 = vpop.permute.xlu0 %893
      %s896 = sor.u32 256, 24
      %897 = vbcast.lane.b32.xlu0 %v883, %s896
      %v898 = vpop.permute.xlu0 %897
      %s900 = sor.u32 256, 32
      %901 = vbcast.lane.b32.xlu0 %v883, %s900
      %v902 = vpop.permute.xlu0 %901
      %s904 = sor.u32 256, 40
      %905 = vbcast.lane.b32.xlu0 %v883, %s904
      %v906 = vpop.permute.xlu0 %905
      %s908 = sor.u32 256, 48
      %909 = vbcast.lane.b32.xlu0 %v883, %s908
      %v910 = vpop.permute.xlu0 %909
      %s912 = sor.u32 256, 56
      %913 = vbcast.lane.b32.xlu0 %v883, %s912
      %v914 = vpop.permute.xlu0 %913
      %s916 = sor.u32 256, 64
      %917 = vbcast.lane.b32.xlu0 %v883, %s916
      %v918 = vpop.permute.xlu0 %917
      %v919 = vsub.f32 %v596, %v713
      %v920 = vsub.f32 %v597, %v713
      %v921 = vsub.f32 %v598, %v717
      %v922 = vsub.f32 %v599, %v717
      %v923 = vsub.f32 %v600, %v721
      %v924 = vsub.f32 %v601, %v721
      %v925 = vsub.f32 %v602, %v725
      %v926 = vsub.f32 %v603, %v725
      %v927 = vsub.f32 %v604, %v729
      %v928 = vsub.f32 %v605, %v729
      %v929 = vsub.f32 %v606, %v733
      %v930 = vsub.f32 %v607, %v733
      %v931 = vsub.f32 %v608, %v737
      %v932 = vsub.f32 %v609, %v737
      %v933 = vsub.f32 %v610, %v741
      %v934 = vsub.f32 %v611, %v741
      %v935 = vsub.f32 %v612, %v745
      %v936 = vsub.f32 %v613, %v745
      %v937 = vsub.f32 %v614, %v749
      %v938 = vsub.f32 %v615, %v749
      %v939 = vsub.f32 %v616, %v753
      %v940 = vsub.f32 %v617, %v753
      %v941 = vsub.f32 %v618, %v757
      %v942 = vsub.f32 %v619, %v757
      %v943 = vsub.f32 %v620, %v761
      %v944 = vsub.f32 %v621, %v761
      %v945 = vsub.f32 %v622, %v765
      %v946 = vsub.f32 %v623, %v765
      %v947 = vsub.f32 %v624, %v769
      %v948 = vsub.f32 %v625, %v769
      %v949 = vsub.f32 %v626, %v773
      %v950 = vsub.f32 %v627, %v773
      %v951 = vsub.f32 %v628, %v780
      %v952 = vsub.f32 %v629, %v780
      %v953 = vsub.f32 %v630, %v784
      %v954 = vsub.f32 %v631, %v784
      %v955 = vsub.f32 %v632, %v788
      %v956 = vsub.f32 %v633, %v788
      %v957 = vsub.f32 %v634, %v792
      %v958 = vsub.f32 %v635, %v792
      %v959 = vsub.f32 %v636, %v796
      %v960 = vsub.f32 %v637, %v796
      %v961 = vsub.f32 %v638, %v800
      %v962 = vsub.f32 %v639, %v800
      %v963 = vsub.f32 %v640, %v804
      %v964 = vsub.f32 %v641, %v804
      %v965 = vsub.f32 %v642, %v808
      %v966 = vsub.f32 %v643, %v808
      %v967 = vsub.f32 %v644, %v812
      %v968 = vsub.f32 %v645, %v812
      %v969 = vsub.f32 %v646, %v819
      %v970 = vsub.f32 %v647, %v819
      %v971 = vsub.f32 %v648, %v823
      %v972 = vsub.f32 %v649, %v823
      %v973 = vsub.f32 %v650, %v827
      %v974 = vsub.f32 %v651, %v827
      %v975 = vsub.f32 %v652, %v831
      %v976 = vsub.f32 %v653, %v831
      %v977 = vsub.f32 %v654, %v835
      %v978 = vsub.f32 %v655, %v835
      %v979 = vsub.f32 %v656, %v839
      %v980 = vsub.f32 %v657, %v839
      %v981 = vsub.f32 %v658, %v843
      %v982 = vsub.f32 %v659, %v843
      %v983 = vsub.f32 %v660, %v847
      %v984 = vsub.f32 %v661, %v847
      %v985 = vsub.f32 %v662, %v851
      %v986 = vsub.f32 %v663, %v851
      %v987 = vsub.f32 %v664, %v855
      %v988 = vsub.f32 %v665, %v855
      %v989 = vsub.f32 %v666, %v859
      %v990 = vsub.f32 %v667, %v859
      %v991 = vsub.f32 %v668, %v863
      %v992 = vsub.f32 %v669, %v863
      %v993 = vsub.f32 %v670, %v867
      %v994 = vsub.f32 %v671, %v867
      %v995 = vsub.f32 %v672, %v871
      %v996 = vsub.f32 %v673, %v871
      %v997 = vsub.f32 %v674, %v875
      %v998 = vsub.f32 %v675, %v875
      %v999 = vsub.f32 %v676, %v879
      %v1000 = vsub.f32 %v677, %v879
      %v1001 = vsub.f32 %v678, %v886
      %v1002 = vsub.f32 %v679, %v886
      %v1003 = vsub.f32 %v680, %v890
      %v1004 = vsub.f32 %v681, %v890
      %v1005 = vsub.f32 %v682, %v894
      %v1006 = vsub.f32 %v683, %v894
      %v1007 = vsub.f32 %v684, %v898
      %v1008 = vsub.f32 %v685, %v898
      %v1009 = vsub.f32 %v686, %v902
      %v1010 = vsub.f32 %v687, %v902
      %v1011 = vsub.f32 %v688, %v906
      %v1012 = vsub.f32 %v689, %v906
      %v1013 = vsub.f32 %v690, %v910
      %v1014 = vsub.f32 %v691, %v910
      %v1015 = vsub.f32 %v692, %v914
      %v1016 = vsub.f32 %v693, %v914
      %v1017 = vsub.f32 %v694, %v918
      %v1018 = vsub.f32 %v695, %v918
      %v1019 = vmul.f32 %v919, 1.442695
      %v1020 = vpow.pop %v1019
      %v1021 = vmul.f32 %v920, 1.442695
      %v1022 = vpow.pop %v1021
      %v1023 = vmul.f32 %v921, 1.442695
      %v1024 = vpow.pop %v1023
      %v1025 = vmul.f32 %v922, 1.442695
      %v1026 = vpow.pop %v1025
      %v1027 = vmul.f32 %v923, 1.442695
      %v1028 = vpow.pop %v1027
      %v1029 = vmul.f32 %v924, 1.442695
      %v1030 = vpow.pop %v1029
      %v1031 = vmul.f32 %v925, 1.442695
      %v1032 = vpow.pop %v1031
      %v1033 = vmul.f32 %v926, 1.442695
      %v1034 = vpow.pop %v1033
      %v1035 = vmul.f32 %v927, 1.442695
      %v1036 = vpow.pop %v1035
      %v1037 = vmul.f32 %v928, 1.442695
      %v1038 = vpow.pop %v1037
      %v1039 = vmul.f32 %v929, 1.442695
      %v1040 = vpow.pop %v1039
      %v1041 = vmul.f32 %v930, 1.442695
      %v1042 = vpow.pop %v1041
      %v1043 = vmul.f32 %v931, 1.442695
      %v1044 = vpow.pop %v1043
      %v1045 = vmul.f32 %v932, 1.442695
      %v1046 = vpow.pop %v1045
      %v1047 = vmul.f32 %v933, 1.442695
      %v1048 = vpow.pop %v1047
      %v1049 = vmul.f32 %v934, 1.442695
      %v1050 = vpow.pop %v1049
      %v1051 = vmul.f32 %v935, 1.442695
      %v1052 = vpow.pop %v1051
      %v1053 = vmul.f32 %v936, 1.442695
      %v1054 = vpow.pop %v1053
      %v1055 = vmul.f32 %v937, 1.442695
      %v1056 = vpow.pop %v1055
      %v1057 = vmul.f32 %v938, 1.442695
      %v1058 = vpow.pop %v1057
      %v1059 = vmul.f32 %v939, 1.442695
      %v1060 = vpow.pop %v1059
      %v1061 = vmul.f32 %v940, 1.442695
      %v1062 = vpow.pop %v1061
      %v1063 = vmul.f32 %v941, 1.442695
      %v1064 = vpow.pop %v1063
      %v1065 = vmul.f32 %v942, 1.442695
      %v1066 = vpow.pop %v1065
      %v1067 = vmul.f32 %v943, 1.442695
      %v1068 = vpow.pop %v1067
      %v1069 = vmul.f32 %v944, 1.442695
      %v1070 = vpow.pop %v1069
      %v1071 = vmul.f32 %v945, 1.442695
      %v1072 = vpow.pop %v1071
      %v1073 = vmul.f32 %v946, 1.442695
      %v1074 = vpow.pop %v1073
      %v1075 = vmul.f32 %v947, 1.442695
      %v1076 = vpow.pop %v1075
      %v1077 = vmul.f32 %v948, 1.442695
      %v1078 = vpow.pop %v1077
      %v1079 = vmul.f32 %v949, 1.442695
      %v1080 = vpow.pop %v1079
      %v1081 = vmul.f32 %v950, 1.442695
      %v1082 = vpow.pop %v1081
      %v1083 = vmul.f32 %v951, 1.442695
      %v1084 = vpow.pop %v1083
      %v1085 = vmul.f32 %v952, 1.442695
      %v1086 = vpow.pop %v1085
      %v1087 = vmul.f32 %v953, 1.442695
      %v1088 = vpow.pop %v1087
      %v1089 = vmul.f32 %v954, 1.442695
      %v1090 = vpow.pop %v1089
      %v1091 = vmul.f32 %v955, 1.442695
      %v1092 = vpow.pop %v1091
      %v1093 = vmul.f32 %v956, 1.442695
      %v1094 = vpow.pop %v1093
      %v1095 = vmul.f32 %v957, 1.442695
      %v1096 = vpow.pop %v1095
      %v1097 = vmul.f32 %v958, 1.442695
      %v1098 = vpow.pop %v1097
      %v1099 = vmul.f32 %v959, 1.442695
      %v1100 = vpow.pop %v1099
      %v1101 = vmul.f32 %v960, 1.442695
      %v1102 = vpow.pop %v1101
      %v1103 = vmul.f32 %v961, 1.442695
      %v1104 = vpow.pop %v1103
      %v1105 = vmul.f32 %v962, 1.442695
      %v1106 = vpow.pop %v1105
      %v1107 = vmul.f32 %v963, 1.442695
      %v1108 = vpow.pop %v1107
      %v1109 = vmul.f32 %v964, 1.442695
      %v1110 = vpow.pop %v1109
      %v1111 = vmul.f32 %v965, 1.442695
      %v1112 = vpow.pop %v1111
      %v1113 = vmul.f32 %v966, 1.442695
      %v1114 = vpow.pop %v1113
      %v1115 = vmul.f32 %v967, 1.442695
      %v1116 = vpow.pop %v1115
      %v1117 = vmul.f32 %v968, 1.442695
      %v1118 = vpow.pop %v1117
      %v1119 = vmul.f32 %v969, 1.442695
      %v1120 = vpow.pop %v1119
      %v1121 = vmul.f32 %v970, 1.442695
      %v1122 = vpow.pop %v1121
      %v1123 = vmul.f32 %v971, 1.442695
      %v1124 = vpow.pop %v1123
      %v1125 = vmul.f32 %v972, 1.442695
      %v1126 = vpow.pop %v1125
      %v1127 = vmul.f32 %v973, 1.442695
      %v1128 = vpow.pop %v1127
      %v1129 = vmul.f32 %v974, 1.442695
      %v1130 = vpow.pop %v1129
      %v1131 = vmul.f32 %v975, 1.442695
      %v1132 = vpow.pop %v1131
      %v1133 = vmul.f32 %v976, 1.442695
      %v1134 = vpow.pop %v1133
      %v1135 = vmul.f32 %v977, 1.442695
      %v1136 = vpow.pop %v1135
      %v1137 = vmul.f32 %v978, 1.442695
      %v1138 = vpow.pop %v1137
      %v1139 = vmul.f32 %v979, 1.442695
      %v1140 = vpow.pop %v1139
      %v1141 = vmul.f32 %v980, 1.442695
      %v1142 = vpow.pop %v1141
      %v1143 = vmul.f32 %v981, 1.442695
      %v1144 = vpow.pop %v1143
      %v1145 = vmul.f32 %v982, 1.442695
      %v1146 = vpow.pop %v1145
      %v1147 = vmul.f32 %v983, 1.442695
      %v1148 = vpow.pop %v1147
      %v1149 = vmul.f32 %v984, 1.442695
      %v1150 = vpow.pop %v1149
      %v1151 = vmul.f32 %v985, 1.442695
      %v1152 = vpow.pop %v1151
      %v1153 = vmul.f32 %v986, 1.442695
      %v1154 = vpow.pop %v1153
      %v1155 = vmul.f32 %v987, 1.442695
      %v1156 = vpow.pop %v1155
      %v1157 = vmul.f32 %v988, 1.442695
      %v1158 = vpow.pop %v1157
      %v1159 = vmul.f32 %v989, 1.442695
      %v1160 = vpow.pop %v1159
      %v1161 = vmul.f32 %v990, 1.442695
      %v1162 = vpow.pop %v1161
      %v1163 = vmul.f32 %v991, 1.442695
      %v1164 = vpow.pop %v1163
      %v1165 = vmul.f32 %v992, 1.442695
      %v1166 = vpow.pop %v1165
      %v1167 = vmul.f32 %v993, 1.442695
      %v1168 = vpow.pop %v1167
      %v1169 = vmul.f32 %v994, 1.442695
      %v1170 = vpow.pop %v1169
      %v1171 = vmul.f32 %v995, 1.442695
      %v1172 = vpow.pop %v1171
      %v1173 = vmul.f32 %v996, 1.442695
      %v1174 = vpow.pop %v1173
      %v1175 = vmul.f32 %v997, 1.442695
      %v1176 = vpow.pop %v1175
      %v1177 = vmul.f32 %v998, 1.442695
      %v1178 = vpow.pop %v1177
      %v1179 = vmul.f32 %v999, 1.442695
      %v1180 = vpow.pop %v1179
      %v1181 = vmul.f32 %v1000, 1.442695
      %v1182 = vpow.pop %v1181
      %v1183 = vmul.f32 %v1001, 1.442695
      %v1184 = vpow.pop %v1183
      %v1185 = vmul.f32 %v1002, 1.442695
      %v1186 = vpow.pop %v1185
      %v1187 = vmul.f32 %v1003, 1.442695
      %v1188 = vpow.pop %v1187
      %v1189 = vmul.f32 %v1004, 1.442695
      %v1190 = vpow.pop %v1189
      %v1191 = vmul.f32 %v1005, 1.442695
      %v1192 = vpow.pop %v1191
      %v1193 = vmul.f32 %v1006, 1.442695
      %v1194 = vpow.pop %v1193
      %v1195 = vmul.f32 %v1007, 1.442695
      %v1196 = vpow.pop %v1195
      %v1197 = vmul.f32 %v1008, 1.442695
      %v1198 = vpow.pop %v1197
      %v1199 = vmul.f32 %v1009, 1.442695
      %v1200 = vpow.pop %v1199
      %v1201 = vmul.f32 %v1010, 1.442695
      %v1202 = vpow.pop %v1201
      %v1203 = vmul.f32 %v1011, 1.442695
      %v1204 = vpow.pop %v1203
      %v1205 = vmul.f32 %v1012, 1.442695
      %v1206 = vpow.pop %v1205
      %v1207 = vmul.f32 %v1013, 1.442695
      %v1208 = vpow.pop %v1207
      %v1209 = vmul.f32 %v1014, 1.442695
      %v1210 = vpow.pop %v1209
      %v1211 = vmul.f32 %v1015, 1.442695
      %v1212 = vpow.pop %v1211
      %v1213 = vmul.f32 %v1016, 1.442695
      %v1214 = vpow.pop %v1213
      %v1215 = vmul.f32 %v1017, 1.442695
      %v1216 = vpow.pop %v1215
      %v1217 = vmul.f32 %v1018, 1.442695
      %v1218 = vpow.pop %v1217
      %v1221 = vunpack.c.l.s4 1983009808
      %v1222 = vunpack.c.0.s8 %v1221
      %v1223 = vlaneseq
      %v1224 = vshrl.u32 %v1223, 7
      %v1225 = vsub.s32 %v1222, %v1224
      %v1226 = vrot.slane %v299, %v1225
      %v1227 = vcombine.high %v1226, %v1226
      %v1230 = vlaneseq
      %v1231 = vshrl.u32 %v1230, 7
      %v1232 = vsub.s32 0, %v1231
      %v1233 = vrot.slane %v1226, %v1232
      %1235 = vbcast.lane.b32.xlu0 %v1233, 256
      %v1236 = vpop.permute.xlu0 %1235
      %s1238 = sor.u32 256, 8
      %1239 = vbcast.lane.b32.xlu0 %v1233, %s1238
      %v1240 = vpop.permute.xlu0 %1239
      %s1242 = sor.u32 256, 16
      %1243 = vbcast.lane.b32.xlu0 %v1233, %s1242
      %v1244 = vpop.permute.xlu0 %1243
      %s1246 = sor.u32 256, 24
      %1247 = vbcast.lane.b32.xlu0 %v1233, %s1246
      %v1248 = vpop.permute.xlu0 %1247
      %s1250 = sor.u32 256, 32
      %1251 = vbcast.lane.b32.xlu0 %v1233, %s1250
      %v1252 = vpop.permute.xlu0 %1251
      %s1254 = sor.u32 256, 40
      %1255 = vbcast.lane.b32.xlu0 %v1233, %s1254
      %v1256 = vpop.permute.xlu0 %1255
      %s1258 = sor.u32 256, 48
      %1259 = vbcast.lane.b32.xlu0 %v1233, %s1258
      %v1260 = vpop.permute.xlu0 %1259
      %s1262 = sor.u32 256, 56
      %1263 = vbcast.lane.b32.xlu0 %v1233, %s1262
      %v1264 = vpop.permute.xlu0 %1263
      %s1266 = sor.u32 256, 64
      %1267 = vbcast.lane.b32.xlu0 %v1233, %s1266
      %v1268 = vpop.permute.xlu0 %1267
      %s1270 = sor.u32 256, 72
      %1271 = vbcast.lane.b32.xlu0 %v1233, %s1270
      %v1272 = vpop.permute.xlu0 %1271
      %s1274 = sor.u32 256, 80
      %1275 = vbcast.lane.b32.xlu0 %v1233, %s1274
      %v1276 = vpop.permute.xlu0 %1275
      %s1278 = sor.u32 256, 88
      %1279 = vbcast.lane.b32.xlu0 %v1233, %s1278
      %v1280 = vpop.permute.xlu0 %1279
      %s1282 = sor.u32 256, 96
      %1283 = vbcast.lane.b32.xlu0 %v1233, %s1282
      %v1284 = vpop.permute.xlu0 %1283
      %s1286 = sor.u32 256, 104
      %1287 = vbcast.lane.b32.xlu0 %v1233, %s1286
      %v1288 = vpop.permute.xlu0 %1287
      %s1290 = sor.u32 256, 112
      %1291 = vbcast.lane.b32.xlu0 %v1233, %s1290
      %v1292 = vpop.permute.xlu0 %1291
      %s1294 = sor.u32 256, 120
      %1295 = vbcast.lane.b32.xlu0 %v1233, %s1294
      %v1296 = vpop.permute.xlu0 %1295
      %v1297 = vlaneseq
      %v1298 = vshrl.u32 %v1297, 7
      %v1299 = vsub.s32 0, %v1298
      %v1300 = vrot.slane %v1227, %v1299
      %1302 = vbcast.lane.b32.xlu0 %v1300, 256
      %v1303 = vpop.permute.xlu0 %1302
      %s1305 = sor.u32 256, 8
      %1306 = vbcast.lane.b32.xlu0 %v1300, %s1305
      %v1307 = vpop.permute.xlu0 %1306
      %s1309 = sor.u32 256, 16
      %1310 = vbcast.lane.b32.xlu0 %v1300, %s1309
      %v1311 = vpop.permute.xlu0 %1310
      %s1313 = sor.u32 256, 24
      %1314 = vbcast.lane.b32.xlu0 %v1300, %s1313
      %v1315 = vpop.permute.xlu0 %1314
      %s1317 = sor.u32 256, 32
      %1318 = vbcast.lane.b32.xlu0 %v1300, %s1317
      %v1319 = vpop.permute.xlu0 %1318
      %s1321 = sor.u32 256, 40
      %1322 = vbcast.lane.b32.xlu0 %v1300, %s1321
      %v1323 = vpop.permute.xlu0 %1322
      %s1325 = sor.u32 256, 48
      %1326 = vbcast.lane.b32.xlu0 %v1300, %s1325
      %v1327 = vpop.permute.xlu0 %1326
      %s1329 = sor.u32 256, 56
      %1330 = vbcast.lane.b32.xlu0 %v1300, %s1329
      %v1331 = vpop.permute.xlu0 %1330
      %s1333 = sor.u32 256, 64
      %1334 = vbcast.lane.b32.xlu0 %v1300, %s1333
      %v1335 = vpop.permute.xlu0 %1334
      %v1336 = vlaneseq
      %v1337 = vshrl.u32 %v1336, 7
      %v1338 = vsub.s32 1, %v1337
      %v1339 = vrot.slane %v1226, %v1338
      %1341 = vbcast.lane.b32.xlu0 %v1339, 256
      %v1342 = vpop.permute.xlu0 %1341
      %s1344 = sor.u32 256, 8
      %1345 = vbcast.lane.b32.xlu0 %v1339, %s1344
      %v1346 = vpop.permute.xlu0 %1345
      %s1348 = sor.u32 256, 16
      %1349 = vbcast.lane.b32.xlu0 %v1339, %s1348
      %v1350 = vpop.permute.xlu0 %1349
      %s1352 = sor.u32 256, 24
      %1353 = vbcast.lane.b32.xlu0 %v1339, %s1352
      %v1354 = vpop.permute.xlu0 %1353
      %s1356 = sor.u32 256, 32
      %1357 = vbcast.lane.b32.xlu0 %v1339, %s1356
      %v1358 = vpop.permute.xlu0 %1357
      %s1360 = sor.u32 256, 40
      %1361 = vbcast.lane.b32.xlu0 %v1339, %s1360
      %v1362 = vpop.permute.xlu0 %1361
      %s1364 = sor.u32 256, 48
      %1365 = vbcast.lane.b32.xlu0 %v1339, %s1364
      %v1366 = vpop.permute.xlu0 %1365
      %s1368 = sor.u32 256, 56
      %1369 = vbcast.lane.b32.xlu0 %v1339, %s1368
      %v1370 = vpop.permute.xlu0 %1369
      %s1372 = sor.u32 256, 64
      %1373 = vbcast.lane.b32.xlu0 %v1339, %s1372
      %v1374 = vpop.permute.xlu0 %1373
      %s1376 = sor.u32 256, 72
      %1377 = vbcast.lane.b32.xlu0 %v1339, %s1376
      %v1378 = vpop.permute.xlu0 %1377
      %s1380 = sor.u32 256, 80
      %1381 = vbcast.lane.b32.xlu0 %v1339, %s1380
      %v1382 = vpop.permute.xlu0 %1381
      %s1384 = sor.u32 256, 88
      %1385 = vbcast.lane.b32.xlu0 %v1339, %s1384
      %v1386 = vpop.permute.xlu0 %1385
      %s1388 = sor.u32 256, 96
      %1389 = vbcast.lane.b32.xlu0 %v1339, %s1388
      %v1390 = vpop.permute.xlu0 %1389
      %s1392 = sor.u32 256, 104
      %1393 = vbcast.lane.b32.xlu0 %v1339, %s1392
      %v1394 = vpop.permute.xlu0 %1393
      %s1396 = sor.u32 256, 112
      %1397 = vbcast.lane.b32.xlu0 %v1339, %s1396
      %v1398 = vpop.permute.xlu0 %1397
      %s1400 = sor.u32 256, 120
      %1401 = vbcast.lane.b32.xlu0 %v1339, %s1400
      %v1402 = vpop.permute.xlu0 %1401
      %v1403 = vlaneseq
      %v1404 = vshrl.u32 %v1403, 7
      %v1405 = vsub.s32 1, %v1404
      %v1406 = vrot.slane %v1227, %v1405
      %1408 = vbcast.lane.b32.xlu0 %v1406, 256
      %v1409 = vpop.permute.xlu0 %1408
      %s1411 = sor.u32 256, 8
      %1412 = vbcast.lane.b32.xlu0 %v1406, %s1411
      %v1413 = vpop.permute.xlu0 %1412
      %s1415 = sor.u32 256, 16
      %1416 = vbcast.lane.b32.xlu0 %v1406, %s1415
      %v1417 = vpop.permute.xlu0 %1416
      %s1419 = sor.u32 256, 24
      %1420 = vbcast.lane.b32.xlu0 %v1406, %s1419
      %v1421 = vpop.permute.xlu0 %1420
      %s1423 = sor.u32 256, 32
      %1424 = vbcast.lane.b32.xlu0 %v1406, %s1423
      %v1425 = vpop.permute.xlu0 %1424
      %s1427 = sor.u32 256, 40
      %1428 = vbcast.lane.b32.xlu0 %v1406, %s1427
      %v1429 = vpop.permute.xlu0 %1428
      %s1431 = sor.u32 256, 48
      %1432 = vbcast.lane.b32.xlu0 %v1406, %s1431
      %v1433 = vpop.permute.xlu0 %1432
      %s1435 = sor.u32 256, 56
      %1436 = vbcast.lane.b32.xlu0 %v1406, %s1435
      %v1437 = vpop.permute.xlu0 %1436
      %s1439 = sor.u32 256, 64
      %1440 = vbcast.lane.b32.xlu0 %v1406, %s1439
      %v1441 = vpop.permute.xlu0 %1440
      %vm1442 = vcmask 7168
      %v1443 = vsel %vm1442, 1.0, %v1236
      %v1444 = vsel %vm1442, 1.0, %v1240
      %v1445 = vsel %vm1442, 1.0, %v1244
      %v1446 = vsel %vm1442, 1.0, %v1248
      %v1447 = vsel %vm1442, 1.0, %v1252
      %v1448 = vsel %vm1442, 1.0, %v1256
      %v1449 = vsel %vm1442, 1.0, %v1260
      %v1450 = vsel %vm1442, 1.0, %v1264
      %v1451 = vsel %vm1442, 1.0, %v1268
      %v1452 = vsel %vm1442, 1.0, %v1272
      %v1453 = vsel %vm1442, 1.0, %v1276
      %v1454 = vsel %vm1442, 1.0, %v1280
      %v1455 = vsel %vm1442, 1.0, %v1284
      %v1456 = vsel %vm1442, 1.0, %v1288
      %v1457 = vsel %vm1442, 1.0, %v1292
      %v1458 = vsel %vm1442, 1.0, %v1296
      %v1459 = vsel %vm1442, 1.0, %v1303
      %v1460 = vsel %vm1442, 1.0, %v1307
      %v1461 = vsel %vm1442, 1.0, %v1311
      %v1462 = vsel %vm1442, 1.0, %v1315
      %v1463 = vsel %vm1442, 1.0, %v1319
      %v1464 = vsel %vm1442, 1.0, %v1323
      %v1465 = vsel %vm1442, 1.0, %v1327
      %v1466 = vsel %vm1442, 1.0, %v1331
      %v1467 = vsel %vm1442, 1.0, %v1335
      %v1468 = vsel %vm1442, 1.0, %v1342
      %v1469 = vsel %vm1442, 1.0, %v1346
      %v1470 = vsel %vm1442, 1.0, %v1350
      %v1471 = vsel %vm1442, 1.0, %v1354
      %v1472 = vsel %vm1442, 1.0, %v1358
      %v1473 = vsel %vm1442, 1.0, %v1362
      %v1474 = vsel %vm1442, 1.0, %v1366
      %v1475 = vsel %vm1442, 1.0, %v1370
      %v1476 = vsel %vm1442, 1.0, %v1374
      %v1477 = vsel %vm1442, 1.0, %v1378
      %v1478 = vsel %vm1442, 1.0, %v1382
      %v1479 = vsel %vm1442, 1.0, %v1386
      %v1480 = vsel %vm1442, 1.0, %v1390
      %v1481 = vsel %vm1442, 1.0, %v1394
      %v1482 = vsel %vm1442, 1.0, %v1398
      %v1483 = vsel %vm1442, 1.0, %v1402
      %v1484 = vsel %vm1442, 1.0, %v1409
      %v1485 = vsel %vm1442, 1.0, %v1413
      %v1486 = vsel %vm1442, 1.0, %v1417
      %v1487 = vsel %vm1442, 1.0, %v1421
      %v1488 = vsel %vm1442, 1.0, %v1425
      %v1489 = vsel %vm1442, 1.0, %v1429
      %v1490 = vsel %vm1442, 1.0, %v1433
      %v1491 = vsel %vm1442, 1.0, %v1437
      %v1492 = vsel %vm1442, 1.0, %v1441
      %vm1493 = vcmask 588800
      %v1495 = vsel %vm1493, %v1022, 0
      %v1498 = vsel %vm1493, %v1026, 0
      %v1501 = vsel %vm1493, %v1030, 0
      %v1504 = vsel %vm1493, %v1034, 0
      %v1507 = vsel %vm1493, %v1038, 0
      %v1510 = vsel %vm1493, %v1042, 0
      %v1513 = vsel %vm1493, %v1046, 0
      %v1516 = vsel %vm1493, %v1050, 0
      %v1519 = vsel %vm1493, %v1054, 0
      %v1522 = vsel %vm1493, %v1058, 0
      %v1525 = vsel %vm1493, %v1062, 0
      %v1528 = vsel %vm1493, %v1066, 0
      %v1531 = vsel %vm1493, %v1070, 0
      %v1534 = vsel %vm1493, %v1074, 0
      %v1537 = vsel %vm1493, %v1078, 0
      %v1540 = vsel %vm1493, %v1082, 0
      %v1543 = vsel %vm1493, %v1086, 0
      %v1546 = vsel %vm1493, %v1090, 0
      %v1549 = vsel %vm1493, %v1094, 0
      %v1552 = vsel %vm1493, %v1098, 0
      %v1555 = vsel %vm1493, %v1102, 0
      %v1558 = vsel %vm1493, %v1106, 0
      %v1561 = vsel %vm1493, %v1110, 0
      %v1564 = vsel %vm1493, %v1114, 0
      %v1567 = vsel %vm1493, %v1118, 0
      %1569 = vmatprep.subr.mxu0 0.0
      %1570 = vmatpush1.msra.mxu0 %v1443
      %1571 = vmatprep.subr.mxu0 0.0
      %1572 = vmatpush1.msra.mxu0 %v1444
      %1573 = vmatprep.subr.mxu0 0.0
      %1574 = vmatpush1.msra.mxu0 %v1445
      %1575 = vmatprep.subr.mxu0 0.0
      %1576 = vmatpush1.msra.mxu0 %v1446
      %1577 = vmatprep.subr.mxu0 0.0
      %1578 = vmatpush1.msra.mxu0 %v1447
      %1579 = vmatprep.subr.mxu0 0.0
      %1580 = vmatpush1.msra.mxu0 %v1448
      %1581 = vmatprep.subr.mxu0 0.0
      %1582 = vmatpush1.msra.mxu0 %v1449
      %1583 = vmatprep.subr.mxu0 0.0
      %1584 = vmatpush1.msra.mxu0 %v1450
      %1585 = vmatprep.subr.mxu0 0.0
      %1586 = vmatpush1.msra.mxu0 %v1451
      %1587 = vmatprep.subr.mxu0 0.0
      %1588 = vmatpush1.msra.mxu0 %v1452
      %1589 = vmatprep.subr.mxu0 0.0
      %1590 = vmatpush1.msra.mxu0 %v1453
      %1591 = vmatprep.subr.mxu0 0.0
      %1592 = vmatpush1.msra.mxu0 %v1454
      %1593 = vmatprep.subr.mxu0 0.0
      %1594 = vmatpush1.msra.mxu0 %v1455
      %1595 = vmatprep.subr.mxu0 0.0
      %1596 = vmatpush1.msra.mxu0 %v1456
      %1597 = vmatprep.subr.mxu0 0.0
      %1598 = vmatpush1.msra.mxu0 %v1457
      %1599 = vmatprep.subr.mxu0 0.0
      %1600 = vmatpush1.msra.mxu0 %v1458
      %1601 = vmatprep.subr.mxu0 0.0
      %1602 = vmatpush1.msra.mxu0 %v1459
      %1603 = vmatprep.subr.mxu0 0.0
      %1604 = vmatpush1.msra.mxu0 %v1460
      %1605 = vmatprep.subr.mxu0 0.0
      %1606 = vmatpush1.msra.mxu0 %v1461
      %1607 = vmatprep.subr.mxu0 0.0
      %1608 = vmatpush1.msra.mxu0 %v1462
      %1609 = vmatprep.subr.mxu0 0.0
      %1610 = vmatpush1.msra.mxu0 %v1463
      %1611 = vmatprep.subr.mxu0 0.0
      %1612 = vmatpush1.msra.mxu0 %v1464
      %1613 = vmatprep.subr.mxu0 0.0
      %1614 = vmatpush1.msra.mxu0 %v1465
      %1615 = vmatprep.subr.mxu0 0.0
      %1616 = vmatpush1.msra.mxu0 %v1466
      %1617 = vmatprep.subr.mxu0 0.0
      %1618 = vmatpush1.msra.mxu0 %v1467
      %1619 = vmatprep.subr.mxu0 0.0
      %1620 = vmatpush1.msra.mxu0 0.0
      %1621 = vmatprep.subr.mxu0 0.0
      %1622 = vmatpush1.msra.mxu0 0.0
      %1623 = vmatprep.subr.mxu0 0.0
      %1624 = vmatpush1.msra.mxu0 0.0
      %1625 = vmatprep.subr.mxu0 0.0
      %1626 = vmatpush1.msra.mxu0 0.0
      %1627 = vmatprep.subr.mxu0 0.0
      %1628 = vmatpush1.msra.mxu0 0.0
      %1629 = vmatprep.subr.mxu0 0.0
      %1630 = vmatpush1.msra.mxu0 0.0
      %1631 = vmatprep.subr.mxu0 0.0
      %1632 = vmatpush1.msra.mxu0 0.0
      %1633 = vmatprep.mubr.f32.mxu0 %v1495
      %1634 = vmatmul.mubr.f32.gmra.mrb[0].mxu0 %v1020
      %v1635 = vpop.f32.mrb[0].mxu0
      %v1636 = vadd.f32 0.0, %v1635
      %v1637 = vpop.f32.mrb[0].mxu0
      %1638 = vmatprep.mubr.f32.mxu0 %v1498
      %1639 = vmatmul.mubr.f32.gmra.mrb[0].mxu0 %v1024
      %v1640 = vpop.f32.mrb[0].mxu0
      %v1641 = vadd.f32 0.0, %v1640
      %v1642 = vpop.f32.mrb[0].mxu0
      %1643 = vmatprep.mubr.f32.mxu0 %v1501
      %1644 = vmatmul.mubr.f32.gmra.mrb[0].mxu0 %v1028
      %v1645 = vpop.f32.mrb[0].mxu0
      %v1646 = vadd.f32 0.0, %v1645
      %v1647 = vpop.f32.mrb[0].mxu0
      %1648 = vmatprep.mubr.f32.mxu0 %v1504
      %1649 = vmatmul.mubr.f32.gmra.mrb[0].mxu0 %v1032
      %v1650 = vpop.f32.mrb[0].mxu0
      %v1651 = vadd.f32 0.0, %v1650
      %v1652 = vpop.f32.mrb[0].mxu0
      %1653 = vmatprep.mubr.f32.mxu0 %v1507
      %1654 = vmatmul.mubr.f32.gmra.mrb[0].mxu0 %v1036
      %v1655 = vpop.f32.mrb[0].mxu0
      %v1656 = vadd.f32 0.0, %v1655
      %v1657 = vpop.f32.mrb[0].mxu0
      %1658 = vmatprep.mubr.f32.mxu0 %v1510
      %1659 = vmatmul.mubr.f32.gmra.mrb[0].mxu0 %v1040
      %v1660 = vpop.f32.mrb[0].mxu0
      %v1661 = vadd.f32 0.0, %v1660
      %v1662 = vpop.f32.mrb[0].mxu0
      %1663 = vmatprep.mubr.f32.mxu0 %v1513
      %1664 = vmatmul.mubr.f32.gmra.mrb[0].mxu0 %v1044
      %v1665 = vpop.f32.mrb[0].mxu0
      %v1666 = vadd.f32 0.0, %v1665
      %v1667 = vpop.f32.mrb[0].mxu0
      %1668 = vmatprep.mubr.f32.mxu0 %v1516
      %1669 = vmatmul.mubr.f32.gmra.mrb[0].mxu0 %v1048
      %v1670 = vpop.f32.mrb[0].mxu0
      %v1671 = vadd.f32 0.0, %v1670
      %v1672 = vpop.f32.mrb[0].mxu0
      %1673 = vmatprep.mubr.f32.mxu0 %v1519
      %1674 = vmatmul.mubr.f32.gmra.mrb[0].mxu0 %v1052
      %v1675 = vpop.f32.mrb[0].mxu0
      %v1676 = vadd.f32 0.0, %v1675
      %v1677 = vpop.f32.mrb[0].mxu0
      %1678 = vmatprep.mubr.f32.mxu0 %v1522
      %1679 = vmatmul.mubr.f32.gmra.mrb[0].mxu0 %v1056
      %v1680 = vpop.f32.mrb[0].mxu0
      %v1681 = vadd.f32 0.0, %v1680
      %v1682 = vpop.f32.mrb[0].mxu0
      %1683 = vmatprep.mubr.f32.mxu0 %v1525
      %1684 = vmatmul.mubr.f32.gmra.mrb[0].mxu0 %v1060
      %v1685 = vpop.f32.mrb[0].mxu0
      %v1686 = vadd.f32 0.0, %v1685
      %v1687 = vpop.f32.mrb[0].mxu0
      %1688 = vmatprep.mubr.f32.mxu0 %v1528
      %1689 = vmatmul.mubr.f32.gmra.mrb[0].mxu0 %v1064
      %v1690 = vpop.f32.mrb[0].mxu0
      %v1691 = vadd.f32 0.0, %v1690
      %v1692 = vpop.f32.mrb[0].mxu0
      %1693 = vmatprep.mubr.f32.mxu0 %v1531
      %1694 = vmatmul.mubr.f32.gmra.mrb[0].mxu0 %v1068
      %v1695 = vpop.f32.mrb[0].mxu0
      %v1696 = vadd.f32 0.0, %v1695
      %v1697 = vpop.f32.mrb[0].mxu0
      %1698 = vmatprep.mubr.f32.mxu0 %v1534
      %1699 = vmatmul.mubr.f32.gmra.mrb[0].mxu0 %v1072
      %v1700 = vpop.f32.mrb[0].mxu0
      %v1701 = vadd.f32 0.0, %v1700
      %v1702 = vpop.f32.mrb[0].mxu0
      %1703 = vmatprep.mubr.f32.mxu0 %v1537
      %1704 = vmatmul.mubr.f32.gmra.mrb[0].mxu0 %v1076
      %v1705 = vpop.f32.mrb[0].mxu0
      %v1706 = vadd.f32 0.0, %v1705
      %v1707 = vpop.f32.mrb[0].mxu0
      %1708 = vmatprep.mubr.f32.mxu0 %v1540
      %1709 = vmatmul.mubr.f32.gmra.mrb[0].mxu0 %v1080
      %v1710 = vpop.f32.mrb[0].mxu0
      %v1711 = vadd.f32 0.0, %v1710
      %v1712 = vpop.f32.mrb[0].mxu0
      %1713 = vmatprep.mubr.f32.mxu0 %v1543
      %1714 = vmatmul.mubr.f32.gmra.mrb[0].mxu0 %v1084
      %v1715 = vpop.f32.mrb[0].mxu0
      %v1716 = vadd.f32 0.0, %v1715
      %v1717 = vpop.f32.mrb[0].mxu0
      %1718 = vmatprep.mubr.f32.mxu0 %v1546
      %1719 = vmatmul.mubr.f32.gmra.mrb[0].mxu0 %v1088
      %v1720 = vpop.f32.mrb[0].mxu0
      %v1721 = vadd.f32 0.0, %v1720
      %v1722 = vpop.f32.mrb[0].mxu0
      %1723 = vmatprep.mubr.f32.mxu0 %v1549
      %1724 = vmatmul.mubr.f32.gmra.mrb[0].mxu0 %v1092
      %v1725 = vpop.f32.mrb[0].mxu0
      %v1726 = vadd.f32 0.0, %v1725
      %v1727 = vpop.f32.mrb[0].mxu0
      %1728 = vmatprep.mubr.f32.mxu0 %v1552
      %1729 = vmatmul.mubr.f32.gmra.mrb[0].mxu0 %v1096
      %v1730 = vpop.f32.mrb[0].mxu0
      %v1731 = vadd.f32 0.0, %v1730
      %v1732 = vpop.f32.mrb[0].mxu0
      %1733 = vmatprep.mubr.f32.mxu0 %v1555
      %1734 = vmatmul.mubr.f32.gmra.mrb[0].mxu0 %v1100
      %v1735 = vpop.f32.mrb[0].mxu0
      %v1736 = vadd.f32 0.0, %v1735
      %v1737 = vpop.f32.mrb[0].mxu0
      %1738 = vmatprep.mubr.f32.mxu0 %v1558
      %1739 = vmatmul.mubr.f32.gmra.mrb[0].mxu0 %v1104
      %v1740 = vpop.f32.mrb[0].mxu0
      %v1741 = vadd.f32 0.0, %v1740
      %v1742 = vpop.f32.mrb[0].mxu0
      %1743 = vmatprep.mubr.f32.mxu0 %v1561
      %1744 = vmatmul.mubr.f32.gmra.mrb[0].mxu0 %v1108
      %v1745 = vpop.f32.mrb[0].mxu0
      %v1746 = vadd.f32 0.0, %v1745
      %v1747 = vpop.f32.mrb[0].mxu0
      %1748 = vmatprep.mubr.f32.mxu0 %v1564
      %1749 = vmatmul.mubr.f32.gmra.mrb[0].mxu0 %v1112
      %v1750 = vpop.f32.mrb[0].mxu0
      %v1751 = vadd.f32 0.0, %v1750
      %v1752 = vpop.f32.mrb[0].mxu0
      %1753 = vmatprep.mubr.f32.mxu0 %v1567
      %1754 = vmatmul.mubr.f32.gmra.mrb[0].mxu0 %v1116
      %v1755 = vpop.f32.mrb[0].mxu0
      %v1756 = vadd.f32 0.0, %v1755
      %v1757 = vpop.f32.mrb[0].mxu0
      %1758 = vdwg.mxu0
      %v1760 = vsel %vm1493, %v1122, 0
      %v1763 = vsel %vm1493, %v1126, 0
      %v1766 = vsel %vm1493, %v1130, 0
      %v1769 = vsel %vm1493, %v1134, 0
      %v1772 = vsel %vm1493, %v1138, 0
      %v1775 = vsel %vm1493, %v1142, 0
      %v1778 = vsel %vm1493, %v1146, 0
      %v1781 = vsel %vm1493, %v1150, 0
      %v1784 = vsel %vm1493, %v1154, 0
      %v1787 = vsel %vm1493, %v1158, 0
      %v1790 = vsel %vm1493, %v1162, 0
      %v1793 = vsel %vm1493, %v1166, 0
      %v1796 = vsel %vm1493, %v1170, 0
      %v1799 = vsel %vm1493, %v1174, 0
      %v1802 = vsel %vm1493, %v1178, 0
      %v1805 = vsel %vm1493, %v1182, 0
      %v1808 = vsel %vm1493, %v1186, 0
      %v1811 = vsel %vm1493, %v1190, 0
      %v1814 = vsel %vm1493, %v1194, 0
      %v1817 = vsel %vm1493, %v1198, 0
      %v1820 = vsel %vm1493, %v1202, 0
      %v1823 = vsel %vm1493, %v1206, 0
      %v1826 = vsel %vm1493, %v1210, 0
      %v1829 = vsel %vm1493, %v1214, 0
      %v1832 = vsel %vm1493, %v1218, 0
      %1834 = vmatprep.subr.mxu0 0.0
      %1835 = vmatpush1.msra.mxu0 %v1468
      %1836 = vmatprep.subr.mxu0 0.0
      %1837 = vmatpush1.msra.mxu0 %v1469
      %1838 = vmatprep.subr.mxu0 0.0
      %1839 = vmatpush1.msra.mxu0 %v1470
      %1840 = vmatprep.subr.mxu0 0.0
      %1841 = vmatpush1.msra.mxu0 %v1471
      %1842 = vmatprep.subr.mxu0 0.0
      %1843 = vmatpush1.msra.mxu0 %v1472
      %1844 = vmatprep.subr.mxu0 0.0
      %1845 = vmatpush1.msra.mxu0 %v1473
      %1846 = vmatprep.subr.mxu0 0.0
      %1847 = vmatpush1.msra.mxu0 %v1474
      %1848 = vmatprep.subr.mxu0 0.0
      %1849 = vmatpush1.msra.mxu0 %v1475
      %1850 = vmatprep.subr.mxu0 0.0
      %1851 = vmatpush1.msra.mxu0 %v1476
      %1852 = vmatprep.subr.mxu0 0.0
      %1853 = vmatpush1.msra.mxu0 %v1477
      %1854 = vmatprep.subr.mxu0 0.0
      %1855 = vmatpush1.msra.mxu0 %v1478
      %1856 = vmatprep.subr.mxu0 0.0
      %1857 = vmatpush1.msra.mxu0 %v1479
      %1858 = vmatprep.subr.mxu0 0.0
      %1859 = vmatpush1.msra.mxu0 %v1480
      %1860 = vmatprep.subr.mxu0 0.0
      %1861 = vmatpush1.msra.mxu0 %v1481
      %1862 = vmatprep.subr.mxu0 0.0
      %1863 = vmatpush1.msra.mxu0 %v1482
      %1864 = vmatprep.subr.mxu0 0.0
      %1865 = vmatpush1.msra.mxu0 %v1483
      %1866 = vmatprep.subr.mxu0 0.0
      %1867 = vmatpush1.msra.mxu0 %v1484
      %1868 = vmatprep.subr.mxu0 0.0
      %1869 = vmatpush1.msra.mxu0 %v1485
      %1870 = vmatprep.subr.mxu0 0.0
      %1871 = vmatpush1.msra.mxu0 %v1486
      %1872 = vmatprep.subr.mxu0 0.0
      %1873 = vmatpush1.msra.mxu0 %v1487
      %1874 = vmatprep.subr.mxu0 0.0
      %1875 = vmatpush1.msra.mxu0 %v1488
      %1876 = vmatprep.subr.mxu0 0.0
      %1877 = vmatpush1.msra.mxu0 %v1489
      %1878 = vmatprep.subr.mxu0 0.0
      %1879 = vmatpush1.msra.mxu0 %v1490
      %1880 = vmatprep.subr.mxu0 0.0
      %1881 = vmatpush1.msra.mxu0 %v1491
      %1882 = vmatprep.subr.mxu0 0.0
      %1883 = vmatpush1.msra.mxu0 %v1492
      %1884 = vmatprep.subr.mxu0 0.0
      %1885 = vmatpush1.msra.mxu0 0.0
      %1886 = vmatprep.subr.mxu0 0.0
      %1887 = vmatpush1.msra.mxu0 0.0
      %1888 = vmatprep.subr.mxu0 0.0
      %1889 = vmatpush1.msra.mxu0 0.0
      %1890 = vmatprep.subr.mxu0 0.0
      %1891 = vmatpush1.msra.mxu0 0.0
      %1892 = vmatprep.subr.mxu0 0.0
      %1893 = vmatpush1.msra.mxu0 0.0
      %1894 = vmatprep.subr.mxu0 0.0
      %1895 = vmatpush1.msra.mxu0 0.0
      %1896 = vmatprep.subr.mxu0 0.0
      %1897 = vmatpush1.msra.mxu0 0.0
      %1898 = vmatprep.mubr.f32.mxu0 %v1760
      %1899 = vmatmul.mubr.f32.gmra.mrb[0].mxu0 %v1120
      %v1900 = vpop.f32.mrb[0].mxu0
      %v1901 = vadd.f32 0.0, %v1900
      %v1902 = vpop.f32.mrb[0].mxu0
      %1903 = vmatprep.mubr.f32.mxu0 %v1763
      %1904 = vmatmul.mubr.f32.gmra.mrb[0].mxu0 %v1124
      %v1905 = vpop.f32.mrb[0].mxu0
      %v1906 = vadd.f32 0.0, %v1905
      %v1907 = vpop.f32.mrb[0].mxu0
      %1908 = vmatprep.mubr.f32.mxu0 %v1766
      %1909 = vmatmul.mubr.f32.gmra.mrb[0].mxu0 %v1128
      %v1910 = vpop.f32.mrb[0].mxu0
      %v1911 = vadd.f32 0.0, %v1910
      %v1912 = vpop.f32.mrb[0].mxu0
      %1913 = vmatprep.mubr.f32.mxu0 %v1769
      %1914 = vmatmul.mubr.f32.gmra.mrb[0].mxu0 %v1132
      %v1915 = vpop.f32.mrb[0].mxu0
      %v1916 = vadd.f32 0.0, %v1915
      %v1917 = vpop.f32.mrb[0].mxu0
      %1918 = vmatprep.mubr.f32.mxu0 %v1772
      %1919 = vmatmul.mubr.f32.gmra.mrb[0].mxu0 %v1136
      %v1920 = vpop.f32.mrb[0].mxu0
      %v1921 = vadd.f32 0.0, %v1920
      %v1922 = vpop.f32.mrb[0].mxu0
      %1923 = vmatprep.mubr.f32.mxu0 %v1775
      %1924 = vmatmul.mubr.f32.gmra.mrb[0].mxu0 %v1140
      %v1925 = vpop.f32.mrb[0].mxu0
      %v1926 = vadd.f32 0.0, %v1925
      %v1927 = vpop.f32.mrb[0].mxu0
      %1928 = vmatprep.mubr.f32.mxu0 %v1778
      %1929 = vmatmul.mubr.f32.gmra.mrb[0].mxu0 %v1144
      %v1930 = vpop.f32.mrb[0].mxu0
      %v1931 = vadd.f32 0.0, %v1930
      %v1932 = vpop.f32.mrb[0].mxu0
      %1933 = vmatprep.mubr.f32.mxu0 %v1781
      %1934 = vmatmul.mubr.f32.gmra.mrb[0].mxu0 %v1148
      %v1935 = vpop.f32.mrb[0].mxu0
      %v1936 = vadd.f32 0.0, %v1935
      %v1937 = vpop.f32.mrb[0].mxu0
      %1938 = vmatprep.mubr.f32.mxu0 %v1784
      %1939 = vmatmul.mubr.f32.gmra.mrb[0].mxu0 %v1152
      %v1940 = vpop.f32.mrb[0].mxu0
      %v1941 = vadd.f32 0.0, %v1940
      %v1942 = vpop.f32.mrb[0].mxu0
      %1943 = vmatprep.mubr.f32.mxu0 %v1787
      %1944 = vmatmul.mubr.f32.gmra.mrb[0].mxu0 %v1156
      %v1945 = vpop.f32.mrb[0].mxu0
      %v1946 = vadd.f32 0.0, %v1945
      %v1947 = vpop.f32.mrb[0].mxu0
      %1948 = vmatprep.mubr.f32.mxu0 %v1790
      %1949 = vmatmul.mubr.f32.gmra.mrb[0].mxu0 %v1160
      %v1950 = vpop.f32.mrb[0].mxu0
      %v1951 = vadd.f32 0.0, %v1950
      %v1952 = vpop.f32.mrb[0].mxu0
      %1953 = vmatprep.mubr.f32.mxu0 %v1793
      %1954 = vmatmul.mubr.f32.gmra.mrb[0].mxu0 %v1164
      %v1955 = vpop.f32.mrb[0].mxu0
      %v1956 = vadd.f32 0.0, %v1955
      %v1957 = vpop.f32.mrb[0].mxu0
      %1958 = vmatprep.mubr.f32.mxu0 %v1796
      %1959 = vmatmul.mubr.f32.gmra.mrb[0].mxu0 %v1168
      %v1960 = vpop.f32.mrb[0].mxu0
      %v1961 = vadd.f32 0.0, %v1960
      %v1962 = vpop.f32.mrb[0].mxu0
      %1963 = vmatprep.mubr.f32.mxu0 %v1799
      %1964 = vmatmul.mubr.f32.gmra.mrb[0].mxu0 %v1172
      %v1965 = vpop.f32.mrb[0].mxu0
      %v1966 = vadd.f32 0.0, %v1965
      %v1967 = vpop.f32.mrb[0].mxu0
      %1968 = vmatprep.mubr.f32.mxu0 %v1802
      %1969 = vmatmul.mubr.f32.gmra.mrb[0].mxu0 %v1176
      %v1970 = vpop.f32.mrb[0].mxu0
      %v1971 = vadd.f32 0.0, %v1970
      %v1972 = vpop.f32.mrb[0].mxu0
      %1973 = vmatprep.mubr.f32.mxu0 %v1805
      %1974 = vmatmul.mubr.f32.gmra.mrb[0].mxu0 %v1180
      %v1975 = vpop.f32.mrb[0].mxu0
      %v1976 = vadd.f32 0.0, %v1975
      %v1977 = vpop.f32.mrb[0].mxu0
      %1978 = vmatprep.mubr.f32.mxu0 %v1808
      %1979 = vmatmul.mubr.f32.gmra.mrb[0].mxu0 %v1184
      %v1980 = vpop.f32.mrb[0].mxu0
      %v1981 = vadd.f32 0.0, %v1980
      %v1982 = vpop.f32.mrb[0].mxu0
      %1983 = vmatprep.mubr.f32.mxu0 %v1811
      %1984 = vmatmul.mubr.f32.gmra.mrb[0].mxu0 %v1188
      %v1985 = vpop.f32.mrb[0].mxu0
      %v1986 = vadd.f32 0.0, %v1985
      %v1987 = vpop.f32.mrb[0].mxu0
      %1988 = vmatprep.mubr.f32.mxu0 %v1814
      %1989 = vmatmul.mubr.f32.gmra.mrb[0].mxu0 %v1192
      %v1990 = vpop.f32.mrb[0].mxu0
      %v1991 = vadd.f32 0.0, %v1990
      %v1992 = vpop.f32.mrb[0].mxu0
      %1993 = vmatprep.mubr.f32.mxu0 %v1817
      %1994 = vmatmul.mubr.f32.gmra.mrb[0].mxu0 %v1196
      %v1995 = vpop.f32.mrb[0].mxu0
      %v1996 = vadd.f32 0.0, %v1995
      %v1997 = vpop.f32.mrb[0].mxu0
      %1998 = vmatprep.mubr.f32.mxu0 %v1820
      %1999 = vmatmul.mubr.f32.gmra.mrb[0].mxu0 %v1200
      %v2000 = vpop.f32.mrb[0].mxu0
      %v2001 = vadd.f32 0.0, %v2000
      %v2002 = vpop.f32.mrb[0].mxu0
      %2003 = vmatprep.mubr.f32.mxu0 %v1823
      %2004 = vmatmul.mubr.f32.gmra.mrb[0].mxu0 %v1204
      %v2005 = vpop.f32.mrb[0].mxu0
      %v2006 = vadd.f32 0.0, %v2005
      %v2007 = vpop.f32.mrb[0].mxu0
      %2008 = vmatprep.mubr.f32.mxu0 %v1826
      %2009 = vmatmul.mubr.f32.gmra.mrb[0].mxu0 %v1208
      %v2010 = vpop.f32.mrb[0].mxu0
      %v2011 = vadd.f32 0.0, %v2010
      %v2012 = vpop.f32.mrb[0].mxu0
      %2013 = vmatprep.mubr.f32.mxu0 %v1829
      %2014 = vmatmul.mubr.f32.gmra.mrb[0].mxu0 %v1212
      %v2015 = vpop.f32.mrb[0].mxu0
      %v2016 = vadd.f32 0.0, %v2015
      %v2017 = vpop.f32.mrb[0].mxu0
      %2018 = vmatprep.mubr.f32.mxu0 %v1832
      %2019 = vmatmul.mubr.f32.gmra.mrb[0].mxu0 %v1216
      %v2020 = vpop.f32.mrb[0].mxu0
      %v2021 = vadd.f32 0.0, %v2020
      %v2022 = vpop.f32.mrb[0].mxu0
      %2023 = vdwg.mxu0
      %v2024 = vrcp.pop %v1636
      %v2025 = vrcp.pop %v1641
      %v2026 = vrcp.pop %v1646
      %v2027 = vrcp.pop %v1651
      %v2028 = vrcp.pop %v1656
      %v2029 = vrcp.pop %v1661
      %v2030 = vrcp.pop %v1666
      %v2031 = vrcp.pop %v1671
      %v2032 = vrcp.pop %v1676
      %v2033 = vrcp.pop %v1681
      %v2034 = vrcp.pop %v1686
      %v2035 = vrcp.pop %v1691
      %v2036 = vrcp.pop %v1696
      %v2037 = vrcp.pop %v1701
      %v2038 = vrcp.pop %v1706
      %v2039 = vrcp.pop %v1711
      %v2040 = vrcp.pop %v1716
      %v2041 = vrcp.pop %v1721
      %v2042 = vrcp.pop %v1726
      %v2043 = vrcp.pop %v1731
      %v2044 = vrcp.pop %v1736
      %v2045 = vrcp.pop %v1741
      %v2046 = vrcp.pop %v1746
      %v2047 = vrcp.pop %v1751
      %v2048 = vrcp.pop %v1756
      %v2049 = vrcp.pop %v1901
      %v2050 = vrcp.pop %v1906
      %v2051 = vrcp.pop %v1911
      %v2052 = vrcp.pop %v1916
      %v2053 = vrcp.pop %v1921
      %v2054 = vrcp.pop %v1926
      %v2055 = vrcp.pop %v1931
      %v2056 = vrcp.pop %v1936
      %v2057 = vrcp.pop %v1941
      %v2058 = vrcp.pop %v1946
      %v2059 = vrcp.pop %v1951
      %v2060 = vrcp.pop %v1956
      %v2061 = vrcp.pop %v1961
      %v2062 = vrcp.pop %v1966
      %v2063 = vrcp.pop %v1971
      %v2064 = vrcp.pop %v1976
      %v2065 = vrcp.pop %v1981
      %v2066 = vrcp.pop %v1986
      %v2067 = vrcp.pop %v1991
      %v2068 = vrcp.pop %v1996
      %v2069 = vrcp.pop %v2001
      %v2070 = vrcp.pop %v2006
      %v2071 = vrcp.pop %v2011
      %v2072 = vrcp.pop %v2016
      %v2073 = vrcp.pop %v2021
      %v2074 = vmul.f32 %v1636, %v2024
      %v2075 = vmul.f32 %v1641, %v2025
      %v2076 = vmul.f32 %v1646, %v2026
      %v2077 = vmul.f32 %v1651, %v2027
      %v2078 = vmul.f32 %v1656, %v2028
      %v2079 = vmul.f32 %v1661, %v2029
      %v2080 = vmul.f32 %v1666, %v2030
      %v2081 = vmul.f32 %v1671, %v2031
      %v2082 = vmul.f32 %v1676, %v2032
      %v2083 = vmul.f32 %v1681, %v2033
      %v2084 = vmul.f32 %v1686, %v2034
      %v2085 = vmul.f32 %v1691, %v2035
      %v2086 = vmul.f32 %v1696, %v2036
      %v2087 = vmul.f32 %v1701, %v2037
      %v2088 = vmul.f32 %v1706, %v2038
      %v2089 = vmul.f32 %v1711, %v2039
      %v2090 = vmul.f32 %v1716, %v2040
      %v2091 = vmul.f32 %v1721, %v2041
      %v2092 = vmul.f32 %v1726, %v2042
      %v2093 = vmul.f32 %v1731, %v2043
      %v2094 = vmul.f32 %v1736, %v2044
      %v2095 = vmul.f32 %v1741, %v2045
      %v2096 = vmul.f32 %v1746, %v2046
      %v2097 = vmul.f32 %v1751, %v2047
      %v2098 = vmul.f32 %v1756, %v2048
      %v2099 = vmul.f32 %v1901, %v2049
      %v2100 = vmul.f32 %v1906, %v2050
      %v2101 = vmul.f32 %v1911, %v2051
      %v2102 = vmul.f32 %v1916, %v2052
      %v2103 = vmul.f32 %v1921, %v2053
      %v2104 = vmul.f32 %v1926, %v2054
      %v2105 = vmul.f32 %v1931, %v2055
      %v2106 = vmul.f32 %v1936, %v2056
      %v2107 = vmul.f32 %v1941, %v2057
      %v2108 = vmul.f32 %v1946, %v2058
      %v2109 = vmul.f32 %v1951, %v2059
      %v2110 = vmul.f32 %v1956, %v2060
      %v2111 = vmul.f32 %v1961, %v2061
      %v2112 = vmul.f32 %v1966, %v2062
      %v2113 = vmul.f32 %v1971, %v2063
      %v2114 = vmul.f32 %v1976, %v2064
      %v2115 = vmul.f32 %v1981, %v2065
      %v2116 = vmul.f32 %v1986, %v2066
      %v2117 = vmul.f32 %v1991, %v2067
      %v2118 = vmul.f32 %v1996, %v2068
      %v2119 = vmul.f32 %v2001, %v2069
      %v2120 = vmul.f32 %v2006, %v2070
      %v2121 = vmul.f32 %v2011, %v2071
      %v2122 = vmul.f32 %v2016, %v2072
      %v2123 = vmul.f32 %v2021, %v2073
      %v2124 = vsub.f32 2.0, %v2074
      %v2125 = vsub.f32 2.0, %v2075
      %v2126 = vsub.f32 2.0, %v2076
      %v2127 = vsub.f32 2.0, %v2077
      %v2128 = vsub.f32 2.0, %v2078
      %v2129 = vsub.f32 2.0, %v2079
      %v2130 = vsub.f32 2.0, %v2080
      %v2131 = vsub.f32 2.0, %v2081
      %v2132 = vsub.f32 2.0, %v2082
      %v2133 = vsub.f32 2.0, %v2083
      %v2134 = vsub.f32 2.0, %v2084
      %v2135 = vsub.f32 2.0, %v2085
      %v2136 = vsub.f32 2.0, %v2086
      %v2137 = vsub.f32 2.0, %v2087
      %v2138 = vsub.f32 2.0, %v2088
      %v2139 = vsub.f32 2.0, %v2089
      %v2140 = vsub.f32 2.0, %v2090
      %v2141 = vsub.f32 2.0, %v2091
      %v2142 = vsub.f32 2.0, %v2092
      %v2143 = vsub.f32 2.0, %v2093
      %v2144 = vsub.f32 2.0, %v2094
      %v2145 = vsub.f32 2.0, %v2095
      %v2146 = vsub.f32 2.0, %v2096
      %v2147 = vsub.f32 2.0, %v2097
      %v2148 = vsub.f32 2.0, %v2098
      %v2149 = vsub.f32 2.0, %v2099
      %v2150 = vsub.f32 2.0, %v2100
      %v2151 = vsub.f32 2.0, %v2101
      %v2152 = vsub.f32 2.0, %v2102
      %v2153 = vsub.f32 2.0, %v2103
      %v2154 = vsub.f32 2.0, %v2104
      %v2155 = vsub.f32 2.0, %v2105
      %v2156 = vsub.f32 2.0, %v2106
      %v2157 = vsub.f32 2.0, %v2107
      %v2158 = vsub.f32 2.0, %v2108
      %v2159 = vsub.f32 2.0, %v2109
      %v2160 = vsub.f32 2.0, %v2110
      %v2161 = vsub.f32 2.0, %v2111
      %v2162 = vsub.f32 2.0, %v2112
      %v2163 = vsub.f32 2.0, %v2113
      %v2164 = vsub.f32 2.0, %v2114
      %v2165 = vsub.f32 2.0, %v2115
      %v2166 = vsub.f32 2.0, %v2116
      %v2167 = vsub.f32 2.0, %v2117
      %v2168 = vsub.f32 2.0, %v2118
      %v2169 = vsub.f32 2.0, %v2119
      %v2170 = vsub.f32 2.0, %v2120
      %v2171 = vsub.f32 2.0, %v2121
      %v2172 = vsub.f32 2.0, %v2122
      %v2173 = vsub.f32 2.0, %v2123
      %v2174 = vmul.f32 %v2024, %v2124
      %v2175 = vmul.f32 %v2025, %v2125
      %v2176 = vmul.f32 %v2026, %v2126
      %v2177 = vmul.f32 %v2027, %v2127
      %v2178 = vmul.f32 %v2028, %v2128
      %v2179 = vmul.f32 %v2029, %v2129
      %v2180 = vmul.f32 %v2030, %v2130
      %v2181 = vmul.f32 %v2031, %v2131
      %v2182 = vmul.f32 %v2032, %v2132
      %v2183 = vmul.f32 %v2033, %v2133
      %v2184 = vmul.f32 %v2034, %v2134
      %v2185 = vmul.f32 %v2035, %v2135
      %v2186 = vmul.f32 %v2036, %v2136
      %v2187 = vmul.f32 %v2037, %v2137
      %v2188 = vmul.f32 %v2038, %v2138
      %v2189 = vmul.f32 %v2039, %v2139
      %v2190 = vmul.f32 %v2040, %v2140
      %v2191 = vmul.f32 %v2041, %v2141
      %v2192 = vmul.f32 %v2042, %v2142
      %v2193 = vmul.f32 %v2043, %v2143
      %v2194 = vmul.f32 %v2044, %v2144
      %v2195 = vmul.f32 %v2045, %v2145
      %v2196 = vmul.f32 %v2046, %v2146
      %v2197 = vmul.f32 %v2047, %v2147
      %v2198 = vmul.f32 %v2048, %v2148
      %v2199 = vmul.f32 %v2049, %v2149
      %v2200 = vmul.f32 %v2050, %v2150
      %v2201 = vmul.f32 %v2051, %v2151
      %v2202 = vmul.f32 %v2052, %v2152
      %v2203 = vmul.f32 %v2053, %v2153
      %v2204 = vmul.f32 %v2054, %v2154
      %v2205 = vmul.f32 %v2055, %v2155
      %v2206 = vmul.f32 %v2056, %v2156
      %v2207 = vmul.f32 %v2057, %v2157
      %v2208 = vmul.f32 %v2058, %v2158
      %v2209 = vmul.f32 %v2059, %v2159
      %v2210 = vmul.f32 %v2060, %v2160
      %v2211 = vmul.f32 %v2061, %v2161
      %v2212 = vmul.f32 %v2062, %v2162
      %v2213 = vmul.f32 %v2063, %v2163
      %v2214 = vmul.f32 %v2064, %v2164
      %v2215 = vmul.f32 %v2065, %v2165
      %v2216 = vmul.f32 %v2066, %v2166
      %v2217 = vmul.f32 %v2067, %v2167
      %v2218 = vmul.f32 %v2068, %v2168
      %v2219 = vmul.f32 %v2069, %v2169
      %v2220 = vmul.f32 %v2070, %v2170
      %v2221 = vmul.f32 %v2071, %v2171
      %v2222 = vmul.f32 %v2072, %v2172
      %v2223 = vmul.f32 %v2073, %v2173
      %2274 = vrot.lane.b32.xlu0 %v2174, 1
      %v2275 = vpop.permute.xlu0 %2274
      %2276 = vrot.lane.b32.xlu0 %v2175, 1
      %v2277 = vpop.permute.xlu0 %2276
      %2278 = vrot.lane.b32.xlu0 %v2176, 1
      %v2279 = vpop.permute.xlu0 %2278
      %2280 = vrot.lane.b32.xlu0 %v2177, 1
      %v2281 = vpop.permute.xlu0 %2280
      %2282 = vrot.lane.b32.xlu0 %v2178, 1
      %v2283 = vpop.permute.xlu0 %2282
      %2284 = vrot.lane.b32.xlu0 %v2179, 1
      %v2285 = vpop.permute.xlu0 %2284
      %2286 = vrot.lane.b32.xlu0 %v2180, 1
      %v2287 = vpop.permute.xlu0 %2286
      %2288 = vrot.lane.b32.xlu0 %v2181, 1
      %v2289 = vpop.permute.xlu0 %2288
      %2290 = vrot.lane.b32.xlu0 %v2182, 1
      %v2291 = vpop.permute.xlu0 %2290
      %2292 = vrot.lane.b32.xlu0 %v2183, 1
      %v2293 = vpop.permute.xlu0 %2292
      %2294 = vrot.lane.b32.xlu0 %v2184, 1
      %v2295 = vpop.permute.xlu0 %2294
      %2296 = vrot.lane.b32.xlu0 %v2185, 1
      %v2297 = vpop.permute.xlu0 %2296
      %2298 = vrot.lane.b32.xlu0 %v2186, 1
      %v2299 = vpop.permute.xlu0 %2298
      %2300 = vrot.lane.b32.xlu0 %v2187, 1
      %v2301 = vpop.permute.xlu0 %2300
      %2302 = vrot.lane.b32.xlu0 %v2188, 1
      %v2303 = vpop.permute.xlu0 %2302
      %2304 = vrot.lane.b32.xlu0 %v2189, 1
      %v2305 = vpop.permute.xlu0 %2304
      %2306 = vrot.lane.b32.xlu0 %v2190, 1
      %v2307 = vpop.permute.xlu0 %2306
      %2308 = vrot.lane.b32.xlu0 %v2191, 1
      %v2309 = vpop.permute.xlu0 %2308
      %2310 = vrot.lane.b32.xlu0 %v2192, 1
      %v2311 = vpop.permute.xlu0 %2310
      %2312 = vrot.lane.b32.xlu0 %v2193, 1
      %v2313 = vpop.permute.xlu0 %2312
      %2314 = vrot.lane.b32.xlu0 %v2194, 1
      %v2315 = vpop.permute.xlu0 %2314
      %2316 = vrot.lane.b32.xlu0 %v2195, 1
      %v2317 = vpop.permute.xlu0 %2316
      %2318 = vrot.lane.b32.xlu0 %v2196, 1
      %v2319 = vpop.permute.xlu0 %2318
      %2320 = vrot.lane.b32.xlu0 %v2197, 1
      %v2321 = vpop.permute.xlu0 %2320
      %2322 = vrot.lane.b32.xlu0 %v2198, 1
      %v2323 = vpop.permute.xlu0 %2322
      %2324 = vrot.lane.b32.xlu0 %v2199, 1
      %v2325 = vpop.permute.xlu0 %2324
      %2326 = vrot.lane.b32.xlu0 %v2200, 1
      %v2327 = vpop.permute.xlu0 %2326
      %2328 = vrot.lane.b32.xlu0 %v2201, 1
      %v2329 = vpop.permute.xlu0 %2328
      %2330 = vrot.lane.b32.xlu0 %v2202, 1
      %v2331 = vpop.permute.xlu0 %2330
      %2332 = vrot.lane.b32.xlu0 %v2203, 1
      %v2333 = vpop.permute.xlu0 %2332
      %2334 = vrot.lane.b32.xlu0 %v2204, 1
      %v2335 = vpop.permute.xlu0 %2334
      %2336 = vrot.lane.b32.xlu0 %v2205, 1
      %v2337 = vpop.permute.xlu0 %2336
      %2338 = vrot.lane.b32.xlu0 %v2206, 1
      %v2339 = vpop.permute.xlu0 %2338
      %2340 = vrot.lane.b32.xlu0 %v2207, 1
      %v2341 = vpop.permute.xlu0 %2340
      %2342 = vrot.lane.b32.xlu0 %v2208, 1
      %v2343 = vpop.permute.xlu0 %2342
      %2344 = vrot.lane.b32.xlu0 %v2209, 1
      %v2345 = vpop.permute.xlu0 %2344
      %2346 = vrot.lane.b32.xlu0 %v2210, 1
      %v2347 = vpop.permute.xlu0 %2346
      %2348 = vrot.lane.b32.xlu0 %v2211, 1
      %v2349 = vpop.permute.xlu0 %2348
      %2350 = vrot.lane.b32.xlu0 %v2212, 1
      %v2351 = vpop.permute.xlu0 %2350
      %2352 = vrot.lane.b32.xlu0 %v2213, 1
      %v2353 = vpop.permute.xlu0 %2352
      %2354 = vrot.lane.b32.xlu0 %v2214, 1
      %v2355 = vpop.permute.xlu0 %2354
      %2356 = vrot.lane.b32.xlu0 %v2215, 1
      %v2357 = vpop.permute.xlu0 %2356
      %2358 = vrot.lane.b32.xlu0 %v2216, 1
      %v2359 = vpop.permute.xlu0 %2358
      %2360 = vrot.lane.b32.xlu0 %v2217, 1
      %v2361 = vpop.permute.xlu0 %2360
      %2362 = vrot.lane.b32.xlu0 %v2218, 1
      %v2363 = vpop.permute.xlu0 %2362
      %2364 = vrot.lane.b32.xlu0 %v2219, 1
      %v2365 = vpop.permute.xlu0 %2364
      %2366 = vrot.lane.b32.xlu0 %v2220, 1
      %v2367 = vpop.permute.xlu0 %2366
      %2368 = vrot.lane.b32.xlu0 %v2221, 1
      %v2369 = vpop.permute.xlu0 %2368
      %2370 = vrot.lane.b32.xlu0 %v2222, 1
      %v2371 = vpop.permute.xlu0 %2370
      %2372 = vrot.lane.b32.xlu0 %v2223, 1
      %v2373 = vpop.permute.xlu0 %2372
      %v2424 = vmul.f32 %v1636, %v2275
      %v2425 = vmul.f32 %v1641, %v2277
      %v2426 = vmul.f32 %v1646, %v2279
      %v2427 = vmul.f32 %v1651, %v2281
      %v2428 = vmul.f32 %v1656, %v2283
      %v2429 = vmul.f32 %v1661, %v2285
      %v2430 = vmul.f32 %v1666, %v2287
      %v2431 = vmul.f32 %v1671, %v2289
      %v2432 = vmul.f32 %v1676, %v2291
      %v2433 = vmul.f32 %v1681, %v2293
      %v2434 = vmul.f32 %v1686, %v2295
      %v2435 = vmul.f32 %v1691, %v2297
      %v2436 = vmul.f32 %v1696, %v2299
      %v2437 = vmul.f32 %v1701, %v2301
      %v2438 = vmul.f32 %v1706, %v2303
      %v2439 = vmul.f32 %v1711, %v2305
      %v2440 = vmul.f32 %v1716, %v2307
      %v2441 = vmul.f32 %v1721, %v2309
      %v2442 = vmul.f32 %v1726, %v2311
      %v2443 = vmul.f32 %v1731, %v2313
      %v2444 = vmul.f32 %v1736, %v2315
      %v2445 = vmul.f32 %v1741, %v2317
      %v2446 = vmul.f32 %v1746, %v2319
      %v2447 = vmul.f32 %v1751, %v2321
      %v2448 = vmul.f32 %v1756, %v2323
      %v2449 = vmul.f32 %v1901, %v2325
      %v2450 = vmul.f32 %v1906, %v2327
      %v2451 = vmul.f32 %v1911, %v2329
      %v2452 = vmul.f32 %v1916, %v2331
      %v2453 = vmul.f32 %v1921, %v2333
      %v2454 = vmul.f32 %v1926, %v2335
      %v2455 = vmul.f32 %v1931, %v2337
      %v2456 = vmul.f32 %v1936, %v2339
      %v2457 = vmul.f32 %v1941, %v2341
      %v2458 = vmul.f32 %v1946, %v2343
      %v2459 = vmul.f32 %v1951, %v2345
      %v2460 = vmul.f32 %v1956, %v2347
      %v2461 = vmul.f32 %v1961, %v2349
      %v2462 = vmul.f32 %v1966, %v2351
      %v2463 = vmul.f32 %v1971, %v2353
      %v2464 = vmul.f32 %v1976, %v2355
      %v2465 = vmul.f32 %v1981, %v2357
      %v2466 = vmul.f32 %v1986, %v2359
      %v2467 = vmul.f32 %v1991, %v2361
      %v2468 = vmul.f32 %v1996, %v2363
      %v2469 = vmul.f32 %v2001, %v2365
      %v2470 = vmul.f32 %v2006, %v2367
      %v2471 = vmul.f32 %v2011, %v2369
      %v2472 = vmul.f32 %v2016, %v2371
      %v2473 = vmul.f32 %v2021, %v2373
      %s2474 = sld [smem:[#allocation14 + %s281]]
      %v2475 = vstv %s2474
      %v2476 = vmul.f32 %v2424, %v2475
      %v2477 = vmul.f32 %v2425, %v2475
      %v2478 = vmul.f32 %v2426, %v2475
      %v2479 = vmul.f32 %v2427, %v2475
      %v2480 = vmul.f32 %v2428, %v2475
      %v2481 = vmul.f32 %v2429, %v2475
      %v2482 = vmul.f32 %v2430, %v2475
      %v2483 = vmul.f32 %v2431, %v2475
      %v2484 = vmul.f32 %v2432, %v2475
      %v2485 = vmul.f32 %v2433, %v2475
      %v2486 = vmul.f32 %v2434, %v2475
      %v2487 = vmul.f32 %v2435, %v2475
      %v2488 = vmul.f32 %v2436, %v2475
      %v2489 = vmul.f32 %v2437, %v2475
      %v2490 = vmul.f32 %v2438, %v2475
      %v2491 = vmul.f32 %v2439, %v2475
      %v2492 = vmul.f32 %v2440, %v2475
      %v2493 = vmul.f32 %v2441, %v2475
      %v2494 = vmul.f32 %v2442, %v2475
      %v2495 = vmul.f32 %v2443, %v2475
      %v2496 = vmul.f32 %v2444, %v2475
      %v2497 = vmul.f32 %v2445, %v2475
      %v2498 = vmul.f32 %v2446, %v2475
      %v2499 = vmul.f32 %v2447, %v2475
      %v2500 = vmul.f32 %v2448, %v2475
      %v2501 = vmul.f32 %v2449, %v2475
      %v2502 = vmul.f32 %v2450, %v2475
      %v2503 = vmul.f32 %v2451, %v2475
      %v2504 = vmul.f32 %v2452, %v2475
      %v2505 = vmul.f32 %v2453, %v2475
      %v2506 = vmul.f32 %v2454, %v2475
      %v2507 = vmul.f32 %v2455, %v2475
      %v2508 = vmul.f32 %v2456, %v2475
      %v2509 = vmul.f32 %v2457, %v2475
      %v2510 = vmul.f32 %v2458, %v2475
      %v2511 = vmul.f32 %v2459, %v2475
      %v2512 = vmul.f32 %v2460, %v2475
      %v2513 = vmul.f32 %v2461, %v2475
      %v2514 = vmul.f32 %v2462, %v2475
      %v2515 = vmul.f32 %v2463, %v2475
      %v2516 = vmul.f32 %v2464, %v2475
      %v2517 = vmul.f32 %v2465, %v2475
      %v2518 = vmul.f32 %v2466, %v2475
      %v2519 = vmul.f32 %v2467, %v2475
      %v2520 = vmul.f32 %v2468, %v2475
      %v2521 = vmul.f32 %v2469, %v2475
      %v2522 = vmul.f32 %v2470, %v2475
      %v2523 = vmul.f32 %v2471, %v2475
      %v2524 = vmul.f32 %v2472, %v2475
      %v2525 = vmul.f32 %v2473, %v2475
      %v2526 = vadd.f32 %v231, %v2476
      %v2527 = vadd.f32 %v232, %v2477
      %v2528 = vadd.f32 %v233, %v2478
      %v2529 = vadd.f32 %v234, %v2479
      %v2530 = vadd.f32 %v235, %v2480
      %v2531 = vadd.f32 %v236, %v2481
      %v2532 = vadd.f32 %v237, %v2482
      %v2533 = vadd.f32 %v238, %v2483
      %v2534 = vadd.f32 %v239, %v2484
      %v2535 = vadd.f32 %v240, %v2485
      %v2536 = vadd.f32 %v241, %v2486
      %v2537 = vadd.f32 %v242, %v2487
      %v2538 = vadd.f32 %v243, %v2488
      %v2539 = vadd.f32 %v244, %v2489
      %v2540 = vadd.f32 %v245, %v2490
      %v2541 = vadd.f32 %v246, %v2491
      %v2542 = vadd.f32 %v247, %v2492
      %v2543 = vadd.f32 %v248, %v2493
      %v2544 = vadd.f32 %v249, %v2494
      %v2545 = vadd.f32 %v250, %v2495
      %v2546 = vadd.f32 %v251, %v2496
      %v2547 = vadd.f32 %v252, %v2497
      %v2548 = vadd.f32 %v253, %v2498
      %v2549 = vadd.f32 %v254, %v2499
      %v2550 = vadd.f32 %v255, %v2500
      %v2551 = vadd.f32 %v256, %v2501
      %v2552 = vadd.f32 %v257, %v2502
      %v2553 = vadd.f32 %v258, %v2503
      %v2554 = vadd.f32 %v259, %v2504
      %v2555 = vadd.f32 %v260, %v2505
      %v2556 = vadd.f32 %v261, %v2506
      %v2557 = vadd.f32 %v262, %v2507
      %v2558 = vadd.f32 %v263, %v2508
      %v2559 = vadd.f32 %v264, %v2509
      %v2560 = vadd.f32 %v265, %v2510
      %v2561 = vadd.f32 %v266, %v2511
      %v2562 = vadd.f32 %v267, %v2512
      %v2563 = vadd.f32 %v268, %v2513
      %v2564 = vadd.f32 %v269, %v2514
      %v2565 = vadd.f32 %v270, %v2515
      %v2566 = vadd.f32 %v271, %v2516
      %v2567 = vadd.f32 %v272, %v2517
      %v2568 = vadd.f32 %v273, %v2518
      %v2569 = vadd.f32 %v274, %v2519
      %v2570 = vadd.f32 %v275, %v2520
      %v2571 = vadd.f32 %v276, %v2521
      %v2572 = vadd.f32 %v277, %v2522
      %v2573 = vadd.f32 %v278, %v2523
      %v2574 = vadd.f32 %v279, %v2524
      %v2575 = vadd.f32 %v280, %v2525
      %v2576 = vld [vmem:[%s20] sm:$0xff]
      %v2577 = vld [vmem:[%s20 + $0x8] sm:$0xff]
      %v2578 = vld [vmem:[%s20 + $0x10] sm:$0xff]
      %v2579 = vld [vmem:[%s20 + $0x18] sm:$0xff]
      %v2580 = vld [vmem:[%s20 + $0x20] sm:$0xff]
      %v2581 = vld [vmem:[%s20 + $0x28] sm:$0xff]
      %v2582 = vld [vmem:[%s20 + $0x30] sm:$0xff]
      %v2583 = vld [vmem:[%s20 + $0x38] sm:$0xff]
      %v2584 = vld [vmem:[%s20 + $0x40] sm:$0xff]
      %v2585 = vld [vmem:[%s20 + $0x48] sm:$0xff]
      %v2586 = vld [vmem:[%s20 + $0x50] sm:$0xff]
      %v2587 = vld [vmem:[%s20 + $0x58] sm:$0xff]
      %v2588 = vld [vmem:[%s20 + $0x60] sm:$0xff]
      %v2589 = vld [vmem:[%s20 + $0x68] sm:$0xff]
      %v2590 = vld [vmem:[%s20 + $0x70] sm:$0xff]
      %v2591 = vld [vmem:[%s20 + $0x78] sm:$0xff]
      %v2592 = vld [vmem:[%s20 + $0x80] sm:$0xff]
      %v2593 = vld [vmem:[%s20 + $0x88] sm:$0xff]
      %v2594 = vld [vmem:[%s20 + $0x90] sm:$0xff]
      %v2595 = vld [vmem:[%s20 + $0x98] sm:$0xff]
      %v2596 = vld [vmem:[%s20 + $0xa0] sm:$0xff]
      %v2597 = vld [vmem:[%s20 + $0xa8] sm:$0xff]
      %v2598 = vld [vmem:[%s20 + $0xb0] sm:$0xff]
      %v2599 = vld [vmem:[%s20 + $0xb8] sm:$0xff]
      %v2600 = vld [vmem:[%s20 + $0xc0] sm:$0xff]
      %v2601 = vld [vmem:[%s20 + $0xc8] sm:$0xff]
      %v2602 = vld [vmem:[%s20 + $0xd0] sm:$0xff]
      %v2603 = vld [vmem:[%s20 + $0xd8] sm:$0xff]
      %v2604 = vld [vmem:[%s20 + $0xe0] sm:$0xff]
      %v2605 = vld [vmem:[%s20 + $0xe8] sm:$0xff]
      %v2606 = vld [vmem:[%s20 + $0xf0] sm:$0xff]
      %v2607 = vld [vmem:[%s20 + $0xf8] sm:$0xff]
      %v2608 = vld [vmem:[%s20 + $0x100] sm:$0xff]
      %v2609 = vld [vmem:[%s20 + $0x108] sm:$0xff]
      %v2610 = vld [vmem:[%s20 + $0x110] sm:$0xff]
      %v2611 = vld [vmem:[%s20 + $0x118] sm:$0xff]
      %v2612 = vld [vmem:[%s20 + $0x120] sm:$0xff]
      %v2613 = vld [vmem:[%s20 + $0x128] sm:$0xff]
      %v2614 = vld [vmem:[%s20 + $0x130] sm:$0xff]
      %v2615 = vld [vmem:[%s20 + $0x138] sm:$0xff]
      %v2616 = vld [vmem:[%s20 + $0x140] sm:$0xff]
      %v2617 = vld [vmem:[%s20 + $0x148] sm:$0xff]
      %v2618 = vld [vmem:[%s20 + $0x150] sm:$0xff]
      %v2619 = vld [vmem:[%s20 + $0x158] sm:$0xff]
      %v2620 = vld [vmem:[%s20 + $0x160] sm:$0xff]
      %v2621 = vld [vmem:[%s20 + $0x168] sm:$0xff]
      %v2622 = vld [vmem:[%s20 + $0x170] sm:$0xff]
      %v2623 = vld [vmem:[%s20 + $0x178] sm:$0xff]
      %v2624 = vld [vmem:[%s20 + $0x180] sm:$0xff]
      %v2625 = vld [vmem:[%s20 + $0x188] sm:$0xff]
      %2626 = vset.pattern.permute.xlu0 0
      %2627 = vperm.xlu0 %2626, %v2174
      %v2628 = vpop.permute.xlu0 %2627
      %2630 = vset.pattern.permute.xlu0 0
      %2631 = vperm.xlu0 %2630, %v2175
      %v2632 = vpop.permute.xlu0 %2631
      %2634 = vset.pattern.permute.xlu0 0
      %2635 = vperm.xlu0 %2634, %v2176
      %v2636 = vpop.permute.xlu0 %2635
      %2638 = vset.pattern.permute.xlu0 0
      %2639 = vperm.xlu0 %2638, %v2177
      %v2640 = vpop.permute.xlu0 %2639
      %2642 = vset.pattern.permute.xlu0 0
      %2643 = vperm.xlu0 %2642, %v2178
      %v2644 = vpop.permute.xlu0 %2643
      %2646 = vset.pattern.permute.xlu0 0
      %2647 = vperm.xlu0 %2646, %v2179
      %v2648 = vpop.permute.xlu0 %2647
      %2650 = vset.pattern.permute.xlu0 0
      %2651 = vperm.xlu0 %2650, %v2180
      %v2652 = vpop.permute.xlu0 %2651
      %2654 = vset.pattern.permute.xlu0 0
      %2655 = vperm.xlu0 %2654, %v2181
      %v2656 = vpop.permute.xlu0 %2655
      %2658 = vset.pattern.permute.xlu0 0
      %2659 = vperm.xlu0 %2658, %v2182
      %v2660 = vpop.permute.xlu0 %2659
      %2662 = vset.pattern.permute.xlu0 0
      %2663 = vperm.xlu0 %2662, %v2183
      %v2664 = vpop.permute.xlu0 %2663
      %2666 = vset.pattern.permute.xlu0 0
      %2667 = vperm.xlu0 %2666, %v2184
      %v2668 = vpop.permute.xlu0 %2667
      %2670 = vset.pattern.permute.xlu0 0
      %2671 = vperm.xlu0 %2670, %v2185
      %v2672 = vpop.permute.xlu0 %2671
      %2674 = vset.pattern.permute.xlu0 0
      %2675 = vperm.xlu0 %2674, %v2186
      %v2676 = vpop.permute.xlu0 %2675
      %2678 = vset.pattern.permute.xlu0 0
      %2679 = vperm.xlu0 %2678, %v2187
      %v2680 = vpop.permute.xlu0 %2679
      %2682 = vset.pattern.permute.xlu0 0
      %2683 = vperm.xlu0 %2682, %v2188
      %v2684 = vpop.permute.xlu0 %2683
      %2686 = vset.pattern.permute.xlu0 0
      %2687 = vperm.xlu0 %2686, %v2189
      %v2688 = vpop.permute.xlu0 %2687
      %2690 = vset.pattern.permute.xlu0 0
      %2691 = vperm.xlu0 %2690, %v2190
      %v2692 = vpop.permute.xlu0 %2691
      %2694 = vset.pattern.permute.xlu0 0
      %2695 = vperm.xlu0 %2694, %v2191
      %v2696 = vpop.permute.xlu0 %2695
      %2698 = vset.pattern.permute.xlu0 0
      %2699 = vperm.xlu0 %2698, %v2192
      %v2700 = vpop.permute.xlu0 %2699
      %2702 = vset.pattern.permute.xlu0 0
      %2703 = vperm.xlu0 %2702, %v2193
      %v2704 = vpop.permute.xlu0 %2703
      %2706 = vset.pattern.permute.xlu0 0
      %2707 = vperm.xlu0 %2706, %v2194
      %v2708 = vpop.permute.xlu0 %2707
      %2710 = vset.pattern.permute.xlu0 0
      %2711 = vperm.xlu0 %2710, %v2195
      %v2712 = vpop.permute.xlu0 %2711
      %2714 = vset.pattern.permute.xlu0 0
      %2715 = vperm.xlu0 %2714, %v2196
      %v2716 = vpop.permute.xlu0 %2715
      %2718 = vset.pattern.permute.xlu0 0
      %2719 = vperm.xlu0 %2718, %v2197
      %v2720 = vpop.permute.xlu0 %2719
      %2722 = vset.pattern.permute.xlu0 0
      %2723 = vperm.xlu0 %2722, %v2198
      %v2724 = vpop.permute.xlu0 %2723
      %2726 = vset.pattern.permute.xlu0 0
      %2727 = vperm.xlu0 %2726, %v2199
      %v2728 = vpop.permute.xlu0 %2727
      %2730 = vset.pattern.permute.xlu0 0
      %2731 = vperm.xlu0 %2730, %v2200
      %v2732 = vpop.permute.xlu0 %2731
      %2734 = vset.pattern.permute.xlu0 0
      %2735 = vperm.xlu0 %2734, %v2201
      %v2736 = vpop.permute.xlu0 %2735
      %2738 = vset.pattern.permute.xlu0 0
      %2739 = vperm.xlu0 %2738, %v2202
      %v2740 = vpop.permute.xlu0 %2739
      %2742 = vset.pattern.permute.xlu0 0
      %2743 = vperm.xlu0 %2742, %v2203
      %v2744 = vpop.permute.xlu0 %2743
      %2746 = vset.pattern.permute.xlu0 0
      %2747 = vperm.xlu0 %2746, %v2204
      %v2748 = vpop.permute.xlu0 %2747
      %2750 = vset.pattern.permute.xlu0 0
      %2751 = vperm.xlu0 %2750, %v2205
      %v2752 = vpop.permute.xlu0 %2751
      %2754 = vset.pattern.permute.xlu0 0
      %2755 = vperm.xlu0 %2754, %v2206
      %v2756 = vpop.permute.xlu0 %2755
      %2758 = vset.pattern.permute.xlu0 0
      %2759 = vperm.xlu0 %2758, %v2207
      %v2760 = vpop.permute.xlu0 %2759
      %2762 = vset.pattern.permute.xlu0 0
      %2763 = vperm.xlu0 %2762, %v2208
      %v2764 = vpop.permute.xlu0 %2763
      %2766 = vset.pattern.permute.xlu0 0
      %2767 = vperm.xlu0 %2766, %v2209
      %v2768 = vpop.permute.xlu0 %2767
      %2770 = vset.pattern.permute.xlu0 0
      %2771 = vperm.xlu0 %2770, %v2210
      %v2772 = vpop.permute.xlu0 %2771
      %2774 = vset.pattern.permute.xlu0 0
      %2775 = vperm.xlu0 %2774, %v2211
      %v2776 = vpop.permute.xlu0 %2775
      %2778 = vset.pattern.permute.xlu0 0
      %2779 = vperm.xlu0 %2778, %v2212
      %v2780 = vpop.permute.xlu0 %2779
      %2782 = vset.pattern.permute.xlu0 0
      %2783 = vperm.xlu0 %2782, %v2213
      %v2784 = vpop.permute.xlu0 %2783
      %2786 = vset.pattern.permute.xlu0 0
      %2787 = vperm.xlu0 %2786, %v2214
      %v2788 = vpop.permute.xlu0 %2787
      %2790 = vset.pattern.permute.xlu0 0
      %2791 = vperm.xlu0 %2790, %v2215
      %v2792 = vpop.permute.xlu0 %2791
      %2794 = vset.pattern.permute.xlu0 0
      %2795 = vperm.xlu0 %2794, %v2216
      %v2796 = vpop.permute.xlu0 %2795
      %2798 = vset.pattern.permute.xlu0 0
      %2799 = vperm.xlu0 %2798, %v2217
      %v2800 = vpop.permute.xlu0 %2799
      %2802 = vset.pattern.permute.xlu0 0
      %2803 = vperm.xlu0 %2802, %v2218
      %v2804 = vpop.permute.xlu0 %2803
      %2806 = vset.pattern.permute.xlu0 0
      %2807 = vperm.xlu0 %2806, %v2219
      %v2808 = vpop.permute.xlu0 %2807
      %2810 = vset.pattern.permute.xlu0 0
      %2811 = vperm.xlu0 %2810, %v2220
      %v2812 = vpop.permute.xlu0 %2811
      %2814 = vset.pattern.permute.xlu0 0
      %2815 = vperm.xlu0 %2814, %v2221
      %v2816 = vpop.permute.xlu0 %2815
      %2818 = vset.pattern.permute.xlu0 0
      %2819 = vperm.xlu0 %2818, %v2222
      %v2820 = vpop.permute.xlu0 %2819
      %2822 = vset.pattern.permute.xlu0 0
      %2823 = vperm.xlu0 %2822, %v2223
      %v2824 = vpop.permute.xlu0 %2823
      %v2826 = vmul.f32 %v1020, %v2628
      %v2827 = vmul.f32 %v1022, %v2628
      %v2828 = vmul.f32 %v1024, %v2632
      %v2829 = vmul.f32 %v1026, %v2632
      %v2830 = vmul.f32 %v1028, %v2636
      %v2831 = vmul.f32 %v1030, %v2636
      %v2832 = vmul.f32 %v1032, %v2640
      %v2833 = vmul.f32 %v1034, %v2640
      %v2834 = vmul.f32 %v1036, %v2644
      %v2835 = vmul.f32 %v1038, %v2644
      %v2836 = vmul.f32 %v1040, %v2648
      %v2837 = vmul.f32 %v1042, %v2648
      %v2838 = vmul.f32 %v1044, %v2652
      %v2839 = vmul.f32 %v1046, %v2652
      %v2840 = vmul.f32 %v1048, %v2656
      %v2841 = vmul.f32 %v1050, %v2656
      %v2842 = vmul.f32 %v1052, %v2660
      %v2843 = vmul.f32 %v1054, %v2660
      %v2844 = vmul.f32 %v1056, %v2664
      %v2845 = vmul.f32 %v1058, %v2664
      %v2846 = vmul.f32 %v1060, %v2668
      %v2847 = vmul.f32 %v1062, %v2668
      %v2848 = vmul.f32 %v1064, %v2672
      %v2849 = vmul.f32 %v1066, %v2672
      %v2850 = vmul.f32 %v1068, %v2676
      %v2851 = vmul.f32 %v1070, %v2676
      %v2852 = vmul.f32 %v1072, %v2680
      %v2853 = vmul.f32 %v1074, %v2680
      %v2854 = vmul.f32 %v1076, %v2684
      %v2855 = vmul.f32 %v1078, %v2684
      %v2856 = vmul.f32 %v1080, %v2688
      %v2857 = vmul.f32 %v1082, %v2688
      %v2858 = vmul.f32 %v1084, %v2692
      %v2859 = vmul.f32 %v1086, %v2692
      %v2860 = vmul.f32 %v1088, %v2696
      %v2861 = vmul.f32 %v1090, %v2696
      %v2862 = vmul.f32 %v1092, %v2700
      %v2863 = vmul.f32 %v1094, %v2700
      %v2864 = vmul.f32 %v1096, %v2704
      %v2865 = vmul.f32 %v1098, %v2704
      %v2866 = vmul.f32 %v1100, %v2708
      %v2867 = vmul.f32 %v1102, %v2708
      %v2868 = vmul.f32 %v1104, %v2712
      %v2869 = vmul.f32 %v1106, %v2712
      %v2870 = vmul.f32 %v1108, %v2716
      %v2871 = vmul.f32 %v1110, %v2716
      %v2872 = vmul.f32 %v1112, %v2720
      %v2873 = vmul.f32 %v1114, %v2720
      %v2874 = vmul.f32 %v1116, %v2724
      %v2875 = vmul.f32 %v1118, %v2724
      %v2876 = vmul.f32 %v1120, %v2728
      %v2877 = vmul.f32 %v1122, %v2728
      %v2878 = vmul.f32 %v1124, %v2732
      %v2879 = vmul.f32 %v1126, %v2732
      %v2880 = vmul.f32 %v1128, %v2736
      %v2881 = vmul.f32 %v1130, %v2736
      %v2882 = vmul.f32 %v1132, %v2740
      %v2883 = vmul.f32 %v1134, %v2740
      %v2884 = vmul.f32 %v1136, %v2744
      %v2885 = vmul.f32 %v1138, %v2744
      %v2886 = vmul.f32 %v1140, %v2748
      %v2887 = vmul.f32 %v1142, %v2748
      %v2888 = vmul.f32 %v1144, %v2752
      %v2889 = vmul.f32 %v1146, %v2752
      %v2890 = vmul.f32 %v1148, %v2756
      %v2891 = vmul.f32 %v1150, %v2756
      %v2892 = vmul.f32 %v1152, %v2760
      %v2893 = vmul.f32 %v1154, %v2760
      %v2894 = vmul.f32 %v1156, %v2764
      %v2895 = vmul.f32 %v1158, %v2764
      %v2896 = vmul.f32 %v1160, %v2768
      %v2897 = vmul.f32 %v1162, %v2768
      %v2898 = vmul.f32 %v1164, %v2772
      %v2899 = vmul.f32 %v1166, %v2772
      %v2900 = vmul.f32 %v1168, %v2776
      %v2901 = vmul.f32 %v1170, %v2776
      %v2902 = vmul.f32 %v1172, %v2780
      %v2903 = vmul.f32 %v1174, %v2780
      %v2904 = vmul.f32 %v1176, %v2784
      %v2905 = vmul.f32 %v1178, %v2784
      %v2906 = vmul.f32 %v1180, %v2788
      %v2907 = vmul.f32 %v1182, %v2788
      %v2908 = vmul.f32 %v1184, %v2792
      %v2909 = vmul.f32 %v1186, %v2792
      %v2910 = vmul.f32 %v1188, %v2796
      %v2911 = vmul.f32 %v1190, %v2796
      %v2912 = vmul.f32 %v1192, %v2800
      %v2913 = vmul.f32 %v1194, %v2800
      %v2914 = vmul.f32 %v1196, %v2804
      %v2915 = vmul.f32 %v1198, %v2804
      %v2916 = vmul.f32 %v1200, %v2808
      %v2917 = vmul.f32 %v1202, %v2808
      %v2918 = vmul.f32 %v1204, %v2812
      %v2919 = vmul.f32 %v1206, %v2812
      %v2920 = vmul.f32 %v1208, %v2816
      %v2921 = vmul.f32 %v1210, %v2816
      %v2922 = vmul.f32 %v1212, %v2820
      %v2923 = vmul.f32 %v1214, %v2820
      %v2924 = vmul.f32 %v1216, %v2824
      %v2925 = vmul.f32 %v1218, %v2824
      %v2926 = vadd.f32 %v2826, %v2876
      %v2927 = vsel %vm1493, %v2827, 0.0
      %v2928 = vsel %vm1493, %v2877, 0.0
      %v2929 = vadd.f32 %v2927, %v2928
      %v2930 = vadd.f32 %v2828, %v2878
      %v2931 = vsel %vm1493, %v2829, 0.0
      %v2932 = vsel %vm1493, %v2879, 0.0
      %v2933 = vadd.f32 %v2931, %v2932
      %v2934 = vadd.f32 %v2830, %v2880
      %v2935 = vsel %vm1493, %v2831, 0.0
      %v2936 = vsel %vm1493, %v2881, 0.0
      %v2937 = vadd.f32 %v2935, %v2936
      %v2938 = vadd.f32 %v2832, %v2882
      %v2939 = vsel %vm1493, %v2833, 0.0
      %v2940 = vsel %vm1493, %v2883, 0.0
      %v2941 = vadd.f32 %v2939, %v2940
      %v2942 = vadd.f32 %v2834, %v2884
      %v2943 = vsel %vm1493, %v2835, 0.0
      %v2944 = vsel %vm1493, %v2885, 0.0
      %v2945 = vadd.f32 %v2943, %v2944
      %v2946 = vadd.f32 %v2836, %v2886
      %v2947 = vsel %vm1493, %v2837, 0.0
      %v2948 = vsel %vm1493, %v2887, 0.0
      %v2949 = vadd.f32 %v2947, %v2948
      %v2950 = vadd.f32 %v2838, %v2888
      %v2951 = vsel %vm1493, %v2839, 0.0
      %v2952 = vsel %vm1493, %v2889, 0.0
      %v2953 = vadd.f32 %v2951, %v2952
      %v2954 = vadd.f32 %v2840, %v2890
      %v2955 = vsel %vm1493, %v2841, 0.0
      %v2956 = vsel %vm1493, %v2891, 0.0
      %v2957 = vadd.f32 %v2955, %v2956
      %v2958 = vadd.f32 %v2842, %v2892
      %v2959 = vsel %vm1493, %v2843, 0.0
      %v2960 = vsel %vm1493, %v2893, 0.0
      %v2961 = vadd.f32 %v2959, %v2960
      %v2962 = vadd.f32 %v2844, %v2894
      %v2963 = vsel %vm1493, %v2845, 0.0
      %v2964 = vsel %vm1493, %v2895, 0.0
      %v2965 = vadd.f32 %v2963, %v2964
      %v2966 = vadd.f32 %v2846, %v2896
      %v2967 = vsel %vm1493, %v2847, 0.0
      %v2968 = vsel %vm1493, %v2897, 0.0
      %v2969 = vadd.f32 %v2967, %v2968
      %v2970 = vadd.f32 %v2848, %v2898
      %v2971 = vsel %vm1493, %v2849, 0.0
      %v2972 = vsel %vm1493, %v2899, 0.0
      %v2973 = vadd.f32 %v2971, %v2972
      %v2974 = vadd.f32 %v2850, %v2900
      %v2975 = vsel %vm1493, %v2851, 0.0
      %v2976 = vsel %vm1493, %v2901, 0.0
      %v2977 = vadd.f32 %v2975, %v2976
      %v2978 = vadd.f32 %v2852, %v2902
      %v2979 = vsel %vm1493, %v2853, 0.0
      %v2980 = vsel %vm1493, %v2903, 0.0
      %v2981 = vadd.f32 %v2979, %v2980
      %v2982 = vadd.f32 %v2854, %v2904
      %v2983 = vsel %vm1493, %v2855, 0.0
      %v2984 = vsel %vm1493, %v2905, 0.0
      %v2985 = vadd.f32 %v2983, %v2984
      %v2986 = vadd.f32 %v2856, %v2906
      %v2987 = vsel %vm1493, %v2857, 0.0
      %v2988 = vsel %vm1493, %v2907, 0.0
      %v2989 = vadd.f32 %v2987, %v2988
      %v2990 = vadd.f32 %v2858, %v2908
      %v2991 = vsel %vm1493, %v2859, 0.0
      %v2992 = vsel %vm1493, %v2909, 0.0
      %v2993 = vadd.f32 %v2991, %v2992
      %v2994 = vadd.f32 %v2860, %v2910
      %v2995 = vsel %vm1493, %v2861, 0.0
      %v2996 = vsel %vm1493, %v2911, 0.0
      %v2997 = vadd.f32 %v2995, %v2996
      %v2998 = vadd.f32 %v2862, %v2912
      %v2999 = vsel %vm1493, %v2863, 0.0
      %v3000 = vsel %vm1493, %v2913, 0.0
      %v3001 = vadd.f32 %v2999, %v3000
      %v3002 = vadd.f32 %v2864, %v2914
      %v3003 = vsel %vm1493, %v2865, 0.0
      %v3004 = vsel %vm1493, %v2915, 0.0
      %v3005 = vadd.f32 %v3003, %v3004
      %v3006 = vadd.f32 %v2866, %v2916
      %v3007 = vsel %vm1493, %v2867, 0.0
      %v3008 = vsel %vm1493, %v2917, 0.0
      %v3009 = vadd.f32 %v3007, %v3008
      %v3010 = vadd.f32 %v2868, %v2918
      %v3011 = vsel %vm1493, %v2869, 0.0
      %v3012 = vsel %vm1493, %v2919, 0.0
      %v3013 = vadd.f32 %v3011, %v3012
      %v3014 = vadd.f32 %v2870, %v2920
      %v3015 = vsel %vm1493, %v2871, 0.0
      %v3016 = vsel %vm1493, %v2921, 0.0
      %v3017 = vadd.f32 %v3015, %v3016
      %v3018 = vadd.f32 %v2872, %v2922
      %v3019 = vsel %vm1493, %v2873, 0.0
      %v3020 = vsel %vm1493, %v2923, 0.0
      %v3021 = vadd.f32 %v3019, %v3020
      %v3022 = vadd.f32 %v2874, %v2924
      %v3023 = vsel %vm1493, %v2875, 0.0
      %v3024 = vsel %vm1493, %v2925, 0.0
      %v3025 = vadd.f32 %v3023, %v3024
      %v3026 = vadd.f32 %v2576, %v2926
      %v3027 = vadd.f32 %v2577, %v2929
      %v3028 = vadd.f32 %v2578, %v2930
      %v3029 = vadd.f32 %v2579, %v2933
      %v3030 = vadd.f32 %v2580, %v2934
      %v3031 = vadd.f32 %v2581, %v2937
      %v3032 = vadd.f32 %v2582, %v2938
      %v3033 = vadd.f32 %v2583, %v2941
      %v3034 = vadd.f32 %v2584, %v2942
      %v3035 = vadd.f32 %v2585, %v2945
      %v3036 = vadd.f32 %v2586, %v2946
      %v3037 = vadd.f32 %v2587, %v2949
      %v3038 = vadd.f32 %v2588, %v2950
      %v3039 = vadd.f32 %v2589, %v2953
      %v3040 = vadd.f32 %v2590, %v2954
      %v3041 = vadd.f32 %v2591, %v2957
      %v3042 = vadd.f32 %v2592, %v2958
      %v3043 = vadd.f32 %v2593, %v2961
      %v3044 = vadd.f32 %v2594, %v2962
      %v3045 = vadd.f32 %v2595, %v2965
      %v3046 = vadd.f32 %v2596, %v2966
      %v3047 = vadd.f32 %v2597, %v2969
      %v3048 = vadd.f32 %v2598, %v2970
      %v3049 = vadd.f32 %v2599, %v2973
      %v3050 = vadd.f32 %v2600, %v2974
      %v3051 = vadd.f32 %v2601, %v2977
      %v3052 = vadd.f32 %v2602, %v2978
      %v3053 = vadd.f32 %v2603, %v2981
      %v3054 = vadd.f32 %v2604, %v2982
      %v3055 = vadd.f32 %v2605, %v2985
      %v3056 = vadd.f32 %v2606, %v2986
      %v3057 = vadd.f32 %v2607, %v2989
      %v3058 = vadd.f32 %v2608, %v2990
      %v3059 = vadd.f32 %v2609, %v2993
      %v3060 = vadd.f32 %v2610, %v2994
      %v3061 = vadd.f32 %v2611, %v2997
      %v3062 = vadd.f32 %v2612, %v2998
      %v3063 = vadd.f32 %v2613, %v3001
      %v3064 = vadd.f32 %v2614, %v3002
      %v3065 = vadd.f32 %v2615, %v3005
      %v3066 = vadd.f32 %v2616, %v3006
      %v3067 = vadd.f32 %v2617, %v3009
      %v3068 = vadd.f32 %v2618, %v3010
      %v3069 = vadd.f32 %v2619, %v3013
      %v3070 = vadd.f32 %v2620, %v3014
      %v3071 = vadd.f32 %v2621, %v3017
      %v3072 = vadd.f32 %v2622, %v3018
      %v3073 = vadd.f32 %v2623, %v3021
      %v3074 = vadd.f32 %v2624, %v3022
      %v3075 = vadd.f32 %v2625, %v3025
      %3076 = vst [vmem:[%s20] sm:$0xff] %v3026
      %3077 = vst.msk [vmem:[%s20 + $0x8] sm:$0xff] %vm1493, %v3027
      %3078 = vst [vmem:[%s20 + $0x10] sm:$0xff] %v3028
      %3079 = vst.msk [vmem:[%s20 + $0x18] sm:$0xff] %vm1493, %v3029
      %3080 = vst [vmem:[%s20 + $0x20] sm:$0xff] %v3030
      %3081 = vst.msk [vmem:[%s20 + $0x28] sm:$0xff] %vm1493, %v3031
      %3082 = vst [vmem:[%s20 + $0x30] sm:$0xff] %v3032
      %3083 = vst.msk [vmem:[%s20 + $0x38] sm:$0xff] %vm1493, %v3033
      %3084 = vst [vmem:[%s20 + $0x40] sm:$0xff] %v3034
      %3085 = vst.msk [vmem:[%s20 + $0x48] sm:$0xff] %vm1493, %v3035
      %3086 = vst [vmem:[%s20 + $0x50] sm:$0xff] %v3036
      %3087 = vst.msk [vmem:[%s20 + $0x58] sm:$0xff] %vm1493, %v3037
      %3088 = vst [vmem:[%s20 + $0x60] sm:$0xff] %v3038
      %3089 = vst.msk [vmem:[%s20 + $0x68] sm:$0xff] %vm1493, %v3039
      %3090 = vst [vmem:[%s20 + $0x70] sm:$0xff] %v3040
      %3091 = vst.msk [vmem:[%s20 + $0x78] sm:$0xff] %vm1493, %v3041
      %3092 = vst [vmem:[%s20 + $0x80] sm:$0xff] %v3042
      %3093 = vst.msk [vmem:[%s20 + $0x88] sm:$0xff] %vm1493, %v3043
      %3094 = vst [vmem:[%s20 + $0x90] sm:$0xff] %v3044
      %3095 = vst.msk [vmem:[%s20 + $0x98] sm:$0xff] %vm1493, %v3045
      %3096 = vst [vmem:[%s20 + $0xa0] sm:$0xff] %v3046
      %3097 = vst.msk [vmem:[%s20 + $0xa8] sm:$0xff] %vm1493, %v3047
      %3098 = vst [vmem:[%s20 + $0xb0] sm:$0xff] %v3048
      %3099 = vst.msk [vmem:[%s20 + $0xb8] sm:$0xff] %vm1493, %v3049
      %3100 = vst [vmem:[%s20 + $0xc0] sm:$0xff] %v3050
      %3101 = vst.msk [vmem:[%s20 + $0xc8] sm:$0xff] %vm1493, %v3051
      %3102 = vst [vmem:[%s20 + $0xd0] sm:$0xff] %v3052
      %3103 = vst.msk [vmem:[%s20 + $0xd8] sm:$0xff] %vm1493, %v3053
      %3104 = vst [vmem:[%s20 + $0xe0] sm:$0xff] %v3054
      %3105 = vst.msk [vmem:[%s20 + $0xe8] sm:$0xff] %vm1493, %v3055
      %3106 = vst [vmem:[%s20 + $0xf0] sm:$0xff] %v3056
      %3107 = vst.msk [vmem:[%s20 + $0xf8] sm:$0xff] %vm1493, %v3057
      %3108 = vst [vmem:[%s20 + $0x100] sm:$0xff] %v3058
      %3109 = vst.msk [vmem:[%s20 + $0x108] sm:$0xff] %vm1493, %v3059
      %3110 = vst [vmem:[%s20 + $0x110] sm:$0xff] %v3060
      %3111 = vst.msk [vmem:[%s20 + $0x118] sm:$0xff] %vm1493, %v3061
      %3112 = vst [vmem:[%s20 + $0x120] sm:$0xff] %v3062
      %3113 = vst.msk [vmem:[%s20 + $0x128] sm:$0xff] %vm1493, %v3063
      %3114 = vst [vmem:[%s20 + $0x130] sm:$0xff] %v3064
      %3115 = vst.msk [vmem:[%s20 + $0x138] sm:$0xff] %vm1493, %v3065
      %3116 = vst [vmem:[%s20 + $0x140] sm:$0xff] %v3066
      %3117 = vst.msk [vmem:[%s20 + $0x148] sm:$0xff] %vm1493, %v3067
      %3118 = vst [vmem:[%s20 + $0x150] sm:$0xff] %v3068
      %3119 = vst.msk [vmem:[%s20 + $0x158] sm:$0xff] %vm1493, %v3069
      %3120 = vst [vmem:[%s20 + $0x160] sm:$0xff] %v3070
      %3121 = vst.msk [vmem:[%s20 + $0x168] sm:$0xff] %vm1493, %v3071
      %3122 = vst [vmem:[%s20 + $0x170] sm:$0xff] %v3072
      %3123 = vst.msk [vmem:[%s20 + $0x178] sm:$0xff] %vm1493, %v3073
      %3124 = vst [vmem:[%s20 + $0x180] sm:$0xff] %v3074
      %3125 = vst.msk [vmem:[%s20 + $0x188] sm:$0xff] %vm1493, %v3075
      %s3126 = sadd.s32 %s281, 1
      %s3127 = sld [smem:[#allocation3 + %s3126]]
      %v3128 = vstv %s3127
      %v3129 = vmul.f32 %v169, %v3128
      %s3130 = sld [smem:[#allocation6 + %s3126]]
      %v3131 = vstv %s3130
      %v3132 = vadd.f32 %v3129, %v3131
      %s3133 = sld [smem:[#allocation8 + %s3126]]
      %v3134 = vstv %s3133
      %v3135 = vmul.f32 %v169, %v3134
      %s3136 = sld [smem:[#allocation9 + %s3126]]
      %v3137 = vstv %s3136
      %v3138 = vadd.f32 %v3135, %v3137
      %s3139 = sld [smem:[#allocation11 + %s3126]]
      %v3140 = vstv %s3139
      %v3141 = vmul.f32 %v169, %v3140
      %s3142 = sld [smem:[#allocation12 + %s3126]]
      %v3143 = vstv %s3142
      %v3144 = vadd.f32 %v3141, %v3143
      %v3147 = vunpack.c.l.s4 1983009808
      %v3148 = vunpack.c.0.s8 %v3147
      %v3149 = vlaneseq
      %v3150 = vshrl.u32 %v3149, 7
      %v3151 = vsub.s32 %v3148, %v3150
      %v3152 = vrot.slane %v3138, %v3151
      %v3153 = vcombine.high %v3152, %v3152
      %v3156 = vsel %vm311, %v3152, -inf
      %v3157 = vsel %vm313, %v3153, -inf
      %v3158 = vmax.f32 %v3156, %v3157
      %3159 = vmax.xlane.f32.xlu0 %v3158
      %v3160 = vpop.xlane.xlu0 %3159
      %v3161 = vsel %vm311, %v3152, inf
      %v3162 = vsel %vm313, %v3153, inf
      %v3163 = vmin.f32 %v3161, %v3162
      %3164 = vmin.xlane.f32.xlu0 %v3163
      %v3165 = vpop.xlane.xlu0 %3164
      %vm3166 = vcmp.ge.f32.partialorder %v3132, 0.0
      %v3169 = vunpack.c.l.s4 269488144
      %v3170 = vunpack.c.0.s8 %v3169
      %v3171 = vlaneseq
      %v3172 = vshrl.u32 %v3171, 7
      %v3173 = vsub.s32 %v3170, %v3172
      %v3174 = vrot.slane %v3160, %v3173
      %v3176 = vmul.f32 %v3132, %v3174
      %v3179 = vunpack.c.l.s4 269488144
      %v3180 = vunpack.c.0.s8 %v3179
      %v3181 = vlaneseq
      %v3182 = vshrl.u32 %v3181, 7
      %v3183 = vsub.s32 %v3180, %v3182
      %v3184 = vrot.slane %v3165, %v3183
      %v3186 = vmul.f32 %v3132, %v3184
      %v3187 = vsel %vm3166, %v3176, %v3186
      %v3190 = vunpack.c.l.s4 1983009808
      %v3191 = vunpack.c.0.s8 %v3190
      %v3192 = vlaneseq
      %v3193 = vshrl.u32 %v3192, 7
      %v3194 = vsub.s32 %v3191, %v3193
      %v3195 = vrot.slane %v3132, %v3194
      %v3196 = vcombine.high %v3195, %v3195
      %v3199 = vlaneseq
      %v3200 = vshrl.u32 %v3199, 7
      %v3201 = vsub.s32 0, %v3200
      %v3202 = vrot.slane %v3195, %v3201
      %3204 = vbcast.lane.b32.xlu0 %v3202, 256
      %v3205 = vpop.permute.xlu0 %3204
      %s3207 = sor.u32 256, 8
      %3208 = vbcast.lane.b32.xlu0 %v3202, %s3207
      %v3209 = vpop.permute.xlu0 %3208
      %s3211 = sor.u32 256, 16
      %3212 = vbcast.lane.b32.xlu0 %v3202, %s3211
      %v3213 = vpop.permute.xlu0 %3212
      %s3215 = sor.u32 256, 24
      %3216 = vbcast.lane.b32.xlu0 %v3202, %s3215
      %v3217 = vpop.permute.xlu0 %3216
      %s3219 = sor.u32 256, 32
      %3220 = vbcast.lane.b32.xlu0 %v3202, %s3219
      %v3221 = vpop.permute.xlu0 %3220
      %s3223 = sor.u32 256, 40
      %3224 = vbcast.lane.b32.xlu0 %v3202, %s3223
      %v3225 = vpop.permute.xlu0 %3224
      %s3227 = sor.u32 256, 48
      %3228 = vbcast.lane.b32.xlu0 %v3202, %s3227
      %v3229 = vpop.permute.xlu0 %3228
      %s3231 = sor.u32 256, 56
      %3232 = vbcast.lane.b32.xlu0 %v3202, %s3231
      %v3233 = vpop.permute.xlu0 %3232
      %s3235 = sor.u32 256, 64
      %3236 = vbcast.lane.b32.xlu0 %v3202, %s3235
      %v3237 = vpop.permute.xlu0 %3236
      %s3239 = sor.u32 256, 72
      %3240 = vbcast.lane.b32.xlu0 %v3202, %s3239
      %v3241 = vpop.permute.xlu0 %3240
      %s3243 = sor.u32 256, 80
      %3244 = vbcast.lane.b32.xlu0 %v3202, %s3243
      %v3245 = vpop.permute.xlu0 %3244
      %s3247 = sor.u32 256, 88
      %3248 = vbcast.lane.b32.xlu0 %v3202, %s3247
      %v3249 = vpop.permute.xlu0 %3248
      %s3251 = sor.u32 256, 96
      %3252 = vbcast.lane.b32.xlu0 %v3202, %s3251
      %v3253 = vpop.permute.xlu0 %3252
      %s3255 = sor.u32 256, 104
      %3256 = vbcast.lane.b32.xlu0 %v3202, %s3255
      %v3257 = vpop.permute.xlu0 %3256
      %s3259 = sor.u32 256, 112
      %3260 = vbcast.lane.b32.xlu0 %v3202, %s3259
      %v3261 = vpop.permute.xlu0 %3260
      %s3263 = sor.u32 256, 120
      %3264 = vbcast.lane.b32.xlu0 %v3202, %s3263
      %v3265 = vpop.permute.xlu0 %3264
      %v3266 = vlaneseq
      %v3267 = vshrl.u32 %v3266, 7
      %v3268 = vsub.s32 0, %v3267
      %v3269 = vrot.slane %v3196, %v3268
      %3271 = vbcast.lane.b32.xlu0 %v3269, 256
      %v3272 = vpop.permute.xlu0 %3271
      %s3274 = sor.u32 256, 8
      %3275 = vbcast.lane.b32.xlu0 %v3269, %s3274
      %v3276 = vpop.permute.xlu0 %3275
      %s3278 = sor.u32 256, 16
      %3279 = vbcast.lane.b32.xlu0 %v3269, %s3278
      %v3280 = vpop.permute.xlu0 %3279
      %s3282 = sor.u32 256, 24
      %3283 = vbcast.lane.b32.xlu0 %v3269, %s3282
      %v3284 = vpop.permute.xlu0 %3283
      %s3286 = sor.u32 256, 32
      %3287 = vbcast.lane.b32.xlu0 %v3269, %s3286
      %v3288 = vpop.permute.xlu0 %3287
      %s3290 = sor.u32 256, 40
      %3291 = vbcast.lane.b32.xlu0 %v3269, %s3290
      %v3292 = vpop.permute.xlu0 %3291
      %s3294 = sor.u32 256, 48
      %3295 = vbcast.lane.b32.xlu0 %v3269, %s3294
      %v3296 = vpop.permute.xlu0 %3295
      %s3298 = sor.u32 256, 56
      %3299 = vbcast.lane.b32.xlu0 %v3269, %s3298
      %v3300 = vpop.permute.xlu0 %3299
      %s3302 = sor.u32 256, 64
      %3303 = vbcast.lane.b32.xlu0 %v3269, %s3302
      %v3304 = vpop.permute.xlu0 %3303
      %v3305 = vlaneseq
      %v3306 = vshrl.u32 %v3305, 7
      %v3307 = vsub.s32 1, %v3306
      %v3308 = vrot.slane %v3195, %v3307
      %3310 = vbcast.lane.b32.xlu0 %v3308, 256
      %v3311 = vpop.permute.xlu0 %3310
      %s3313 = sor.u32 256, 8
      %3314 = vbcast.lane.b32.xlu0 %v3308, %s3313
      %v3315 = vpop.permute.xlu0 %3314
      %s3317 = sor.u32 256, 16
      %3318 = vbcast.lane.b32.xlu0 %v3308, %s3317
      %v3319 = vpop.permute.xlu0 %3318
      %s3321 = sor.u32 256, 24
      %3322 = vbcast.lane.b32.xlu0 %v3308, %s3321
      %v3323 = vpop.permute.xlu0 %3322
      %s3325 = sor.u32 256, 32
      %3326 = vbcast.lane.b32.xlu0 %v3308, %s3325
      %v3327 = vpop.permute.xlu0 %3326
      %s3329 = sor.u32 256, 40
      %3330 = vbcast.lane.b32.xlu0 %v3308, %s3329
      %v3331 = vpop.permute.xlu0 %3330
      %s3333 = sor.u32 256, 48
      %3334 = vbcast.lane.b32.xlu0 %v3308, %s3333
      %v3335 = vpop.permute.xlu0 %3334
      %s3337 = sor.u32 256, 56
      %3338 = vbcast.lane.b32.xlu0 %v3308, %s3337
      %v3339 = vpop.permute.xlu0 %3338
      %s3341 = sor.u32 256, 64
      %3342 = vbcast.lane.b32.xlu0 %v3308, %s3341
      %v3343 = vpop.permute.xlu0 %3342
      %s3345 = sor.u32 256, 72
      %3346 = vbcast.lane.b32.xlu0 %v3308, %s3345
      %v3347 = vpop.permute.xlu0 %3346
      %s3349 = sor.u32 256, 80
      %3350 = vbcast.lane.b32.xlu0 %v3308, %s3349
      %v3351 = vpop.permute.xlu0 %3350
      %s3353 = sor.u32 256, 88
      %3354 = vbcast.lane.b32.xlu0 %v3308, %s3353
      %v3355 = vpop.permute.xlu0 %3354
      %s3357 = sor.u32 256, 96
      %3358 = vbcast.lane.b32.xlu0 %v3308, %s3357
      %v3359 = vpop.permute.xlu0 %3358
      %s3361 = sor.u32 256, 104
      %3362 = vbcast.lane.b32.xlu0 %v3308, %s3361
      %v3363 = vpop.permute.xlu0 %3362
      %s3365 = sor.u32 256, 112
      %3366 = vbcast.lane.b32.xlu0 %v3308, %s3365
      %v3367 = vpop.permute.xlu0 %3366
      %s3369 = sor.u32 256, 120
      %3370 = vbcast.lane.b32.xlu0 %v3308, %s3369
      %v3371 = vpop.permute.xlu0 %3370
      %v3372 = vlaneseq
      %v3373 = vshrl.u32 %v3372, 7
      %v3374 = vsub.s32 1, %v3373
      %v3375 = vrot.slane %v3196, %v3374
      %3377 = vbcast.lane.b32.xlu0 %v3375, 256
      %v3378 = vpop.permute.xlu0 %3377
      %s3380 = sor.u32 256, 8
      %3381 = vbcast.lane.b32.xlu0 %v3375, %s3380
      %v3382 = vpop.permute.xlu0 %3381
      %s3384 = sor.u32 256, 16
      %3385 = vbcast.lane.b32.xlu0 %v3375, %s3384
      %v3386 = vpop.permute.xlu0 %3385
      %s3388 = sor.u32 256, 24
      %3389 = vbcast.lane.b32.xlu0 %v3375, %s3388
      %v3390 = vpop.permute.xlu0 %3389
      %s3392 = sor.u32 256, 32
      %3393 = vbcast.lane.b32.xlu0 %v3375, %s3392
      %v3394 = vpop.permute.xlu0 %3393
      %s3396 = sor.u32 256, 40
      %3397 = vbcast.lane.b32.xlu0 %v3375, %s3396
      %v3398 = vpop.permute.xlu0 %3397
      %s3400 = sor.u32 256, 48
      %3401 = vbcast.lane.b32.xlu0 %v3375, %s3400
      %v3402 = vpop.permute.xlu0 %3401
      %s3404 = sor.u32 256, 56
      %3405 = vbcast.lane.b32.xlu0 %v3375, %s3404
      %v3406 = vpop.permute.xlu0 %3405
      %s3408 = sor.u32 256, 64
      %3409 = vbcast.lane.b32.xlu0 %v3375, %s3408
      %v3410 = vpop.permute.xlu0 %3409
      %v3412 = vunpack.c.l.s4 1966171168
      %v3413 = vunpack.c.0.s8 %v3412
      %v3414 = vlaneseq
      %v3415 = vshrl.u32 %v3414, 7
      %v3416 = vsub.s32 %v3413, %v3415
      %v3417 = vrot.slane %v3138, %v3416
      %v3418 = vcombine.high %v3417, %v3417
      %v3419 = vlaneseq
      %v3420 = vshrl.u32 %v3419, 7
      %v3421 = vsub.s32 0, %v3420
      %v3422 = vrot.slane %v3417, %v3421
      %v3423 = vlaneseq
      %v3424 = vshrl.u32 %v3423, 7
      %v3425 = vsub.s32 1, %v3424
      %v3426 = vrot.slane %v3417, %v3425
      %v3427 = vlaneseq
      %v3428 = vshrl.u32 %v3427, 7
      %v3429 = vsub.s32 0, %v3428
      %v3430 = vrot.slane %v3418, %v3429
      %v3431 = vlaneseq
      %v3432 = vshrl.u32 %v3431, 7
      %v3433 = vsub.s32 1, %v3432
      %v3434 = vrot.slane %v3418, %v3433
      %v3439 = vmul.f32 %v3205, %v3422
      %v3440 = vmul.f32 %v3205, %v3426
      %v3441 = vmul.f32 %v3209, %v3422
      %v3442 = vmul.f32 %v3209, %v3426
      %v3443 = vmul.f32 %v3213, %v3422
      %v3444 = vmul.f32 %v3213, %v3426
      %v3445 = vmul.f32 %v3217, %v3422
      %v3446 = vmul.f32 %v3217, %v3426
      %v3447 = vmul.f32 %v3221, %v3422
      %v3448 = vmul.f32 %v3221, %v3426
      %v3449 = vmul.f32 %v3225, %v3422
      %v3450 = vmul.f32 %v3225, %v3426
      %v3451 = vmul.f32 %v3229, %v3422
      %v3452 = vmul.f32 %v3229, %v3426
      %v3453 = vmul.f32 %v3233, %v3422
      %v3454 = vmul.f32 %v3233, %v3426
      %v3455 = vmul.f32 %v3237, %v3422
      %v3456 = vmul.f32 %v3237, %v3426
      %v3457 = vmul.f32 %v3241, %v3422
      %v3458 = vmul.f32 %v3241, %v3426
      %v3459 = vmul.f32 %v3245, %v3422
      %v3460 = vmul.f32 %v3245, %v3426
      %v3461 = vmul.f32 %v3249, %v3422
      %v3462 = vmul.f32 %v3249, %v3426
      %v3463 = vmul.f32 %v3253, %v3422
      %v3464 = vmul.f32 %v3253, %v3426
      %v3465 = vmul.f32 %v3257, %v3422
      %v3466 = vmul.f32 %v3257, %v3426
      %v3467 = vmul.f32 %v3261, %v3422
      %v3468 = vmul.f32 %v3261, %v3426
      %v3469 = vmul.f32 %v3265, %v3422
      %v3470 = vmul.f32 %v3265, %v3426
      %v3471 = vmul.f32 %v3272, %v3422
      %v3472 = vmul.f32 %v3272, %v3426
      %v3473 = vmul.f32 %v3276, %v3422
      %v3474 = vmul.f32 %v3276, %v3426
      %v3475 = vmul.f32 %v3280, %v3422
      %v3476 = vmul.f32 %v3280, %v3426
      %v3477 = vmul.f32 %v3284, %v3422
      %v3478 = vmul.f32 %v3284, %v3426
      %v3479 = vmul.f32 %v3288, %v3422
      %v3480 = vmul.f32 %v3288, %v3426
      %v3481 = vmul.f32 %v3292, %v3422
      %v3482 = vmul.f32 %v3292, %v3426
      %v3483 = vmul.f32 %v3296, %v3422
      %v3484 = vmul.f32 %v3296, %v3426
      %v3485 = vmul.f32 %v3300, %v3422
      %v3486 = vmul.f32 %v3300, %v3426
      %v3487 = vmul.f32 %v3304, %v3422
      %v3488 = vmul.f32 %v3304, %v3426
      %v3489 = vmul.f32 %v3311, %v3430
      %v3490 = vmul.f32 %v3311, %v3434
      %v3491 = vmul.f32 %v3315, %v3430
      %v3492 = vmul.f32 %v3315, %v3434
      %v3493 = vmul.f32 %v3319, %v3430
      %v3494 = vmul.f32 %v3319, %v3434
      %v3495 = vmul.f32 %v3323, %v3430
      %v3496 = vmul.f32 %v3323, %v3434
      %v3497 = vmul.f32 %v3327, %v3430
      %v3498 = vmul.f32 %v3327, %v3434
      %v3499 = vmul.f32 %v3331, %v3430
      %v3500 = vmul.f32 %v3331, %v3434
      %v3501 = vmul.f32 %v3335, %v3430
      %v3502 = vmul.f32 %v3335, %v3434
      %v3503 = vmul.f32 %v3339, %v3430
      %v3504 = vmul.f32 %v3339, %v3434
      %v3505 = vmul.f32 %v3343, %v3430
      %v3506 = vmul.f32 %v3343, %v3434
      %v3507 = vmul.f32 %v3347, %v3430
      %v3508 = vmul.f32 %v3347, %v3434
      %v3509 = vmul.f32 %v3351, %v3430
      %v3510 = vmul.f32 %v3351, %v3434
      %v3511 = vmul.f32 %v3355, %v3430
      %v3512 = vmul.f32 %v3355, %v3434
      %v3513 = vmul.f32 %v3359, %v3430
      %v3514 = vmul.f32 %v3359, %v3434
      %v3515 = vmul.f32 %v3363, %v3430
      %v3516 = vmul.f32 %v3363, %v3434
      %v3517 = vmul.f32 %v3367, %v3430
      %v3518 = vmul.f32 %v3367, %v3434
      %v3519 = vmul.f32 %v3371, %v3430
      %v3520 = vmul.f32 %v3371, %v3434
      %v3521 = vmul.f32 %v3378, %v3430
      %v3522 = vmul.f32 %v3378, %v3434
      %v3523 = vmul.f32 %v3382, %v3430
      %v3524 = vmul.f32 %v3382, %v3434
      %v3525 = vmul.f32 %v3386, %v3430
      %v3526 = vmul.f32 %v3386, %v3434
      %v3527 = vmul.f32 %v3390, %v3430
      %v3528 = vmul.f32 %v3390, %v3434
      %v3529 = vmul.f32 %v3394, %v3430
      %v3530 = vmul.f32 %v3394, %v3434
      %v3531 = vmul.f32 %v3398, %v3430
      %v3532 = vmul.f32 %v3398, %v3434
      %v3533 = vmul.f32 %v3402, %v3430
      %v3534 = vmul.f32 %v3402, %v3434
      %v3535 = vmul.f32 %v3406, %v3430
      %v3536 = vmul.f32 %v3406, %v3434
      %v3537 = vmul.f32 %v3410, %v3430
      %v3538 = vmul.f32 %v3410, %v3434
      %v3541 = vunpack.c.l.s4 1983009808
      %v3542 = vunpack.c.0.s8 %v3541
      %v3543 = vlaneseq
      %v3544 = vshrl.u32 %v3543, 7
      %v3545 = vsub.s32 %v3542, %v3544
      %v3546 = vrot.slane %v3187, %v3545
      %v3547 = vcombine.high %v3546, %v3546
      %v3550 = vlaneseq
      %v3551 = vshrl.u32 %v3550, 7
      %v3552 = vsub.s32 0, %v3551
      %v3553 = vrot.slane %v3546, %v3552
      %3555 = vbcast.lane.b32.xlu0 %v3553, 256
      %v3556 = vpop.permute.xlu0 %3555
      %s3558 = sor.u32 256, 8
      %3559 = vbcast.lane.b32.xlu0 %v3553, %s3558
      %v3560 = vpop.permute.xlu0 %3559
      %s3562 = sor.u32 256, 16
      %3563 = vbcast.lane.b32.xlu0 %v3553, %s3562
      %v3564 = vpop.permute.xlu0 %3563
      %s3566 = sor.u32 256, 24
      %3567 = vbcast.lane.b32.xlu0 %v3553, %s3566
      %v3568 = vpop.permute.xlu0 %3567
      %s3570 = sor.u32 256, 32
      %3571 = vbcast.lane.b32.xlu0 %v3553, %s3570
      %v3572 = vpop.permute.xlu0 %3571
      %s3574 = sor.u32 256, 40
      %3575 = vbcast.lane.b32.xlu0 %v3553, %s3574
      %v3576 = vpop.permute.xlu0 %3575
      %s3578 = sor.u32 256, 48
      %3579 = vbcast.lane.b32.xlu0 %v3553, %s3578
      %v3580 = vpop.permute.xlu0 %3579
      %s3582 = sor.u32 256, 56
      %3583 = vbcast.lane.b32.xlu0 %v3553, %s3582
      %v3584 = vpop.permute.xlu0 %3583
      %s3586 = sor.u32 256, 64
      %3587 = vbcast.lane.b32.xlu0 %v3553, %s3586
      %v3588 = vpop.permute.xlu0 %3587
      %s3590 = sor.u32 256, 72
      %3591 = vbcast.lane.b32.xlu0 %v3553, %s3590
      %v3592 = vpop.permute.xlu0 %3591
      %s3594 = sor.u32 256, 80
      %3595 = vbcast.lane.b32.xlu0 %v3553, %s3594
      %v3596 = vpop.permute.xlu0 %3595
      %s3598 = sor.u32 256, 88
      %3599 = vbcast.lane.b32.xlu0 %v3553, %s3598
      %v3600 = vpop.permute.xlu0 %3599
      %s3602 = sor.u32 256, 96
      %3603 = vbcast.lane.b32.xlu0 %v3553, %s3602
      %v3604 = vpop.permute.xlu0 %3603
      %s3606 = sor.u32 256, 104
      %3607 = vbcast.lane.b32.xlu0 %v3553, %s3606
      %v3608 = vpop.permute.xlu0 %3607
      %s3610 = sor.u32 256, 112
      %3611 = vbcast.lane.b32.xlu0 %v3553, %s3610
      %v3612 = vpop.permute.xlu0 %3611
      %s3614 = sor.u32 256, 120
      %3615 = vbcast.lane.b32.xlu0 %v3553, %s3614
      %v3616 = vpop.permute.xlu0 %3615
      %v3617 = vlaneseq
      %v3618 = vshrl.u32 %v3617, 7
      %v3619 = vsub.s32 0, %v3618
      %v3620 = vrot.slane %v3547, %v3619
      %3622 = vbcast.lane.b32.xlu0 %v3620, 256
      %v3623 = vpop.permute.xlu0 %3622
      %s3625 = sor.u32 256, 8
      %3626 = vbcast.lane.b32.xlu0 %v3620, %s3625
      %v3627 = vpop.permute.xlu0 %3626
      %s3629 = sor.u32 256, 16
      %3630 = vbcast.lane.b32.xlu0 %v3620, %s3629
      %v3631 = vpop.permute.xlu0 %3630
      %s3633 = sor.u32 256, 24
      %3634 = vbcast.lane.b32.xlu0 %v3620, %s3633
      %v3635 = vpop.permute.xlu0 %3634
      %s3637 = sor.u32 256, 32
      %3638 = vbcast.lane.b32.xlu0 %v3620, %s3637
      %v3639 = vpop.permute.xlu0 %3638
      %s3641 = sor.u32 256, 40
      %3642 = vbcast.lane.b32.xlu0 %v3620, %s3641
      %v3643 = vpop.permute.xlu0 %3642
      %s3645 = sor.u32 256, 48
      %3646 = vbcast.lane.b32.xlu0 %v3620, %s3645
      %v3647 = vpop.permute.xlu0 %3646
      %s3649 = sor.u32 256, 56
      %3650 = vbcast.lane.b32.xlu0 %v3620, %s3649
      %v3651 = vpop.permute.xlu0 %3650
      %s3653 = sor.u32 256, 64
      %3654 = vbcast.lane.b32.xlu0 %v3620, %s3653
      %v3655 = vpop.permute.xlu0 %3654
      %v3656 = vlaneseq
      %v3657 = vshrl.u32 %v3656, 7
      %v3658 = vsub.s32 1, %v3657
      %v3659 = vrot.slane %v3546, %v3658
      %3661 = vbcast.lane.b32.xlu0 %v3659, 256
      %v3662 = vpop.permute.xlu0 %3661
      %s3664 = sor.u32 256, 8
      %3665 = vbcast.lane.b32.xlu0 %v3659, %s3664
      %v3666 = vpop.permute.xlu0 %3665
      %s3668 = sor.u32 256, 16
      %3669 = vbcast.lane.b32.xlu0 %v3659, %s3668
      %v3670 = vpop.permute.xlu0 %3669
      %s3672 = sor.u32 256, 24
      %3673 = vbcast.lane.b32.xlu0 %v3659, %s3672
      %v3674 = vpop.permute.xlu0 %3673
      %s3676 = sor.u32 256, 32
      %3677 = vbcast.lane.b32.xlu0 %v3659, %s3676
      %v3678 = vpop.permute.xlu0 %3677
      %s3680 = sor.u32 256, 40
      %3681 = vbcast.lane.b32.xlu0 %v3659, %s3680
      %v3682 = vpop.permute.xlu0 %3681
      %s3684 = sor.u32 256, 48
      %3685 = vbcast.lane.b32.xlu0 %v3659, %s3684
      %v3686 = vpop.permute.xlu0 %3685
      %s3688 = sor.u32 256, 56
      %3689 = vbcast.lane.b32.xlu0 %v3659, %s3688
      %v3690 = vpop.permute.xlu0 %3689
      %s3692 = sor.u32 256, 64
      %3693 = vbcast.lane.b32.xlu0 %v3659, %s3692
      %v3694 = vpop.permute.xlu0 %3693
      %s3696 = sor.u32 256, 72
      %3697 = vbcast.lane.b32.xlu0 %v3659, %s3696
      %v3698 = vpop.permute.xlu0 %3697
      %s3700 = sor.u32 256, 80
      %3701 = vbcast.lane.b32.xlu0 %v3659, %s3700
      %v3702 = vpop.permute.xlu0 %3701
      %s3704 = sor.u32 256, 88
      %3705 = vbcast.lane.b32.xlu0 %v3659, %s3704
      %v3706 = vpop.permute.xlu0 %3705
      %s3708 = sor.u32 256, 96
      %3709 = vbcast.lane.b32.xlu0 %v3659, %s3708
      %v3710 = vpop.permute.xlu0 %3709
      %s3712 = sor.u32 256, 104
      %3713 = vbcast.lane.b32.xlu0 %v3659, %s3712
      %v3714 = vpop.permute.xlu0 %3713
      %s3716 = sor.u32 256, 112
      %3717 = vbcast.lane.b32.xlu0 %v3659, %s3716
      %v3718 = vpop.permute.xlu0 %3717
      %s3720 = sor.u32 256, 120
      %3721 = vbcast.lane.b32.xlu0 %v3659, %s3720
      %v3722 = vpop.permute.xlu0 %3721
      %v3723 = vlaneseq
      %v3724 = vshrl.u32 %v3723, 7
      %v3725 = vsub.s32 1, %v3724
      %v3726 = vrot.slane %v3547, %v3725
      %3728 = vbcast.lane.b32.xlu0 %v3726, 256
      %v3729 = vpop.permute.xlu0 %3728
      %s3731 = sor.u32 256, 8
      %3732 = vbcast.lane.b32.xlu0 %v3726, %s3731
      %v3733 = vpop.permute.xlu0 %3732
      %s3735 = sor.u32 256, 16
      %3736 = vbcast.lane.b32.xlu0 %v3726, %s3735
      %v3737 = vpop.permute.xlu0 %3736
      %s3739 = sor.u32 256, 24
      %3740 = vbcast.lane.b32.xlu0 %v3726, %s3739
      %v3741 = vpop.permute.xlu0 %3740
      %s3743 = sor.u32 256, 32
      %3744 = vbcast.lane.b32.xlu0 %v3726, %s3743
      %v3745 = vpop.permute.xlu0 %3744
      %s3747 = sor.u32 256, 40
      %3748 = vbcast.lane.b32.xlu0 %v3726, %s3747
      %v3749 = vpop.permute.xlu0 %3748
      %s3751 = sor.u32 256, 48
      %3752 = vbcast.lane.b32.xlu0 %v3726, %s3751
      %v3753 = vpop.permute.xlu0 %3752
      %s3755 = sor.u32 256, 56
      %3756 = vbcast.lane.b32.xlu0 %v3726, %s3755
      %v3757 = vpop.permute.xlu0 %3756
      %s3759 = sor.u32 256, 64
      %3760 = vbcast.lane.b32.xlu0 %v3726, %s3759
      %v3761 = vpop.permute.xlu0 %3760
      %v3762 = vsub.f32 %v3439, %v3556
      %v3763 = vsub.f32 %v3440, %v3556
      %v3764 = vsub.f32 %v3441, %v3560
      %v3765 = vsub.f32 %v3442, %v3560
      %v3766 = vsub.f32 %v3443, %v3564
      %v3767 = vsub.f32 %v3444, %v3564
      %v3768 = vsub.f32 %v3445, %v3568
      %v3769 = vsub.f32 %v3446, %v3568
      %v3770 = vsub.f32 %v3447, %v3572
      %v3771 = vsub.f32 %v3448, %v3572
      %v3772 = vsub.f32 %v3449, %v3576
      %v3773 = vsub.f32 %v3450, %v3576
      %v3774 = vsub.f32 %v3451, %v3580
      %v3775 = vsub.f32 %v3452, %v3580
      %v3776 = vsub.f32 %v3453, %v3584
      %v3777 = vsub.f32 %v3454, %v3584
      %v3778 = vsub.f32 %v3455, %v3588
      %v3779 = vsub.f32 %v3456, %v3588
      %v3780 = vsub.f32 %v3457, %v3592
      %v3781 = vsub.f32 %v3458, %v3592
      %v3782 = vsub.f32 %v3459, %v3596
      %v3783 = vsub.f32 %v3460, %v3596
      %v3784 = vsub.f32 %v3461, %v3600
      %v3785 = vsub.f32 %v3462, %v3600
      %v3786 = vsub.f32 %v3463, %v3604
      %v3787 = vsub.f32 %v3464, %v3604
      %v3788 = vsub.f32 %v3465, %v3608
      %v3789 = vsub.f32 %v3466, %v3608
      %v3790 = vsub.f32 %v3467, %v3612
      %v3791 = vsub.f32 %v3468, %v3612
      %v3792 = vsub.f32 %v3469, %v3616
      %v3793 = vsub.f32 %v3470, %v3616
      %v3794 = vsub.f32 %v3471, %v3623
      %v3795 = vsub.f32 %v3472, %v3623
      %v3796 = vsub.f32 %v3473, %v3627
      %v3797 = vsub.f32 %v3474, %v3627
      %v3798 = vsub.f32 %v3475, %v3631
      %v3799 = vsub.f32 %v3476, %v3631
      %v3800 = vsub.f32 %v3477, %v3635
      %v3801 = vsub.f32 %v3478, %v3635
      %v3802 = vsub.f32 %v3479, %v3639
      %v3803 = vsub.f32 %v3480, %v3639
      %v3804 = vsub.f32 %v3481, %v3643
      %v3805 = vsub.f32 %v3482, %v3643
      %v3806 = vsub.f32 %v3483, %v3647
      %v3807 = vsub.f32 %v3484, %v3647
      %v3808 = vsub.f32 %v3485, %v3651
      %v3809 = vsub.f32 %v3486, %v3651
      %v3810 = vsub.f32 %v3487, %v3655
      %v3811 = vsub.f32 %v3488, %v3655
      %v3812 = vsub.f32 %v3489, %v3662
      %v3813 = vsub.f32 %v3490, %v3662
      %v3814 = vsub.f32 %v3491, %v3666
      %v3815 = vsub.f32 %v3492, %v3666
      %v3816 = vsub.f32 %v3493, %v3670
      %v3817 = vsub.f32 %v3494, %v3670
      %v3818 = vsub.f32 %v3495, %v3674
      %v3819 = vsub.f32 %v3496, %v3674
      %v3820 = vsub.f32 %v3497, %v3678
      %v3821 = vsub.f32 %v3498, %v3678
      %v3822 = vsub.f32 %v3499, %v3682
      %v3823 = vsub.f32 %v3500, %v3682
      %v3824 = vsub.f32 %v3501, %v3686
      %v3825 = vsub.f32 %v3502, %v3686
      %v3826 = vsub.f32 %v3503, %v3690
      %v3827 = vsub.f32 %v3504, %v3690
      %v3828 = vsub.f32 %v3505, %v3694
      %v3829 = vsub.f32 %v3506, %v3694
      %v3830 = vsub.f32 %v3507, %v3698
      %v3831 = vsub.f32 %v3508, %v3698
      %v3832 = vsub.f32 %v3509, %v3702
      %v3833 = vsub.f32 %v3510, %v3702
      %v3834 = vsub.f32 %v3511, %v3706
      %v3835 = vsub.f32 %v3512, %v3706
      %v3836 = vsub.f32 %v3513, %v3710
      %v3837 = vsub.f32 %v3514, %v3710
      %v3838 = vsub.f32 %v3515, %v3714
      %v3839 = vsub.f32 %v3516, %v3714
      %v3840 = vsub.f32 %v3517, %v3718
      %v3841 = vsub.f32 %v3518, %v3718
      %v3842 = vsub.f32 %v3519, %v3722
      %v3843 = vsub.f32 %v3520, %v3722
      %v3844 = vsub.f32 %v3521, %v3729
      %v3845 = vsub.f32 %v3522, %v3729
      %v3846 = vsub.f32 %v3523, %v3733
      %v3847 = vsub.f32 %v3524, %v3733
      %v3848 = vsub.f32 %v3525, %v3737
      %v3849 = vsub.f32 %v3526, %v3737
      %v3850 = vsub.f32 %v3527, %v3741
      %v3851 = vsub.f32 %v3528, %v3741
      %v3852 = vsub.f32 %v3529, %v3745
      %v3853 = vsub.f32 %v3530, %v3745
      %v3854 = vsub.f32 %v3531, %v3749
      %v3855 = vsub.f32 %v3532, %v3749
      %v3856 = vsub.f32 %v3533, %v3753
      %v3857 = vsub.f32 %v3534, %v3753
      %v3858 = vsub.f32 %v3535, %v3757
      %v3859 = vsub.f32 %v3536, %v3757
      %v3860 = vsub.f32 %v3537, %v3761
      %v3861 = vsub.f32 %v3538, %v3761
      %v3862 = vmul.f32 %v3762, 1.442695
      %v3863 = vpow.pop %v3862
      %v3864 = vmul.f32 %v3763, 1.442695
      %v3865 = vpow.pop %v3864
      %v3866 = vmul.f32 %v3764, 1.442695
      %v3867 = vpow.pop %v3866
      %v3868 = vmul.f32 %v3765, 1.442695
      %v3869 = vpow.pop %v3868
      %v3870 = vmul.f32 %v3766, 1.442695
      %v3871 = vpow.pop %v3870
      %v3872 = vmul.f32 %v3767, 1.442695
      %v3873 = vpow.pop %v3872
      %v3874 = vmul.f32 %v3768, 1.442695
      %v3875 = vpow.pop %v3874
      %v3876 = vmul.f32 %v3769, 1.442695
      %v3877 = vpow.pop %v3876
      %v3878 = vmul.f32 %v3770, 1.442695
      %v3879 = vpow.pop %v3878
      %v3880 = vmul.f32 %v3771, 1.442695
      %v3881 = vpow.pop %v3880
      %v3882 = vmul.f32 %v3772, 1.442695
      %v3883 = vpow.pop %v3882
      %v3884 = vmul.f32 %v3773, 1.442695
      %v3885 = vpow.pop %v3884
      %v3886 = vmul.f32 %v3774, 1.442695
      %v3887 = vpow.pop %v3886
      %v3888 = vmul.f32 %v3775, 1.442695
      %v3889 = vpow.pop %v3888
      %v3890 = vmul.f32 %v3776, 1.442695
      %v3891 = vpow.pop %v3890
      %v3892 = vmul.f32 %v3777, 1.442695
      %v3893 = vpow.pop %v3892
      %v3894 = vmul.f32 %v3778, 1.442695
      %v3895 = vpow.pop %v3894
      %v3896 = vmul.f32 %v3779, 1.442695
      %v3897 = vpow.pop %v3896
      %v3898 = vmul.f32 %v3780, 1.442695
      %v3899 = vpow.pop %v3898
      %v3900 = vmul.f32 %v3781, 1.442695
      %v3901 = vpow.pop %v3900
      %v3902 = vmul.f32 %v3782, 1.442695
      %v3903 = vpow.pop %v3902
      %v3904 = vmul.f32 %v3783, 1.442695
      %v3905 = vpow.pop %v3904
      %v3906 = vmul.f32 %v3784, 1.442695
      %v3907 = vpow.pop %v3906
      %v3908 = vmul.f32 %v3785, 1.442695
      %v3909 = vpow.pop %v3908
      %v3910 = vmul.f32 %v3786, 1.442695
      %v3911 = vpow.pop %v3910
      %v3912 = vmul.f32 %v3787, 1.442695
      %v3913 = vpow.pop %v3912
      %v3914 = vmul.f32 %v3788, 1.442695
      %v3915 = vpow.pop %v3914
      %v3916 = vmul.f32 %v3789, 1.442695
      %v3917 = vpow.pop %v3916
      %v3918 = vmul.f32 %v3790, 1.442695
      %v3919 = vpow.pop %v3918
      %v3920 = vmul.f32 %v3791, 1.442695
      %v3921 = vpow.pop %v3920
      %v3922 = vmul.f32 %v3792, 1.442695
      %v3923 = vpow.pop %v3922
      %v3924 = vmul.f32 %v3793, 1.442695
      %v3925 = vpow.pop %v3924
      %v3926 = vmul.f32 %v3794, 1.442695
      %v3927 = vpow.pop %v3926
      %v3928 = vmul.f32 %v3795, 1.442695
      %v3929 = vpow.pop %v3928
      %v3930 = vmul.f32 %v3796, 1.442695
      %v3931 = vpow.pop %v3930
      %v3932 = vmul.f32 %v3797, 1.442695
      %v3933 = vpow.pop %v3932
      %v3934 = vmul.f32 %v3798, 1.442695
      %v3935 = vpow.pop %v3934
      %v3936 = vmul.f32 %v3799, 1.442695
      %v3937 = vpow.pop %v3936
      %v3938 = vmul.f32 %v3800, 1.442695
      %v3939 = vpow.pop %v3938
      %v3940 = vmul.f32 %v3801, 1.442695
      %v3941 = vpow.pop %v3940
      %v3942 = vmul.f32 %v3802, 1.442695
      %v3943 = vpow.pop %v3942
      %v3944 = vmul.f32 %v3803, 1.442695
      %v3945 = vpow.pop %v3944
      %v3946 = vmul.f32 %v3804, 1.442695
      %v3947 = vpow.pop %v3946
      %v3948 = vmul.f32 %v3805, 1.442695
      %v3949 = vpow.pop %v3948
      %v3950 = vmul.f32 %v3806, 1.442695
      %v3951 = vpow.pop %v3950
      %v3952 = vmul.f32 %v3807, 1.442695
      %v3953 = vpow.pop %v3952
      %v3954 = vmul.f32 %v3808, 1.442695
      %v3955 = vpow.pop %v3954
      %v3956 = vmul.f32 %v3809, 1.442695
      %v3957 = vpow.pop %v3956
      %v3958 = vmul.f32 %v3810, 1.442695
      %v3959 = vpow.pop %v3958
      %v3960 = vmul.f32 %v3811, 1.442695
      %v3961 = vpow.pop %v3960
      %v3962 = vmul.f32 %v3812, 1.442695
      %v3963 = vpow.pop %v3962
      %v3964 = vmul.f32 %v3813, 1.442695
      %v3965 = vpow.pop %v3964
      %v3966 = vmul.f32 %v3814, 1.442695
      %v3967 = vpow.pop %v3966
      %v3968 = vmul.f32 %v3815, 1.442695
      %v3969 = vpow.pop %v3968
      %v3970 = vmul.f32 %v3816, 1.442695
      %v3971 = vpow.pop %v3970
      %v3972 = vmul.f32 %v3817, 1.442695
      %v3973 = vpow.pop %v3972
      %v3974 = vmul.f32 %v3818, 1.442695
      %v3975 = vpow.pop %v3974
      %v3976 = vmul.f32 %v3819, 1.442695
      %v3977 = vpow.pop %v3976
      %v3978 = vmul.f32 %v3820, 1.442695
      %v3979 = vpow.pop %v3978
      %v3980 = vmul.f32 %v3821, 1.442695
      %v3981 = vpow.pop %v3980
      %v3982 = vmul.f32 %v3822, 1.442695
      %v3983 = vpow.pop %v3982
      %v3984 = vmul.f32 %v3823, 1.442695
      %v3985 = vpow.pop %v3984
      %v3986 = vmul.f32 %v3824, 1.442695
      %v3987 = vpow.pop %v3986
      %v3988 = vmul.f32 %v3825, 1.442695
      %v3989 = vpow.pop %v3988
      %v3990 = vmul.f32 %v3826, 1.442695
      %v3991 = vpow.pop %v3990
      %v3992 = vmul.f32 %v3827, 1.442695
      %v3993 = vpow.pop %v3992
      %v3994 = vmul.f32 %v3828, 1.442695
      %v3995 = vpow.pop %v3994
      %v3996 = vmul.f32 %v3829, 1.442695
      %v3997 = vpow.pop %v3996
      %v3998 = vmul.f32 %v3830, 1.442695
      %v3999 = vpow.pop %v3998
      %v4000 = vmul.f32 %v3831, 1.442695
      %v4001 = vpow.pop %v4000
      %v4002 = vmul.f32 %v3832, 1.442695
      %v4003 = vpow.pop %v4002
      %v4004 = vmul.f32 %v3833, 1.442695
      %v4005 = vpow.pop %v4004
      %v4006 = vmul.f32 %v3834, 1.442695
      %v4007 = vpow.pop %v4006
      %v4008 = vmul.f32 %v3835, 1.442695
      %v4009 = vpow.pop %v4008
      %v4010 = vmul.f32 %v3836, 1.442695
      %v4011 = vpow.pop %v4010
      %v4012 = vmul.f32 %v3837, 1.442695
      %v4013 = vpow.pop %v4012
      %v4014 = vmul.f32 %v3838, 1.442695
      %v4015 = vpow.pop %v4014
      %v4016 = vmul.f32 %v3839, 1.442695
      %v4017 = vpow.pop %v4016
      %v4018 = vmul.f32 %v3840, 1.442695
      %v4019 = vpow.pop %v4018
      %v4020 = vmul.f32 %v3841, 1.442695
      %v4021 = vpow.pop %v4020
      %v4022 = vmul.f32 %v3842, 1.442695
      %v4023 = vpow.pop %v4022
      %v4024 = vmul.f32 %v3843, 1.442695
      %v4025 = vpow.pop %v4024
      %v4026 = vmul.f32 %v3844, 1.442695
      %v4027 = vpow.pop %v4026
      %v4028 = vmul.f32 %v3845, 1.442695
      %v4029 = vpow.pop %v4028
      %v4030 = vmul.f32 %v3846, 1.442695
      %v4031 = vpow.pop %v4030
      %v4032 = vmul.f32 %v3847, 1.442695
      %v4033 = vpow.pop %v4032
      %v4034 = vmul.f32 %v3848, 1.442695
      %v4035 = vpow.pop %v4034
      %v4036 = vmul.f32 %v3849, 1.442695
      %v4037 = vpow.pop %v4036
      %v4038 = vmul.f32 %v3850, 1.442695
      %v4039 = vpow.pop %v4038
      %v4040 = vmul.f32 %v3851, 1.442695
      %v4041 = vpow.pop %v4040
      %v4042 = vmul.f32 %v3852, 1.442695
      %v4043 = vpow.pop %v4042
      %v4044 = vmul.f32 %v3853, 1.442695
      %v4045 = vpow.pop %v4044
      %v4046 = vmul.f32 %v3854, 1.442695
      %v4047 = vpow.pop %v4046
      %v4048 = vmul.f32 %v3855, 1.442695
      %v4049 = vpow.pop %v4048
      %v4050 = vmul.f32 %v3856, 1.442695
      %v4051 = vpow.pop %v4050
      %v4052 = vmul.f32 %v3857, 1.442695
      %v4053 = vpow.pop %v4052
      %v4054 = vmul.f32 %v3858, 1.442695
      %v4055 = vpow.pop %v4054
      %v4056 = vmul.f32 %v3859, 1.442695
      %v4057 = vpow.pop %v4056
      %v4058 = vmul.f32 %v3860, 1.442695
      %v4059 = vpow.pop %v4058
      %v4060 = vmul.f32 %v3861, 1.442695
      %v4061 = vpow.pop %v4060
      %v4064 = vunpack.c.l.s4 1983009808
      %v4065 = vunpack.c.0.s8 %v4064
      %v4066 = vlaneseq
      %v4067 = vshrl.u32 %v4066, 7
      %v4068 = vsub.s32 %v4065, %v4067
      %v4069 = vrot.slane %v3144, %v4068
      %v4070 = vcombine.high %v4069, %v4069
      %v4073 = vlaneseq
      %v4074 = vshrl.u32 %v4073, 7
      %v4075 = vsub.s32 0, %v4074
      %v4076 = vrot.slane %v4069, %v4075
      %4078 = vbcast.lane.b32.xlu0 %v4076, 256
      %v4079 = vpop.permute.xlu0 %4078
      %s4081 = sor.u32 256, 8
      %4082 = vbcast.lane.b32.xlu0 %v4076, %s4081
      %v4083 = vpop.permute.xlu0 %4082
      %s4085 = sor.u32 256, 16
      %4086 = vbcast.lane.b32.xlu0 %v4076, %s4085
      %v4087 = vpop.permute.xlu0 %4086
      %s4089 = sor.u32 256, 24
      %4090 = vbcast.lane.b32.xlu0 %v4076, %s4089
      %v4091 = vpop.permute.xlu0 %4090
      %s4093 = sor.u32 256, 32
      %4094 = vbcast.lane.b32.xlu0 %v4076, %s4093
      %v4095 = vpop.permute.xlu0 %4094
      %s4097 = sor.u32 256, 40
      %4098 = vbcast.lane.b32.xlu0 %v4076, %s4097
      %v4099 = vpop.permute.xlu0 %4098
      %s4101 = sor.u32 256, 48
      %4102 = vbcast.lane.b32.xlu0 %v4076, %s4101
      %v4103 = vpop.permute.xlu0 %4102
      %s4105 = sor.u32 256, 56
      %4106 = vbcast.lane.b32.xlu0 %v4076, %s4105
      %v4107 = vpop.permute.xlu0 %4106
      %s4109 = sor.u32 256, 64
      %4110 = vbcast.lane.b32.xlu0 %v4076, %s4109
      %v4111 = vpop.permute.xlu0 %4110
      %s4113 = sor.u32 256, 72
      %4114 = vbcast.lane.b32.xlu0 %v4076, %s4113
      %v4115 = vpop.permute.xlu0 %4114
      %s4117 = sor.u32 256, 80
      %4118 = vbcast.lane.b32.xlu0 %v4076, %s4117
      %v4119 = vpop.permute.xlu0 %4118
      %s4121 = sor.u32 256, 88
      %4122 = vbcast.lane.b32.xlu0 %v4076, %s4121
      %v4123 = vpop.permute.xlu0 %4122
      %s4125 = sor.u32 256, 96
      %4126 = vbcast.lane.b32.xlu0 %v4076, %s4125
      %v4127 = vpop.permute.xlu0 %4126
      %s4129 = sor.u32 256, 104
      %4130 = vbcast.lane.b32.xlu0 %v4076, %s4129
      %v4131 = vpop.permute.xlu0 %4130
      %s4133 = sor.u32 256, 112
      %4134 = vbcast.lane.b32.xlu0 %v4076, %s4133
      %v4135 = vpop.permute.xlu0 %4134
      %s4137 = sor.u32 256, 120
      %4138 = vbcast.lane.b32.xlu0 %v4076, %s4137
      %v4139 = vpop.permute.xlu0 %4138
      %v4140 = vlaneseq
      %v4141 = vshrl.u32 %v4140, 7
      %v4142 = vsub.s32 0, %v4141
      %v4143 = vrot.slane %v4070, %v4142
      %4145 = vbcast.lane.b32.xlu0 %v4143, 256
      %v4146 = vpop.permute.xlu0 %4145
      %s4148 = sor.u32 256, 8
      %4149 = vbcast.lane.b32.xlu0 %v4143, %s4148
      %v4150 = vpop.permute.xlu0 %4149
      %s4152 = sor.u32 256, 16
      %4153 = vbcast.lane.b32.xlu0 %v4143, %s4152
      %v4154 = vpop.permute.xlu0 %4153
      %s4156 = sor.u32 256, 24
      %4157 = vbcast.lane.b32.xlu0 %v4143, %s4156
      %v4158 = vpop.permute.xlu0 %4157
      %s4160 = sor.u32 256, 32
      %4161 = vbcast.lane.b32.xlu0 %v4143, %s4160
      %v4162 = vpop.permute.xlu0 %4161
      %s4164 = sor.u32 256, 40
      %4165 = vbcast.lane.b32.xlu0 %v4143, %s4164
      %v4166 = vpop.permute.xlu0 %4165
      %s4168 = sor.u32 256, 48
      %4169 = vbcast.lane.b32.xlu0 %v4143, %s4168
      %v4170 = vpop.permute.xlu0 %4169
      %s4172 = sor.u32 256, 56
      %4173 = vbcast.lane.b32.xlu0 %v4143, %s4172
      %v4174 = vpop.permute.xlu0 %4173
      %s4176 = sor.u32 256, 64
      %4177 = vbcast.lane.b32.xlu0 %v4143, %s4176
      %v4178 = vpop.permute.xlu0 %4177
      %v4179 = vlaneseq
      %v4180 = vshrl.u32 %v4179, 7
      %v4181 = vsub.s32 1, %v4180
      %v4182 = vrot.slane %v4069, %v4181
      %4184 = vbcast.lane.b32.xlu0 %v4182, 256
      %v4185 = vpop.permute.xlu0 %4184
      %s4187 = sor.u32 256, 8
      %4188 = vbcast.lane.b32.xlu0 %v4182, %s4187
      %v4189 = vpop.permute.xlu0 %4188
      %s4191 = sor.u32 256, 16
      %4192 = vbcast.lane.b32.xlu0 %v4182, %s4191
      %v4193 = vpop.permute.xlu0 %4192
      %s4195 = sor.u32 256, 24
      %4196 = vbcast.lane.b32.xlu0 %v4182, %s4195
      %v4197 = vpop.permute.xlu0 %4196
      %s4199 = sor.u32 256, 32
      %4200 = vbcast.lane.b32.xlu0 %v4182, %s4199
      %v4201 = vpop.permute.xlu0 %4200
      %s4203 = sor.u32 256, 40
      %4204 = vbcast.lane.b32.xlu0 %v4182, %s4203
      %v4205 = vpop.permute.xlu0 %4204
      %s4207 = sor.u32 256, 48
      %4208 = vbcast.lane.b32.xlu0 %v4182, %s4207
      %v4209 = vpop.permute.xlu0 %4208
      %s4211 = sor.u32 256, 56
      %4212 = vbcast.lane.b32.xlu0 %v4182, %s4211
      %v4213 = vpop.permute.xlu0 %4212
      %s4215 = sor.u32 256, 64
      %4216 = vbcast.lane.b32.xlu0 %v4182, %s4215
      %v4217 = vpop.permute.xlu0 %4216
      %s4219 = sor.u32 256, 72
      %4220 = vbcast.lane.b32.xlu0 %v4182, %s4219
      %v4221 = vpop.permute.xlu0 %4220
      %s4223 = sor.u32 256, 80
      %4224 = vbcast.lane.b32.xlu0 %v4182, %s4223
      %v4225 = vpop.permute.xlu0 %4224
      %s4227 = sor.u32 256, 88
      %4228 = vbcast.lane.b32.xlu0 %v4182, %s4227
      %v4229 = vpop.permute.xlu0 %4228
      %s4231 = sor.u32 256, 96
      %4232 = vbcast.lane.b32.xlu0 %v4182, %s4231
      %v4233 = vpop.permute.xlu0 %4232
      %s4235 = sor.u32 256, 104
      %4236 = vbcast.lane.b32.xlu0 %v4182, %s4235
      %v4237 = vpop.permute.xlu0 %4236
      %s4239 = sor.u32 256, 112
      %4240 = vbcast.lane.b32.xlu0 %v4182, %s4239
      %v4241 = vpop.permute.xlu0 %4240
      %s4243 = sor.u32 256, 120
      %4244 = vbcast.lane.b32.xlu0 %v4182, %s4243
      %v4245 = vpop.permute.xlu0 %4244
      %v4246 = vlaneseq
      %v4247 = vshrl.u32 %v4246, 7
      %v4248 = vsub.s32 1, %v4247
      %v4249 = vrot.slane %v4070, %v4248
      %4251 = vbcast.lane.b32.xlu0 %v4249, 256
      %v4252 = vpop.permute.xlu0 %4251
      %s4254 = sor.u32 256, 8
      %4255 = vbcast.lane.b32.xlu0 %v4249, %s4254
      %v4256 = vpop.permute.xlu0 %4255
      %s4258 = sor.u32 256, 16
      %4259 = vbcast.lane.b32.xlu0 %v4249, %s4258
      %v4260 = vpop.permute.xlu0 %4259
      %s4262 = sor.u32 256, 24
      %4263 = vbcast.lane.b32.xlu0 %v4249, %s4262
      %v4264 = vpop.permute.xlu0 %4263
      %s4266 = sor.u32 256, 32
      %4267 = vbcast.lane.b32.xlu0 %v4249, %s4266
      %v4268 = vpop.permute.xlu0 %4267
      %s4270 = sor.u32 256, 40
      %4271 = vbcast.lane.b32.xlu0 %v4249, %s4270
      %v4272 = vpop.permute.xlu0 %4271
      %s4274 = sor.u32 256, 48
      %4275 = vbcast.lane.b32.xlu0 %v4249, %s4274
      %v4276 = vpop.permute.xlu0 %4275
      %s4278 = sor.u32 256, 56
      %4279 = vbcast.lane.b32.xlu0 %v4249, %s4278
      %v4280 = vpop.permute.xlu0 %4279
      %s4282 = sor.u32 256, 64
      %4283 = vbcast.lane.b32.xlu0 %v4249, %s4282
      %v4284 = vpop.permute.xlu0 %4283
      %v4285 = vsel %vm1442, 1.0, %v4079
      %v4286 = vsel %vm1442, 1.0, %v4083
      %v4287 = vsel %vm1442, 1.0, %v4087
      %v4288 = vsel %vm1442, 1.0, %v4091
      %v4289 = vsel %vm1442, 1.0, %v4095
      %v4290 = vsel %vm1442, 1.0, %v4099
      %v4291 = vsel %vm1442, 1.0, %v4103
      %v4292 = vsel %vm1442, 1.0, %v4107
      %v4293 = vsel %vm1442, 1.0, %v4111
      %v4294 = vsel %vm1442, 1.0, %v4115
      %v4295 = vsel %vm1442, 1.0, %v4119
      %v4296 = vsel %vm1442, 1.0, %v4123
      %v4297 = vsel %vm1442, 1.0, %v4127
      %v4298 = vsel %vm1442, 1.0, %v4131
      %v4299 = vsel %vm1442, 1.0, %v4135
      %v4300 = vsel %vm1442, 1.0, %v4139
      %v4301 = vsel %vm1442, 1.0, %v4146
      %v4302 = vsel %vm1442, 1.0, %v4150
      %v4303 = vsel %vm1442, 1.0, %v4154
      %v4304 = vsel %vm1442, 1.0, %v4158
      %v4305 = vsel %vm1442, 1.0, %v4162
      %v4306 = vsel %vm1442, 1.0, %v4166
      %v4307 = vsel %vm1442, 1.0, %v4170
      %v4308 = vsel %vm1442, 1.0, %v4174
      %v4309 = vsel %vm1442, 1.0, %v4178
      %v4310 = vsel %vm1442, 1.0, %v4185
      %v4311 = vsel %vm1442, 1.0, %v4189
      %v4312 = vsel %vm1442, 1.0, %v4193
      %v4313 = vsel %vm1442, 1.0, %v4197
      %v4314 = vsel %vm1442, 1.0, %v4201
      %v4315 = vsel %vm1442, 1.0, %v4205
      %v4316 = vsel %vm1442, 1.0, %v4209
      %v4317 = vsel %vm1442, 1.0, %v4213
      %v4318 = vsel %vm1442, 1.0, %v4217
      %v4319 = vsel %vm1442, 1.0, %v4221
      %v4320 = vsel %vm1442, 1.0, %v4225
      %v4321 = vsel %vm1442, 1.0, %v4229
      %v4322 = vsel %vm1442, 1.0, %v4233
      %v4323 = vsel %vm1442, 1.0, %v4237
      %v4324 = vsel %vm1442, 1.0, %v4241
      %v4325 = vsel %vm1442, 1.0, %v4245
      %v4326 = vsel %vm1442, 1.0, %v4252
      %v4327 = vsel %vm1442, 1.0, %v4256
      %v4328 = vsel %vm1442, 1.0, %v4260
      %v4329 = vsel %vm1442, 1.0, %v4264
      %v4330 = vsel %vm1442, 1.0, %v4268
      %v4331 = vsel %vm1442, 1.0, %v4272
      %v4332 = vsel %vm1442, 1.0, %v4276
      %v4333 = vsel %vm1442, 1.0, %v4280
      %v4334 = vsel %vm1442, 1.0, %v4284
      %v4336 = vsel %vm1493, %v3865, 0
      %v4339 = vsel %vm1493, %v3869, 0
      %v4342 = vsel %vm1493, %v3873, 0
      %v4345 = vsel %vm1493, %v3877, 0
      %v4348 = vsel %vm1493, %v3881, 0
      %v4351 = vsel %vm1493, %v3885, 0
      %v4354 = vsel %vm1493, %v3889, 0
      %v4357 = vsel %vm1493, %v3893, 0
      %v4360 = vsel %vm1493, %v3897, 0
      %v4363 = vsel %vm1493, %v3901, 0
      %v4366 = vsel %vm1493, %v3905, 0
      %v4369 = vsel %vm1493, %v3909, 0
      %v4372 = vsel %vm1493, %v3913, 0
      %v4375 = vsel %vm1493, %v3917, 0
      %v4378 = vsel %vm1493, %v3921, 0
      %v4381 = vsel %vm1493, %v3925, 0
      %v4384 = vsel %vm1493, %v3929, 0
      %v4387 = vsel %vm1493, %v3933, 0
      %v4390 = vsel %vm1493, %v3937, 0
      %v4393 = vsel %vm1493, %v3941, 0
      %v4396 = vsel %vm1493, %v3945, 0
      %v4399 = vsel %vm1493, %v3949, 0
      %v4402 = vsel %vm1493, %v3953, 0
      %v4405 = vsel %vm1493, %v3957, 0
      %v4408 = vsel %vm1493, %v3961, 0
      %4410 = vmatprep.subr.mxu0 0.0
      %4411 = vmatpush1.msra.mxu0 %v4285
      %4412 = vmatprep.subr.mxu0 0.0
      %4413 = vmatpush1.msra.mxu0 %v4286
      %4414 = vmatprep.subr.mxu0 0.0
      %4415 = vmatpush1.msra.mxu0 %v4287
      %4416 = vmatprep.subr.mxu0 0.0
      %4417 = vmatpush1.msra.mxu0 %v4288
      %4418 = vmatprep.subr.mxu0 0.0
      %4419 = vmatpush1.msra.mxu0 %v4289
      %4420 = vmatprep.subr.mxu0 0.0
      %4421 = vmatpush1.msra.mxu0 %v4290
      %4422 = vmatprep.subr.mxu0 0.0
      %4423 = vmatpush1.msra.mxu0 %v4291
      %4424 = vmatprep.subr.mxu0 0.0
      %4425 = vmatpush1.msra.mxu0 %v4292
      %4426 = vmatprep.subr.mxu0 0.0
      %4427 = vmatpush1.msra.mxu0 %v4293
      %4428 = vmatprep.subr.mxu0 0.0
      %4429 = vmatpush1.msra.mxu0 %v4294
      %4430 = vmatprep.subr.mxu0 0.0
      %4431 = vmatpush1.msra.mxu0 %v4295
      %4432 = vmatprep.subr.mxu0 0.0
      %4433 = vmatpush1.msra.mxu0 %v4296
      %4434 = vmatprep.subr.mxu0 0.0
      %4435 = vmatpush1.msra.mxu0 %v4297
      %4436 = vmatprep.subr.mxu0 0.0
      %4437 = vmatpush1.msra.mxu0 %v4298
      %4438 = vmatprep.subr.mxu0 0.0
      %4439 = vmatpush1.msra.mxu0 %v4299
      %4440 = vmatprep.subr.mxu0 0.0
      %4441 = vmatpush1.msra.mxu0 %v4300
      %4442 = vmatprep.subr.mxu0 0.0
      %4443 = vmatpush1.msra.mxu0 %v4301
      %4444 = vmatprep.subr.mxu0 0.0
      %4445 = vmatpush1.msra.mxu0 %v4302
      %4446 = vmatprep.subr.mxu0 0.0
      %4447 = vmatpush1.msra.mxu0 %v4303
      %4448 = vmatprep.subr.mxu0 0.0
      %4449 = vmatpush1.msra.mxu0 %v4304
      %4450 = vmatprep.subr.mxu0 0.0
      %4451 = vmatpush1.msra.mxu0 %v4305
      %4452 = vmatprep.subr.mxu0 0.0
      %4453 = vmatpush1.msra.mxu0 %v4306
      %4454 = vmatprep.subr.mxu0 0.0
      %4455 = vmatpush1.msra.mxu0 %v4307
      %4456 = vmatprep.subr.mxu0 0.0
      %4457 = vmatpush1.msra.mxu0 %v4308
      %4458 = vmatprep.subr.mxu0 0.0
      %4459 = vmatpush1.msra.mxu0 %v4309
      %4460 = vmatprep.subr.mxu0 0.0
      %4461 = vmatpush1.msra.mxu0 0.0
      %4462 = vmatprep.subr.mxu0 0.0
      %4463 = vmatpush1.msra.mxu0 0.0
      %4464 = vmatprep.subr.mxu0 0.0
      %4465 = vmatpush1.msra.mxu0 0.0
      %4466 = vmatprep.subr.mxu0 0.0
      %4467 = vmatpush1.msra.mxu0 0.0
      %4468 = vmatprep.subr.mxu0 0.0
      %4469 = vmatpush1.msra.mxu0 0.0
      %4470 = vmatprep.subr.mxu0 0.0
      %4471 = vmatpush1.msra.mxu0 0.0
      %4472 = vmatprep.subr.mxu0 0.0
      %4473 = vmatpush1.msra.mxu0 0.0
      %4474 = vmatprep.mubr.f32.mxu0 %v4336
      %4475 = vmatmul.mubr.f32.gmra.mrb[0].mxu0 %v3863
      %v4476 = vpop.f32.mrb[0].mxu0
      %v4477 = vadd.f32 0.0, %v4476
      %v4478 = vpop.f32.mrb[0].mxu0
      %4479 = vmatprep.mubr.f32.mxu0 %v4339
      %4480 = vmatmul.mubr.f32.gmra.mrb[0].mxu0 %v3867
      %v4481 = vpop.f32.mrb[0].mxu0
      %v4482 = vadd.f32 0.0, %v4481
      %v4483 = vpop.f32.mrb[0].mxu0
      %4484 = vmatprep.mubr.f32.mxu0 %v4342
      %4485 = vmatmul.mubr.f32.gmra.mrb[0].mxu0 %v3871
      %v4486 = vpop.f32.mrb[0].mxu0
      %v4487 = vadd.f32 0.0, %v4486
      %v4488 = vpop.f32.mrb[0].mxu0
      %4489 = vmatprep.mubr.f32.mxu0 %v4345
      %4490 = vmatmul.mubr.f32.gmra.mrb[0].mxu0 %v3875
      %v4491 = vpop.f32.mrb[0].mxu0
      %v4492 = vadd.f32 0.0, %v4491
      %v4493 = vpop.f32.mrb[0].mxu0
      %4494 = vmatprep.mubr.f32.mxu0 %v4348
      %4495 = vmatmul.mubr.f32.gmra.mrb[0].mxu0 %v3879
      %v4496 = vpop.f32.mrb[0].mxu0
      %v4497 = vadd.f32 0.0, %v4496
      %v4498 = vpop.f32.mrb[0].mxu0
      %4499 = vmatprep.mubr.f32.mxu0 %v4351
      %4500 = vmatmul.mubr.f32.gmra.mrb[0].mxu0 %v3883
      %v4501 = vpop.f32.mrb[0].mxu0
      %v4502 = vadd.f32 0.0, %v4501
      %v4503 = vpop.f32.mrb[0].mxu0
      %4504 = vmatprep.mubr.f32.mxu0 %v4354
      %4505 = vmatmul.mubr.f32.gmra.mrb[0].mxu0 %v3887
      %v4506 = vpop.f32.mrb[0].mxu0
      %v4507 = vadd.f32 0.0, %v4506
      %v4508 = vpop.f32.mrb[0].mxu0
      %4509 = vmatprep.mubr.f32.mxu0 %v4357
      %4510 = vmatmul.mubr.f32.gmra.mrb[0].mxu0 %v3891
      %v4511 = vpop.f32.mrb[0].mxu0
      %v4512 = vadd.f32 0.0, %v4511
      %v4513 = vpop.f32.mrb[0].mxu0
      %4514 = vmatprep.mubr.f32.mxu0 %v4360
      %4515 = vmatmul.mubr.f32.gmra.mrb[0].mxu0 %v3895
      %v4516 = vpop.f32.mrb[0].mxu0
      %v4517 = vadd.f32 0.0, %v4516
      %v4518 = vpop.f32.mrb[0].mxu0
      %4519 = vmatprep.mubr.f32.mxu0 %v4363
      %4520 = vmatmul.mubr.f32.gmra.mrb[0].mxu0 %v3899
      %v4521 = vpop.f32.mrb[0].mxu0
      %v4522 = vadd.f32 0.0, %v4521
      %v4523 = vpop.f32.mrb[0].mxu0
      %4524 = vmatprep.mubr.f32.mxu0 %v4366
      %4525 = vmatmul.mubr.f32.gmra.mrb[0].mxu0 %v3903
      %v4526 = vpop.f32.mrb[0].mxu0
      %v4527 = vadd.f32 0.0, %v4526
      %v4528 = vpop.f32.mrb[0].mxu0
      %4529 = vmatprep.mubr.f32.mxu0 %v4369
      %4530 = vmatmul.mubr.f32.gmra.mrb[0].mxu0 %v3907
      %v4531 = vpop.f32.mrb[0].mxu0
      %v4532 = vadd.f32 0.0, %v4531
      %v4533 = vpop.f32.mrb[0].mxu0
      %4534 = vmatprep.mubr.f32.mxu0 %v4372
      %4535 = vmatmul.mubr.f32.gmra.mrb[0].mxu0 %v3911
      %v4536 = vpop.f32.mrb[0].mxu0
      %v4537 = vadd.f32 0.0, %v4536
      %v4538 = vpop.f32.mrb[0].mxu0
      %4539 = vmatprep.mubr.f32.mxu0 %v4375
      %4540 = vmatmul.mubr.f32.gmra.mrb[0].mxu0 %v3915
      %v4541 = vpop.f32.mrb[0].mxu0
      %v4542 = vadd.f32 0.0, %v4541
      %v4543 = vpop.f32.mrb[0].mxu0
      %4544 = vmatprep.mubr.f32.mxu0 %v4378
      %4545 = vmatmul.mubr.f32.gmra.mrb[0].mxu0 %v3919
      %v4546 = vpop.f32.mrb[0].mxu0
      %v4547 = vadd.f32 0.0, %v4546
      %v4548 = vpop.f32.mrb[0].mxu0
      %4549 = vmatprep.mubr.f32.mxu0 %v4381
      %4550 = vmatmul.mubr.f32.gmra.mrb[0].mxu0 %v3923
      %v4551 = vpop.f32.mrb[0].mxu0
      %v4552 = vadd.f32 0.0, %v4551
      %v4553 = vpop.f32.mrb[0].mxu0
      %4554 = vmatprep.mubr.f32.mxu0 %v4384
      %4555 = vmatmul.mubr.f32.gmra.mrb[0].mxu0 %v3927
      %v4556 = vpop.f32.mrb[0].mxu0
      %v4557 = vadd.f32 0.0, %v4556
      %v4558 = vpop.f32.mrb[0].mxu0
      %4559 = vmatprep.mubr.f32.mxu0 %v4387
      %4560 = vmatmul.mubr.f32.gmra.mrb[0].mxu0 %v3931
      %v4561 = vpop.f32.mrb[0].mxu0
      %v4562 = vadd.f32 0.0, %v4561
      %v4563 = vpop.f32.mrb[0].mxu0
      %4564 = vmatprep.mubr.f32.mxu0 %v4390
      %4565 = vmatmul.mubr.f32.gmra.mrb[0].mxu0 %v3935
      %v4566 = vpop.f32.mrb[0].mxu0
      %v4567 = vadd.f32 0.0, %v4566
      %v4568 = vpop.f32.mrb[0].mxu0
      %4569 = vmatprep.mubr.f32.mxu0 %v4393
      %4570 = vmatmul.mubr.f32.gmra.mrb[0].mxu0 %v3939
      %v4571 = vpop.f32.mrb[0].mxu0
      %v4572 = vadd.f32 0.0, %v4571
      %v4573 = vpop.f32.mrb[0].mxu0
      %4574 = vmatprep.mubr.f32.mxu0 %v4396
      %4575 = vmatmul.mubr.f32.gmra.mrb[0].mxu0 %v3943
      %v4576 = vpop.f32.mrb[0].mxu0
      %v4577 = vadd.f32 0.0, %v4576
      %v4578 = vpop.f32.mrb[0].mxu0
      %4579 = vmatprep.mubr.f32.mxu0 %v4399
      %4580 = vmatmul.mubr.f32.gmra.mrb[0].mxu0 %v3947
      %v4581 = vpop.f32.mrb[0].mxu0
      %v4582 = vadd.f32 0.0, %v4581
      %v4583 = vpop.f32.mrb[0].mxu0
      %4584 = vmatprep.mubr.f32.mxu0 %v4402
      %4585 = vmatmul.mubr.f32.gmra.mrb[0].mxu0 %v3951
      %v4586 = vpop.f32.mrb[0].mxu0
      %v4587 = vadd.f32 0.0, %v4586
      %v4588 = vpop.f32.mrb[0].mxu0
      %4589 = vmatprep.mubr.f32.mxu0 %v4405
      %4590 = vmatmul.mubr.f32.gmra.mrb[0].mxu0 %v3955
      %v4591 = vpop.f32.mrb[0].mxu0
      %v4592 = vadd.f32 0.0, %v4591
      %v4593 = vpop.f32.mrb[0].mxu0
      %4594 = vmatprep.mubr.f32.mxu0 %v4408
      %4595 = vmatmul.mubr.f32.gmra.mrb[0].mxu0 %v3959
      %v4596 = vpop.f32.mrb[0].mxu0
      %v4597 = vadd.f32 0.0, %v4596
      %v4598 = vpop.f32.mrb[0].mxu0
      %4599 = vdwg.mxu0
      %v4601 = vsel %vm1493, %v3965, 0
      %v4604 = vsel %vm1493, %v3969, 0
      %v4607 = vsel %vm1493, %v3973, 0
      %v4610 = vsel %vm1493, %v3977, 0
      %v4613 = vsel %vm1493, %v3981, 0
      %v4616 = vsel %vm1493, %v3985, 0
      %v4619 = vsel %vm1493, %v3989, 0
      %v4622 = vsel %vm1493, %v3993, 0
      %v4625 = vsel %vm1493, %v3997, 0
      %v4628 = vsel %vm1493, %v4001, 0
      %v4631 = vsel %vm1493, %v4005, 0
      %v4634 = vsel %vm1493, %v4009, 0
      %v4637 = vsel %vm1493, %v4013, 0
      %v4640 = vsel %vm1493, %v4017, 0
      %v4643 = vsel %vm1493, %v4021, 0
      %v4646 = vsel %vm1493, %v4025, 0
      %v4649 = vsel %vm1493, %v4029, 0
      %v4652 = vsel %vm1493, %v4033, 0
      %v4655 = vsel %vm1493, %v4037, 0
      %v4658 = vsel %vm1493, %v4041, 0
      %v4661 = vsel %vm1493, %v4045, 0
      %v4664 = vsel %vm1493, %v4049, 0
      %v4667 = vsel %vm1493, %v4053, 0
      %v4670 = vsel %vm1493, %v4057, 0
      %v4673 = vsel %vm1493, %v4061, 0
      %4675 = vmatprep.subr.mxu0 0.0
      %4676 = vmatpush1.msra.mxu0 %v4310
      %4677 = vmatprep.subr.mxu0 0.0
      %4678 = vmatpush1.msra.mxu0 %v4311
      %4679 = vmatprep.subr.mxu0 0.0
      %4680 = vmatpush1.msra.mxu0 %v4312
      %4681 = vmatprep.subr.mxu0 0.0
      %4682 = vmatpush1.msra.mxu0 %v4313
      %4683 = vmatprep.subr.mxu0 0.0
      %4684 = vmatpush1.msra.mxu0 %v4314
      %4685 = vmatprep.subr.mxu0 0.0
      %4686 = vmatpush1.msra.mxu0 %v4315
      %4687 = vmatprep.subr.mxu0 0.0
      %4688 = vmatpush1.msra.mxu0 %v4316
      %4689 = vmatprep.subr.mxu0 0.0
      %4690 = vmatpush1.msra.mxu0 %v4317
      %4691 = vmatprep.subr.mxu0 0.0
      %4692 = vmatpush1.msra.mxu0 %v4318
      %4693 = vmatprep.subr.mxu0 0.0
      %4694 = vmatpush1.msra.mxu0 %v4319
      %4695 = vmatprep.subr.mxu0 0.0
      %4696 = vmatpush1.msra.mxu0 %v4320
      %4697 = vmatprep.subr.mxu0 0.0
      %4698 = vmatpush1.msra.mxu0 %v4321
      %4699 = vmatprep.subr.mxu0 0.0
      %4700 = vmatpush1.msra.mxu0 %v4322
      %4701 = vmatprep.subr.mxu0 0.0
      %4702 = vmatpush1.msra.mxu0 %v4323
      %4703 = vmatprep.subr.mxu0 0.0
      %4704 = vmatpush1.msra.mxu0 %v4324
      %4705 = vmatprep.subr.mxu0 0.0
      %4706 = vmatpush1.msra.mxu0 %v4325
      %4707 = vmatprep.subr.mxu0 0.0
      %4708 = vmatpush1.msra.mxu0 %v4326
      %4709 = vmatprep.subr.mxu0 0.0
      %4710 = vmatpush1.msra.mxu0 %v4327
      %4711 = vmatprep.subr.mxu0 0.0
      %4712 = vmatpush1.msra.mxu0 %v4328
      %4713 = vmatprep.subr.mxu0 0.0
      %4714 = vmatpush1.msra.mxu0 %v4329
      %4715 = vmatprep.subr.mxu0 0.0
      %4716 = vmatpush1.msra.mxu0 %v4330
      %4717 = vmatprep.subr.mxu0 0.0
      %4718 = vmatpush1.msra.mxu0 %v4331
      %4719 = vmatprep.subr.mxu0 0.0
      %4720 = vmatpush1.msra.mxu0 %v4332
      %4721 = vmatprep.subr.mxu0 0.0
      %4722 = vmatpush1.msra.mxu0 %v4333
      %4723 = vmatprep.subr.mxu0 0.0
      %4724 = vmatpush1.msra.mxu0 %v4334
      %4725 = vmatprep.subr.mxu0 0.0
      %4726 = vmatpush1.msra.mxu0 0.0
      %4727 = vmatprep.subr.mxu0 0.0
      %4728 = vmatpush1.msra.mxu0 0.0
      %4729 = vmatprep.subr.mxu0 0.0
      %4730 = vmatpush1.msra.mxu0 0.0
      %4731 = vmatprep.subr.mxu0 0.0
      %4732 = vmatpush1.msra.mxu0 0.0
      %4733 = vmatprep.subr.mxu0 0.0
      %4734 = vmatpush1.msra.mxu0 0.0
      %4735 = vmatprep.subr.mxu0 0.0
      %4736 = vmatpush1.msra.mxu0 0.0
      %4737 = vmatprep.subr.mxu0 0.0
      %4738 = vmatpush1.msra.mxu0 0.0
      %4739 = vmatprep.mubr.f32.mxu0 %v4601
      %4740 = vmatmul.mubr.f32.gmra.mrb[0].mxu0 %v3963
      %v4741 = vpop.f32.mrb[0].mxu0
      %v4742 = vadd.f32 0.0, %v4741
      %v4743 = vpop.f32.mrb[0].mxu0
      %4744 = vmatprep.mubr.f32.mxu0 %v4604
      %4745 = vmatmul.mubr.f32.gmra.mrb[0].mxu0 %v3967
      %v4746 = vpop.f32.mrb[0].mxu0
      %v4747 = vadd.f32 0.0, %v4746
      %v4748 = vpop.f32.mrb[0].mxu0
      %4749 = vmatprep.mubr.f32.mxu0 %v4607
      %4750 = vmatmul.mubr.f32.gmra.mrb[0].mxu0 %v3971
      %v4751 = vpop.f32.mrb[0].mxu0
      %v4752 = vadd.f32 0.0, %v4751
      %v4753 = vpop.f32.mrb[0].mxu0
      %4754 = vmatprep.mubr.f32.mxu0 %v4610
      %4755 = vmatmul.mubr.f32.gmra.mrb[0].mxu0 %v3975
      %v4756 = vpop.f32.mrb[0].mxu0
      %v4757 = vadd.f32 0.0, %v4756
      %v4758 = vpop.f32.mrb[0].mxu0
      %4759 = vmatprep.mubr.f32.mxu0 %v4613
      %4760 = vmatmul.mubr.f32.gmra.mrb[0].mxu0 %v3979
      %v4761 = vpop.f32.mrb[0].mxu0
      %v4762 = vadd.f32 0.0, %v4761
      %v4763 = vpop.f32.mrb[0].mxu0
      %4764 = vmatprep.mubr.f32.mxu0 %v4616
      %4765 = vmatmul.mubr.f32.gmra.mrb[0].mxu0 %v3983
      %v4766 = vpop.f32.mrb[0].mxu0
      %v4767 = vadd.f32 0.0, %v4766
      %v4768 = vpop.f32.mrb[0].mxu0
      %4769 = vmatprep.mubr.f32.mxu0 %v4619
      %4770 = vmatmul.mubr.f32.gmra.mrb[0].mxu0 %v3987
      %v4771 = vpop.f32.mrb[0].mxu0
      %v4772 = vadd.f32 0.0, %v4771
      %v4773 = vpop.f32.mrb[0].mxu0
      %4774 = vmatprep.mubr.f32.mxu0 %v4622
      %4775 = vmatmul.mubr.f32.gmra.mrb[0].mxu0 %v3991
      %v4776 = vpop.f32.mrb[0].mxu0
      %v4777 = vadd.f32 0.0, %v4776
      %v4778 = vpop.f32.mrb[0].mxu0
      %4779 = vmatprep.mubr.f32.mxu0 %v4625
      %4780 = vmatmul.mubr.f32.gmra.mrb[0].mxu0 %v3995
      %v4781 = vpop.f32.mrb[0].mxu0
      %v4782 = vadd.f32 0.0, %v4781
      %v4783 = vpop.f32.mrb[0].mxu0
      %4784 = vmatprep.mubr.f32.mxu0 %v4628
      %4785 = vmatmul.mubr.f32.gmra.mrb[0].mxu0 %v3999
      %v4786 = vpop.f32.mrb[0].mxu0
      %v4787 = vadd.f32 0.0, %v4786
      %v4788 = vpop.f32.mrb[0].mxu0
      %4789 = vmatprep.mubr.f32.mxu0 %v4631
      %4790 = vmatmul.mubr.f32.gmra.mrb[0].mxu0 %v4003
      %v4791 = vpop.f32.mrb[0].mxu0
      %v4792 = vadd.f32 0.0, %v4791
      %v4793 = vpop.f32.mrb[0].mxu0
      %4794 = vmatprep.mubr.f32.mxu0 %v4634
      %4795 = vmatmul.mubr.f32.gmra.mrb[0].mxu0 %v4007
      %v4796 = vpop.f32.mrb[0].mxu0
      %v4797 = vadd.f32 0.0, %v4796
      %v4798 = vpop.f32.mrb[0].mxu0
      %4799 = vmatprep.mubr.f32.mxu0 %v4637
      %4800 = vmatmul.mubr.f32.gmra.mrb[0].mxu0 %v4011
      %v4801 = vpop.f32.mrb[0].mxu0
      %v4802 = vadd.f32 0.0, %v4801
      %v4803 = vpop.f32.mrb[0].mxu0
      %4804 = vmatprep.mubr.f32.mxu0 %v4640
      %4805 = vmatmul.mubr.f32.gmra.mrb[0].mxu0 %v4015
      %v4806 = vpop.f32.mrb[0].mxu0
      %v4807 = vadd.f32 0.0, %v4806
      %v4808 = vpop.f32.mrb[0].mxu0
      %4809 = vmatprep.mubr.f32.mxu0 %v4643
      %4810 = vmatmul.mubr.f32.gmra.mrb[0].mxu0 %v4019
      %v4811 = vpop.f32.mrb[0].mxu0
      %v4812 = vadd.f32 0.0, %v4811
      %v4813 = vpop.f32.mrb[0].mxu0
      %4814 = vmatprep.mubr.f32.mxu0 %v4646
      %4815 = vmatmul.mubr.f32.gmra.mrb[0].mxu0 %v4023
      %v4816 = vpop.f32.mrb[0].mxu0
      %v4817 = vadd.f32 0.0, %v4816
      %v4818 = vpop.f32.mrb[0].mxu0
      %4819 = vmatprep.mubr.f32.mxu0 %v4649
      %4820 = vmatmul.mubr.f32.gmra.mrb[0].mxu0 %v4027
      %v4821 = vpop.f32.mrb[0].mxu0
      %v4822 = vadd.f32 0.0, %v4821
      %v4823 = vpop.f32.mrb[0].mxu0
      %4824 = vmatprep.mubr.f32.mxu0 %v4652
      %4825 = vmatmul.mubr.f32.gmra.mrb[0].mxu0 %v4031
      %v4826 = vpop.f32.mrb[0].mxu0
      %v4827 = vadd.f32 0.0, %v4826
      %v4828 = vpop.f32.mrb[0].mxu0
      %4829 = vmatprep.mubr.f32.mxu0 %v4655
      %4830 = vmatmul.mubr.f32.gmra.mrb[0].mxu0 %v4035
      %v4831 = vpop.f32.mrb[0].mxu0
      %v4832 = vadd.f32 0.0, %v4831
      %v4833 = vpop.f32.mrb[0].mxu0
      %4834 = vmatprep.mubr.f32.mxu0 %v4658
      %4835 = vmatmul.mubr.f32.gmra.mrb[0].mxu0 %v4039
      %v4836 = vpop.f32.mrb[0].mxu0
      %v4837 = vadd.f32 0.0, %v4836
      %v4838 = vpop.f32.mrb[0].mxu0
      %4839 = vmatprep.mubr.f32.mxu0 %v4661
      %4840 = vmatmul.mubr.f32.gmra.mrb[0].mxu0 %v4043
      %v4841 = vpop.f32.mrb[0].mxu0
      %v4842 = vadd.f32 0.0, %v4841
      %v4843 = vpop.f32.mrb[0].mxu0
      %4844 = vmatprep.mubr.f32.mxu0 %v4664
      %4845 = vmatmul.mubr.f32.gmra.mrb[0].mxu0 %v4047
      %v4846 = vpop.f32.mrb[0].mxu0
      %v4847 = vadd.f32 0.0, %v4846
      %v4848 = vpop.f32.mrb[0].mxu0
      %4849 = vmatprep.mubr.f32.mxu0 %v4667
      %4850 = vmatmul.mubr.f32.gmra.mrb[0].mxu0 %v4051
      %v4851 = vpop.f32.mrb[0].mxu0
      %v4852 = vadd.f32 0.0, %v4851
      %v4853 = vpop.f32.mrb[0].mxu0
      %4854 = vmatprep.mubr.f32.mxu0 %v4670
      %4855 = vmatmul.mubr.f32.gmra.mrb[0].mxu0 %v4055
      %v4856 = vpop.f32.mrb[0].mxu0
      %v4857 = vadd.f32 0.0, %v4856
      %v4858 = vpop.f32.mrb[0].mxu0
      %4859 = vmatprep.mubr.f32.mxu0 %v4673
      %4860 = vmatmul.mubr.f32.gmra.mrb[0].mxu0 %v4059
      %v4861 = vpop.f32.mrb[0].mxu0
      %v4862 = vadd.f32 0.0, %v4861
      %v4863 = vpop.f32.mrb[0].mxu0
      %4864 = vdwg.mxu0
      %v4865 = vrcp.pop %v4477
      %v4866 = vrcp.pop %v4482
      %v4867 = vrcp.pop %v4487
      %v4868 = vrcp.pop %v4492
      %v4869 = vrcp.pop %v4497
      %v4870 = vrcp.pop %v4502
      %v4871 = vrcp.pop %v4507
      %v4872 = vrcp.pop %v4512
      %v4873 = vrcp.pop %v4517
      %v4874 = vrcp.pop %v4522
      %v4875 = vrcp.pop %v4527
      %v4876 = vrcp.pop %v4532
      %v4877 = vrcp.pop %v4537
      %v4878 = vrcp.pop %v4542
      %v4879 = vrcp.pop %v4547
      %v4880 = vrcp.pop %v4552
      %v4881 = vrcp.pop %v4557
      %v4882 = vrcp.pop %v4562
      %v4883 = vrcp.pop %v4567
      %v4884 = vrcp.pop %v4572
      %v4885 = vrcp.pop %v4577
      %v4886 = vrcp.pop %v4582
      %v4887 = vrcp.pop %v4587
      %v4888 = vrcp.pop %v4592
      %v4889 = vrcp.pop %v4597
      %v4890 = vrcp.pop %v4742
      %v4891 = vrcp.pop %v4747
      %v4892 = vrcp.pop %v4752
      %v4893 = vrcp.pop %v4757
      %v4894 = vrcp.pop %v4762
      %v4895 = vrcp.pop %v4767
      %v4896 = vrcp.pop %v4772
      %v4897 = vrcp.pop %v4777
      %v4898 = vrcp.pop %v4782
      %v4899 = vrcp.pop %v4787
      %v4900 = vrcp.pop %v4792
      %v4901 = vrcp.pop %v4797
      %v4902 = vrcp.pop %v4802
      %v4903 = vrcp.pop %v4807
      %v4904 = vrcp.pop %v4812
      %v4905 = vrcp.pop %v4817
      %v4906 = vrcp.pop %v4822
      %v4907 = vrcp.pop %v4827
      %v4908 = vrcp.pop %v4832
      %v4909 = vrcp.pop %v4837
      %v4910 = vrcp.pop %v4842
      %v4911 = vrcp.pop %v4847
      %v4912 = vrcp.pop %v4852
      %v4913 = vrcp.pop %v4857
      %v4914 = vrcp.pop %v4862
      %v4915 = vmul.f32 %v4477, %v4865
      %v4916 = vmul.f32 %v4482, %v4866
      %v4917 = vmul.f32 %v4487, %v4867
      %v4918 = vmul.f32 %v4492, %v4868
      %v4919 = vmul.f32 %v4497, %v4869
      %v4920 = vmul.f32 %v4502, %v4870
      %v4921 = vmul.f32 %v4507, %v4871
      %v4922 = vmul.f32 %v4512, %v4872
      %v4923 = vmul.f32 %v4517, %v4873
      %v4924 = vmul.f32 %v4522, %v4874
      %v4925 = vmul.f32 %v4527, %v4875
      %v4926 = vmul.f32 %v4532, %v4876
      %v4927 = vmul.f32 %v4537, %v4877
      %v4928 = vmul.f32 %v4542, %v4878
      %v4929 = vmul.f32 %v4547, %v4879
      %v4930 = vmul.f32 %v4552, %v4880
      %v4931 = vmul.f32 %v4557, %v4881
      %v4932 = vmul.f32 %v4562, %v4882
      %v4933 = vmul.f32 %v4567, %v4883
      %v4934 = vmul.f32 %v4572, %v4884
      %v4935 = vmul.f32 %v4577, %v4885
      %v4936 = vmul.f32 %v4582, %v4886
      %v4937 = vmul.f32 %v4587, %v4887
      %v4938 = vmul.f32 %v4592, %v4888
      %v4939 = vmul.f32 %v4597, %v4889
      %v4940 = vmul.f32 %v4742, %v4890
      %v4941 = vmul.f32 %v4747, %v4891
      %v4942 = vmul.f32 %v4752, %v4892
      %v4943 = vmul.f32 %v4757, %v4893
      %v4944 = vmul.f32 %v4762, %v4894
      %v4945 = vmul.f32 %v4767, %v4895
      %v4946 = vmul.f32 %v4772, %v4896
      %v4947 = vmul.f32 %v4777, %v4897
      %v4948 = vmul.f32 %v4782, %v4898
      %v4949 = vmul.f32 %v4787, %v4899
      %v4950 = vmul.f32 %v4792, %v4900
      %v4951 = vmul.f32 %v4797, %v4901
      %v4952 = vmul.f32 %v4802, %v4902
      %v4953 = vmul.f32 %v4807, %v4903
      %v4954 = vmul.f32 %v4812, %v4904
      %v4955 = vmul.f32 %v4817, %v4905
      %v4956 = vmul.f32 %v4822, %v4906
      %v4957 = vmul.f32 %v4827, %v4907
      %v4958 = vmul.f32 %v4832, %v4908
      %v4959 = vmul.f32 %v4837, %v4909
      %v4960 = vmul.f32 %v4842, %v4910
      %v4961 = vmul.f32 %v4847, %v4911
      %v4962 = vmul.f32 %v4852, %v4912
      %v4963 = vmul.f32 %v4857, %v4913
      %v4964 = vmul.f32 %v4862, %v4914
      %v4965 = vsub.f32 2.0, %v4915
      %v4966 = vsub.f32 2.0, %v4916
      %v4967 = vsub.f32 2.0, %v4917
      %v4968 = vsub.f32 2.0, %v4918
      %v4969 = vsub.f32 2.0, %v4919
      %v4970 = vsub.f32 2.0, %v4920
      %v4971 = vsub.f32 2.0, %v4921
      %v4972 = vsub.f32 2.0, %v4922
      %v4973 = vsub.f32 2.0, %v4923
      %v4974 = vsub.f32 2.0, %v4924
      %v4975 = vsub.f32 2.0, %v4925
      %v4976 = vsub.f32 2.0, %v4926
      %v4977 = vsub.f32 2.0, %v4927
      %v4978 = vsub.f32 2.0, %v4928
      %v4979 = vsub.f32 2.0, %v4929
      %v4980 = vsub.f32 2.0, %v4930
      %v4981 = vsub.f32 2.0, %v4931
      %v4982 = vsub.f32 2.0, %v4932
      %v4983 = vsub.f32 2.0, %v4933
      %v4984 = vsub.f32 2.0, %v4934
      %v4985 = vsub.f32 2.0, %v4935
      %v4986 = vsub.f32 2.0, %v4936
      %v4987 = vsub.f32 2.0, %v4937
      %v4988 = vsub.f32 2.0, %v4938
      %v4989 = vsub.f32 2.0, %v4939
      %v4990 = vsub.f32 2.0, %v4940
      %v4991 = vsub.f32 2.0, %v4941
      %v4992 = vsub.f32 2.0, %v4942
      %v4993 = vsub.f32 2.0, %v4943
      %v4994 = vsub.f32 2.0, %v4944
      %v4995 = vsub.f32 2.0, %v4945
      %v4996 = vsub.f32 2.0, %v4946
      %v4997 = vsub.f32 2.0, %v4947
      %v4998 = vsub.f32 2.0, %v4948
      %v4999 = vsub.f32 2.0, %v4949
      %v5000 = vsub.f32 2.0, %v4950
      %v5001 = vsub.f32 2.0, %v4951
      %v5002 = vsub.f32 2.0, %v4952
      %v5003 = vsub.f32 2.0, %v4953
      %v5004 = vsub.f32 2.0, %v4954
      %v5005 = vsub.f32 2.0, %v4955
      %v5006 = vsub.f32 2.0, %v4956
      %v5007 = vsub.f32 2.0, %v4957
      %v5008 = vsub.f32 2.0, %v4958
      %v5009 = vsub.f32 2.0, %v4959
      %v5010 = vsub.f32 2.0, %v4960
      %v5011 = vsub.f32 2.0, %v4961
      %v5012 = vsub.f32 2.0, %v4962
      %v5013 = vsub.f32 2.0, %v4963
      %v5014 = vsub.f32 2.0, %v4964
      %v5015 = vmul.f32 %v4865, %v4965
      %v5016 = vmul.f32 %v4866, %v4966
      %v5017 = vmul.f32 %v4867, %v4967
      %v5018 = vmul.f32 %v4868, %v4968
      %v5019 = vmul.f32 %v4869, %v4969
      %v5020 = vmul.f32 %v4870, %v4970
      %v5021 = vmul.f32 %v4871, %v4971
      %v5022 = vmul.f32 %v4872, %v4972
      %v5023 = vmul.f32 %v4873, %v4973
      %v5024 = vmul.f32 %v4874, %v4974
      %v5025 = vmul.f32 %v4875, %v4975
      %v5026 = vmul.f32 %v4876, %v4976
      %v5027 = vmul.f32 %v4877, %v4977
      %v5028 = vmul.f32 %v4878, %v4978
      %v5029 = vmul.f32 %v4879, %v4979
      %v5030 = vmul.f32 %v4880, %v4980
      %v5031 = vmul.f32 %v4881, %v4981
      %v5032 = vmul.f32 %v4882, %v4982
      %v5033 = vmul.f32 %v4883, %v4983
      %v5034 = vmul.f32 %v4884, %v4984
      %v5035 = vmul.f32 %v4885, %v4985
      %v5036 = vmul.f32 %v4886, %v4986
      %v5037 = vmul.f32 %v4887, %v4987
      %v5038 = vmul.f32 %v4888, %v4988
      %v5039 = vmul.f32 %v4889, %v4989
      %v5040 = vmul.f32 %v4890, %v4990
      %v5041 = vmul.f32 %v4891, %v4991
      %v5042 = vmul.f32 %v4892, %v4992
      %v5043 = vmul.f32 %v4893, %v4993
      %v5044 = vmul.f32 %v4894, %v4994
      %v5045 = vmul.f32 %v4895, %v4995
      %v5046 = vmul.f32 %v4896, %v4996
      %v5047 = vmul.f32 %v4897, %v4997
      %v5048 = vmul.f32 %v4898, %v4998
      %v5049 = vmul.f32 %v4899, %v4999
      %v5050 = vmul.f32 %v4900, %v5000
      %v5051 = vmul.f32 %v4901, %v5001
      %v5052 = vmul.f32 %v4902, %v5002
      %v5053 = vmul.f32 %v4903, %v5003
      %v5054 = vmul.f32 %v4904, %v5004
      %v5055 = vmul.f32 %v4905, %v5005
      %v5056 = vmul.f32 %v4906, %v5006
      %v5057 = vmul.f32 %v4907, %v5007
      %v5058 = vmul.f32 %v4908, %v5008
      %v5059 = vmul.f32 %v4909, %v5009
      %v5060 = vmul.f32 %v4910, %v5010
      %v5061 = vmul.f32 %v4911, %v5011
      %v5062 = vmul.f32 %v4912, %v5012
      %v5063 = vmul.f32 %v4913, %v5013
      %v5064 = vmul.f32 %v4914, %v5014
      %5115 = vrot.lane.b32.xlu0 %v5015, 1
      %v5116 = vpop.permute.xlu0 %5115
      %5117 = vrot.lane.b32.xlu0 %v5016, 1
      %v5118 = vpop.permute.xlu0 %5117
      %5119 = vrot.lane.b32.xlu0 %v5017, 1
      %v5120 = vpop.permute.xlu0 %5119
      %5121 = vrot.lane.b32.xlu0 %v5018, 1
      %v5122 = vpop.permute.xlu0 %5121
      %5123 = vrot.lane.b32.xlu0 %v5019, 1
      %v5124 = vpop.permute.xlu0 %5123
      %5125 = vrot.lane.b32.xlu0 %v5020, 1
      %v5126 = vpop.permute.xlu0 %5125
      %5127 = vrot.lane.b32.xlu0 %v5021, 1
      %v5128 = vpop.permute.xlu0 %5127
      %5129 = vrot.lane.b32.xlu0 %v5022, 1
      %v5130 = vpop.permute.xlu0 %5129
      %5131 = vrot.lane.b32.xlu0 %v5023, 1
      %v5132 = vpop.permute.xlu0 %5131
      %5133 = vrot.lane.b32.xlu0 %v5024, 1
      %v5134 = vpop.permute.xlu0 %5133
      %5135 = vrot.lane.b32.xlu0 %v5025, 1
      %v5136 = vpop.permute.xlu0 %5135
      %5137 = vrot.lane.b32.xlu0 %v5026, 1
      %v5138 = vpop.permute.xlu0 %5137
      %5139 = vrot.lane.b32.xlu0 %v5027, 1
      %v5140 = vpop.permute.xlu0 %5139
      %5141 = vrot.lane.b32.xlu0 %v5028, 1
      %v5142 = vpop.permute.xlu0 %5141
      %5143 = vrot.lane.b32.xlu0 %v5029, 1
      %v5144 = vpop.permute.xlu0 %5143
      %5145 = vrot.lane.b32.xlu0 %v5030, 1
      %v5146 = vpop.permute.xlu0 %5145
      %5147 = vrot.lane.b32.xlu0 %v5031, 1
      %v5148 = vpop.permute.xlu0 %5147
      %5149 = vrot.lane.b32.xlu0 %v5032, 1
      %v5150 = vpop.permute.xlu0 %5149
      %5151 = vrot.lane.b32.xlu0 %v5033, 1
      %v5152 = vpop.permute.xlu0 %5151
      %5153 = vrot.lane.b32.xlu0 %v5034, 1
      %v5154 = vpop.permute.xlu0 %5153
      %5155 = vrot.lane.b32.xlu0 %v5035, 1
      %v5156 = vpop.permute.xlu0 %5155
      %5157 = vrot.lane.b32.xlu0 %v5036, 1
      %v5158 = vpop.permute.xlu0 %5157
      %5159 = vrot.lane.b32.xlu0 %v5037, 1
      %v5160 = vpop.permute.xlu0 %5159
      %5161 = vrot.lane.b32.xlu0 %v5038, 1
      %v5162 = vpop.permute.xlu0 %5161
      %5163 = vrot.lane.b32.xlu0 %v5039, 1
      %v5164 = vpop.permute.xlu0 %5163
      %5165 = vrot.lane.b32.xlu0 %v5040, 1
      %v5166 = vpop.permute.xlu0 %5165
      %5167 = vrot.lane.b32.xlu0 %v5041, 1
      %v5168 = vpop.permute.xlu0 %5167
      %5169 = vrot.lane.b32.xlu0 %v5042, 1
      %v5170 = vpop.permute.xlu0 %5169
      %5171 = vrot.lane.b32.xlu0 %v5043, 1
      %v5172 = vpop.permute.xlu0 %5171
      %5173 = vrot.lane.b32.xlu0 %v5044, 1
      %v5174 = vpop.permute.xlu0 %5173
      %5175 = vrot.lane.b32.xlu0 %v5045, 1
      %v5176 = vpop.permute.xlu0 %5175
      %5177 = vrot.lane.b32.xlu0 %v5046, 1
      %v5178 = vpop.permute.xlu0 %5177
      %5179 = vrot.lane.b32.xlu0 %v5047, 1
      %v5180 = vpop.permute.xlu0 %5179
      %5181 = vrot.lane.b32.xlu0 %v5048, 1
      %v5182 = vpop.permute.xlu0 %5181
      %5183 = vrot.lane.b32.xlu0 %v5049, 1
      %v5184 = vpop.permute.xlu0 %5183
      %5185 = vrot.lane.b32.xlu0 %v5050, 1
      %v5186 = vpop.permute.xlu0 %5185
      %5187 = vrot.lane.b32.xlu0 %v5051, 1
      %v5188 = vpop.permute.xlu0 %5187
      %5189 = vrot.lane.b32.xlu0 %v5052, 1
      %v5190 = vpop.permute.xlu0 %5189
      %5191 = vrot.lane.b32.xlu0 %v5053, 1
      %v5192 = vpop.permute.xlu0 %5191
      %5193 = vrot.lane.b32.xlu0 %v5054, 1
      %v5194 = vpop.permute.xlu0 %5193
      %5195 = vrot.lane.b32.xlu0 %v5055, 1
      %v5196 = vpop.permute.xlu0 %5195
      %5197 = vrot.lane.b32.xlu0 %v5056, 1
      %v5198 = vpop.permute.xlu0 %5197
      %5199 = vrot.lane.b32.xlu0 %v5057, 1
      %v5200 = vpop.permute.xlu0 %5199
      %5201 = vrot.lane.b32.xlu0 %v5058, 1
      %v5202 = vpop.permute.xlu0 %5201
      %5203 = vrot.lane.b32.xlu0 %v5059, 1
      %v5204 = vpop.permute.xlu0 %5203
      %5205 = vrot.lane.b32.xlu0 %v5060, 1
      %v5206 = vpop.permute.xlu0 %5205
      %5207 = vrot.lane.b32.xlu0 %v5061, 1
      %v5208 = vpop.permute.xlu0 %5207
      %5209 = vrot.lane.b32.xlu0 %v5062, 1
      %v5210 = vpop.permute.xlu0 %5209
      %5211 = vrot.lane.b32.xlu0 %v5063, 1
      %v5212 = vpop.permute.xlu0 %5211
      %5213 = vrot.lane.b32.xlu0 %v5064, 1
      %v5214 = vpop.permute.xlu0 %5213
      %v5265 = vmul.f32 %v4477, %v5116
      %v5266 = vmul.f32 %v4482, %v5118
      %v5267 = vmul.f32 %v4487, %v5120
      %v5268 = vmul.f32 %v4492, %v5122
      %v5269 = vmul.f32 %v4497, %v5124
      %v5270 = vmul.f32 %v4502, %v5126
      %v5271 = vmul.f32 %v4507, %v5128
      %v5272 = vmul.f32 %v4512, %v5130
      %v5273 = vmul.f32 %v4517, %v5132
      %v5274 = vmul.f32 %v4522, %v5134
      %v5275 = vmul.f32 %v4527, %v5136
      %v5276 = vmul.f32 %v4532, %v5138
      %v5277 = vmul.f32 %v4537, %v5140
      %v5278 = vmul.f32 %v4542, %v5142
      %v5279 = vmul.f32 %v4547, %v5144
      %v5280 = vmul.f32 %v4552, %v5146
      %v5281 = vmul.f32 %v4557, %v5148
      %v5282 = vmul.f32 %v4562, %v5150
      %v5283 = vmul.f32 %v4567, %v5152
      %v5284 = vmul.f32 %v4572, %v5154
      %v5285 = vmul.f32 %v4577, %v5156
      %v5286 = vmul.f32 %v4582, %v5158
      %v5287 = vmul.f32 %v4587, %v5160
      %v5288 = vmul.f32 %v4592, %v5162
      %v5289 = vmul.f32 %v4597, %v5164
      %v5290 = vmul.f32 %v4742, %v5166
      %v5291 = vmul.f32 %v4747, %v5168
      %v5292 = vmul.f32 %v4752, %v5170
      %v5293 = vmul.f32 %v4757, %v5172
      %v5294 = vmul.f32 %v4762, %v5174
      %v5295 = vmul.f32 %v4767, %v5176
      %v5296 = vmul.f32 %v4772, %v5178
      %v5297 = vmul.f32 %v4777, %v5180
      %v5298 = vmul.f32 %v4782, %v5182
      %v5299 = vmul.f32 %v4787, %v5184
      %v5300 = vmul.f32 %v4792, %v5186
      %v5301 = vmul.f32 %v4797, %v5188
      %v5302 = vmul.f32 %v4802, %v5190
      %v5303 = vmul.f32 %v4807, %v5192
      %v5304 = vmul.f32 %v4812, %v5194
      %v5305 = vmul.f32 %v4817, %v5196
      %v5306 = vmul.f32 %v4822, %v5198
      %v5307 = vmul.f32 %v4827, %v5200
      %v5308 = vmul.f32 %v4832, %v5202
      %v5309 = vmul.f32 %v4837, %v5204
      %v5310 = vmul.f32 %v4842, %v5206
      %v5311 = vmul.f32 %v4847, %v5208
      %v5312 = vmul.f32 %v4852, %v5210
      %v5313 = vmul.f32 %v4857, %v5212
      %v5314 = vmul.f32 %v4862, %v5214
      %s5315 = sld [smem:[#allocation14 + %s3126]]
      %v5316 = vstv %s5315
      %v5317 = vmul.f32 %v5265, %v5316
      %v5318 = vmul.f32 %v5266, %v5316
      %v5319 = vmul.f32 %v5267, %v5316
      %v5320 = vmul.f32 %v5268, %v5316
      %v5321 = vmul.f32 %v5269, %v5316
      %v5322 = vmul.f32 %v5270, %v5316
      %v5323 = vmul.f32 %v5271, %v5316
      %v5324 = vmul.f32 %v5272, %v5316
      %v5325 = vmul.f32 %v5273, %v5316
      %v5326 = vmul.f32 %v5274, %v5316
      %v5327 = vmul.f32 %v5275, %v5316
      %v5328 = vmul.f32 %v5276, %v5316
      %v5329 = vmul.f32 %v5277, %v5316
      %v5330 = vmul.f32 %v5278, %v5316
      %v5331 = vmul.f32 %v5279, %v5316
      %v5332 = vmul.f32 %v5280, %v5316
      %v5333 = vmul.f32 %v5281, %v5316
      %v5334 = vmul.f32 %v5282, %v5316
      %v5335 = vmul.f32 %v5283, %v5316
      %v5336 = vmul.f32 %v5284, %v5316
      %v5337 = vmul.f32 %v5285, %v5316
      %v5338 = vmul.f32 %v5286, %v5316
      %v5339 = vmul.f32 %v5287, %v5316
      %v5340 = vmul.f32 %v5288, %v5316
      %v5341 = vmul.f32 %v5289, %v5316
      %v5342 = vmul.f32 %v5290, %v5316
      %v5343 = vmul.f32 %v5291, %v5316
      %v5344 = vmul.f32 %v5292, %v5316
      %v5345 = vmul.f32 %v5293, %v5316
      %v5346 = vmul.f32 %v5294, %v5316
      %v5347 = vmul.f32 %v5295, %v5316
      %v5348 = vmul.f32 %v5296, %v5316
      %v5349 = vmul.f32 %v5297, %v5316
      %v5350 = vmul.f32 %v5298, %v5316
      %v5351 = vmul.f32 %v5299, %v5316
      %v5352 = vmul.f32 %v5300, %v5316
      %v5353 = vmul.f32 %v5301, %v5316
      %v5354 = vmul.f32 %v5302, %v5316
      %v5355 = vmul.f32 %v5303, %v5316
      %v5356 = vmul.f32 %v5304, %v5316
      %v5357 = vmul.f32 %v5305, %v5316
      %v5358 = vmul.f32 %v5306, %v5316
      %v5359 = vmul.f32 %v5307, %v5316
      %v5360 = vmul.f32 %v5308, %v5316
      %v5361 = vmul.f32 %v5309, %v5316
      %v5362 = vmul.f32 %v5310, %v5316
      %v5363 = vmul.f32 %v5311, %v5316
      %v5364 = vmul.f32 %v5312, %v5316
      %v5365 = vmul.f32 %v5313, %v5316
      %v5366 = vmul.f32 %v5314, %v5316
      %v5367 = vadd.f32 %v2526, %v5317
      %v5368 = vadd.f32 %v2527, %v5318
      %v5369 = vadd.f32 %v2528, %v5319
      %v5370 = vadd.f32 %v2529, %v5320
      %v5371 = vadd.f32 %v2530, %v5321
      %v5372 = vadd.f32 %v2531, %v5322
      %v5373 = vadd.f32 %v2532, %v5323
      %v5374 = vadd.f32 %v2533, %v5324
      %v5375 = vadd.f32 %v2534, %v5325
      %v5376 = vadd.f32 %v2535, %v5326
      %v5377 = vadd.f32 %v2536, %v5327
      %v5378 = vadd.f32 %v2537, %v5328
      %v5379 = vadd.f32 %v2538, %v5329
      %v5380 = vadd.f32 %v2539, %v5330
      %v5381 = vadd.f32 %v2540, %v5331
      %v5382 = vadd.f32 %v2541, %v5332
      %v5383 = vadd.f32 %v2542, %v5333
      %v5384 = vadd.f32 %v2543, %v5334
      %v5385 = vadd.f32 %v2544, %v5335
      %v5386 = vadd.f32 %v2545, %v5336
      %v5387 = vadd.f32 %v2546, %v5337
      %v5388 = vadd.f32 %v2547, %v5338
      %v5389 = vadd.f32 %v2548, %v5339
      %v5390 = vadd.f32 %v2549, %v5340
      %v5391 = vadd.f32 %v2550, %v5341
      %v5392 = vadd.f32 %v2551, %v5342
      %v5393 = vadd.f32 %v2552, %v5343
      %v5394 = vadd.f32 %v2553, %v5344
      %v5395 = vadd.f32 %v2554, %v5345
      %v5396 = vadd.f32 %v2555, %v5346
      %v5397 = vadd.f32 %v2556, %v5347
      %v5398 = vadd.f32 %v2557, %v5348
      %v5399 = vadd.f32 %v2558, %v5349
      %v5400 = vadd.f32 %v2559, %v5350
      %v5401 = vadd.f32 %v2560, %v5351
      %v5402 = vadd.f32 %v2561, %v5352
      %v5403 = vadd.f32 %v2562, %v5353
      %v5404 = vadd.f32 %v2563, %v5354
      %v5405 = vadd.f32 %v2564, %v5355
      %v5406 = vadd.f32 %v2565, %v5356
      %v5407 = vadd.f32 %v2566, %v5357
      %v5408 = vadd.f32 %v2567, %v5358
      %v5409 = vadd.f32 %v2568, %v5359
      %v5410 = vadd.f32 %v2569, %v5360
      %v5411 = vadd.f32 %v2570, %v5361
      %v5412 = vadd.f32 %v2571, %v5362
      %v5413 = vadd.f32 %v2572, %v5363
      %v5414 = vadd.f32 %v2573, %v5364
      %v5415 = vadd.f32 %v2574, %v5365
      %v5416 = vadd.f32 %v2575, %v5366
      %v5417 = vld [vmem:[%s20] sm:$0xff]
      %v5418 = vld [vmem:[%s20 + $0x8] sm:$0xff]
      %v5419 = vld [vmem:[%s20 + $0x10] sm:$0xff]
      %v5420 = vld [vmem:[%s20 + $0x18] sm:$0xff]
      %v5421 = vld [vmem:[%s20 + $0x20] sm:$0xff]
      %v5422 = vld [vmem:[%s20 + $0x28] sm:$0xff]
      %v5423 = vld [vmem:[%s20 + $0x30] sm:$0xff]
      %v5424 = vld [vmem:[%s20 + $0x38] sm:$0xff]
      %v5425 = vld [vmem:[%s20 + $0x40] sm:$0xff]
      %v5426 = vld [vmem:[%s20 + $0x48] sm:$0xff]
      %v5427 = vld [vmem:[%s20 + $0x50] sm:$0xff]
      %v5428 = vld [vmem:[%s20 + $0x58] sm:$0xff]
      %v5429 = vld [vmem:[%s20 + $0x60] sm:$0xff]
      %v5430 = vld [vmem:[%s20 + $0x68] sm:$0xff]
      %v5431 = vld [vmem:[%s20 + $0x70] sm:$0xff]
      %v5432 = vld [vmem:[%s20 + $0x78] sm:$0xff]
      %v5433 = vld [vmem:[%s20 + $0x80] sm:$0xff]
      %v5434 = vld [vmem:[%s20 + $0x88] sm:$0xff]
      %v5435 = vld [vmem:[%s20 + $0x90] sm:$0xff]
      %v5436 = vld [vmem:[%s20 + $0x98] sm:$0xff]
      %v5437 = vld [vmem:[%s20 + $0xa0] sm:$0xff]
      %v5438 = vld [vmem:[%s20 + $0xa8] sm:$0xff]
      %v5439 = vld [vmem:[%s20 + $0xb0] sm:$0xff]
      %v5440 = vld [vmem:[%s20 + $0xb8] sm:$0xff]
      %v5441 = vld [vmem:[%s20 + $0xc0] sm:$0xff]
      %v5442 = vld [vmem:[%s20 + $0xc8] sm:$0xff]
      %v5443 = vld [vmem:[%s20 + $0xd0] sm:$0xff]
      %v5444 = vld [vmem:[%s20 + $0xd8] sm:$0xff]
      %v5445 = vld [vmem:[%s20 + $0xe0] sm:$0xff]
      %v5446 = vld [vmem:[%s20 + $0xe8] sm:$0xff]
      %v5447 = vld [vmem:[%s20 + $0xf0] sm:$0xff]
      %v5448 = vld [vmem:[%s20 + $0xf8] sm:$0xff]
      %v5449 = vld [vmem:[%s20 + $0x100] sm:$0xff]
      %v5450 = vld [vmem:[%s20 + $0x108] sm:$0xff]
      %v5451 = vld [vmem:[%s20 + $0x110] sm:$0xff]
      %v5452 = vld [vmem:[%s20 + $0x118] sm:$0xff]
      %v5453 = vld [vmem:[%s20 + $0x120] sm:$0xff]
      %v5454 = vld [vmem:[%s20 + $0x128] sm:$0xff]
      %v5455 = vld [vmem:[%s20 + $0x130] sm:$0xff]
      %v5456 = vld [vmem:[%s20 + $0x138] sm:$0xff]
      %v5457 = vld [vmem:[%s20 + $0x140] sm:$0xff]
      %v5458 = vld [vmem:[%s20 + $0x148] sm:$0xff]
      %v5459 = vld [vmem:[%s20 + $0x150] sm:$0xff]
      %v5460 = vld [vmem:[%s20 + $0x158] sm:$0xff]
      %v5461 = vld [vmem:[%s20 + $0x160] sm:$0xff]
      %v5462 = vld [vmem:[%s20 + $0x168] sm:$0xff]
      %v5463 = vld [vmem:[%s20 + $0x170] sm:$0xff]
      %v5464 = vld [vmem:[%s20 + $0x178] sm:$0xff]
      %v5465 = vld [vmem:[%s20 + $0x180] sm:$0xff]
      %v5466 = vld [vmem:[%s20 + $0x188] sm:$0xff]
      %5467 = vset.pattern.permute.xlu0 0
      %5468 = vperm.xlu0 %5467, %v5015
      %v5469 = vpop.permute.xlu0 %5468
      %5471 = vset.pattern.permute.xlu0 0
      %5472 = vperm.xlu0 %5471, %v5016
      %v5473 = vpop.permute.xlu0 %5472
      %5475 = vset.pattern.permute.xlu0 0
      %5476 = vperm.xlu0 %5475, %v5017
      %v5477 = vpop.permute.xlu0 %5476
      %5479 = vset.pattern.permute.xlu0 0
      %5480 = vperm.xlu0 %5479, %v5018
      %v5481 = vpop.permute.xlu0 %5480
      %5483 = vset.pattern.permute.xlu0 0
      %5484 = vperm.xlu0 %5483, %v5019
      %v5485 = vpop.permute.xlu0 %5484
      %5487 = vset.pattern.permute.xlu0 0
      %5488 = vperm.xlu0 %5487, %v5020
      %v5489 = vpop.permute.xlu0 %5488
      %5491 = vset.pattern.permute.xlu0 0
      %5492 = vperm.xlu0 %5491, %v5021
      %v5493 = vpop.permute.xlu0 %5492
      %5495 = vset.pattern.permute.xlu0 0
      %5496 = vperm.xlu0 %5495, %v5022
      %v5497 = vpop.permute.xlu0 %5496
      %5499 = vset.pattern.permute.xlu0 0
      %5500 = vperm.xlu0 %5499, %v5023
      %v5501 = vpop.permute.xlu0 %5500
      %5503 = vset.pattern.permute.xlu0 0
      %5504 = vperm.xlu0 %5503, %v5024
      %v5505 = vpop.permute.xlu0 %5504
      %5507 = vset.pattern.permute.xlu0 0
      %5508 = vperm.xlu0 %5507, %v5025
      %v5509 = vpop.permute.xlu0 %5508
      %5511 = vset.pattern.permute.xlu0 0
      %5512 = vperm.xlu0 %5511, %v5026
      %v5513 = vpop.permute.xlu0 %5512
      %5515 = vset.pattern.permute.xlu0 0
      %5516 = vperm.xlu0 %5515, %v5027
      %v5517 = vpop.permute.xlu0 %5516
      %5519 = vset.pattern.permute.xlu0 0
      %5520 = vperm.xlu0 %5519, %v5028
      %v5521 = vpop.permute.xlu0 %5520
      %5523 = vset.pattern.permute.xlu0 0
      %5524 = vperm.xlu0 %5523, %v5029
      %v5525 = vpop.permute.xlu0 %5524
      %5527 = vset.pattern.permute.xlu0 0
      %5528 = vperm.xlu0 %5527, %v5030
      %v5529 = vpop.permute.xlu0 %5528
      %5531 = vset.pattern.permute.xlu0 0
      %5532 = vperm.xlu0 %5531, %v5031
      %v5533 = vpop.permute.xlu0 %5532
      %5535 = vset.pattern.permute.xlu0 0
      %5536 = vperm.xlu0 %5535, %v5032
      %v5537 = vpop.permute.xlu0 %5536
      %5539 = vset.pattern.permute.xlu0 0
      %5540 = vperm.xlu0 %5539, %v5033
      %v5541 = vpop.permute.xlu0 %5540
      %5543 = vset.pattern.permute.xlu0 0
      %5544 = vperm.xlu0 %5543, %v5034
      %v5545 = vpop.permute.xlu0 %5544
      %5547 = vset.pattern.permute.xlu0 0
      %5548 = vperm.xlu0 %5547, %v5035
      %v5549 = vpop.permute.xlu0 %5548
      %5551 = vset.pattern.permute.xlu0 0
      %5552 = vperm.xlu0 %5551, %v5036
      %v5553 = vpop.permute.xlu0 %5552
      %5555 = vset.pattern.permute.xlu0 0
      %5556 = vperm.xlu0 %5555, %v5037
      %v5557 = vpop.permute.xlu0 %5556
      %5559 = vset.pattern.permute.xlu0 0
      %5560 = vperm.xlu0 %5559, %v5038
      %v5561 = vpop.permute.xlu0 %5560
      %5563 = vset.pattern.permute.xlu0 0
      %5564 = vperm.xlu0 %5563, %v5039
      %v5565 = vpop.permute.xlu0 %5564
      %5567 = vset.pattern.permute.xlu0 0
      %5568 = vperm.xlu0 %5567, %v5040
      %v5569 = vpop.permute.xlu0 %5568
      %5571 = vset.pattern.permute.xlu0 0
      %5572 = vperm.xlu0 %5571, %v5041
      %v5573 = vpop.permute.xlu0 %5572
      %5575 = vset.pattern.permute.xlu0 0
      %5576 = vperm.xlu0 %5575, %v5042
      %v5577 = vpop.permute.xlu0 %5576
      %5579 = vset.pattern.permute.xlu0 0
      %5580 = vperm.xlu0 %5579, %v5043
      %v5581 = vpop.permute.xlu0 %5580
      %5583 = vset.pattern.permute.xlu0 0
      %5584 = vperm.xlu0 %5583, %v5044
      %v5585 = vpop.permute.xlu0 %5584
      %5587 = vset.pattern.permute.xlu0 0
      %5588 = vperm.xlu0 %5587, %v5045
      %v5589 = vpop.permute.xlu0 %5588
      %5591 = vset.pattern.permute.xlu0 0
      %5592 = vperm.xlu0 %5591, %v5046
      %v5593 = vpop.permute.xlu0 %5592
      %5595 = vset.pattern.permute.xlu0 0
      %5596 = vperm.xlu0 %5595, %v5047
      %v5597 = vpop.permute.xlu0 %5596
      %5599 = vset.pattern.permute.xlu0 0
      %5600 = vperm.xlu0 %5599, %v5048
      %v5601 = vpop.permute.xlu0 %5600
      %5603 = vset.pattern.permute.xlu0 0
      %5604 = vperm.xlu0 %5603, %v5049
      %v5605 = vpop.permute.xlu0 %5604
      %5607 = vset.pattern.permute.xlu0 0
      %5608 = vperm.xlu0 %5607, %v5050
      %v5609 = vpop.permute.xlu0 %5608
      %5611 = vset.pattern.permute.xlu0 0
      %5612 = vperm.xlu0 %5611, %v5051
      %v5613 = vpop.permute.xlu0 %5612
      %5615 = vset.pattern.permute.xlu0 0
      %5616 = vperm.xlu0 %5615, %v5052
      %v5617 = vpop.permute.xlu0 %5616
      %5619 = vset.pattern.permute.xlu0 0
      %5620 = vperm.xlu0 %5619, %v5053
      %v5621 = vpop.permute.xlu0 %5620
      %5623 = vset.pattern.permute.xlu0 0
      %5624 = vperm.xlu0 %5623, %v5054
      %v5625 = vpop.permute.xlu0 %5624
      %5627 = vset.pattern.permute.xlu0 0
      %5628 = vperm.xlu0 %5627, %v5055
      %v5629 = vpop.permute.xlu0 %5628
      %5631 = vset.pattern.permute.xlu0 0
      %5632 = vperm.xlu0 %5631, %v5056
      %v5633 = vpop.permute.xlu0 %5632
      %5635 = vset.pattern.permute.xlu0 0
      %5636 = vperm.xlu0 %5635, %v5057
      %v5637 = vpop.permute.xlu0 %5636
      %5639 = vset.pattern.permute.xlu0 0
      %5640 = vperm.xlu0 %5639, %v5058
      %v5641 = vpop.permute.xlu0 %5640
      %5643 = vset.pattern.permute.xlu0 0
      %5644 = vperm.xlu0 %5643, %v5059
      %v5645 = vpop.permute.xlu0 %5644
      %5647 = vset.pattern.permute.xlu0 0
      %5648 = vperm.xlu0 %5647, %v5060
      %v5649 = vpop.permute.xlu0 %5648
      %5651 = vset.pattern.permute.xlu0 0
      %5652 = vperm.xlu0 %5651, %v5061
      %v5653 = vpop.permute.xlu0 %5652
      %5655 = vset.pattern.permute.xlu0 0
      %5656 = vperm.xlu0 %5655, %v5062
      %v5657 = vpop.permute.xlu0 %5656
      %5659 = vset.pattern.permute.xlu0 0
      %5660 = vperm.xlu0 %5659, %v5063
      %v5661 = vpop.permute.xlu0 %5660
      %5663 = vset.pattern.permute.xlu0 0
      %5664 = vperm.xlu0 %5663, %v5064
      %v5665 = vpop.permute.xlu0 %5664
      %v5667 = vmul.f32 %v3863, %v5469
      %v5668 = vmul.f32 %v3865, %v5469
      %v5669 = vmul.f32 %v3867, %v5473
      %v5670 = vmul.f32 %v3869, %v5473
      %v5671 = vmul.f32 %v3871, %v5477
      %v5672 = vmul.f32 %v3873, %v5477
      %v5673 = vmul.f32 %v3875, %v5481
      %v5674 = vmul.f32 %v3877, %v5481
      %v5675 = vmul.f32 %v3879, %v5485
      %v5676 = vmul.f32 %v3881, %v5485
      %v5677 = vmul.f32 %v3883, %v5489
      %v5678 = vmul.f32 %v3885, %v5489
      %v5679 = vmul.f32 %v3887, %v5493
      %v5680 = vmul.f32 %v3889, %v5493
      %v5681 = vmul.f32 %v3891, %v5497
      %v5682 = vmul.f32 %v3893, %v5497
      %v5683 = vmul.f32 %v3895, %v5501
      %v5684 = vmul.f32 %v3897, %v5501
      %v5685 = vmul.f32 %v3899, %v5505
      %v5686 = vmul.f32 %v3901, %v5505
      %v5687 = vmul.f32 %v3903, %v5509
      %v5688 = vmul.f32 %v3905, %v5509
      %v5689 = vmul.f32 %v3907, %v5513
      %v5690 = vmul.f32 %v3909, %v5513
      %v5691 = vmul.f32 %v3911, %v5517
      %v5692 = vmul.f32 %v3913, %v5517
      %v5693 = vmul.f32 %v3915, %v5521
      %v5694 = vmul.f32 %v3917, %v5521
      %v5695 = vmul.f32 %v3919, %v5525
      %v5696 = vmul.f32 %v3921, %v5525
      %v5697 = vmul.f32 %v3923, %v5529
      %v5698 = vmul.f32 %v3925, %v5529
      %v5699 = vmul.f32 %v3927, %v5533
      %v5700 = vmul.f32 %v3929, %v5533
      %v5701 = vmul.f32 %v3931, %v5537
      %v5702 = vmul.f32 %v3933, %v5537
      %v5703 = vmul.f32 %v3935, %v5541
      %v5704 = vmul.f32 %v3937, %v5541
      %v5705 = vmul.f32 %v3939, %v5545
      %v5706 = vmul.f32 %v3941, %v5545
      %v5707 = vmul.f32 %v3943, %v5549
      %v5708 = vmul.f32 %v3945, %v5549
      %v5709 = vmul.f32 %v3947, %v5553
      %v5710 = vmul.f32 %v3949, %v5553
      %v5711 = vmul.f32 %v3951, %v5557
      %v5712 = vmul.f32 %v3953, %v5557
      %v5713 = vmul.f32 %v3955, %v5561
      %v5714 = vmul.f32 %v3957, %v5561
      %v5715 = vmul.f32 %v3959, %v5565
      %v5716 = vmul.f32 %v3961, %v5565
      %v5717 = vmul.f32 %v3963, %v5569
      %v5718 = vmul.f32 %v3965, %v5569
      %v5719 = vmul.f32 %v3967, %v5573
      %v5720 = vmul.f32 %v3969, %v5573
      %v5721 = vmul.f32 %v3971, %v5577
      %v5722 = vmul.f32 %v3973, %v5577
      %v5723 = vmul.f32 %v3975, %v5581
      %v5724 = vmul.f32 %v3977, %v5581
      %v5725 = vmul.f32 %v3979, %v5585
      %v5726 = vmul.f32 %v3981, %v5585
      %v5727 = vmul.f32 %v3983, %v5589
      %v5728 = vmul.f32 %v3985, %v5589
      %v5729 = vmul.f32 %v3987, %v5593
      %v5730 = vmul.f32 %v3989, %v5593
      %v5731 = vmul.f32 %v3991, %v5597
      %v5732 = vmul.f32 %v3993, %v5597
      %v5733 = vmul.f32 %v3995, %v5601
      %v5734 = vmul.f32 %v3997, %v5601
      %v5735 = vmul.f32 %v3999, %v5605
      %v5736 = vmul.f32 %v4001, %v5605
      %v5737 = vmul.f32 %v4003, %v5609
      %v5738 = vmul.f32 %v4005, %v5609
      %v5739 = vmul.f32 %v4007, %v5613
      %v5740 = vmul.f32 %v4009, %v5613
      %v5741 = vmul.f32 %v4011, %v5617
      %v5742 = vmul.f32 %v4013, %v5617
      %v5743 = vmul.f32 %v4015, %v5621
      %v5744 = vmul.f32 %v4017, %v5621
      %v5745 = vmul.f32 %v4019, %v5625
      %v5746 = vmul.f32 %v4021, %v5625
      %v5747 = vmul.f32 %v4023, %v5629
      %v5748 = vmul.f32 %v4025, %v5629
      %v5749 = vmul.f32 %v4027, %v5633
      %v5750 = vmul.f32 %v4029, %v5633
      %v5751 = vmul.f32 %v4031, %v5637
      %v5752 = vmul.f32 %v4033, %v5637
      %v5753 = vmul.f32 %v4035, %v5641
      %v5754 = vmul.f32 %v4037, %v5641
      %v5755 = vmul.f32 %v4039, %v5645
      %v5756 = vmul.f32 %v4041, %v5645
      %v5757 = vmul.f32 %v4043, %v5649
      %v5758 = vmul.f32 %v4045, %v5649
      %v5759 = vmul.f32 %v4047, %v5653
      %v5760 = vmul.f32 %v4049, %v5653
      %v5761 = vmul.f32 %v4051, %v5657
      %v5762 = vmul.f32 %v4053, %v5657
      %v5763 = vmul.f32 %v4055, %v5661
      %v5764 = vmul.f32 %v4057, %v5661
      %v5765 = vmul.f32 %v4059, %v5665
      %v5766 = vmul.f32 %v4061, %v5665
      %v5767 = vadd.f32 %v5667, %v5717
      %v5768 = vsel %vm1493, %v5668, 0.0
      %v5769 = vsel %vm1493, %v5718, 0.0
      %v5770 = vadd.f32 %v5768, %v5769
      %v5771 = vadd.f32 %v5669, %v5719
      %v5772 = vsel %vm1493, %v5670, 0.0
      %v5773 = vsel %vm1493, %v5720, 0.0
      %v5774 = vadd.f32 %v5772, %v5773
      %v5775 = vadd.f32 %v5671, %v5721
      %v5776 = vsel %vm1493, %v5672, 0.0
      %v5777 = vsel %vm1493, %v5722, 0.0
      %v5778 = vadd.f32 %v5776, %v5777
      %v5779 = vadd.f32 %v5673, %v5723
      %v5780 = vsel %vm1493, %v5674, 0.0
      %v5781 = vsel %vm1493, %v5724, 0.0
      %v5782 = vadd.f32 %v5780, %v5781
      %v5783 = vadd.f32 %v5675, %v5725
      %v5784 = vsel %vm1493, %v5676, 0.0
      %v5785 = vsel %vm1493, %v5726, 0.0
      %v5786 = vadd.f32 %v5784, %v5785
      %v5787 = vadd.f32 %v5677, %v5727
      %v5788 = vsel %vm1493, %v5678, 0.0
      %v5789 = vsel %vm1493, %v5728, 0.0
      %v5790 = vadd.f32 %v5788, %v5789
      %v5791 = vadd.f32 %v5679, %v5729
      %v5792 = vsel %vm1493, %v5680, 0.0
      %v5793 = vsel %vm1493, %v5730, 0.0
      %v5794 = vadd.f32 %v5792, %v5793
      %v5795 = vadd.f32 %v5681, %v5731
      %v5796 = vsel %vm1493, %v5682, 0.0
      %v5797 = vsel %vm1493, %v5732, 0.0
      %v5798 = vadd.f32 %v5796, %v5797
      %v5799 = vadd.f32 %v5683, %v5733
      %v5800 = vsel %vm1493, %v5684, 0.0
      %v5801 = vsel %vm1493, %v5734, 0.0
      %v5802 = vadd.f32 %v5800, %v5801
      %v5803 = vadd.f32 %v5685, %v5735
      %v5804 = vsel %vm1493, %v5686, 0.0
      %v5805 = vsel %vm1493, %v5736, 0.0
      %v5806 = vadd.f32 %v5804, %v5805
      %v5807 = vadd.f32 %v5687, %v5737
      %v5808 = vsel %vm1493, %v5688, 0.0
      %v5809 = vsel %vm1493, %v5738, 0.0
      %v5810 = vadd.f32 %v5808, %v5809
      %v5811 = vadd.f32 %v5689, %v5739
      %v5812 = vsel %vm1493, %v5690, 0.0
      %v5813 = vsel %vm1493, %v5740, 0.0
      %v5814 = vadd.f32 %v5812, %v5813
      %v5815 = vadd.f32 %v5691, %v5741
      %v5816 = vsel %vm1493, %v5692, 0.0
      %v5817 = vsel %vm1493, %v5742, 0.0
      %v5818 = vadd.f32 %v5816, %v5817
      %v5819 = vadd.f32 %v5693, %v5743
      %v5820 = vsel %vm1493, %v5694, 0.0
      %v5821 = vsel %vm1493, %v5744, 0.0
      %v5822 = vadd.f32 %v5820, %v5821
      %v5823 = vadd.f32 %v5695, %v5745
      %v5824 = vsel %vm1493, %v5696, 0.0
      %v5825 = vsel %vm1493, %v5746, 0.0
      %v5826 = vadd.f32 %v5824, %v5825
      %v5827 = vadd.f32 %v5697, %v5747
      %v5828 = vsel %vm1493, %v5698, 0.0
      %v5829 = vsel %vm1493, %v5748, 0.0
      %v5830 = vadd.f32 %v5828, %v5829
      %v5831 = vadd.f32 %v5699, %v5749
      %v5832 = vsel %vm1493, %v5700, 0.0
      %v5833 = vsel %vm1493, %v5750, 0.0
      %v5834 = vadd.f32 %v5832, %v5833
      %v5835 = vadd.f32 %v5701, %v5751
      %v5836 = vsel %vm1493, %v5702, 0.0
      %v5837 = vsel %vm1493, %v5752, 0.0
      %v5838 = vadd.f32 %v5836, %v5837
      %v5839 = vadd.f32 %v5703, %v5753
      %v5840 = vsel %vm1493, %v5704, 0.0
      %v5841 = vsel %vm1493, %v5754, 0.0
      %v5842 = vadd.f32 %v5840, %v5841
      %v5843 = vadd.f32 %v5705, %v5755
      %v5844 = vsel %vm1493, %v5706, 0.0
      %v5845 = vsel %vm1493, %v5756, 0.0
      %v5846 = vadd.f32 %v5844, %v5845
      %v5847 = vadd.f32 %v5707, %v5757
      %v5848 = vsel %vm1493, %v5708, 0.0
      %v5849 = vsel %vm1493, %v5758, 0.0
      %v5850 = vadd.f32 %v5848, %v5849
      %v5851 = vadd.f32 %v5709, %v5759
      %v5852 = vsel %vm1493, %v5710, 0.0
      %v5853 = vsel %vm1493, %v5760, 0.0
      %v5854 = vadd.f32 %v5852, %v5853
      %v5855 = vadd.f32 %v5711, %v5761
      %v5856 = vsel %vm1493, %v5712, 0.0
      %v5857 = vsel %vm1493, %v5762, 0.0
      %v5858 = vadd.f32 %v5856, %v5857
      %v5859 = vadd.f32 %v5713, %v5763
      %v5860 = vsel %vm1493, %v5714, 0.0
      %v5861 = vsel %vm1493, %v5764, 0.0
      %v5862 = vadd.f32 %v5860, %v5861
      %v5863 = vadd.f32 %v5715, %v5765
      %v5864 = vsel %vm1493, %v5716, 0.0
      %v5865 = vsel %vm1493, %v5766, 0.0
      %v5866 = vadd.f32 %v5864, %v5865
      %v5867 = vadd.f32 %v5417, %v5767
      %v5868 = vadd.f32 %v5418, %v5770
      %v5869 = vadd.f32 %v5419, %v5771
      %v5870 = vadd.f32 %v5420, %v5774
      %v5871 = vadd.f32 %v5421, %v5775
      %v5872 = vadd.f32 %v5422, %v5778
      %v5873 = vadd.f32 %v5423, %v5779
      %v5874 = vadd.f32 %v5424, %v5782
      %v5875 = vadd.f32 %v5425, %v5783
      %v5876 = vadd.f32 %v5426, %v5786
      %v5877 = vadd.f32 %v5427, %v5787
      %v5878 = vadd.f32 %v5428, %v5790
      %v5879 = vadd.f32 %v5429, %v5791
      %v5880 = vadd.f32 %v5430, %v5794
      %v5881 = vadd.f32 %v5431, %v5795
      %v5882 = vadd.f32 %v5432, %v5798
      %v5883 = vadd.f32 %v5433, %v5799
      %v5884 = vadd.f32 %v5434, %v5802
      %v5885 = vadd.f32 %v5435, %v5803
      %v5886 = vadd.f32 %v5436, %v5806
      %v5887 = vadd.f32 %v5437, %v5807
      %v5888 = vadd.f32 %v5438, %v5810
      %v5889 = vadd.f32 %v5439, %v5811
      %v5890 = vadd.f32 %v5440, %v5814
      %v5891 = vadd.f32 %v5441, %v5815
      %v5892 = vadd.f32 %v5442, %v5818
      %v5893 = vadd.f32 %v5443, %v5819
      %v5894 = vadd.f32 %v5444, %v5822
      %v5895 = vadd.f32 %v5445, %v5823
      %v5896 = vadd.f32 %v5446, %v5826
      %v5897 = vadd.f32 %v5447, %v5827
      %v5898 = vadd.f32 %v5448, %v5830
      %v5899 = vadd.f32 %v5449, %v5831
      %v5900 = vadd.f32 %v5450, %v5834
      %v5901 = vadd.f32 %v5451, %v5835
      %v5902 = vadd.f32 %v5452, %v5838
      %v5903 = vadd.f32 %v5453, %v5839
      %v5904 = vadd.f32 %v5454, %v5842
      %v5905 = vadd.f32 %v5455, %v5843
      %v5906 = vadd.f32 %v5456, %v5846
      %v5907 = vadd.f32 %v5457, %v5847
      %v5908 = vadd.f32 %v5458, %v5850
      %v5909 = vadd.f32 %v5459, %v5851
      %v5910 = vadd.f32 %v5460, %v5854
      %v5911 = vadd.f32 %v5461, %v5855
      %v5912 = vadd.f32 %v5462, %v5858
      %v5913 = vadd.f32 %v5463, %v5859
      %v5914 = vadd.f32 %v5464, %v5862
      %v5915 = vadd.f32 %v5465, %v5863
      %v5916 = vadd.f32 %v5466, %v5866
      %5917 = vst [vmem:[%s20] sm:$0xff] %v5867
      %5918 = vst.msk [vmem:[%s20 + $0x8] sm:$0xff] %vm1493, %v5868
      %5919 = vst [vmem:[%s20 + $0x10] sm:$0xff] %v5869
      %5920 = vst.msk [vmem:[%s20 + $0x18] sm:$0xff] %vm1493, %v5870
      %5921 = vst [vmem:[%s20 + $0x20] sm:$0xff] %v5871
      %5922 = vst.msk [vmem:[%s20 + $0x28] sm:$0xff] %vm1493, %v5872
      %5923 = vst [vmem:[%s20 + $0x30] sm:$0xff] %v5873
      %5924 = vst.msk [vmem:[%s20 + $0x38] sm:$0xff] %vm1493, %v5874
      %5925 = vst [vmem:[%s20 + $0x40] sm:$0xff] %v5875
      %5926 = vst.msk [vmem:[%s20 + $0x48] sm:$0xff] %vm1493, %v5876
      %5927 = vst [vmem:[%s20 + $0x50] sm:$0xff] %v5877
      %5928 = vst.msk [vmem:[%s20 + $0x58] sm:$0xff] %vm1493, %v5878
      %5929 = vst [vmem:[%s20 + $0x60] sm:$0xff] %v5879
      %5930 = vst.msk [vmem:[%s20 + $0x68] sm:$0xff] %vm1493, %v5880
      %5931 = vst [vmem:[%s20 + $0x70] sm:$0xff] %v5881
      %5932 = vst.msk [vmem:[%s20 + $0x78] sm:$0xff] %vm1493, %v5882
      %5933 = vst [vmem:[%s20 + $0x80] sm:$0xff] %v5883
      %5934 = vst.msk [vmem:[%s20 + $0x88] sm:$0xff] %vm1493, %v5884
      %5935 = vst [vmem:[%s20 + $0x90] sm:$0xff] %v5885
      %5936 = vst.msk [vmem:[%s20 + $0x98] sm:$0xff] %vm1493, %v5886
      %5937 = vst [vmem:[%s20 + $0xa0] sm:$0xff] %v5887
      %5938 = vst.msk [vmem:[%s20 + $0xa8] sm:$0xff] %vm1493, %v5888
      %5939 = vst [vmem:[%s20 + $0xb0] sm:$0xff] %v5889
      %5940 = vst.msk [vmem:[%s20 + $0xb8] sm:$0xff] %vm1493, %v5890
      %5941 = vst [vmem:[%s20 + $0xc0] sm:$0xff] %v5891
      %5942 = vst.msk [vmem:[%s20 + $0xc8] sm:$0xff] %vm1493, %v5892
      %5943 = vst [vmem:[%s20 + $0xd0] sm:$0xff] %v5893
      %5944 = vst.msk [vmem:[%s20 + $0xd8] sm:$0xff] %vm1493, %v5894
      %5945 = vst [vmem:[%s20 + $0xe0] sm:$0xff] %v5895
      %5946 = vst.msk [vmem:[%s20 + $0xe8] sm:$0xff] %vm1493, %v5896
      %5947 = vst [vmem:[%s20 + $0xf0] sm:$0xff] %v5897
      %5948 = vst.msk [vmem:[%s20 + $0xf8] sm:$0xff] %vm1493, %v5898
      %5949 = vst [vmem:[%s20 + $0x100] sm:$0xff] %v5899
      %5950 = vst.msk [vmem:[%s20 + $0x108] sm:$0xff] %vm1493, %v5900
      %5951 = vst [vmem:[%s20 + $0x110] sm:$0xff] %v5901
      %5952 = vst.msk [vmem:[%s20 + $0x118] sm:$0xff] %vm1493, %v5902
      %5953 = vst [vmem:[%s20 + $0x120] sm:$0xff] %v5903
      %5954 = vst.msk [vmem:[%s20 + $0x128] sm:$0xff] %vm1493, %v5904
      %5955 = vst [vmem:[%s20 + $0x130] sm:$0xff] %v5905
      %5956 = vst.msk [vmem:[%s20 + $0x138] sm:$0xff] %vm1493, %v5906
      %5957 = vst [vmem:[%s20 + $0x140] sm:$0xff] %v5907
      %5958 = vst.msk [vmem:[%s20 + $0x148] sm:$0xff] %vm1493, %v5908
      %5959 = vst [vmem:[%s20 + $0x150] sm:$0xff] %v5909
      %5960 = vst.msk [vmem:[%s20 + $0x158] sm:$0xff] %vm1493, %v5910
      %5961 = vst [vmem:[%s20 + $0x160] sm:$0xff] %v5911
      %5962 = vst.msk [vmem:[%s20 + $0x168] sm:$0xff] %vm1493, %v5912
      %5963 = vst [vmem:[%s20 + $0x170] sm:$0xff] %v5913
      %5964 = vst.msk [vmem:[%s20 + $0x178] sm:$0xff] %vm1493, %v5914
      %5965 = vst [vmem:[%s20 + $0x180] sm:$0xff] %v5915
      %5966 = vst.msk [vmem:[%s20 + $0x188] sm:$0xff] %vm1493, %v5916
    $region114: #{att_forward.1} parent=1 // loop_footer
      %s230 = sadd.s32 1, %s226
    $region115: #{att_forward.1} parent=1 // loop_footer_branch
      %225 = sbr.rel target = $region111
    $region116: #{att_forward.1} parent=1 // loop_exit
      _
    %s5967 = sld [smem:[#allocation2]]
    %v5968 = vstv %s5967
    %v5969 = vadd.f32 %v231, %v5968
    %v5970 = vadd.f32 %v232, %v5968
    %v5971 = vadd.f32 %v233, %v5968
    %v5972 = vadd.f32 %v234, %v5968
    %v5973 = vadd.f32 %v235, %v5968
    %v5974 = vadd.f32 %v236, %v5968
    %v5975 = vadd.f32 %v237, %v5968
    %v5976 = vadd.f32 %v238, %v5968
    %v5977 = vadd.f32 %v239, %v5968
    %v5978 = vadd.f32 %v240, %v5968
    %v5979 = vadd.f32 %v241, %v5968
    %v5980 = vadd.f32 %v242, %v5968
    %v5981 = vadd.f32 %v243, %v5968
    %v5982 = vadd.f32 %v244, %v5968
    %v5983 = vadd.f32 %v245, %v5968
    %v5984 = vadd.f32 %v246, %v5968
    %v5985 = vadd.f32 %v247, %v5968
    %v5986 = vadd.f32 %v248, %v5968
    %v5987 = vadd.f32 %v249, %v5968
    %v5988 = vadd.f32 %v250, %v5968
    %v5989 = vadd.f32 %v251, %v5968
    %v5990 = vadd.f32 %v252, %v5968
    %v5991 = vadd.f32 %v253, %v5968
    %v5992 = vadd.f32 %v254, %v5968
    %v5993 = vadd.f32 %v255, %v5968
    %v5994 = vadd.f32 %v256, %v5968
    %v5995 = vadd.f32 %v257, %v5968
    %v5996 = vadd.f32 %v258, %v5968
    %v5997 = vadd.f32 %v259, %v5968
    %v5998 = vadd.f32 %v260, %v5968
    %v5999 = vadd.f32 %v261, %v5968
    %v6000 = vadd.f32 %v262, %v5968
    %v6001 = vadd.f32 %v263, %v5968
    %v6002 = vadd.f32 %v264, %v5968
    %v6003 = vadd.f32 %v265, %v5968
    %v6004 = vadd.f32 %v266, %v5968
    %v6005 = vadd.f32 %v267, %v5968
    %v6006 = vadd.f32 %v268, %v5968
    %v6007 = vadd.f32 %v269, %v5968
    %v6008 = vadd.f32 %v270, %v5968
    %v6009 = vadd.f32 %v271, %v5968
    %v6010 = vadd.f32 %v272, %v5968
    %v6011 = vadd.f32 %v273, %v5968
    %v6012 = vadd.f32 %v274, %v5968
    %v6013 = vadd.f32 %v275, %v5968
    %v6014 = vadd.f32 %v276, %v5968
    %v6015 = vadd.f32 %v277, %v5968
    %v6016 = vadd.f32 %v278, %v5968
    %v6017 = vadd.f32 %v279, %v5968
    %v6018 = vadd.f32 %v280, %v5968
    %6069 = vset.pattern.permute.xlu0 1
    %6070 = vperm.xlu0 %6069, %v5969
    %v6071 = vpop.permute.xlu0 %6070
    %6072 = vset.pattern.permute.xlu0 1
    %6073 = vperm.xlu0 %6072, %v5970
    %v6074 = vpop.permute.xlu0 %6073
    %6075 = vset.pattern.permute.xlu0 1
    %6076 = vperm.xlu0 %6075, %v5971
    %v6077 = vpop.permute.xlu0 %6076
    %6078 = vset.pattern.permute.xlu0 1
    %6079 = vperm.xlu0 %6078, %v5972
    %v6080 = vpop.permute.xlu0 %6079
    %6081 = vset.pattern.permute.xlu0 1
    %6082 = vperm.xlu0 %6081, %v5973
    %v6083 = vpop.permute.xlu0 %6082
    %6084 = vset.pattern.permute.xlu0 1
    %6085 = vperm.xlu0 %6084, %v5974
    %v6086 = vpop.permute.xlu0 %6085
    %6087 = vset.pattern.permute.xlu0 1
    %6088 = vperm.xlu0 %6087, %v5975
    %v6089 = vpop.permute.xlu0 %6088
    %6090 = vset.pattern.permute.xlu0 1
    %6091 = vperm.xlu0 %6090, %v5976
    %v6092 = vpop.permute.xlu0 %6091
    %6093 = vset.pattern.permute.xlu0 1
    %6094 = vperm.xlu0 %6093, %v5977
    %v6095 = vpop.permute.xlu0 %6094
    %6096 = vset.pattern.permute.xlu0 1
    %6097 = vperm.xlu0 %6096, %v5978
    %v6098 = vpop.permute.xlu0 %6097
    %6099 = vset.pattern.permute.xlu0 1
    %6100 = vperm.xlu0 %6099, %v5979
    %v6101 = vpop.permute.xlu0 %6100
    %6102 = vset.pattern.permute.xlu0 1
    %6103 = vperm.xlu0 %6102, %v5980
    %v6104 = vpop.permute.xlu0 %6103
    %6105 = vset.pattern.permute.xlu0 1
    %6106 = vperm.xlu0 %6105, %v5981
    %v6107 = vpop.permute.xlu0 %6106
    %6108 = vset.pattern.permute.xlu0 1
    %6109 = vperm.xlu0 %6108, %v5982
    %v6110 = vpop.permute.xlu0 %6109
    %6111 = vset.pattern.permute.xlu0 1
    %6112 = vperm.xlu0 %6111, %v5983
    %v6113 = vpop.permute.xlu0 %6112
    %6114 = vset.pattern.permute.xlu0 1
    %6115 = vperm.xlu0 %6114, %v5984
    %v6116 = vpop.permute.xlu0 %6115
    %6117 = vset.pattern.permute.xlu0 1
    %6118 = vperm.xlu0 %6117, %v5985
    %v6119 = vpop.permute.xlu0 %6118
    %6120 = vset.pattern.permute.xlu0 1
    %6121 = vperm.xlu0 %6120, %v5986
    %v6122 = vpop.permute.xlu0 %6121
    %6123 = vset.pattern.permute.xlu0 1
    %6124 = vperm.xlu0 %6123, %v5987
    %v6125 = vpop.permute.xlu0 %6124
    %6126 = vset.pattern.permute.xlu0 1
    %6127 = vperm.xlu0 %6126, %v5988
    %v6128 = vpop.permute.xlu0 %6127
    %6129 = vset.pattern.permute.xlu0 1
    %6130 = vperm.xlu0 %6129, %v5989
    %v6131 = vpop.permute.xlu0 %6130
    %6132 = vset.pattern.permute.xlu0 1
    %6133 = vperm.xlu0 %6132, %v5990
    %v6134 = vpop.permute.xlu0 %6133
    %6135 = vset.pattern.permute.xlu0 1
    %6136 = vperm.xlu0 %6135, %v5991
    %v6137 = vpop.permute.xlu0 %6136
    %6138 = vset.pattern.permute.xlu0 1
    %6139 = vperm.xlu0 %6138, %v5992
    %v6140 = vpop.permute.xlu0 %6139
    %6141 = vset.pattern.permute.xlu0 1
    %6142 = vperm.xlu0 %6141, %v5993
    %v6143 = vpop.permute.xlu0 %6142
    %6144 = vset.pattern.permute.xlu0 1
    %6145 = vperm.xlu0 %6144, %v5994
    %v6146 = vpop.permute.xlu0 %6145
    %6147 = vset.pattern.permute.xlu0 1
    %6148 = vperm.xlu0 %6147, %v5995
    %v6149 = vpop.permute.xlu0 %6148
    %6150 = vset.pattern.permute.xlu0 1
    %6151 = vperm.xlu0 %6150, %v5996
    %v6152 = vpop.permute.xlu0 %6151
    %6153 = vset.pattern.permute.xlu0 1
    %6154 = vperm.xlu0 %6153, %v5997
    %v6155 = vpop.permute.xlu0 %6154
    %6156 = vset.pattern.permute.xlu0 1
    %6157 = vperm.xlu0 %6156, %v5998
    %v6158 = vpop.permute.xlu0 %6157
    %6159 = vset.pattern.permute.xlu0 1
    %6160 = vperm.xlu0 %6159, %v5999
    %v6161 = vpop.permute.xlu0 %6160
    %6162 = vset.pattern.permute.xlu0 1
    %6163 = vperm.xlu0 %6162, %v6000
    %v6164 = vpop.permute.xlu0 %6163
    %6165 = vset.pattern.permute.xlu0 1
    %6166 = vperm.xlu0 %6165, %v6001
    %v6167 = vpop.permute.xlu0 %6166
    %6168 = vset.pattern.permute.xlu0 1
    %6169 = vperm.xlu0 %6168, %v6002
    %v6170 = vpop.permute.xlu0 %6169
    %6171 = vset.pattern.permute.xlu0 1
    %6172 = vperm.xlu0 %6171, %v6003
    %v6173 = vpop.permute.xlu0 %6172
    %6174 = vset.pattern.permute.xlu0 1
    %6175 = vperm.xlu0 %6174, %v6004
    %v6176 = vpop.permute.xlu0 %6175
    %6177 = vset.pattern.permute.xlu0 1
    %6178 = vperm.xlu0 %6177, %v6005
    %v6179 = vpop.permute.xlu0 %6178
    %6180 = vset.pattern.permute.xlu0 1
    %6181 = vperm.xlu0 %6180, %v6006
    %v6182 = vpop.permute.xlu0 %6181
    %6183 = vset.pattern.permute.xlu0 1
    %6184 = vperm.xlu0 %6183, %v6007
    %v6185 = vpop.permute.xlu0 %6184
    %6186 = vset.pattern.permute.xlu0 1
    %6187 = vperm.xlu0 %6186, %v6008
    %v6188 = vpop.permute.xlu0 %6187
    %6189 = vset.pattern.permute.xlu0 1
    %6190 = vperm.xlu0 %6189, %v6009
    %v6191 = vpop.permute.xlu0 %6190
    %6192 = vset.pattern.permute.xlu0 1
    %6193 = vperm.xlu0 %6192, %v6010
    %v6194 = vpop.permute.xlu0 %6193
    %6195 = vset.pattern.permute.xlu0 1
    %6196 = vperm.xlu0 %6195, %v6011
    %v6197 = vpop.permute.xlu0 %6196
    %6198 = vset.pattern.permute.xlu0 1
    %6199 = vperm.xlu0 %6198, %v6012
    %v6200 = vpop.permute.xlu0 %6199
    %6201 = vset.pattern.permute.xlu0 1
    %6202 = vperm.xlu0 %6201, %v6013
    %v6203 = vpop.permute.xlu0 %6202
    %6204 = vset.pattern.permute.xlu0 1
    %6205 = vperm.xlu0 %6204, %v6014
    %v6206 = vpop.permute.xlu0 %6205
    %6207 = vset.pattern.permute.xlu0 1
    %6208 = vperm.xlu0 %6207, %v6015
    %v6209 = vpop.permute.xlu0 %6208
    %6210 = vset.pattern.permute.xlu0 1
    %6211 = vperm.xlu0 %6210, %v6016
    %v6212 = vpop.permute.xlu0 %6211
    %6213 = vset.pattern.permute.xlu0 1
    %6214 = vperm.xlu0 %6213, %v6017
    %v6215 = vpop.permute.xlu0 %6214
    %6216 = vset.pattern.permute.xlu0 1
    %6217 = vperm.xlu0 %6216, %v6018
    %v6218 = vpop.permute.xlu0 %6217
    %v6219 = vlaneseq
    %v6220 = vand.u32 %v6219, 127
    %v6221 = vlaneseq
    %v6222 = vshrl.u32 %v6221, 7
    %v6223 = vsub.s32 %v6220, %v6222
    %v6224 = vrot.slane %v6071, %v6223
    %v6225 = vadd.s32 %v6220, 4294967288
    %v6226 = vlaneseq
    %v6227 = vshrl.u32 %v6226, 7
    %v6228 = vsub.s32 %v6225, %v6227
    %v6229 = vrot.slane %v6074, %v6228
    %vm6230 = vcmask 130112
    %v6231 = vsel %vm6230, %v6229, %v6224
    %v6232 = vadd.s32 %v6220, 4294967280
    %v6233 = vlaneseq
    %v6234 = vshrl.u32 %v6233, 7
    %v6235 = vsub.s32 %v6232, %v6234
    %v6236 = vrot.slane %v6077, %v6235
    %vm6237 = vcmask 195712
    %v6238 = vsel %vm6237, %v6236, %v6231
    %v6239 = vadd.s32 %v6220, 4294967272
    %v6240 = vlaneseq
    %v6241 = vshrl.u32 %v6240, 7
    %v6242 = vsub.s32 %v6239, %v6241
    %v6243 = vrot.slane %v6080, %v6242
    %vm6244 = vcmask 261312
    %v6245 = vsel %vm6244, %v6243, %v6238
    %v6246 = vadd.s32 %v6220, 4294967264
    %v6247 = vlaneseq
    %v6248 = vshrl.u32 %v6247, 7
    %v6249 = vsub.s32 %v6246, %v6248
    %v6250 = vrot.slane %v6083, %v6249
    %vm6251 = vcmask 326912
    %v6252 = vsel %vm6251, %v6250, %v6245
    %v6253 = vadd.s32 %v6220, 4294967256
    %v6254 = vlaneseq
    %v6255 = vshrl.u32 %v6254, 7
    %v6256 = vsub.s32 %v6253, %v6255
    %v6257 = vrot.slane %v6086, %v6256
    %vm6258 = vcmask 392512
    %v6259 = vsel %vm6258, %v6257, %v6252
    %v6260 = vadd.s32 %v6220, 4294967248
    %v6261 = vlaneseq
    %v6262 = vshrl.u32 %v6261, 7
    %v6263 = vsub.s32 %v6260, %v6262
    %v6264 = vrot.slane %v6089, %v6263
    %vm6265 = vcmask 458112
    %v6266 = vsel %vm6265, %v6264, %v6259
    %v6267 = vadd.s32 %v6220, 4294967240
    %v6268 = vlaneseq
    %v6269 = vshrl.u32 %v6268, 7
    %v6270 = vsub.s32 %v6267, %v6269
    %v6271 = vrot.slane %v6092, %v6270
    %vm6272 = vcmask 523712
    %v6273 = vsel %vm6272, %v6271, %v6266
    %v6274 = vadd.s32 %v6220, 4294967232
    %v6275 = vlaneseq
    %v6276 = vshrl.u32 %v6275, 7
    %v6277 = vsub.s32 %v6274, %v6276
    %v6278 = vrot.slane %v6095, %v6277
    %vm6279 = vcmask 589312
    %v6280 = vsel %vm6279, %v6278, %v6273
    %v6281 = vadd.s32 %v6220, 4294967224
    %v6282 = vlaneseq
    %v6283 = vshrl.u32 %v6282, 7
    %v6284 = vsub.s32 %v6281, %v6283
    %v6285 = vrot.slane %v6098, %v6284
    %vm6286 = vcmask 654912
    %v6287 = vsel %vm6286, %v6285, %v6280
    %v6288 = vadd.s32 %v6220, 4294967216
    %v6289 = vlaneseq
    %v6290 = vshrl.u32 %v6289, 7
    %v6291 = vsub.s32 %v6288, %v6290
    %v6292 = vrot.slane %v6101, %v6291
    %vm6293 = vcmask 720512
    %v6294 = vsel %vm6293, %v6292, %v6287
    %v6295 = vadd.s32 %v6220, 4294967208
    %v6296 = vlaneseq
    %v6297 = vshrl.u32 %v6296, 7
    %v6298 = vsub.s32 %v6295, %v6297
    %v6299 = vrot.slane %v6104, %v6298
    %vm6300 = vcmask 786112
    %v6301 = vsel %vm6300, %v6299, %v6294
    %v6302 = vadd.s32 %v6220, 4294967200
    %v6303 = vlaneseq
    %v6304 = vshrl.u32 %v6303, 7
    %v6305 = vsub.s32 %v6302, %v6304
    %v6306 = vrot.slane %v6107, %v6305
    %vm6307 = vcmask 851712
    %v6308 = vsel %vm6307, %v6306, %v6301
    %v6309 = vadd.s32 %v6220, 4294967192
    %v6310 = vlaneseq
    %v6311 = vshrl.u32 %v6310, 7
    %v6312 = vsub.s32 %v6309, %v6311
    %v6313 = vrot.slane %v6110, %v6312
    %vm6314 = vcmask 917312
    %v6315 = vsel %vm6314, %v6313, %v6308
    %v6316 = vadd.s32 %v6220, 4294967184
    %v6317 = vlaneseq
    %v6318 = vshrl.u32 %v6317, 7
    %v6319 = vsub.s32 %v6316, %v6318
    %v6320 = vrot.slane %v6113, %v6319
    %vm6321 = vcmask 982912
    %v6322 = vsel %vm6321, %v6320, %v6315
    %v6323 = vadd.s32 %v6220, 4294967176
    %v6324 = vlaneseq
    %v6325 = vshrl.u32 %v6324, 7
    %v6326 = vsub.s32 %v6323, %v6325
    %v6327 = vrot.slane %v6116, %v6326
    %vm6328 = vcmask 1048512
    %v6329 = vsel %vm6328, %v6327, %v6322
    %v6330 = vlaneseq
    %v6331 = vshrl.u32 %v6330, 7
    %v6332 = vsub.s32 %v6220, %v6331
    %v6333 = vrot.slane %v6119, %v6332
    %v6334 = vlaneseq
    %v6335 = vshrl.u32 %v6334, 7
    %v6336 = vsub.s32 %v6225, %v6335
    %v6337 = vrot.slane %v6122, %v6336
    %v6338 = vsel %vm6230, %v6337, %v6333
    %v6339 = vlaneseq
    %v6340 = vshrl.u32 %v6339, 7
    %v6341 = vsub.s32 %v6232, %v6340
    %v6342 = vrot.slane %v6125, %v6341
    %v6343 = vsel %vm6237, %v6342, %v6338
    %v6344 = vlaneseq
    %v6345 = vshrl.u32 %v6344, 7
    %v6346 = vsub.s32 %v6239, %v6345
    %v6347 = vrot.slane %v6128, %v6346
    %v6348 = vsel %vm6244, %v6347, %v6343
    %v6349 = vlaneseq
    %v6350 = vshrl.u32 %v6349, 7
    %v6351 = vsub.s32 %v6246, %v6350
    %v6352 = vrot.slane %v6131, %v6351
    %v6353 = vsel %vm6251, %v6352, %v6348
    %v6354 = vlaneseq
    %v6355 = vshrl.u32 %v6354, 7
    %v6356 = vsub.s32 %v6253, %v6355
    %v6357 = vrot.slane %v6134, %v6356
    %v6358 = vsel %vm6258, %v6357, %v6353
    %v6359 = vlaneseq
    %v6360 = vshrl.u32 %v6359, 7
    %v6361 = vsub.s32 %v6260, %v6360
    %v6362 = vrot.slane %v6137, %v6361
    %v6363 = vsel %vm6265, %v6362, %v6358
    %v6364 = vlaneseq
    %v6365 = vshrl.u32 %v6364, 7
    %v6366 = vsub.s32 %v6267, %v6365
    %v6367 = vrot.slane %v6140, %v6366
    %v6368 = vsel %vm6272, %v6367, %v6363
    %v6369 = vlaneseq
    %v6370 = vshrl.u32 %v6369, 7
    %v6371 = vsub.s32 %v6274, %v6370
    %v6372 = vrot.slane %v6143, %v6371
    %v6373 = vsel %vm6279, %v6372, %v6368
    %v6374 = vlaneseq
    %v6375 = vshrl.u32 %v6374, 7
    %v6376 = vsub.s32 %v6220, %v6375
    %v6377 = vrot.slane %v6146, %v6376
    %v6378 = vlaneseq
    %v6379 = vshrl.u32 %v6378, 7
    %v6380 = vsub.s32 %v6225, %v6379
    %v6381 = vrot.slane %v6149, %v6380
    %v6382 = vsel %vm6230, %v6381, %v6377
    %v6383 = vlaneseq
    %v6384 = vshrl.u32 %v6383, 7
    %v6385 = vsub.s32 %v6232, %v6384
    %v6386 = vrot.slane %v6152, %v6385
    %v6387 = vsel %vm6237, %v6386, %v6382
    %v6388 = vlaneseq
    %v6389 = vshrl.u32 %v6388, 7
    %v6390 = vsub.s32 %v6239, %v6389
    %v6391 = vrot.slane %v6155, %v6390
    %v6392 = vsel %vm6244, %v6391, %v6387
    %v6393 = vlaneseq
    %v6394 = vshrl.u32 %v6393, 7
    %v6395 = vsub.s32 %v6246, %v6394
    %v6396 = vrot.slane %v6158, %v6395
    %v6397 = vsel %vm6251, %v6396, %v6392
    %v6398 = vlaneseq
    %v6399 = vshrl.u32 %v6398, 7
    %v6400 = vsub.s32 %v6253, %v6399
    %v6401 = vrot.slane %v6161, %v6400
    %v6402 = vsel %vm6258, %v6401, %v6397
    %v6403 = vlaneseq
    %v6404 = vshrl.u32 %v6403, 7
    %v6405 = vsub.s32 %v6260, %v6404
    %v6406 = vrot.slane %v6164, %v6405
    %v6407 = vsel %vm6265, %v6406, %v6402
    %v6408 = vlaneseq
    %v6409 = vshrl.u32 %v6408, 7
    %v6410 = vsub.s32 %v6267, %v6409
    %v6411 = vrot.slane %v6167, %v6410
    %v6412 = vsel %vm6272, %v6411, %v6407
    %v6413 = vlaneseq
    %v6414 = vshrl.u32 %v6413, 7
    %v6415 = vsub.s32 %v6274, %v6414
    %v6416 = vrot.slane %v6170, %v6415
    %v6417 = vsel %vm6279, %v6416, %v6412
    %v6418 = vlaneseq
    %v6419 = vshrl.u32 %v6418, 7
    %v6420 = vsub.s32 %v6281, %v6419
    %v6421 = vrot.slane %v6173, %v6420
    %v6422 = vsel %vm6286, %v6421, %v6417
    %v6423 = vlaneseq
    %v6424 = vshrl.u32 %v6423, 7
    %v6425 = vsub.s32 %v6288, %v6424
    %v6426 = vrot.slane %v6176, %v6425
    %v6427 = vsel %vm6293, %v6426, %v6422
    %v6428 = vlaneseq
    %v6429 = vshrl.u32 %v6428, 7
    %v6430 = vsub.s32 %v6295, %v6429
    %v6431 = vrot.slane %v6179, %v6430
    %v6432 = vsel %vm6300, %v6431, %v6427
    %v6433 = vlaneseq
    %v6434 = vshrl.u32 %v6433, 7
    %v6435 = vsub.s32 %v6302, %v6434
    %v6436 = vrot.slane %v6182, %v6435
    %v6437 = vsel %vm6307, %v6436, %v6432
    %v6438 = vlaneseq
    %v6439 = vshrl.u32 %v6438, 7
    %v6440 = vsub.s32 %v6309, %v6439
    %v6441 = vrot.slane %v6185, %v6440
    %v6442 = vsel %vm6314, %v6441, %v6437
    %v6443 = vlaneseq
    %v6444 = vshrl.u32 %v6443, 7
    %v6445 = vsub.s32 %v6316, %v6444
    %v6446 = vrot.slane %v6188, %v6445
    %v6447 = vsel %vm6321, %v6446, %v6442
    %v6448 = vlaneseq
    %v6449 = vshrl.u32 %v6448, 7
    %v6450 = vsub.s32 %v6323, %v6449
    %v6451 = vrot.slane %v6191, %v6450
    %v6452 = vsel %vm6328, %v6451, %v6447
    %v6453 = vlaneseq
    %v6454 = vshrl.u32 %v6453, 7
    %v6455 = vsub.s32 %v6220, %v6454
    %v6456 = vrot.slane %v6194, %v6455
    %v6457 = vlaneseq
    %v6458 = vshrl.u32 %v6457, 7
    %v6459 = vsub.s32 %v6225, %v6458
    %v6460 = vrot.slane %v6197, %v6459
    %v6461 = vsel %vm6230, %v6460, %v6456
    %v6462 = vlaneseq
    %v6463 = vshrl.u32 %v6462, 7
    %v6464 = vsub.s32 %v6232, %v6463
    %v6465 = vrot.slane %v6200, %v6464
    %v6466 = vsel %vm6237, %v6465, %v6461
    %v6467 = vlaneseq
    %v6468 = vshrl.u32 %v6467, 7
    %v6469 = vsub.s32 %v6239, %v6468
    %v6470 = vrot.slane %v6203, %v6469
    %v6471 = vsel %vm6244, %v6470, %v6466
    %v6472 = vlaneseq
    %v6473 = vshrl.u32 %v6472, 7
    %v6474 = vsub.s32 %v6246, %v6473
    %v6475 = vrot.slane %v6206, %v6474
    %v6476 = vsel %vm6251, %v6475, %v6471
    %v6477 = vlaneseq
    %v6478 = vshrl.u32 %v6477, 7
    %v6479 = vsub.s32 %v6253, %v6478
    %v6480 = vrot.slane %v6209, %v6479
    %v6481 = vsel %vm6258, %v6480, %v6476
    %v6482 = vlaneseq
    %v6483 = vshrl.u32 %v6482, 7
    %v6484 = vsub.s32 %v6260, %v6483
    %v6485 = vrot.slane %v6212, %v6484
    %v6486 = vsel %vm6265, %v6485, %v6481
    %v6487 = vlaneseq
    %v6488 = vshrl.u32 %v6487, 7
    %v6489 = vsub.s32 %v6267, %v6488
    %v6490 = vrot.slane %v6215, %v6489
    %v6491 = vsel %vm6272, %v6490, %v6486
    %v6492 = vlaneseq
    %v6493 = vshrl.u32 %v6492, 7
    %v6494 = vsub.s32 %v6274, %v6493
    %v6495 = vrot.slane %v6218, %v6494
    %v6496 = vsel %vm6279, %v6495, %v6491
    %vm6497 = vcmask 1041409
    %v6498 = vsel %vm6497, %v6452, %v6329
    %v6499 = vsel %vm6497, %v6496, %v6373
    %vm6502 = vcmask 1041408
    %v6503 = vsel %vm6502, %v6498, 0.0
    %vm6504 = vcmask 582656
    %v6505 = vsel %vm6504, %v6499, 0.0
    %v6506 = vadd.f32 %v6503, %v6505
    %6507 = vadd.xlane.f32.xlu0 %v6506
    %v6508 = vpop.xlane.xlu0 %6507
    %v6509 = vrcp.pop 200.0
    %v6510 = vmul.f32 %v6508, %v6509
    %v6512 = vlaneseq
    %v6513 = vshrl.u32 %v6512, 7
    %v6514 = vsub.s32 0, %v6513
    %v6515 = vrot.slane %v6510, %v6514
    %v6516 = vlaneseq
    %v6517 = vshrl.u32 %v6516, 7
    %v6518 = vsub.s32 1, %v6517
    %v6519 = vrot.slane %v6510, %v6518
    %v6522 = vsub.f32 %v5969, %v6515
    %v6523 = vsub.f32 %v5970, %v6515
    %v6524 = vsub.f32 %v5971, %v6515
    %v6525 = vsub.f32 %v5972, %v6515
    %v6526 = vsub.f32 %v5973, %v6515
    %v6527 = vsub.f32 %v5974, %v6515
    %v6528 = vsub.f32 %v5975, %v6515
    %v6529 = vsub.f32 %v5976, %v6515
    %v6530 = vsub.f32 %v5977, %v6515
    %v6531 = vsub.f32 %v5978, %v6515
    %v6532 = vsub.f32 %v5979, %v6515
    %v6533 = vsub.f32 %v5980, %v6515
    %v6534 = vsub.f32 %v5981, %v6515
    %v6535 = vsub.f32 %v5982, %v6515
    %v6536 = vsub.f32 %v5983, %v6515
    %v6537 = vsub.f32 %v5984, %v6515
    %v6538 = vsub.f32 %v5985, %v6515
    %v6539 = vsub.f32 %v5986, %v6515
    %v6540 = vsub.f32 %v5987, %v6515
    %v6541 = vsub.f32 %v5988, %v6515
    %v6542 = vsub.f32 %v5989, %v6515
    %v6543 = vsub.f32 %v5990, %v6515
    %v6544 = vsub.f32 %v5991, %v6515
    %v6545 = vsub.f32 %v5992, %v6515
    %v6546 = vsub.f32 %v5993, %v6515
    %v6547 = vsub.f32 %v5994, %v6519
    %v6548 = vsub.f32 %v5995, %v6519
    %v6549 = vsub.f32 %v5996, %v6519
    %v6550 = vsub.f32 %v5997, %v6519
    %v6551 = vsub.f32 %v5998, %v6519
    %v6552 = vsub.f32 %v5999, %v6519
    %v6553 = vsub.f32 %v6000, %v6519
    %v6554 = vsub.f32 %v6001, %v6519
    %v6555 = vsub.f32 %v6002, %v6519
    %v6556 = vsub.f32 %v6003, %v6519
    %v6557 = vsub.f32 %v6004, %v6519
    %v6558 = vsub.f32 %v6005, %v6519
    %v6559 = vsub.f32 %v6006, %v6519
    %v6560 = vsub.f32 %v6007, %v6519
    %v6561 = vsub.f32 %v6008, %v6519
    %v6562 = vsub.f32 %v6009, %v6519
    %v6563 = vsub.f32 %v6010, %v6519
    %v6564 = vsub.f32 %v6011, %v6519
    %v6565 = vsub.f32 %v6012, %v6519
    %v6566 = vsub.f32 %v6013, %v6519
    %v6567 = vsub.f32 %v6014, %v6519
    %v6568 = vsub.f32 %v6015, %v6519
    %v6569 = vsub.f32 %v6016, %v6519
    %v6570 = vsub.f32 %v6017, %v6519
    %v6571 = vsub.f32 %v6018, %v6519
    %v6572 = vmul.f32 %v6522, %v6522
    %v6573 = vmul.f32 %v6523, %v6523
    %v6574 = vmul.f32 %v6524, %v6524
    %v6575 = vmul.f32 %v6525, %v6525
    %v6576 = vmul.f32 %v6526, %v6526
    %v6577 = vmul.f32 %v6527, %v6527
    %v6578 = vmul.f32 %v6528, %v6528
    %v6579 = vmul.f32 %v6529, %v6529
    %v6580 = vmul.f32 %v6530, %v6530
    %v6581 = vmul.f32 %v6531, %v6531
    %v6582 = vmul.f32 %v6532, %v6532
    %v6583 = vmul.f32 %v6533, %v6533
    %v6584 = vmul.f32 %v6534, %v6534
    %v6585 = vmul.f32 %v6535, %v6535
    %v6586 = vmul.f32 %v6536, %v6536
    %v6587 = vmul.f32 %v6537, %v6537
    %v6588 = vmul.f32 %v6538, %v6538
    %v6589 = vmul.f32 %v6539, %v6539
    %v6590 = vmul.f32 %v6540, %v6540
    %v6591 = vmul.f32 %v6541, %v6541
    %v6592 = vmul.f32 %v6542, %v6542
    %v6593 = vmul.f32 %v6543, %v6543
    %v6594 = vmul.f32 %v6544, %v6544
    %v6595 = vmul.f32 %v6545, %v6545
    %v6596 = vmul.f32 %v6546, %v6546
    %v6597 = vmul.f32 %v6547, %v6547
    %v6598 = vmul.f32 %v6548, %v6548
    %v6599 = vmul.f32 %v6549, %v6549
    %v6600 = vmul.f32 %v6550, %v6550
    %v6601 = vmul.f32 %v6551, %v6551
    %v6602 = vmul.f32 %v6552, %v6552
    %v6603 = vmul.f32 %v6553, %v6553
    %v6604 = vmul.f32 %v6554, %v6554
    %v6605 = vmul.f32 %v6555, %v6555
    %v6606 = vmul.f32 %v6556, %v6556
    %v6607 = vmul.f32 %v6557, %v6557
    %v6608 = vmul.f32 %v6558, %v6558
    %v6609 = vmul.f32 %v6559, %v6559
    %v6610 = vmul.f32 %v6560, %v6560
    %v6611 = vmul.f32 %v6561, %v6561
    %v6612 = vmul.f32 %v6562, %v6562
    %v6613 = vmul.f32 %v6563, %v6563
    %v6614 = vmul.f32 %v6564, %v6564
    %v6615 = vmul.f32 %v6565, %v6565
    %v6616 = vmul.f32 %v6566, %v6566
    %v6617 = vmul.f32 %v6567, %v6567
    %v6618 = vmul.f32 %v6568, %v6568
    %v6619 = vmul.f32 %v6569, %v6569
    %v6620 = vmul.f32 %v6570, %v6570
    %v6621 = vmul.f32 %v6571, %v6571
    %6672 = vset.pattern.permute.xlu0 1
    %6673 = vperm.xlu0 %6672, %v6572
    %v6674 = vpop.permute.xlu0 %6673
    %6675 = vset.pattern.permute.xlu0 1
    %6676 = vperm.xlu0 %6675, %v6573
    %v6677 = vpop.permute.xlu0 %6676
    %6678 = vset.pattern.permute.xlu0 1
    %6679 = vperm.xlu0 %6678, %v6574
    %v6680 = vpop.permute.xlu0 %6679
    %6681 = vset.pattern.permute.xlu0 1
    %6682 = vperm.xlu0 %6681, %v6575
    %v6683 = vpop.permute.xlu0 %6682
    %6684 = vset.pattern.permute.xlu0 1
    %6685 = vperm.xlu0 %6684, %v6576
    %v6686 = vpop.permute.xlu0 %6685
    %6687 = vset.pattern.permute.xlu0 1
    %6688 = vperm.xlu0 %6687, %v6577
    %v6689 = vpop.permute.xlu0 %6688
    %6690 = vset.pattern.permute.xlu0 1
    %6691 = vperm.xlu0 %6690, %v6578
    %v6692 = vpop.permute.xlu0 %6691
    %6693 = vset.pattern.permute.xlu0 1
    %6694 = vperm.xlu0 %6693, %v6579
    %v6695 = vpop.permute.xlu0 %6694
    %6696 = vset.pattern.permute.xlu0 1
    %6697 = vperm.xlu0 %6696, %v6580
    %v6698 = vpop.permute.xlu0 %6697
    %6699 = vset.pattern.permute.xlu0 1
    %6700 = vperm.xlu0 %6699, %v6581
    %v6701 = vpop.permute.xlu0 %6700
    %6702 = vset.pattern.permute.xlu0 1
    %6703 = vperm.xlu0 %6702, %v6582
    %v6704 = vpop.permute.xlu0 %6703
    %6705 = vset.pattern.permute.xlu0 1
    %6706 = vperm.xlu0 %6705, %v6583
    %v6707 = vpop.permute.xlu0 %6706
    %6708 = vset.pattern.permute.xlu0 1
    %6709 = vperm.xlu0 %6708, %v6584
    %v6710 = vpop.permute.xlu0 %6709
    %6711 = vset.pattern.permute.xlu0 1
    %6712 = vperm.xlu0 %6711, %v6585
    %v6713 = vpop.permute.xlu0 %6712
    %6714 = vset.pattern.permute.xlu0 1
    %6715 = vperm.xlu0 %6714, %v6586
    %v6716 = vpop.permute.xlu0 %6715
    %6717 = vset.pattern.permute.xlu0 1
    %6718 = vperm.xlu0 %6717, %v6587
    %v6719 = vpop.permute.xlu0 %6718
    %6720 = vset.pattern.permute.xlu0 1
    %6721 = vperm.xlu0 %6720, %v6588
    %v6722 = vpop.permute.xlu0 %6721
    %6723 = vset.pattern.permute.xlu0 1
    %6724 = vperm.xlu0 %6723, %v6589
    %v6725 = vpop.permute.xlu0 %6724
    %6726 = vset.pattern.permute.xlu0 1
    %6727 = vperm.xlu0 %6726, %v6590
    %v6728 = vpop.permute.xlu0 %6727
    %6729 = vset.pattern.permute.xlu0 1
    %6730 = vperm.xlu0 %6729, %v6591
    %v6731 = vpop.permute.xlu0 %6730
    %6732 = vset.pattern.permute.xlu0 1
    %6733 = vperm.xlu0 %6732, %v6592
    %v6734 = vpop.permute.xlu0 %6733
    %6735 = vset.pattern.permute.xlu0 1
    %6736 = vperm.xlu0 %6735, %v6593
    %v6737 = vpop.permute.xlu0 %6736
    %6738 = vset.pattern.permute.xlu0 1
    %6739 = vperm.xlu0 %6738, %v6594
    %v6740 = vpop.permute.xlu0 %6739
    %6741 = vset.pattern.permute.xlu0 1
    %6742 = vperm.xlu0 %6741, %v6595
    %v6743 = vpop.permute.xlu0 %6742
    %6744 = vset.pattern.permute.xlu0 1
    %6745 = vperm.xlu0 %6744, %v6596
    %v6746 = vpop.permute.xlu0 %6745
    %6747 = vset.pattern.permute.xlu0 1
    %6748 = vperm.xlu0 %6747, %v6597
    %v6749 = vpop.permute.xlu0 %6748
    %6750 = vset.pattern.permute.xlu0 1
    %6751 = vperm.xlu0 %6750, %v6598
    %v6752 = vpop.permute.xlu0 %6751
    %6753 = vset.pattern.permute.xlu0 1
    %6754 = vperm.xlu0 %6753, %v6599
    %v6755 = vpop.permute.xlu0 %6754
    %6756 = vset.pattern.permute.xlu0 1
    %6757 = vperm.xlu0 %6756, %v6600
    %v6758 = vpop.permute.xlu0 %6757
    %6759 = vset.pattern.permute.xlu0 1
    %6760 = vperm.xlu0 %6759, %v6601
    %v6761 = vpop.permute.xlu0 %6760
    %6762 = vset.pattern.permute.xlu0 1
    %6763 = vperm.xlu0 %6762, %v6602
    %v6764 = vpop.permute.xlu0 %6763
    %6765 = vset.pattern.permute.xlu0 1
    %6766 = vperm.xlu0 %6765, %v6603
    %v6767 = vpop.permute.xlu0 %6766
    %6768 = vset.pattern.permute.xlu0 1
    %6769 = vperm.xlu0 %6768, %v6604
    %v6770 = vpop.permute.xlu0 %6769
    %6771 = vset.pattern.permute.xlu0 1
    %6772 = vperm.xlu0 %6771, %v6605
    %v6773 = vpop.permute.xlu0 %6772
    %6774 = vset.pattern.permute.xlu0 1
    %6775 = vperm.xlu0 %6774, %v6606
    %v6776 = vpop.permute.xlu0 %6775
    %6777 = vset.pattern.permute.xlu0 1
    %6778 = vperm.xlu0 %6777, %v6607
    %v6779 = vpop.permute.xlu0 %6778
    %6780 = vset.pattern.permute.xlu0 1
    %6781 = vperm.xlu0 %6780, %v6608
    %v6782 = vpop.permute.xlu0 %6781
    %6783 = vset.pattern.permute.xlu0 1
    %6784 = vperm.xlu0 %6783, %v6609
    %v6785 = vpop.permute.xlu0 %6784
    %6786 = vset.pattern.permute.xlu0 1
    %6787 = vperm.xlu0 %6786, %v6610
    %v6788 = vpop.permute.xlu0 %6787
    %6789 = vset.pattern.permute.xlu0 1
    %6790 = vperm.xlu0 %6789, %v6611
    %v6791 = vpop.permute.xlu0 %6790
    %6792 = vset.pattern.permute.xlu0 1
    %6793 = vperm.xlu0 %6792, %v6612
    %v6794 = vpop.permute.xlu0 %6793
    %6795 = vset.pattern.permute.xlu0 1
    %6796 = vperm.xlu0 %6795, %v6613
    %v6797 = vpop.permute.xlu0 %6796
    %6798 = vset.pattern.permute.xlu0 1
    %6799 = vperm.xlu0 %6798, %v6614
    %v6800 = vpop.permute.xlu0 %6799
    %6801 = vset.pattern.permute.xlu0 1
    %6802 = vperm.xlu0 %6801, %v6615
    %v6803 = vpop.permute.xlu0 %6802
    %6804 = vset.pattern.permute.xlu0 1
    %6805 = vperm.xlu0 %6804, %v6616
    %v6806 = vpop.permute.xlu0 %6805
    %6807 = vset.pattern.permute.xlu0 1
    %6808 = vperm.xlu0 %6807, %v6617
    %v6809 = vpop.permute.xlu0 %6808
    %6810 = vset.pattern.permute.xlu0 1
    %6811 = vperm.xlu0 %6810, %v6618
    %v6812 = vpop.permute.xlu0 %6811
    %6813 = vset.pattern.permute.xlu0 1
    %6814 = vperm.xlu0 %6813, %v6619
    %v6815 = vpop.permute.xlu0 %6814
    %6816 = vset.pattern.permute.xlu0 1
    %6817 = vperm.xlu0 %6816, %v6620
    %v6818 = vpop.permute.xlu0 %6817
    %6819 = vset.pattern.permute.xlu0 1
    %6820 = vperm.xlu0 %6819, %v6621
    %v6821 = vpop.permute.xlu0 %6820
    %v6822 = vlaneseq
    %v6823 = vshrl.u32 %v6822, 7
    %v6824 = vsub.s32 %v6220, %v6823
    %v6825 = vrot.slane %v6674, %v6824
    %v6826 = vlaneseq
    %v6827 = vshrl.u32 %v6826, 7
    %v6828 = vsub.s32 %v6225, %v6827
    %v6829 = vrot.slane %v6677, %v6828
    %v6830 = vsel %vm6230, %v6829, %v6825
    %v6831 = vlaneseq
    %v6832 = vshrl.u32 %v6831, 7
    %v6833 = vsub.s32 %v6232, %v6832
    %v6834 = vrot.slane %v6680, %v6833
    %v6835 = vsel %vm6237, %v6834, %v6830
    %v6836 = vlaneseq
    %v6837 = vshrl.u32 %v6836, 7
    %v6838 = vsub.s32 %v6239, %v6837
    %v6839 = vrot.slane %v6683, %v6838
    %v6840 = vsel %vm6244, %v6839, %v6835
    %v6841 = vlaneseq
    %v6842 = vshrl.u32 %v6841, 7
    %v6843 = vsub.s32 %v6246, %v6842
    %v6844 = vrot.slane %v6686, %v6843
    %v6845 = vsel %vm6251, %v6844, %v6840
    %v6846 = vlaneseq
    %v6847 = vshrl.u32 %v6846, 7
    %v6848 = vsub.s32 %v6253, %v6847
    %v6849 = vrot.slane %v6689, %v6848
    %v6850 = vsel %vm6258, %v6849, %v6845
    %v6851 = vlaneseq
    %v6852 = vshrl.u32 %v6851, 7
    %v6853 = vsub.s32 %v6260, %v6852
    %v6854 = vrot.slane %v6692, %v6853
    %v6855 = vsel %vm6265, %v6854, %v6850
    %v6856 = vlaneseq
    %v6857 = vshrl.u32 %v6856, 7
    %v6858 = vsub.s32 %v6267, %v6857
    %v6859 = vrot.slane %v6695, %v6858
    %v6860 = vsel %vm6272, %v6859, %v6855
    %v6861 = vlaneseq
    %v6862 = vshrl.u32 %v6861, 7
    %v6863 = vsub.s32 %v6274, %v6862
    %v6864 = vrot.slane %v6698, %v6863
    %v6865 = vsel %vm6279, %v6864, %v6860
    %v6866 = vlaneseq
    %v6867 = vshrl.u32 %v6866, 7
    %v6868 = vsub.s32 %v6281, %v6867
    %v6869 = vrot.slane %v6701, %v6868
    %v6870 = vsel %vm6286, %v6869, %v6865
    %v6871 = vlaneseq
    %v6872 = vshrl.u32 %v6871, 7
    %v6873 = vsub.s32 %v6288, %v6872
    %v6874 = vrot.slane %v6704, %v6873
    %v6875 = vsel %vm6293, %v6874, %v6870
    %v6876 = vlaneseq
    %v6877 = vshrl.u32 %v6876, 7
    %v6878 = vsub.s32 %v6295, %v6877
    %v6879 = vrot.slane %v6707, %v6878
    %v6880 = vsel %vm6300, %v6879, %v6875
    %v6881 = vlaneseq
    %v6882 = vshrl.u32 %v6881, 7
    %v6883 = vsub.s32 %v6302, %v6882
    %v6884 = vrot.slane %v6710, %v6883
    %v6885 = vsel %vm6307, %v6884, %v6880
    %v6886 = vlaneseq
    %v6887 = vshrl.u32 %v6886, 7
    %v6888 = vsub.s32 %v6309, %v6887
    %v6889 = vrot.slane %v6713, %v6888
    %v6890 = vsel %vm6314, %v6889, %v6885
    %v6891 = vlaneseq
    %v6892 = vshrl.u32 %v6891, 7
    %v6893 = vsub.s32 %v6316, %v6892
    %v6894 = vrot.slane %v6716, %v6893
    %v6895 = vsel %vm6321, %v6894, %v6890
    %v6896 = vlaneseq
    %v6897 = vshrl.u32 %v6896, 7
    %v6898 = vsub.s32 %v6323, %v6897
    %v6899 = vrot.slane %v6719, %v6898
    %v6900 = vsel %vm6328, %v6899, %v6895
    %v6901 = vlaneseq
    %v6902 = vshrl.u32 %v6901, 7
    %v6903 = vsub.s32 %v6220, %v6902
    %v6904 = vrot.slane %v6722, %v6903
    %v6905 = vlaneseq
    %v6906 = vshrl.u32 %v6905, 7
    %v6907 = vsub.s32 %v6225, %v6906
    %v6908 = vrot.slane %v6725, %v6907
    %v6909 = vsel %vm6230, %v6908, %v6904
    %v6910 = vlaneseq
    %v6911 = vshrl.u32 %v6910, 7
    %v6912 = vsub.s32 %v6232, %v6911
    %v6913 = vrot.slane %v6728, %v6912
    %v6914 = vsel %vm6237, %v6913, %v6909
    %v6915 = vlaneseq
    %v6916 = vshrl.u32 %v6915, 7
    %v6917 = vsub.s32 %v6239, %v6916
    %v6918 = vrot.slane %v6731, %v6917
    %v6919 = vsel %vm6244, %v6918, %v6914
    %v6920 = vlaneseq
    %v6921 = vshrl.u32 %v6920, 7
    %v6922 = vsub.s32 %v6246, %v6921
    %v6923 = vrot.slane %v6734, %v6922
    %v6924 = vsel %vm6251, %v6923, %v6919
    %v6925 = vlaneseq
    %v6926 = vshrl.u32 %v6925, 7
    %v6927 = vsub.s32 %v6253, %v6926
    %v6928 = vrot.slane %v6737, %v6927
    %v6929 = vsel %vm6258, %v6928, %v6924
    %v6930 = vlaneseq
    %v6931 = vshrl.u32 %v6930, 7
    %v6932 = vsub.s32 %v6260, %v6931
    %v6933 = vrot.slane %v6740, %v6932
    %v6934 = vsel %vm6265, %v6933, %v6929
    %v6935 = vlaneseq
    %v6936 = vshrl.u32 %v6935, 7
    %v6937 = vsub.s32 %v6267, %v6936
    %v6938 = vrot.slane %v6743, %v6937
    %v6939 = vsel %vm6272, %v6938, %v6934
    %v6940 = vlaneseq
    %v6941 = vshrl.u32 %v6940, 7
    %v6942 = vsub.s32 %v6274, %v6941
    %v6943 = vrot.slane %v6746, %v6942
    %v6944 = vsel %vm6279, %v6943, %v6939
    %v6945 = vlaneseq
    %v6946 = vshrl.u32 %v6945, 7
    %v6947 = vsub.s32 %v6220, %v6946
    %v6948 = vrot.slane %v6749, %v6947
    %v6949 = vlaneseq
    %v6950 = vshrl.u32 %v6949, 7
    %v6951 = vsub.s32 %v6225, %v6950
    %v6952 = vrot.slane %v6752, %v6951
    %v6953 = vsel %vm6230, %v6952, %v6948
    %v6954 = vlaneseq
    %v6955 = vshrl.u32 %v6954, 7
    %v6956 = vsub.s32 %v6232, %v6955
    %v6957 = vrot.slane %v6755, %v6956
    %v6958 = vsel %vm6237, %v6957, %v6953
    %v6959 = vlaneseq
    %v6960 = vshrl.u32 %v6959, 7
    %v6961 = vsub.s32 %v6239, %v6960
    %v6962 = vrot.slane %v6758, %v6961
    %v6963 = vsel %vm6244, %v6962, %v6958
    %v6964 = vlaneseq
    %v6965 = vshrl.u32 %v6964, 7
    %v6966 = vsub.s32 %v6246, %v6965
    %v6967 = vrot.slane %v6761, %v6966
    %v6968 = vsel %vm6251, %v6967, %v6963
    %v6969 = vlaneseq
    %v6970 = vshrl.u32 %v6969, 7
    %v6971 = vsub.s32 %v6253, %v6970
    %v6972 = vrot.slane %v6764, %v6971
    %v6973 = vsel %vm6258, %v6972, %v6968
    %v6974 = vlaneseq
    %v6975 = vshrl.u32 %v6974, 7
    %v6976 = vsub.s32 %v6260, %v6975
    %v6977 = vrot.slane %v6767, %v6976
    %v6978 = vsel %vm6265, %v6977, %v6973
    %v6979 = vlaneseq
    %v6980 = vshrl.u32 %v6979, 7
    %v6981 = vsub.s32 %v6267, %v6980
    %v6982 = vrot.slane %v6770, %v6981
    %v6983 = vsel %vm6272, %v6982, %v6978
    %v6984 = vlaneseq
    %v6985 = vshrl.u32 %v6984, 7
    %v6986 = vsub.s32 %v6274, %v6985
    %v6987 = vrot.slane %v6773, %v6986
    %v6988 = vsel %vm6279, %v6987, %v6983
    %v6989 = vlaneseq
    %v6990 = vshrl.u32 %v6989, 7
    %v6991 = vsub.s32 %v6281, %v6990
    %v6992 = vrot.slane %v6776, %v6991
    %v6993 = vsel %vm6286, %v6992, %v6988
    %v6994 = vlaneseq
    %v6995 = vshrl.u32 %v6994, 7
    %v6996 = vsub.s32 %v6288, %v6995
    %v6997 = vrot.slane %v6779, %v6996
    %v6998 = vsel %vm6293, %v6997, %v6993
    %v6999 = vlaneseq
    %v7000 = vshrl.u32 %v6999, 7
    %v7001 = vsub.s32 %v6295, %v7000
    %v7002 = vrot.slane %v6782, %v7001
    %v7003 = vsel %vm6300, %v7002, %v6998
    %v7004 = vlaneseq
    %v7005 = vshrl.u32 %v7004, 7
    %v7006 = vsub.s32 %v6302, %v7005
    %v7007 = vrot.slane %v6785, %v7006
    %v7008 = vsel %vm6307, %v7007, %v7003
    %v7009 = vlaneseq
    %v7010 = vshrl.u32 %v7009, 7
    %v7011 = vsub.s32 %v6309, %v7010
    %v7012 = vrot.slane %v6788, %v7011
    %v7013 = vsel %vm6314, %v7012, %v7008
    %v7014 = vlaneseq
    %v7015 = vshrl.u32 %v7014, 7
    %v7016 = vsub.s32 %v6316, %v7015
    %v7017 = vrot.slane %v6791, %v7016
    %v7018 = vsel %vm6321, %v7017, %v7013
    %v7019 = vlaneseq
    %v7020 = vshrl.u32 %v7019, 7
    %v7021 = vsub.s32 %v6323, %v7020
    %v7022 = vrot.slane %v6794, %v7021
    %v7023 = vsel %vm6328, %v7022, %v7018
    %v7024 = vlaneseq
    %v7025 = vshrl.u32 %v7024, 7
    %v7026 = vsub.s32 %v6220, %v7025
    %v7027 = vrot.slane %v6797, %v7026
    %v7028 = vlaneseq
    %v7029 = vshrl.u32 %v7028, 7
    %v7030 = vsub.s32 %v6225, %v7029
    %v7031 = vrot.slane %v6800, %v7030
    %v7032 = vsel %vm6230, %v7031, %v7027
    %v7033 = vlaneseq
    %v7034 = vshrl.u32 %v7033, 7
    %v7035 = vsub.s32 %v6232, %v7034
    %v7036 = vrot.slane %v6803, %v7035
    %v7037 = vsel %vm6237, %v7036, %v7032
    %v7038 = vlaneseq
    %v7039 = vshrl.u32 %v7038, 7
    %v7040 = vsub.s32 %v6239, %v7039
    %v7041 = vrot.slane %v6806, %v7040
    %v7042 = vsel %vm6244, %v7041, %v7037
    %v7043 = vlaneseq
    %v7044 = vshrl.u32 %v7043, 7
    %v7045 = vsub.s32 %v6246, %v7044
    %v7046 = vrot.slane %v6809, %v7045
    %v7047 = vsel %vm6251, %v7046, %v7042
    %v7048 = vlaneseq
    %v7049 = vshrl.u32 %v7048, 7
    %v7050 = vsub.s32 %v6253, %v7049
    %v7051 = vrot.slane %v6812, %v7050
    %v7052 = vsel %vm6258, %v7051, %v7047
    %v7053 = vlaneseq
    %v7054 = vshrl.u32 %v7053, 7
    %v7055 = vsub.s32 %v6260, %v7054
    %v7056 = vrot.slane %v6815, %v7055
    %v7057 = vsel %vm6265, %v7056, %v7052
    %v7058 = vlaneseq
    %v7059 = vshrl.u32 %v7058, 7
    %v7060 = vsub.s32 %v6267, %v7059
    %v7061 = vrot.slane %v6818, %v7060
    %v7062 = vsel %vm6272, %v7061, %v7057
    %v7063 = vlaneseq
    %v7064 = vshrl.u32 %v7063, 7
    %v7065 = vsub.s32 %v6274, %v7064
    %v7066 = vrot.slane %v6821, %v7065
    %v7067 = vsel %vm6279, %v7066, %v7062
    %v7068 = vsel %vm6497, %v7023, %v6900
    %v7069 = vsel %vm6497, %v7067, %v6944
    %v7072 = vsel %vm6502, %v7068, 0.0
    %v7073 = vsel %vm6504, %v7069, 0.0
    %v7074 = vadd.f32 %v7072, %v7073
    %7075 = vadd.xlane.f32.xlu0 %v7074
    %v7076 = vpop.xlane.xlu0 %7075
    %v7077 = vmul.f32 %v7076, %v6509
    %v7078 = vadd.f32 %v7077, 1e-05
    %v7079 = vrsqrt.pop %v7078
    %v7081 = vlaneseq
    %v7082 = vshrl.u32 %v7081, 7
    %v7083 = vsub.s32 0, %v7082
    %v7084 = vrot.slane %v7079, %v7083
    %v7085 = vlaneseq
    %v7086 = vshrl.u32 %v7085, 7
    %v7087 = vsub.s32 1, %v7086
    %v7088 = vrot.slane %v7079, %v7087
    %v7091 = vmul.f32 %v6522, %v7084
    %v7092 = vmul.f32 %v6523, %v7084
    %v7093 = vmul.f32 %v6524, %v7084
    %v7094 = vmul.f32 %v6525, %v7084
    %v7095 = vmul.f32 %v6526, %v7084
    %v7096 = vmul.f32 %v6527, %v7084
    %v7097 = vmul.f32 %v6528, %v7084
    %v7098 = vmul.f32 %v6529, %v7084
    %v7099 = vmul.f32 %v6530, %v7084
    %v7100 = vmul.f32 %v6531, %v7084
    %v7101 = vmul.f32 %v6532, %v7084
    %v7102 = vmul.f32 %v6533, %v7084
    %v7103 = vmul.f32 %v6534, %v7084
    %v7104 = vmul.f32 %v6535, %v7084
    %v7105 = vmul.f32 %v6536, %v7084
    %v7106 = vmul.f32 %v6537, %v7084
    %v7107 = vmul.f32 %v6538, %v7084
    %v7108 = vmul.f32 %v6539, %v7084
    %v7109 = vmul.f32 %v6540, %v7084
    %v7110 = vmul.f32 %v6541, %v7084
    %v7111 = vmul.f32 %v6542, %v7084
    %v7112 = vmul.f32 %v6543, %v7084
    %v7113 = vmul.f32 %v6544, %v7084
    %v7114 = vmul.f32 %v6545, %v7084
    %v7115 = vmul.f32 %v6546, %v7084
    %v7116 = vmul.f32 %v6547, %v7088
    %v7117 = vmul.f32 %v6548, %v7088
    %v7118 = vmul.f32 %v6549, %v7088
    %v7119 = vmul.f32 %v6550, %v7088
    %v7120 = vmul.f32 %v6551, %v7088
    %v7121 = vmul.f32 %v6552, %v7088
    %v7122 = vmul.f32 %v6553, %v7088
    %v7123 = vmul.f32 %v6554, %v7088
    %v7124 = vmul.f32 %v6555, %v7088
    %v7125 = vmul.f32 %v6556, %v7088
    %v7126 = vmul.f32 %v6557, %v7088
    %v7127 = vmul.f32 %v6558, %v7088
    %v7128 = vmul.f32 %v6559, %v7088
    %v7129 = vmul.f32 %v6560, %v7088
    %v7130 = vmul.f32 %v6561, %v7088
    %v7131 = vmul.f32 %v6562, %v7088
    %v7132 = vmul.f32 %v6563, %v7088
    %v7133 = vmul.f32 %v6564, %v7088
    %v7134 = vmul.f32 %v6565, %v7088
    %v7135 = vmul.f32 %v6566, %v7088
    %v7136 = vmul.f32 %v6567, %v7088
    %v7137 = vmul.f32 %v6568, %v7088
    %v7138 = vmul.f32 %v6569, %v7088
    %v7139 = vmul.f32 %v6570, %v7088
    %v7140 = vmul.f32 %v6571, %v7088
    %v7141 = vld [vmem:[%s9] sm:$0x3]
    %v7143 = vlaneseq
    %v7144 = vshrl.u32 %v7143, 7
    %v7145 = vsub.s32 0, %v7144
    %v7146 = vrot.slane %v7141, %v7145
    %v7147 = vlaneseq
    %v7148 = vshrl.u32 %v7147, 7
    %v7149 = vsub.s32 1, %v7148
    %v7150 = vrot.slane %v7141, %v7149
    %7152 = vbcast.lane.b32.xlu0 %v7146, 256
    %v7153 = vpop.permute.xlu0 %7152
    %s7155 = sor.u32 256, 8
    %7156 = vbcast.lane.b32.xlu0 %v7146, %s7155
    %v7157 = vpop.permute.xlu0 %7156
    %s7159 = sor.u32 256, 16
    %7160 = vbcast.lane.b32.xlu0 %v7146, %s7159
    %v7161 = vpop.permute.xlu0 %7160
    %s7163 = sor.u32 256, 24
    %7164 = vbcast.lane.b32.xlu0 %v7146, %s7163
    %v7165 = vpop.permute.xlu0 %7164
    %s7167 = sor.u32 256, 32
    %7168 = vbcast.lane.b32.xlu0 %v7146, %s7167
    %v7169 = vpop.permute.xlu0 %7168
    %s7171 = sor.u32 256, 40
    %7172 = vbcast.lane.b32.xlu0 %v7146, %s7171
    %v7173 = vpop.permute.xlu0 %7172
    %s7175 = sor.u32 256, 48
    %7176 = vbcast.lane.b32.xlu0 %v7146, %s7175
    %v7177 = vpop.permute.xlu0 %7176
    %s7179 = sor.u32 256, 56
    %7180 = vbcast.lane.b32.xlu0 %v7146, %s7179
    %v7181 = vpop.permute.xlu0 %7180
    %s7183 = sor.u32 256, 64
    %7184 = vbcast.lane.b32.xlu0 %v7146, %s7183
    %v7185 = vpop.permute.xlu0 %7184
    %s7187 = sor.u32 256, 72
    %7188 = vbcast.lane.b32.xlu0 %v7146, %s7187
    %v7189 = vpop.permute.xlu0 %7188
    %s7191 = sor.u32 256, 80
    %7192 = vbcast.lane.b32.xlu0 %v7146, %s7191
    %v7193 = vpop.permute.xlu0 %7192
    %s7195 = sor.u32 256, 88
    %7196 = vbcast.lane.b32.xlu0 %v7146, %s7195
    %v7197 = vpop.permute.xlu0 %7196
    %s7199 = sor.u32 256, 96
    %7200 = vbcast.lane.b32.xlu0 %v7146, %s7199
    %v7201 = vpop.permute.xlu0 %7200
    %s7203 = sor.u32 256, 104
    %7204 = vbcast.lane.b32.xlu0 %v7146, %s7203
    %v7205 = vpop.permute.xlu0 %7204
    %s7207 = sor.u32 256, 112
    %7208 = vbcast.lane.b32.xlu0 %v7146, %s7207
    %v7209 = vpop.permute.xlu0 %7208
    %s7211 = sor.u32 256, 120
    %7212 = vbcast.lane.b32.xlu0 %v7146, %s7211
    %v7213 = vpop.permute.xlu0 %7212
    %7215 = vbcast.lane.b32.xlu0 %v7150, 256
    %v7216 = vpop.permute.xlu0 %7215
    %s7218 = sor.u32 256, 8
    %7219 = vbcast.lane.b32.xlu0 %v7150, %s7218
    %v7220 = vpop.permute.xlu0 %7219
    %s7222 = sor.u32 256, 16
    %7223 = vbcast.lane.b32.xlu0 %v7150, %s7222
    %v7224 = vpop.permute.xlu0 %7223
    %s7226 = sor.u32 256, 24
    %7227 = vbcast.lane.b32.xlu0 %v7150, %s7226
    %v7228 = vpop.permute.xlu0 %7227
    %s7230 = sor.u32 256, 32
    %7231 = vbcast.lane.b32.xlu0 %v7150, %s7230
    %v7232 = vpop.permute.xlu0 %7231
    %s7234 = sor.u32 256, 40
    %7235 = vbcast.lane.b32.xlu0 %v7150, %s7234
    %v7236 = vpop.permute.xlu0 %7235
    %s7238 = sor.u32 256, 48
    %7239 = vbcast.lane.b32.xlu0 %v7150, %s7238
    %v7240 = vpop.permute.xlu0 %7239
    %s7242 = sor.u32 256, 56
    %7243 = vbcast.lane.b32.xlu0 %v7150, %s7242
    %v7244 = vpop.permute.xlu0 %7243
    %s7246 = sor.u32 256, 64
    %7247 = vbcast.lane.b32.xlu0 %v7150, %s7246
    %v7248 = vpop.permute.xlu0 %7247
    %v7274 = vmul.f32 %v7091, %v7153
    %v7275 = vmul.f32 %v7092, %v7157
    %v7276 = vmul.f32 %v7093, %v7161
    %v7277 = vmul.f32 %v7094, %v7165
    %v7278 = vmul.f32 %v7095, %v7169
    %v7279 = vmul.f32 %v7096, %v7173
    %v7280 = vmul.f32 %v7097, %v7177
    %v7281 = vmul.f32 %v7098, %v7181
    %v7282 = vmul.f32 %v7099, %v7185
    %v7283 = vmul.f32 %v7100, %v7189
    %v7284 = vmul.f32 %v7101, %v7193
    %v7285 = vmul.f32 %v7102, %v7197
    %v7286 = vmul.f32 %v7103, %v7201
    %v7287 = vmul.f32 %v7104, %v7205
    %v7288 = vmul.f32 %v7105, %v7209
    %v7289 = vmul.f32 %v7106, %v7213
    %v7290 = vmul.f32 %v7107, %v7216
    %v7291 = vmul.f32 %v7108, %v7220
    %v7292 = vmul.f32 %v7109, %v7224
    %v7293 = vmul.f32 %v7110, %v7228
    %v7294 = vmul.f32 %v7111, %v7232
    %v7295 = vmul.f32 %v7112, %v7236
    %v7296 = vmul.f32 %v7113, %v7240
    %v7297 = vmul.f32 %v7114, %v7244
    %v7298 = vmul.f32 %v7115, %v7248
    %v7299 = vmul.f32 %v7116, %v7153
    %v7300 = vmul.f32 %v7117, %v7157
    %v7301 = vmul.f32 %v7118, %v7161
    %v7302 = vmul.f32 %v7119, %v7165
    %v7303 = vmul.f32 %v7120, %v7169
    %v7304 = vmul.f32 %v7121, %v7173
    %v7305 = vmul.f32 %v7122, %v7177
    %v7306 = vmul.f32 %v7123, %v7181
    %v7307 = vmul.f32 %v7124, %v7185
    %v7308 = vmul.f32 %v7125, %v7189
    %v7309 = vmul.f32 %v7126, %v7193
    %v7310 = vmul.f32 %v7127, %v7197
    %v7311 = vmul.f32 %v7128, %v7201
    %v7312 = vmul.f32 %v7129, %v7205
    %v7313 = vmul.f32 %v7130, %v7209
    %v7314 = vmul.f32 %v7131, %v7213
    %v7315 = vmul.f32 %v7132, %v7216
    %v7316 = vmul.f32 %v7133, %v7220
    %v7317 = vmul.f32 %v7134, %v7224
    %v7318 = vmul.f32 %v7135, %v7228
    %v7319 = vmul.f32 %v7136, %v7232
    %v7320 = vmul.f32 %v7137, %v7236
    %v7321 = vmul.f32 %v7138, %v7240
    %v7322 = vmul.f32 %v7139, %v7244
    %v7323 = vmul.f32 %v7140, %v7248
    %v7324 = vld [vmem:[%s10] sm:$0x3]
    %v7326 = vlaneseq
    %v7327 = vshrl.u32 %v7326, 7
    %v7328 = vsub.s32 0, %v7327
    %v7329 = vrot.slane %v7324, %v7328
    %v7330 = vlaneseq
    %v7331 = vshrl.u32 %v7330, 7
    %v7332 = vsub.s32 1, %v7331
    %v7333 = vrot.slane %v7324, %v7332
    %7335 = vbcast.lane.b32.xlu0 %v7329, 256
    %v7336 = vpop.permute.xlu0 %7335
    %s7338 = sor.u32 256, 8
    %7339 = vbcast.lane.b32.xlu0 %v7329, %s7338
    %v7340 = vpop.permute.xlu0 %7339
    %s7342 = sor.u32 256, 16
    %7343 = vbcast.lane.b32.xlu0 %v7329, %s7342
    %v7344 = vpop.permute.xlu0 %7343
    %s7346 = sor.u32 256, 24
    %7347 = vbcast.lane.b32.xlu0 %v7329, %s7346
    %v7348 = vpop.permute.xlu0 %7347
    %s7350 = sor.u32 256, 32
    %7351 = vbcast.lane.b32.xlu0 %v7329, %s7350
    %v7352 = vpop.permute.xlu0 %7351
    %s7354 = sor.u32 256, 40
    %7355 = vbcast.lane.b32.xlu0 %v7329, %s7354
    %v7356 = vpop.permute.xlu0 %7355
    %s7358 = sor.u32 256, 48
    %7359 = vbcast.lane.b32.xlu0 %v7329, %s7358
    %v7360 = vpop.permute.xlu0 %7359
    %s7362 = sor.u32 256, 56
    %7363 = vbcast.lane.b32.xlu0 %v7329, %s7362
    %v7364 = vpop.permute.xlu0 %7363
    %s7366 = sor.u32 256, 64
    %7367 = vbcast.lane.b32.xlu0 %v7329, %s7366
    %v7368 = vpop.permute.xlu0 %7367
    %s7370 = sor.u32 256, 72
    %7371 = vbcast.lane.b32.xlu0 %v7329, %s7370
    %v7372 = vpop.permute.xlu0 %7371
    %s7374 = sor.u32 256, 80
    %7375 = vbcast.lane.b32.xlu0 %v7329, %s7374
    %v7376 = vpop.permute.xlu0 %7375
    %s7378 = sor.u32 256, 88
    %7379 = vbcast.lane.b32.xlu0 %v7329, %s7378
    %v7380 = vpop.permute.xlu0 %7379
    %s7382 = sor.u32 256, 96
    %7383 = vbcast.lane.b32.xlu0 %v7329, %s7382
    %v7384 = vpop.permute.xlu0 %7383
    %s7386 = sor.u32 256, 104
    %7387 = vbcast.lane.b32.xlu0 %v7329, %s7386
    %v7388 = vpop.permute.xlu0 %7387
    %s7390 = sor.u32 256, 112
    %7391 = vbcast.lane.b32.xlu0 %v7329, %s7390
    %v7392 = vpop.permute.xlu0 %7391
    %s7394 = sor.u32 256, 120
    %7395 = vbcast.lane.b32.xlu0 %v7329, %s7394
    %v7396 = vpop.permute.xlu0 %7395
    %7398 = vbcast.lane.b32.xlu0 %v7333, 256
    %v7399 = vpop.permute.xlu0 %7398
    %s7401 = sor.u32 256, 8
    %7402 = vbcast.lane.b32.xlu0 %v7333, %s7401
    %v7403 = vpop.permute.xlu0 %7402
    %s7405 = sor.u32 256, 16
    %7406 = vbcast.lane.b32.xlu0 %v7333, %s7405
    %v7407 = vpop.permute.xlu0 %7406
    %s7409 = sor.u32 256, 24
    %7410 = vbcast.lane.b32.xlu0 %v7333, %s7409
    %v7411 = vpop.permute.xlu0 %7410
    %s7413 = sor.u32 256, 32
    %7414 = vbcast.lane.b32.xlu0 %v7333, %s7413
    %v7415 = vpop.permute.xlu0 %7414
    %s7417 = sor.u32 256, 40
    %7418 = vbcast.lane.b32.xlu0 %v7333, %s7417
    %v7419 = vpop.permute.xlu0 %7418
    %s7421 = sor.u32 256, 48
    %7422 = vbcast.lane.b32.xlu0 %v7333, %s7421
    %v7423 = vpop.permute.xlu0 %7422
    %s7425 = sor.u32 256, 56
    %7426 = vbcast.lane.b32.xlu0 %v7333, %s7425
    %v7427 = vpop.permute.xlu0 %7426
    %s7429 = sor.u32 256, 64
    %7430 = vbcast.lane.b32.xlu0 %v7333, %s7429
    %v7431 = vpop.permute.xlu0 %7430
    %v7457 = vadd.f32 %v7274, %v7336
    %v7458 = vadd.f32 %v7275, %v7340
    %v7459 = vadd.f32 %v7276, %v7344
    %v7460 = vadd.f32 %v7277, %v7348
    %v7461 = vadd.f32 %v7278, %v7352
    %v7462 = vadd.f32 %v7279, %v7356
    %v7463 = vadd.f32 %v7280, %v7360
    %v7464 = vadd.f32 %v7281, %v7364
    %v7465 = vadd.f32 %v7282, %v7368
    %v7466 = vadd.f32 %v7283, %v7372
    %v7467 = vadd.f32 %v7284, %v7376
    %v7468 = vadd.f32 %v7285, %v7380
    %v7469 = vadd.f32 %v7286, %v7384
    %v7470 = vadd.f32 %v7287, %v7388
    %v7471 = vadd.f32 %v7288, %v7392
    %v7472 = vadd.f32 %v7289, %v7396
    %v7473 = vadd.f32 %v7290, %v7399
    %v7474 = vadd.f32 %v7291, %v7403
    %v7475 = vadd.f32 %v7292, %v7407
    %v7476 = vadd.f32 %v7293, %v7411
    %v7477 = vadd.f32 %v7294, %v7415
    %v7478 = vadd.f32 %v7295, %v7419
    %v7479 = vadd.f32 %v7296, %v7423
    %v7480 = vadd.f32 %v7297, %v7427
    %v7481 = vadd.f32 %v7298, %v7431
    %v7482 = vadd.f32 %v7299, %v7336
    %v7483 = vadd.f32 %v7300, %v7340
    %v7484 = vadd.f32 %v7301, %v7344
    %v7485 = vadd.f32 %v7302, %v7348
    %v7486 = vadd.f32 %v7303, %v7352
    %v7487 = vadd.f32 %v7304, %v7356
    %v7488 = vadd.f32 %v7305, %v7360
    %v7489 = vadd.f32 %v7306, %v7364
    %v7490 = vadd.f32 %v7307, %v7368
    %v7491 = vadd.f32 %v7308, %v7372
    %v7492 = vadd.f32 %v7309, %v7376
    %v7493 = vadd.f32 %v7310, %v7380
    %v7494 = vadd.f32 %v7311, %v7384
    %v7495 = vadd.f32 %v7312, %v7388
    %v7496 = vadd.f32 %v7313, %v7392
    %v7497 = vadd.f32 %v7314, %v7396
    %v7498 = vadd.f32 %v7315, %v7399
    %v7499 = vadd.f32 %v7316, %v7403
    %v7500 = vadd.f32 %v7317, %v7407
    %v7501 = vadd.f32 %v7318, %v7411
    %v7502 = vadd.f32 %v7319, %v7415
    %v7503 = vadd.f32 %v7320, %v7419
    %v7504 = vadd.f32 %v7321, %v7423
    %v7505 = vadd.f32 %v7322, %v7427
    %v7506 = vadd.f32 %v7323, %v7431
    %v7507 = vld [vmem:[%s11] sm:$0xff]
    %v7508 = vld [vmem:[%s11 + $0x8] sm:$0xff]
    %v7509 = vld [vmem:[%s11 + $0x10] sm:$0xff]
    %v7510 = vld [vmem:[%s11 + $0x18] sm:$0xff]
    %v7511 = vld [vmem:[%s11 + $0x20] sm:$0xff]
    %v7512 = vld [vmem:[%s11 + $0x28] sm:$0xff]
    %v7513 = vld [vmem:[%s11 + $0x30] sm:$0xff]
    %v7514 = vld [vmem:[%s11 + $0x38] sm:$0xff]
    %v7515 = vld [vmem:[%s11 + $0x40] sm:$0xff]
    %v7516 = vld [vmem:[%s11 + $0x48] sm:$0xff]
    %v7517 = vld [vmem:[%s11 + $0x50] sm:$0xff]
    %v7518 = vld [vmem:[%s11 + $0x58] sm:$0xff]
    %v7519 = vld [vmem:[%s11 + $0x60] sm:$0xff]
    %v7520 = vld [vmem:[%s11 + $0x68] sm:$0xff]
    %v7521 = vld [vmem:[%s11 + $0x70] sm:$0xff]
    %v7522 = vld [vmem:[%s11 + $0x78] sm:$0xff]
    %v7523 = vld [vmem:[%s11 + $0x80] sm:$0xff]
    %v7524 = vld [vmem:[%s11 + $0x88] sm:$0xff]
    %v7525 = vld [vmem:[%s11 + $0x90] sm:$0xff]
    %v7526 = vld [vmem:[%s11 + $0x98] sm:$0xff]
    %v7527 = vld [vmem:[%s11 + $0xa0] sm:$0xff]
    %v7528 = vld [vmem:[%s11 + $0xa8] sm:$0xff]
    %v7529 = vld [vmem:[%s11 + $0xb0] sm:$0xff]
    %v7530 = vld [vmem:[%s11 + $0xb8] sm:$0xff]
    %v7531 = vld [vmem:[%s11 + $0xc0] sm:$0xff]
    %v7532 = vld [vmem:[%s12] sm:$0x1]
    %v7534 = vlaneseq
    %v7535 = vshrl.u32 %v7534, 7
    %v7536 = vsub.s32 0, %v7535
    %v7537 = vrot.slane %v7532, %v7536
    %7589 = vset.pattern.permute.xlu0 1
    %7590 = vperm.xlu0 %7589, %v7457
    %v7591 = vpop.permute.xlu0 %7590
    %7592 = vset.pattern.permute.xlu0 1
    %7593 = vperm.xlu0 %7592, %v7458
    %v7594 = vpop.permute.xlu0 %7593
    %7595 = vset.pattern.permute.xlu0 1
    %7596 = vperm.xlu0 %7595, %v7459
    %v7597 = vpop.permute.xlu0 %7596
    %7598 = vset.pattern.permute.xlu0 1
    %7599 = vperm.xlu0 %7598, %v7460
    %v7600 = vpop.permute.xlu0 %7599
    %7601 = vset.pattern.permute.xlu0 1
    %7602 = vperm.xlu0 %7601, %v7461
    %v7603 = vpop.permute.xlu0 %7602
    %7604 = vset.pattern.permute.xlu0 1
    %7605 = vperm.xlu0 %7604, %v7462
    %v7606 = vpop.permute.xlu0 %7605
    %7607 = vset.pattern.permute.xlu0 1
    %7608 = vperm.xlu0 %7607, %v7463
    %v7609 = vpop.permute.xlu0 %7608
    %7610 = vset.pattern.permute.xlu0 1
    %7611 = vperm.xlu0 %7610, %v7464
    %v7612 = vpop.permute.xlu0 %7611
    %7613 = vset.pattern.permute.xlu0 1
    %7614 = vperm.xlu0 %7613, %v7465
    %v7615 = vpop.permute.xlu0 %7614
    %7616 = vset.pattern.permute.xlu0 1
    %7617 = vperm.xlu0 %7616, %v7466
    %v7618 = vpop.permute.xlu0 %7617
    %7619 = vset.pattern.permute.xlu0 1
    %7620 = vperm.xlu0 %7619, %v7467
    %v7621 = vpop.permute.xlu0 %7620
    %7622 = vset.pattern.permute.xlu0 1
    %7623 = vperm.xlu0 %7622, %v7468
    %v7624 = vpop.permute.xlu0 %7623
    %7625 = vset.pattern.permute.xlu0 1
    %7626 = vperm.xlu0 %7625, %v7469
    %v7627 = vpop.permute.xlu0 %7626
    %7628 = vset.pattern.permute.xlu0 1
    %7629 = vperm.xlu0 %7628, %v7470
    %v7630 = vpop.permute.xlu0 %7629
    %7631 = vset.pattern.permute.xlu0 1
    %7632 = vperm.xlu0 %7631, %v7471
    %v7633 = vpop.permute.xlu0 %7632
    %7634 = vset.pattern.permute.xlu0 1
    %7635 = vperm.xlu0 %7634, %v7472
    %v7636 = vpop.permute.xlu0 %7635
    %7637 = vset.pattern.permute.xlu0 1
    %7638 = vperm.xlu0 %7637, %v7473
    %v7639 = vpop.permute.xlu0 %7638
    %7640 = vset.pattern.permute.xlu0 1
    %7641 = vperm.xlu0 %7640, %v7474
    %v7642 = vpop.permute.xlu0 %7641
    %7643 = vset.pattern.permute.xlu0 1
    %7644 = vperm.xlu0 %7643, %v7475
    %v7645 = vpop.permute.xlu0 %7644
    %7646 = vset.pattern.permute.xlu0 1
    %7647 = vperm.xlu0 %7646, %v7476
    %v7648 = vpop.permute.xlu0 %7647
    %7649 = vset.pattern.permute.xlu0 1
    %7650 = vperm.xlu0 %7649, %v7477
    %v7651 = vpop.permute.xlu0 %7650
    %7652 = vset.pattern.permute.xlu0 1
    %7653 = vperm.xlu0 %7652, %v7478
    %v7654 = vpop.permute.xlu0 %7653
    %7655 = vset.pattern.permute.xlu0 1
    %7656 = vperm.xlu0 %7655, %v7479
    %v7657 = vpop.permute.xlu0 %7656
    %7658 = vset.pattern.permute.xlu0 1
    %7659 = vperm.xlu0 %7658, %v7480
    %v7660 = vpop.permute.xlu0 %7659
    %7661 = vset.pattern.permute.xlu0 1
    %7662 = vperm.xlu0 %7661, %v7481
    %v7663 = vpop.permute.xlu0 %7662
    %7664 = vset.pattern.permute.xlu0 1
    %7665 = vperm.xlu0 %7664, %v7482
    %v7666 = vpop.permute.xlu0 %7665
    %7667 = vset.pattern.permute.xlu0 1
    %7668 = vperm.xlu0 %7667, %v7483
    %v7669 = vpop.permute.xlu0 %7668
    %7670 = vset.pattern.permute.xlu0 1
    %7671 = vperm.xlu0 %7670, %v7484
    %v7672 = vpop.permute.xlu0 %7671
    %7673 = vset.pattern.permute.xlu0 1
    %7674 = vperm.xlu0 %7673, %v7485
    %v7675 = vpop.permute.xlu0 %7674
    %7676 = vset.pattern.permute.xlu0 1
    %7677 = vperm.xlu0 %7676, %v7486
    %v7678 = vpop.permute.xlu0 %7677
    %7679 = vset.pattern.permute.xlu0 1
    %7680 = vperm.xlu0 %7679, %v7487
    %v7681 = vpop.permute.xlu0 %7680
    %7682 = vset.pattern.permute.xlu0 1
    %7683 = vperm.xlu0 %7682, %v7488
    %v7684 = vpop.permute.xlu0 %7683
    %7685 = vset.pattern.permute.xlu0 1
    %7686 = vperm.xlu0 %7685, %v7489
    %v7687 = vpop.permute.xlu0 %7686
    %7688 = vset.pattern.permute.xlu0 1
    %7689 = vperm.xlu0 %7688, %v7490
    %v7690 = vpop.permute.xlu0 %7689
    %7691 = vset.pattern.permute.xlu0 1
    %7692 = vperm.xlu0 %7691, %v7491
    %v7693 = vpop.permute.xlu0 %7692
    %7694 = vset.pattern.permute.xlu0 1
    %7695 = vperm.xlu0 %7694, %v7492
    %v7696 = vpop.permute.xlu0 %7695
    %7697 = vset.pattern.permute.xlu0 1
    %7698 = vperm.xlu0 %7697, %v7493
    %v7699 = vpop.permute.xlu0 %7698
    %7700 = vset.pattern.permute.xlu0 1
    %7701 = vperm.xlu0 %7700, %v7494
    %v7702 = vpop.permute.xlu0 %7701
    %7703 = vset.pattern.permute.xlu0 1
    %7704 = vperm.xlu0 %7703, %v7495
    %v7705 = vpop.permute.xlu0 %7704
    %7706 = vset.pattern.permute.xlu0 1
    %7707 = vperm.xlu0 %7706, %v7496
    %v7708 = vpop.permute.xlu0 %7707
    %7709 = vset.pattern.permute.xlu0 1
    %7710 = vperm.xlu0 %7709, %v7497
    %v7711 = vpop.permute.xlu0 %7710
    %7712 = vset.pattern.permute.xlu0 1
    %7713 = vperm.xlu0 %7712, %v7498
    %v7714 = vpop.permute.xlu0 %7713
    %7715 = vset.pattern.permute.xlu0 1
    %7716 = vperm.xlu0 %7715, %v7499
    %v7717 = vpop.permute.xlu0 %7716
    %7718 = vset.pattern.permute.xlu0 1
    %7719 = vperm.xlu0 %7718, %v7500
    %v7720 = vpop.permute.xlu0 %7719
    %7721 = vset.pattern.permute.xlu0 1
    %7722 = vperm.xlu0 %7721, %v7501
    %v7723 = vpop.permute.xlu0 %7722
    %7724 = vset.pattern.permute.xlu0 1
    %7725 = vperm.xlu0 %7724, %v7502
    %v7726 = vpop.permute.xlu0 %7725
    %7727 = vset.pattern.permute.xlu0 1
    %7728 = vperm.xlu0 %7727, %v7503
    %v7729 = vpop.permute.xlu0 %7728
    %7730 = vset.pattern.permute.xlu0 1
    %7731 = vperm.xlu0 %7730, %v7504
    %v7732 = vpop.permute.xlu0 %7731
    %7733 = vset.pattern.permute.xlu0 1
    %7734 = vperm.xlu0 %7733, %v7505
    %v7735 = vpop.permute.xlu0 %7734
    %7736 = vset.pattern.permute.xlu0 1
    %7737 = vperm.xlu0 %7736, %v7506
    %v7738 = vpop.permute.xlu0 %7737
    %v7739 = vlaneseq
    %v7740 = vshrl.u32 %v7739, 7
    %v7741 = vsub.s32 %v6220, %v7740
    %v7742 = vrot.slane %v7591, %v7741
    %v7743 = vlaneseq
    %v7744 = vshrl.u32 %v7743, 7
    %v7745 = vsub.s32 %v6225, %v7744
    %v7746 = vrot.slane %v7594, %v7745
    %v7747 = vsel %vm6230, %v7746, %v7742
    %v7748 = vlaneseq
    %v7749 = vshrl.u32 %v7748, 7
    %v7750 = vsub.s32 %v6232, %v7749
    %v7751 = vrot.slane %v7597, %v7750
    %v7752 = vsel %vm6237, %v7751, %v7747
    %v7753 = vlaneseq
    %v7754 = vshrl.u32 %v7753, 7
    %v7755 = vsub.s32 %v6239, %v7754
    %v7756 = vrot.slane %v7600, %v7755
    %v7757 = vsel %vm6244, %v7756, %v7752
    %v7758 = vlaneseq
    %v7759 = vshrl.u32 %v7758, 7
    %v7760 = vsub.s32 %v6246, %v7759
    %v7761 = vrot.slane %v7603, %v7760
    %v7762 = vsel %vm6251, %v7761, %v7757
    %v7763 = vlaneseq
    %v7764 = vshrl.u32 %v7763, 7
    %v7765 = vsub.s32 %v6253, %v7764
    %v7766 = vrot.slane %v7606, %v7765
    %v7767 = vsel %vm6258, %v7766, %v7762
    %v7768 = vlaneseq
    %v7769 = vshrl.u32 %v7768, 7
    %v7770 = vsub.s32 %v6260, %v7769
    %v7771 = vrot.slane %v7609, %v7770
    %v7772 = vsel %vm6265, %v7771, %v7767
    %v7773 = vlaneseq
    %v7774 = vshrl.u32 %v7773, 7
    %v7775 = vsub.s32 %v6267, %v7774
    %v7776 = vrot.slane %v7612, %v7775
    %v7777 = vsel %vm6272, %v7776, %v7772
    %v7778 = vlaneseq
    %v7779 = vshrl.u32 %v7778, 7
    %v7780 = vsub.s32 %v6274, %v7779
    %v7781 = vrot.slane %v7615, %v7780
    %v7782 = vsel %vm6279, %v7781, %v7777
    %v7783 = vlaneseq
    %v7784 = vshrl.u32 %v7783, 7
    %v7785 = vsub.s32 %v6281, %v7784
    %v7786 = vrot.slane %v7618, %v7785
    %v7787 = vsel %vm6286, %v7786, %v7782
    %v7788 = vlaneseq
    %v7789 = vshrl.u32 %v7788, 7
    %v7790 = vsub.s32 %v6288, %v7789
    %v7791 = vrot.slane %v7621, %v7790
    %v7792 = vsel %vm6293, %v7791, %v7787
    %v7793 = vlaneseq
    %v7794 = vshrl.u32 %v7793, 7
    %v7795 = vsub.s32 %v6295, %v7794
    %v7796 = vrot.slane %v7624, %v7795
    %v7797 = vsel %vm6300, %v7796, %v7792
    %v7798 = vlaneseq
    %v7799 = vshrl.u32 %v7798, 7
    %v7800 = vsub.s32 %v6302, %v7799
    %v7801 = vrot.slane %v7627, %v7800
    %v7802 = vsel %vm6307, %v7801, %v7797
    %v7803 = vlaneseq
    %v7804 = vshrl.u32 %v7803, 7
    %v7805 = vsub.s32 %v6309, %v7804
    %v7806 = vrot.slane %v7630, %v7805
    %v7807 = vsel %vm6314, %v7806, %v7802
    %v7808 = vlaneseq
    %v7809 = vshrl.u32 %v7808, 7
    %v7810 = vsub.s32 %v6316, %v7809
    %v7811 = vrot.slane %v7633, %v7810
    %v7812 = vsel %vm6321, %v7811, %v7807
    %v7813 = vlaneseq
    %v7814 = vshrl.u32 %v7813, 7
    %v7815 = vsub.s32 %v6323, %v7814
    %v7816 = vrot.slane %v7636, %v7815
    %v7817 = vsel %vm6328, %v7816, %v7812
    %v7818 = vlaneseq
    %v7819 = vshrl.u32 %v7818, 7
    %v7820 = vsub.s32 %v6220, %v7819
    %v7821 = vrot.slane %v7639, %v7820
    %v7822 = vlaneseq
    %v7823 = vshrl.u32 %v7822, 7
    %v7824 = vsub.s32 %v6225, %v7823
    %v7825 = vrot.slane %v7642, %v7824
    %v7826 = vsel %vm6230, %v7825, %v7821
    %v7827 = vlaneseq
    %v7828 = vshrl.u32 %v7827, 7
    %v7829 = vsub.s32 %v6232, %v7828
    %v7830 = vrot.slane %v7645, %v7829
    %v7831 = vsel %vm6237, %v7830, %v7826
    %v7832 = vlaneseq
    %v7833 = vshrl.u32 %v7832, 7
    %v7834 = vsub.s32 %v6239, %v7833
    %v7835 = vrot.slane %v7648, %v7834
    %v7836 = vsel %vm6244, %v7835, %v7831
    %v7837 = vlaneseq
    %v7838 = vshrl.u32 %v7837, 7
    %v7839 = vsub.s32 %v6246, %v7838
    %v7840 = vrot.slane %v7651, %v7839
    %v7841 = vsel %vm6251, %v7840, %v7836
    %v7842 = vlaneseq
    %v7843 = vshrl.u32 %v7842, 7
    %v7844 = vsub.s32 %v6253, %v7843
    %v7845 = vrot.slane %v7654, %v7844
    %v7846 = vsel %vm6258, %v7845, %v7841
    %v7847 = vlaneseq
    %v7848 = vshrl.u32 %v7847, 7
    %v7849 = vsub.s32 %v6260, %v7848
    %v7850 = vrot.slane %v7657, %v7849
    %v7851 = vsel %vm6265, %v7850, %v7846
    %v7852 = vlaneseq
    %v7853 = vshrl.u32 %v7852, 7
    %v7854 = vsub.s32 %v6267, %v7853
    %v7855 = vrot.slane %v7660, %v7854
    %v7856 = vsel %vm6272, %v7855, %v7851
    %v7857 = vlaneseq
    %v7858 = vshrl.u32 %v7857, 7
    %v7859 = vsub.s32 %v6274, %v7858
    %v7860 = vrot.slane %v7663, %v7859
    %v7861 = vsel %vm6279, %v7860, %v7856
    %v7862 = vlaneseq
    %v7863 = vshrl.u32 %v7862, 7
    %v7864 = vsub.s32 %v6220, %v7863
    %v7865 = vrot.slane %v7666, %v7864
    %v7866 = vlaneseq
    %v7867 = vshrl.u32 %v7866, 7
    %v7868 = vsub.s32 %v6225, %v7867
    %v7869 = vrot.slane %v7669, %v7868
    %v7870 = vsel %vm6230, %v7869, %v7865
    %v7871 = vlaneseq
    %v7872 = vshrl.u32 %v7871, 7
    %v7873 = vsub.s32 %v6232, %v7872
    %v7874 = vrot.slane %v7672, %v7873
    %v7875 = vsel %vm6237, %v7874, %v7870
    %v7876 = vlaneseq
    %v7877 = vshrl.u32 %v7876, 7
    %v7878 = vsub.s32 %v6239, %v7877
    %v7879 = vrot.slane %v7675, %v7878
    %v7880 = vsel %vm6244, %v7879, %v7875
    %v7881 = vlaneseq
    %v7882 = vshrl.u32 %v7881, 7
    %v7883 = vsub.s32 %v6246, %v7882
    %v7884 = vrot.slane %v7678, %v7883
    %v7885 = vsel %vm6251, %v7884, %v7880
    %v7886 = vlaneseq
    %v7887 = vshrl.u32 %v7886, 7
    %v7888 = vsub.s32 %v6253, %v7887
    %v7889 = vrot.slane %v7681, %v7888
    %v7890 = vsel %vm6258, %v7889, %v7885
    %v7891 = vlaneseq
    %v7892 = vshrl.u32 %v7891, 7
    %v7893 = vsub.s32 %v6260, %v7892
    %v7894 = vrot.slane %v7684, %v7893
    %v7895 = vsel %vm6265, %v7894, %v7890
    %v7896 = vlaneseq
    %v7897 = vshrl.u32 %v7896, 7
    %v7898 = vsub.s32 %v6267, %v7897
    %v7899 = vrot.slane %v7687, %v7898
    %v7900 = vsel %vm6272, %v7899, %v7895
    %v7901 = vlaneseq
    %v7902 = vshrl.u32 %v7901, 7
    %v7903 = vsub.s32 %v6274, %v7902
    %v7904 = vrot.slane %v7690, %v7903
    %v7905 = vsel %vm6279, %v7904, %v7900
    %v7906 = vlaneseq
    %v7907 = vshrl.u32 %v7906, 7
    %v7908 = vsub.s32 %v6281, %v7907
    %v7909 = vrot.slane %v7693, %v7908
    %v7910 = vsel %vm6286, %v7909, %v7905
    %v7911 = vlaneseq
    %v7912 = vshrl.u32 %v7911, 7
    %v7913 = vsub.s32 %v6288, %v7912
    %v7914 = vrot.slane %v7696, %v7913
    %v7915 = vsel %vm6293, %v7914, %v7910
    %v7916 = vlaneseq
    %v7917 = vshrl.u32 %v7916, 7
    %v7918 = vsub.s32 %v6295, %v7917
    %v7919 = vrot.slane %v7699, %v7918
    %v7920 = vsel %vm6300, %v7919, %v7915
    %v7921 = vlaneseq
    %v7922 = vshrl.u32 %v7921, 7
    %v7923 = vsub.s32 %v6302, %v7922
    %v7924 = vrot.slane %v7702, %v7923
    %v7925 = vsel %vm6307, %v7924, %v7920
    %v7926 = vlaneseq
    %v7927 = vshrl.u32 %v7926, 7
    %v7928 = vsub.s32 %v6309, %v7927
    %v7929 = vrot.slane %v7705, %v7928
    %v7930 = vsel %vm6314, %v7929, %v7925
    %v7931 = vlaneseq
    %v7932 = vshrl.u32 %v7931, 7
    %v7933 = vsub.s32 %v6316, %v7932
    %v7934 = vrot.slane %v7708, %v7933
    %v7935 = vsel %vm6321, %v7934, %v7930
    %v7936 = vlaneseq
    %v7937 = vshrl.u32 %v7936, 7
    %v7938 = vsub.s32 %v6323, %v7937
    %v7939 = vrot.slane %v7711, %v7938
    %v7940 = vsel %vm6328, %v7939, %v7935
    %v7941 = vlaneseq
    %v7942 = vshrl.u32 %v7941, 7
    %v7943 = vsub.s32 %v6220, %v7942
    %v7944 = vrot.slane %v7714, %v7943
    %v7945 = vlaneseq
    %v7946 = vshrl.u32 %v7945, 7
    %v7947 = vsub.s32 %v6225, %v7946
    %v7948 = vrot.slane %v7717, %v7947
    %v7949 = vsel %vm6230, %v7948, %v7944
    %v7950 = vlaneseq
    %v7951 = vshrl.u32 %v7950, 7
    %v7952 = vsub.s32 %v6232, %v7951
    %v7953 = vrot.slane %v7720, %v7952
    %v7954 = vsel %vm6237, %v7953, %v7949
    %v7955 = vlaneseq
    %v7956 = vshrl.u32 %v7955, 7
    %v7957 = vsub.s32 %v6239, %v7956
    %v7958 = vrot.slane %v7723, %v7957
    %v7959 = vsel %vm6244, %v7958, %v7954
    %v7960 = vlaneseq
    %v7961 = vshrl.u32 %v7960, 7
    %v7962 = vsub.s32 %v6246, %v7961
    %v7963 = vrot.slane %v7726, %v7962
    %v7964 = vsel %vm6251, %v7963, %v7959
    %v7965 = vlaneseq
    %v7966 = vshrl.u32 %v7965, 7
    %v7967 = vsub.s32 %v6253, %v7966
    %v7968 = vrot.slane %v7729, %v7967
    %v7969 = vsel %vm6258, %v7968, %v7964
    %v7970 = vlaneseq
    %v7971 = vshrl.u32 %v7970, 7
    %v7972 = vsub.s32 %v6260, %v7971
    %v7973 = vrot.slane %v7732, %v7972
    %v7974 = vsel %vm6265, %v7973, %v7969
    %v7975 = vlaneseq
    %v7976 = vshrl.u32 %v7975, 7
    %v7977 = vsub.s32 %v6267, %v7976
    %v7978 = vrot.slane %v7735, %v7977
    %v7979 = vsel %vm6272, %v7978, %v7974
    %v7980 = vlaneseq
    %v7981 = vshrl.u32 %v7980, 7
    %v7982 = vsub.s32 %v6274, %v7981
    %v7983 = vrot.slane %v7738, %v7982
    %v7984 = vsel %vm6279, %v7983, %v7979
    %v7985 = vsel %vm6497, %v7940, %v7817
    %v7986 = vsel %vm6497, %v7984, %v7861
    %vm7988 = vcmask 588800
    %v7989 = vsel %vm7988, %v7986, 0
    %7991 = vmatprep.subr.mxu0 0.0
    %7992 = vmatpush1.msra.mxu0 %v7507
    %7993 = vmatprep.subr.mxu0 0.0
    %7994 = vmatpush1.msra.mxu0 %v7508
    %7995 = vmatprep.subr.mxu0 0.0
    %7996 = vmatpush1.msra.mxu0 %v7509
    %7997 = vmatprep.subr.mxu0 0.0
    %7998 = vmatpush1.msra.mxu0 %v7510
    %7999 = vmatprep.subr.mxu0 0.0
    %8000 = vmatpush1.msra.mxu0 %v7511
    %8001 = vmatprep.subr.mxu0 0.0
    %8002 = vmatpush1.msra.mxu0 %v7512
    %8003 = vmatprep.subr.mxu0 0.0
    %8004 = vmatpush1.msra.mxu0 %v7513
    %8005 = vmatprep.subr.mxu0 0.0
    %8006 = vmatpush1.msra.mxu0 %v7514
    %8007 = vmatprep.subr.mxu0 0.0
    %8008 = vmatpush1.msra.mxu0 %v7515
    %8009 = vmatprep.subr.mxu0 0.0
    %8010 = vmatpush1.msra.mxu0 %v7516
    %8011 = vmatprep.subr.mxu0 0.0
    %8012 = vmatpush1.msra.mxu0 %v7517
    %8013 = vmatprep.subr.mxu0 0.0
    %8014 = vmatpush1.msra.mxu0 %v7518
    %8015 = vmatprep.subr.mxu0 0.0
    %8016 = vmatpush1.msra.mxu0 %v7519
    %8017 = vmatprep.subr.mxu0 0.0
    %8018 = vmatpush1.msra.mxu0 %v7520
    %8019 = vmatprep.subr.mxu0 0.0
    %8020 = vmatpush1.msra.mxu0 %v7521
    %8021 = vmatprep.subr.mxu0 0.0
    %8022 = vmatpush1.msra.mxu0 %v7522
    %8023 = vmatprep.subr.mxu0 0.0
    %8024 = vmatpush1.msra.mxu0 %v7523
    %8025 = vmatprep.subr.mxu0 0.0
    %8026 = vmatpush1.msra.mxu0 %v7524
    %8027 = vmatprep.subr.mxu0 0.0
    %8028 = vmatpush1.msra.mxu0 %v7525
    %8029 = vmatprep.subr.mxu0 0.0
    %8030 = vmatpush1.msra.mxu0 %v7526
    %8031 = vmatprep.subr.mxu0 0.0
    %8032 = vmatpush1.msra.mxu0 %v7527
    %8033 = vmatprep.subr.mxu0 0.0
    %8034 = vmatpush1.msra.mxu0 %v7528
    %8035 = vmatprep.subr.mxu0 0.0
    %8036 = vmatpush1.msra.mxu0 %v7529
    %8037 = vmatprep.subr.mxu0 0.0
    %8038 = vmatpush1.msra.mxu0 %v7530
    %8039 = vmatprep.subr.mxu0 0.0
    %8040 = vmatpush1.msra.mxu0 %v7531
    %8041 = vmatprep.subr.mxu0 0.0
    %8042 = vmatpush1.msra.mxu0 0.0
    %8043 = vmatprep.subr.mxu0 0.0
    %8044 = vmatpush1.msra.mxu0 0.0
    %8045 = vmatprep.subr.mxu0 0.0
    %8046 = vmatpush1.msra.mxu0 0.0
    %8047 = vmatprep.subr.mxu0 0.0
    %8048 = vmatpush1.msra.mxu0 0.0
    %8049 = vmatprep.subr.mxu0 0.0
    %8050 = vmatpush1.msra.mxu0 0.0
    %8051 = vmatprep.subr.mxu0 0.0
    %8052 = vmatpush1.msra.mxu0 0.0
    %8053 = vmatprep.subr.mxu0 0.0
    %8054 = vmatpush1.msra.mxu0 0.0
    %8055 = vmatprep.mubr.f32.mxu0 %v7989
    %8056 = vmatmul.mubr.f32.gmra.mrb[0].mxu0 %v7985
    %v8057 = vpop.f32.mrb[0].mxu0
    %v8058 = vadd.f32 %v7537, %v8057
    %v8059 = vpop.f32.mrb[0].mxu0
    %8060 = vdwg.mxu0
    %v8061 = vmax.f32 %v8058, 0.0
    %v8062 = vld [vmem:[%s13] sm:$0xff]
    %v8063 = vld [vmem:[%s13 + $0x8] sm:$0xff]
    %v8064 = vld [vmem:[%s13 + $0x10] sm:$0xff]
    %v8065 = vld [vmem:[%s13 + $0x18] sm:$0xff]
    %v8066 = vld [vmem:[%s13 + $0x20] sm:$0xff]
    %v8067 = vld [vmem:[%s13 + $0x28] sm:$0xff]
    %v8068 = vld [vmem:[%s13 + $0x30] sm:$0xff]
    %v8069 = vld [vmem:[%s13 + $0x38] sm:$0xff]
    %v8070 = vld [vmem:[%s13 + $0x40] sm:$0xff]
    %v8071 = vld [vmem:[%s13 + $0x48] sm:$0xff]
    %v8072 = vld [vmem:[%s13 + $0x50] sm:$0xff]
    %v8073 = vld [vmem:[%s13 + $0x58] sm:$0xff]
    %v8074 = vld [vmem:[%s13 + $0x60] sm:$0xff]
    %v8075 = vld [vmem:[%s13 + $0x68] sm:$0xff]
    %v8076 = vld [vmem:[%s13 + $0x70] sm:$0xff]
    %v8077 = vld [vmem:[%s13 + $0x78] sm:$0xff]
    %v8078 = vld [vmem:[%s14] sm:$0x1]
    %v8080 = vlaneseq
    %v8081 = vshrl.u32 %v8080, 7
    %v8082 = vsub.s32 0, %v8081
    %v8083 = vrot.slane %v8078, %v8082
    %8085 = vmatprep.subr.mxu0 0.0
    %8086 = vmatpush1.msra.mxu0 %v8062
    %8087 = vmatprep.subr.mxu0 0.0
    %8088 = vmatpush1.msra.mxu0 %v8063
    %8089 = vmatprep.subr.mxu0 0.0
    %8090 = vmatpush1.msra.mxu0 %v8064
    %8091 = vmatprep.subr.mxu0 0.0
    %8092 = vmatpush1.msra.mxu0 %v8065
    %8093 = vmatprep.subr.mxu0 0.0
    %8094 = vmatpush1.msra.mxu0 %v8066
    %8095 = vmatprep.subr.mxu0 0.0
    %8096 = vmatpush1.msra.mxu0 %v8067
    %8097 = vmatprep.subr.mxu0 0.0
    %8098 = vmatpush1.msra.mxu0 %v8068
    %8099 = vmatprep.subr.mxu0 0.0
    %8100 = vmatpush1.msra.mxu0 %v8069
    %8101 = vmatprep.subr.mxu0 0.0
    %8102 = vmatpush1.msra.mxu0 %v8070
    %8103 = vmatprep.subr.mxu0 0.0
    %8104 = vmatpush1.msra.mxu0 %v8071
    %8105 = vmatprep.subr.mxu0 0.0
    %8106 = vmatpush1.msra.mxu0 %v8072
    %8107 = vmatprep.subr.mxu0 0.0
    %8108 = vmatpush1.msra.mxu0 %v8073
    %8109 = vmatprep.subr.mxu0 0.0
    %8110 = vmatpush1.msra.mxu0 %v8074
    %8111 = vmatprep.subr.mxu0 0.0
    %8112 = vmatpush1.msra.mxu0 %v8075
    %8113 = vmatprep.subr.mxu0 0.0
    %8114 = vmatpush1.msra.mxu0 %v8076
    %8115 = vmatprep.subr.mxu0 0.0
    %8116 = vmatpush1.msra.mxu0 %v8077
    %8117 = vmatprep.subr.mxu0 0.0
    %8118 = vmatpush1.msra.mxu0 0.0
    %8119 = vmatprep.subr.mxu0 0.0
    %8120 = vmatpush1.msra.mxu0 0.0
    %8121 = vmatprep.subr.mxu0 0.0
    %8122 = vmatpush1.msra.mxu0 0.0
    %8123 = vmatprep.subr.mxu0 0.0
    %8124 = vmatpush1.msra.mxu0 0.0
    %8125 = vmatprep.subr.mxu0 0.0
    %8126 = vmatpush1.msra.mxu0 0.0
    %8127 = vmatprep.subr.mxu0 0.0
    %8128 = vmatpush1.msra.mxu0 0.0
    %8129 = vmatprep.subr.mxu0 0.0
    %8130 = vmatpush1.msra.mxu0 0.0
    %8131 = vmatprep.subr.mxu0 0.0
    %8132 = vmatpush1.msra.mxu0 0.0
    %8133 = vmatprep.subr.mxu0 0.0
    %8134 = vmatpush1.msra.mxu0 0.0
    %8135 = vmatprep.subr.mxu0 0.0
    %8136 = vmatpush1.msra.mxu0 0.0
    %8137 = vmatprep.subr.mxu0 0.0
    %8138 = vmatpush1.msra.mxu0 0.0
    %8139 = vmatprep.subr.mxu0 0.0
    %8140 = vmatpush1.msra.mxu0 0.0
    %8141 = vmatprep.subr.mxu0 0.0
    %8142 = vmatpush1.msra.mxu0 0.0
    %8143 = vmatprep.subr.mxu0 0.0
    %8144 = vmatpush1.msra.mxu0 0.0
    %8145 = vmatprep.subr.mxu0 0.0
    %8146 = vmatpush1.msra.mxu0 0.0
    %8147 = vmatprep.subr.mxu0 0.0
    %8148 = vmatpush1.msra.mxu0 0.0
    %8149 = vmatprep.mubr.f32.mxu0 0.0
    %8150 = vmatmul.mubr.f32.gmra.mrb[0].mxu0 %v8061
    %v8151 = vpop.f32.mrb[0].mxu0
    %v8152 = vadd.f32 %v8083, %v8151
    %v8153 = vpop.f32.mrb[0].mxu0
    %8154 = vdwg.mxu0
    %v8155 = vld [vmem:[%s15] sm:$0xff]
    %v8156 = vld [vmem:[%s15 + $0x8] sm:$0xff]
    %v8157 = vld [vmem:[%s15 + $0x10] sm:$0xff]
    %v8158 = vld [vmem:[%s15 + $0x18] sm:$0xff]
    %v8159 = vld [vmem:[%s15 + $0x20] sm:$0xff]
    %v8160 = vld [vmem:[%s15 + $0x28] sm:$0xff]
    %v8161 = vld [vmem:[%s15 + $0x30] sm:$0xff]
    %v8162 = vld [vmem:[%s15 + $0x38] sm:$0xff]
    %v8163 = vld [vmem:[%s16] sm:$0x1]
    %v8165 = vlaneseq
    %v8166 = vshrl.u32 %v8165, 7
    %v8167 = vsub.s32 0, %v8166
    %v8168 = vrot.slane %v8163, %v8167
    %vm8170 = vcmask 523264
    %v8172 = vsel %vm8170, %v8152, 0
    %8174 = vmatprep.subr.mxu0 0.0
    %8175 = vmatpush1.msra.mxu0 %v8155
    %8176 = vmatprep.subr.mxu0 0.0
    %8177 = vmatpush1.msra.mxu0 %v8156
    %8178 = vmatprep.subr.mxu0 0.0
    %8179 = vmatpush1.msra.mxu0 %v8157
    %8180 = vmatprep.subr.mxu0 0.0
    %8181 = vmatpush1.msra.mxu0 %v8158
    %8182 = vmatprep.subr.mxu0 0.0
    %8183 = vmatpush1.msra.mxu0 %v8159
    %8184 = vmatprep.subr.mxu0 0.0
    %8185 = vmatpush1.msra.mxu0 %v8160
    %8186 = vmatprep.subr.mxu0 0.0
    %8187 = vmatpush1.msra.mxu0 %v8161
    %8188 = vmatprep.subr.mxu0 0.0
    %8189 = vmatpush1.msra.mxu0 %v8162
    %8190 = vmatprep.subr.mxu0 0.0
    %8191 = vmatpush1.msra.mxu0 0.0
    %8192 = vmatprep.subr.mxu0 0.0
    %8193 = vmatpush1.msra.mxu0 0.0
    %8194 = vmatprep.subr.mxu0 0.0
    %8195 = vmatpush1.msra.mxu0 0.0
    %8196 = vmatprep.subr.mxu0 0.0
    %8197 = vmatpush1.msra.mxu0 0.0
    %8198 = vmatprep.subr.mxu0 0.0
    %8199 = vmatpush1.msra.mxu0 0.0
    %8200 = vmatprep.subr.mxu0 0.0
    %8201 = vmatpush1.msra.mxu0 0.0
    %8202 = vmatprep.subr.mxu0 0.0
    %8203 = vmatpush1.msra.mxu0 0.0
    %8204 = vmatprep.subr.mxu0 0.0
    %8205 = vmatpush1.msra.mxu0 0.0
    %8206 = vmatprep.subr.mxu0 0.0
    %8207 = vmatpush1.msra.mxu0 0.0
    %8208 = vmatprep.subr.mxu0 0.0
    %8209 = vmatpush1.msra.mxu0 0.0
    %8210 = vmatprep.subr.mxu0 0.0
    %8211 = vmatpush1.msra.mxu0 0.0
    %8212 = vmatprep.subr.mxu0 0.0
    %8213 = vmatpush1.msra.mxu0 0.0
    %8214 = vmatprep.subr.mxu0 0.0
    %8215 = vmatpush1.msra.mxu0 0.0
    %8216 = vmatprep.subr.mxu0 0.0
    %8217 = vmatpush1.msra.mxu0 0.0
    %8218 = vmatprep.subr.mxu0 0.0
    %8219 = vmatpush1.msra.mxu0 0.0
    %8220 = vmatprep.subr.mxu0 0.0
    %8221 = vmatpush1.msra.mxu0 0.0
    %8222 = vmatprep.subr.mxu0 0.0
    %8223 = vmatpush1.msra.mxu0 0.0
    %8224 = vmatprep.subr.mxu0 0.0
    %8225 = vmatpush1.msra.mxu0 0.0
    %8226 = vmatprep.subr.mxu0 0.0
    %8227 = vmatpush1.msra.mxu0 0.0
    %8228 = vmatprep.subr.mxu0 0.0
    %8229 = vmatpush1.msra.mxu0 0.0
    %8230 = vmatprep.subr.mxu0 0.0
    %8231 = vmatpush1.msra.mxu0 0.0
    %8232 = vmatprep.subr.mxu0 0.0
    %8233 = vmatpush1.msra.mxu0 0.0
    %8234 = vmatprep.subr.mxu0 0.0
    %8235 = vmatpush1.msra.mxu0 0.0
    %8236 = vmatprep.subr.mxu0 0.0
    %8237 = vmatpush1.msra.mxu0 0.0
    %8238 = vmatprep.mubr.f32.mxu0 0.0
    %8239 = vmatmul.mubr.f32.gmra.mrb[0].mxu0 %v8172
    %v8240 = vpop.f32.mrb[0].mxu0
    %v8241 = vadd.f32 %v8168, %v8240
    %v8242 = vpop.f32.mrb[0].mxu0
    %8243 = vdwg.mxu0
    %v8244 = vmax.f32 %v8241, 0.0
    %v8245 = vld [vmem:[%s17] sm:$0xff]
    %v8246 = vld [vmem:[%s17 + $0x8] sm:$0xff]
    %v8247 = vld [vmem:[%s17 + $0x10] sm:$0xff]
    %v8248 = vld [vmem:[%s17 + $0x18] sm:$0xff]
    %v8249 = vld [vmem:[%s17 + $0x20] sm:$0xff]
    %v8250 = vld [vmem:[%s17 + $0x28] sm:$0xff]
    %v8251 = vld [vmem:[%s17 + $0x30] sm:$0xff]
    %v8252 = vld [vmem:[%s17 + $0x38] sm:$0xff]
    %v8253 = vld [vmem:[%s17 + $0x40] sm:$0xff]
    %v8254 = vld [vmem:[%s17 + $0x48] sm:$0xff]
    %v8255 = vld [vmem:[%s17 + $0x50] sm:$0xff]
    %v8256 = vld [vmem:[%s17 + $0x58] sm:$0xff]
    %v8257 = vld [vmem:[%s17 + $0x60] sm:$0xff]
    %v8258 = vld [vmem:[%s17 + $0x68] sm:$0xff]
    %v8259 = vld [vmem:[%s17 + $0x70] sm:$0xff]
    %v8260 = vld [vmem:[%s17 + $0x78] sm:$0xff]
    %v8261 = vld [vmem:[%s17 + $0x80] sm:$0xff]
    %v8262 = vld [vmem:[%s17 + $0x88] sm:$0xff]
    %v8263 = vld [vmem:[%s17 + $0x90] sm:$0xff]
    %v8264 = vld [vmem:[%s17 + $0x98] sm:$0xff]
    %v8265 = vld [vmem:[%s17 + $0xa0] sm:$0xff]
    %v8266 = vld [vmem:[%s17 + $0xa8] sm:$0xff]
    %v8267 = vld [vmem:[%s17 + $0xb0] sm:$0xff]
    %v8268 = vld [vmem:[%s17 + $0xb8] sm:$0xff]
    %v8269 = vld [vmem:[%s17 + $0xc0] sm:$0xff]
    %v8270 = vld [vmem:[%s17 + $0xc8] sm:$0xff]
    %v8271 = vld [vmem:[%s17 + $0xd0] sm:$0xff]
    %v8272 = vld [vmem:[%s17 + $0xd8] sm:$0xff]
    %v8273 = vld [vmem:[%s17 + $0xe0] sm:$0xff]
    %v8274 = vld [vmem:[%s17 + $0xe8] sm:$0xff]
    %v8275 = vld [vmem:[%s17 + $0xf0] sm:$0xff]
    %v8276 = vld [vmem:[%s17 + $0xf8] sm:$0xff]
    %v8277 = vld [vmem:[%s18] sm:$0x3]
    %v8279 = vlaneseq
    %v8280 = vshrl.u32 %v8279, 7
    %v8281 = vsub.s32 0, %v8280
    %v8282 = vrot.slane %v8277, %v8281
    %v8283 = vlaneseq
    %v8284 = vshrl.u32 %v8283, 7
    %v8285 = vsub.s32 1, %v8284
    %v8286 = vrot.slane %v8277, %v8285
    %8289 = vmatprep.subr.mxu0 %v8246
    %8290 = vmatpush1.msra.mxu0 %v8245
    %8291 = vmatprep.subr.mxu0 %v8248
    %8292 = vmatpush1.msra.mxu0 %v8247
    %8293 = vmatprep.subr.mxu0 %v8250
    %8294 = vmatpush1.msra.mxu0 %v8249
    %8295 = vmatprep.subr.mxu0 %v8252
    %8296 = vmatpush1.msra.mxu0 %v8251
    %8297 = vmatprep.subr.mxu0 %v8254
    %8298 = vmatpush1.msra.mxu0 %v8253
    %8299 = vmatprep.subr.mxu0 %v8256
    %8300 = vmatpush1.msra.mxu0 %v8255
    %8301 = vmatprep.subr.mxu0 %v8258
    %8302 = vmatpush1.msra.mxu0 %v8257
    %8303 = vmatprep.subr.mxu0 %v8260
    %8304 = vmatpush1.msra.mxu0 %v8259
    %8305 = vmatprep.subr.mxu0 %v8262
    %8306 = vmatpush1.msra.mxu0 %v8261
    %8307 = vmatprep.subr.mxu0 %v8264
    %8308 = vmatpush1.msra.mxu0 %v8263
    %8309 = vmatprep.subr.mxu0 %v8266
    %8310 = vmatpush1.msra.mxu0 %v8265
    %8311 = vmatprep.subr.mxu0 %v8268
    %8312 = vmatpush1.msra.mxu0 %v8267
    %8313 = vmatprep.subr.mxu0 %v8270
    %8314 = vmatpush1.msra.mxu0 %v8269
    %8315 = vmatprep.subr.mxu0 %v8272
    %8316 = vmatpush1.msra.mxu0 %v8271
    %8317 = vmatprep.subr.mxu0 %v8274
    %8318 = vmatpush1.msra.mxu0 %v8273
    %8319 = vmatprep.subr.mxu0 %v8276
    %8320 = vmatpush1.msra.mxu0 %v8275
    %8321 = vmatprep.subr.mxu0 0.0
    %8322 = vmatpush1.msra.mxu0 0.0
    %8323 = vmatprep.subr.mxu0 0.0
    %8324 = vmatpush1.msra.mxu0 0.0
    %8325 = vmatprep.subr.mxu0 0.0
    %8326 = vmatpush1.msra.mxu0 0.0
    %8327 = vmatprep.subr.mxu0 0.0
    %8328 = vmatpush1.msra.mxu0 0.0
    %8329 = vmatprep.subr.mxu0 0.0
    %8330 = vmatpush1.msra.mxu0 0.0
    %8331 = vmatprep.subr.mxu0 0.0
    %8332 = vmatpush1.msra.mxu0 0.0
    %8333 = vmatprep.subr.mxu0 0.0
    %8334 = vmatpush1.msra.mxu0 0.0
    %8335 = vmatprep.subr.mxu0 0.0
    %8336 = vmatpush1.msra.mxu0 0.0
    %8337 = vmatprep.subr.mxu0 0.0
    %8338 = vmatpush1.msra.mxu0 0.0
    %8339 = vmatprep.subr.mxu0 0.0
    %8340 = vmatpush1.msra.mxu0 0.0
    %8341 = vmatprep.subr.mxu0 0.0
    %8342 = vmatpush1.msra.mxu0 0.0
    %8343 = vmatprep.subr.mxu0 0.0
    %8344 = vmatpush1.msra.mxu0 0.0
    %8345 = vmatprep.subr.mxu0 0.0
    %8346 = vmatpush1.msra.mxu0 0.0
    %8347 = vmatprep.subr.mxu0 0.0
    %8348 = vmatpush1.msra.mxu0 0.0
    %8349 = vmatprep.subr.mxu0 0.0
    %8350 = vmatpush1.msra.mxu0 0.0
    %8351 = vmatprep.subr.mxu0 0.0
    %8352 = vmatpush1.msra.mxu0 0.0
    %8353 = vmatprep.mubr.f32.mxu0 0.0
    %8354 = vmatmul.mubr.f32.gmra.mrb[0].mxu0 %v8244
    %v8355 = vpop.f32.mrb[0].mxu0
    %v8356 = vadd.f32 %v8282, %v8355
    %v8357 = vpop.f32.mrb[0].mxu0
    %v8358 = vadd.f32 %v8286, %v8357
    %8359 = vdwg.mxu0
    %v8362 = vcombine.low %v8356, %v8358
    %v8364 = vunpack.c.l.s4 1983009808
    %v8365 = vunpack.c.0.s8 %v8364
    %v8366 = vlaneseq
    %v8367 = vshrl.u32 %v8366, 7
    %v8368 = vsub.s32 %v8365, %v8367
    %v8369 = vrot.slane %v8362, %v8368
    %vm8371 = vcmask 584706
    %vm8372 = vmor %vm8371, %vm6502
    %8373 = vst.msk [vmem:[#allocation15] sm:$0xf] %vm8372, %v8369
    // Predicated region
    $region117: #{att_forward.1} parent=1 // pred_check
      _
    $region118: #{att_forward.1} parent=1 // pred_check_branch
      %8375 = sbr.rel (0) target = $region120
    $region119: #{att_forward.1} parent=1 // pred_region
      %s8376 = sadd.s32 0, 0
      %s8378 = ssub.s32 64, 64
      %8379 = vsyncadd [#allocation4], %s8378
      %s8380 = smul.addr %s8376, 2
      %s8381 = smul.addr %s8380, 32
      %s8382 = scalar_lea.hbm %s19, %s8381
      %s8384 = sshll.u32 [#allocation15], 4
      %s8385 = int_to_ptr.vmem [resolvable:$true] %s8384
      %8387 = dma.vmem_to_hbm [thread:$0]  %s8385, 64, %s8382, [#allocation4]
    $region120: #{att_forward.1} parent=1 // pred_fallthru
      _
    // Predicated region
    $region121: #{att_forward.1} parent=1 // pred_check
      _
    $region122: #{att_forward.1} parent=1 // pred_check_branch
      %8389 = sbr.rel (0) target = $region124
    $region123: #{att_forward.1} parent=1 // pred_region
      _
    $region124: #{att_forward.1} parent=1 // pred_fallthru
      _
    // Predicated region
    $region125: #{att_forward.1} parent=1 // pred_check
      _
    $region126: #{att_forward.1} parent=1 // pred_check_branch
      %8391 = sbr.rel (0) target = $region128
    $region127: #{att_forward.1} parent=1 // pred_region
      %8392 = dma.done [#allocation4], 64
    $region128: #{att_forward.1} parent=1 // pred_fallthru
      _
    // Predicated region
    $region129: #{att_forward.1} parent=1 // pred_check
      _
    $region130: #{att_forward.1} parent=1 // pred_check_branch
      %8394 = sbr.rel (0) target = $region132
    $region131: #{att_forward.1} parent=1 // pred_region
      _
    $region132: #{att_forward.1} parent=1 // pred_fallthru
      _
    %8395 = vsyncpa [#allocation4], 1
    %8396 = vsyncpa [#allocation5], 1
    %8397 = vsyncpa [#allocation7], 1
    %8398 = vsyncpa [#allocation10], 1
    %8399 = vsyncpa [#allocation13], 1

</llo_original>
